<compile_context>
chip_gen: v7x
topology: tpu7x:2x2x1
jax: 0.10.0
libtpu: 0.0.40
codegen_flags: <defaults>
</compile_context>

<pallas_src>
import numpy as np

import jax
import jax.numpy as jnp
from jax.experimental import pallas as pl
from jax.experimental.pallas import tpu as pltpu

C = 512            # channel count hardcoded by the PyTorch module
EPS = 1e-5
NPOOL = 21         # 1 + 4 + 16 pooled positions across the three branches
NTAP = 9           # 3x3 conv taps
KPAD = 192         # 9 * NPOOL = 189, padded to a sublane-friendly full-dim block


# ----------------------------------------------------------------------------
# Precomputed linear operators (trace-time numpy, all tiny).
# ----------------------------------------------------------------------------
def _upsample_matrix(out_size, in_size):
    """align_corners=True bilinear matrix (out, in); F.upsample_bilinear."""
    A = np.zeros((out_size, in_size), dtype=np.float32)
    if in_size == 1:
        A[:, 0] = 1.0
        return A
    for h in range(out_size):
        src = h * (in_size - 1) / (out_size - 1)
        i0 = int(np.floor(src))
        i1 = min(i0 + 1, in_size - 1)
        w1 = src - i0
        A[h, i0] += 1.0 - w1
        A[h, i1] += w1
    return A


def _pool_matrix(s, H, W):
    """AdaptiveAvgPool2d((s,s)) as a (s*s, H*W) matrix (H, W divisible by s)."""
    P = np.zeros((s * s, H * W), dtype=np.float32)
    bh, bw = H // s, W // s
    for i in range(s):
        for j in range(s):
            for di in range(bh):
                for dj in range(bw):
                    p = (i * bh + di) * W + (j * bw + dj)
                    P[i * s + j, p] = 1.0 / (bh * bw)
    return P


def _build_pool_operator_t(H, W):
    """Stacked adaptive-pool operator, transposed: (HW, 21)."""
    P = np.zeros((NPOOL, H * W), dtype=np.float32)
    P[0, :] = 1.0 / (H * W)
    P[1:5, :] = _pool_matrix(2, H, W)
    P[5:21, :] = _pool_matrix(4, H, W)
    return np.ascontiguousarray(P.T)


def _branch_mask_t():
    """Block-diagonal mask (3C, 21): branch channel block x its pool rows."""
    m = np.zeros((NPOOL, 3 * C), dtype=np.float32)
    m[0:1, 0:C] = 1.0
    m[1:5, C:2 * C] = 1.0
    m[5:21, 2 * C:3 * C] = 1.0
    return np.ascontiguousarray(m.T)


def _build_shifted_basis_t(H, W):
    """(KPAD, HW) basis: 9 zero-padded spatial shifts of the stacked upsample."""
    B = np.zeros((H, W, NPOOL), dtype=np.float32)
    B[:, :, 0] = 1.0                                   # 1x1 branch -> constant
    B[:, :, 1:5] = np.einsum('hi,wj->hwij', _upsample_matrix(H, 2),
                             _upsample_matrix(W, 2)).reshape(H, W, 4)
    B[:, :, 5:21] = np.einsum('hi,wj->hwij', _upsample_matrix(H, 4),
                              _upsample_matrix(W, 4)).reshape(H, W, 16)
    Bpad = np.zeros((H + 2, W + 2, NPOOL), dtype=np.float32)   # conv zero pad
    Bpad[1:H + 1, 1:W + 1] = B
    cols = [Bpad[dy:dy + H, dx:dx + W, :].reshape(H * W, NPOOL)
            for dy in range(3) for dx in range(3)]     # tap = dy*3 + dx
    bcat = np.concatenate(cols, axis=1)                # (HW, 189)
    bcat = np.pad(bcat, ((0, 0), (0, KPAD - NTAP * NPOOL)))
    return np.ascontiguousarray(bcat.T)                # (KPAD, HW)


def _pick_tile(total, cap):
    """Largest 128-aligned divisor of `total` that is <= cap (else full dim)."""
    if total <= cap:
        return total
    t = (cap // 128) * 128
    while t >= 128:
        if total % t == 0:
            return t
        t -= 128
    # TODO(synk): no 128-aligned divisor of HW; fall back to the full dim.  For
    # very large, awkwardly-sized feature maps this should become a pl.cdiv
    # grid with a masked tail instead.
    return total


def _vmem_block_bytes(shape, dtype):
    """Conservative VMEM footprint of one buffered block (lane/sublane padded)."""
    itemsize = np.dtype(dtype).itemsize
    sub_mult = max(8, 32 // itemsize)
    if len(shape) == 1:
        return int(-(-shape[0] // 128) * 128 * itemsize)
    lead = int(np.prod(shape[:-2], dtype=np.int64)) if len(shape) > 2 else 1
    sub = -(-shape[-2] // sub_mult) * sub_mult
    lane = -(-shape[-1] // 128) * 128
    return int(lead * sub * lane * itemsize)


# ----------------------------------------------------------------------------
# Kernel 1: pooling reduction over HW + branch 1x1 conv + BN + ReLU (transposed).
#   acc(C,21) += x_tile(C,tp) @ P^T(tp,21)
#   finalize:  ybig^T(3C,21) = mask^T * relu(W_scaled^T(3C,C) @ acc + shift^T)
# ----------------------------------------------------------------------------
def _pool_branch_kernel(x_ref, pt_ref, w_ref, mask_ref, sh_ref, y_ref, acc_ref):
    t = pl.program_id(1)

    @pl.when(t == 0)
    def _():
        acc_ref[...] = jnp.zeros_like(acc_ref)

    acc_ref[...] += jnp.dot(x_ref[0], pt_ref[...],
                            preferred_element_type=jnp.float32)        # (C, 21)

    @pl.when(t == pl.num_programs(1) - 1)
    def _():
        # W_scaled^T has the BN scale folded per output channel (row).
        z = jnp.dot(w_ref[...], acc_ref[...],
                    preferred_element_type=jnp.float32)                # (3C, 21)
        y_ref[0] = mask_ref[...] * jnp.maximum(z + sh_ref[...], 0.0)


def _run_pool_branches(x3, p_t, w_t, mask_t, sh_t):
    N, _, HW = x3.shape
    tp = _pick_tile(HW, 4096)
    nt = HW // tp
    need = (2 * (_vmem_block_bytes((1, C, tp), jnp.float32)
                 + _vmem_block_bytes((tp, NPOOL), jnp.float32)
                 + _vmem_block_bytes((3 * C, C), jnp.float32)
                 + _vmem_block_bytes((3 * C, NPOOL), jnp.float32)
                 + _vmem_block_bytes((3 * C, 1), jnp.float32)
                 + _vmem_block_bytes((1, 3 * C, NPOOL), jnp.float32))
            + _vmem_block_bytes((C, NPOOL), jnp.float32))
    vmem = int(max(need + (8 << 20), 32 << 20))
    return pl.pallas_call(
        _pool_branch_kernel,
        out_shape=jax.ShapeDtypeStruct((N, 3 * C, NPOOL), jnp.float32),
        grid_spec=pltpu.PrefetchScalarGridSpec(
            num_scalar_prefetch=0,
            grid=(N, nt),
            in_specs=[
                pl.BlockSpec((1, C, tp), lambda n, t: (n, 0, t)),
                pl.BlockSpec((tp, NPOOL), lambda n, t: (t, 0)),
                pl.BlockSpec((3 * C, C), lambda n, t: (0, 0)),
                pl.BlockSpec((3 * C, NPOOL), lambda n, t: (0, 0)),
                pl.BlockSpec((3 * C, 1), lambda n, t: (0, 0)),
            ],
            out_specs=pl.BlockSpec((1, 3 * C, NPOOL), lambda n, t: (n, 0, 0)),
            scratch_shapes=[pltpu.VMEM((C, NPOOL), jnp.float32)],
        ),
        compiler_params=pltpu.CompilerParams(
            dimension_semantics=("parallel", "arbitrary"),
            vmem_limit_bytes=vmem),
    )(x3, p_t, w_t, mask_t, sh_t)


# ----------------------------------------------------------------------------
# Kernel 2: fused upsample + 3x3 conv + BN + ReLU, emitting NCHW directly.
#   out^T(C,tm) = relu( mcat^T(C,KPAD) @ bcat^T(KPAD,tm) + conv_shift(C,1) )
# ----------------------------------------------------------------------------
def _spatial_kernel(m_ref, b_ref, sh_ref, o_ref):
    acc = jnp.dot(m_ref[0], b_ref[...],
                  preferred_element_type=jnp.float32)                  # (C, tm)
    o_ref[0] = jnp.maximum(acc + sh_ref[...], 0.0)


def _run_spatial(mcat_t, bcat_t, conv_shift_t):
    N = mcat_t.shape[0]
    HW = bcat_t.shape[1]
    tm = _pick_tile(HW, 4096)
    nm = HW // tm
    need = 2 * (_vmem_block_bytes((1, C, KPAD), jnp.bfloat16)
                + _vmem_block_bytes((KPAD, tm), jnp.bfloat16)
                + _vmem_block_bytes((C, 1), jnp.float32)
                + _vmem_block_bytes((1, C, tm), jnp.float32))
    vmem = int(max(need + (8 << 20), 32 << 20))
    return pl.pallas_call(
        _spatial_kernel,
        out_shape=jax.ShapeDtypeStruct((N, C, HW), jnp.float32),
        grid_spec=pltpu.PrefetchScalarGridSpec(
            num_scalar_prefetch=0,
            # Image axis innermost: the bcat^T tile is DMA'd once per HW tile
            # (not once per image); the tiny per-image mcat^T is re-fetched.
            grid=(nm, N),
            in_specs=[
                pl.BlockSpec((1, C, KPAD), lambda m, n: (n, 0, 0)),
                pl.BlockSpec((KPAD, tm), lambda m, n: (0, m)),
                pl.BlockSpec((C, 1), lambda m, n: (0, 0)),
            ],
            out_specs=pl.BlockSpec((1, C, tm), lambda m, n: (n, 0, m)),
        ),
        compiler_params=pltpu.CompilerParams(
            dimension_semantics=("parallel", "parallel"),
            vmem_limit_bytes=vmem),
    )(mcat_t, bcat_t, conv_shift_t)


# ----------------------------------------------------------------------------
# Wrapper: NCHW in, NCHW out, no layout transposes of the large tensors.
# ----------------------------------------------------------------------------
def sppm_forward(x_nchw, params):
    N, cin, H, W = x_nchw.shape
    assert cin == C and H % 4 == 0 and W % 4 == 0
    HW = H * W
    x3 = x_nchw.reshape(N, C, HW)                       # free reshape, stays NCHW

    # Trace-time constants (all small).
    p_t = jnp.asarray(_build_pool_operator_t(H, W))                    # (HW, 21)
    mask_t = jnp.asarray(_branch_mask_t())                             # (3C, 21)
    bcat_t = jnp.asarray(_build_shifted_basis_t(H, W)).astype(jnp.bfloat16)  # (192, HW)

    # Branch 1x1 conv weights with BN scale folded, transposed to (3C, C).
    wbig = jnp.concatenate(params['branch_w'], axis=1)                 # (C, 3C)
    scbig = jnp.concatenate(params['branch_scale'], axis=1)            # (1, 3C)
    shbig = jnp.concatenate(params['branch_shift'], axis=1)            # (1, 3C)
    w_t = (wbig * scbig).T                                             # (3C, C)
    sh_t = shbig.reshape(3 * C, 1)                                     # (3C, 1)

    # Kernel 1: read x once (f32) -> 21 pooled / 1x1-conv / BN / ReLU rows.
    ybig_t = _run_pool_branches(x3, p_t, w_t, mask_t, sh_t)            # (N, 3C, 21)

    # Tiny projection of the 3x3 conv (+ folded BN scale) onto the 21 basis
    # rows; bf16 MXU operands, result is consumed in bf16 by kernel 2 anyway.
    m = jnp.einsum('nck,tcd->ndtk', ybig_t.astype(jnp.bfloat16),
                   params['conv_w'].astype(jnp.bfloat16))              # (N, C, 9, 21)
    m = m.astype(jnp.float32) * params['conv_scale'].reshape(1, C, 1, 1)
    mcat_t = m.reshape(N, C, NTAP * NPOOL)
    mcat_t = jnp.pad(mcat_t, ((0, 0), (0, 0), (0, KPAD - NTAP * NPOOL)))
    mcat_t = mcat_t.astype(jnp.bfloat16)                               # (N, C, 192)

    # Kernel 2: per-pixel fused upsample + 3x3 conv + BN + ReLU, NCHW output.
    out3 = _run_spatial(mcat_t, bcat_t, params['conv_shift'].reshape(C, 1))
    return out3.reshape(N, C, H, W)


# ----------------------------------------------------------------------------
# Pure-JAX reference (independent path via lax.conv) for a sanity check.
# ----------------------------------------------------------------------------
def sppm_reference(x_nchw, params):
    N, _, H, W = x_nchw.shape
    hp = jax.lax.Precision.HIGHEST
    x = jnp.transpose(x_nchw, (0, 2, 3, 1)).reshape(N, H * W, C)
    Ps = [jnp.full((1, H * W), 1.0 / (H * W), jnp.float32),
          jnp.asarray(_pool_matrix(2, H, W)),
          jnp.asarray(_pool_matrix(4, H, W))]
    Bs = [jnp.ones((H * W, 1), jnp.float32),
          jnp.asarray(np.einsum('hi,wj->hwij', _upsample_matrix(H, 2),
                                _upsample_matrix(W, 2)).reshape(H * W, 4)),
          jnp.asarray(np.einsum('hi,wj->hwij', _upsample_matrix(H, 4),
                                _upsample_matrix(W, 4)).reshape(H * W, 16))]
    branches = []
    for b in range(3):
        pooled = jnp.einsum('kp,npc->nkc', Ps[b], x, precision=hp)
        z = jnp.einsum('nkc,cd->nkd', pooled, params['branch_w'][b], precision=hp)
        y = jnp.maximum(z * params['branch_scale'][b] + params['branch_shift'][b], 0.0)
        branches.append(jnp.einsum('pk,nkc->npc', Bs[b], y, precision=hp))
    cat = jnp.concatenate(branches, axis=-1).reshape(N, H, W, 3 * C)
    w_hwio = params['conv_w'].reshape(3, 3, 3 * C, C)
    conv = jax.lax.conv_general_dilated(cat, w_hwio, (1, 1), 'SAME',
                                        dimension_numbers=('NHWC', 'HWIO', 'NHWC'),
                                        precision=hp)
    out = jnp.maximum(conv * params['conv_scale'].reshape(1, 1, 1, C)
                      + params['conv_shift'].reshape(1, 1, 1, C), 0.0)
    return jnp.transpose(out, (0, 3, 1, 2))


# ----------------------------------------------------------------------------
# Deterministic synthetic parameters (BatchNorm folded into scale/shift).
# ----------------------------------------------------------------------------
def init_params(key):
    keys = jax.random.split(key, 32)
    ki = 0

    def nrm(shape, scale):
        nonlocal ki
        k = keys[ki]; ki += 1
        return scale * jax.random.normal(k, shape, jnp.float32)

    def uni(shape, lo, hi):
        nonlocal ki
        k = keys[ki]; ki += 1
        return jax.random.uniform(k, shape, jnp.float32, lo, hi)

    branch_w, branch_scale, branch_shift = [], [], []
    for _ in range(3):
        w = nrm((C, C), 0.05)                       # 1x1 conv weight, (Cin, Cout)
        gamma = 1.0 + nrm((C,), 0.1)
        beta = nrm((C,), 0.1)
        mean = nrm((C,), 0.1)
        var = uni((C,), 0.5, 1.5)
        scale = gamma / jnp.sqrt(var + EPS)
        shift = beta - mean * scale
        branch_w.append(w)
        branch_scale.append(scale.reshape(1, C))
        branch_shift.append(shift.reshape(1, C))

    conv_w = nrm((NTAP, 3 * C, C), 0.02)            # 3x3 conv: (tap, Cin, Cout)
    conv_b = nrm((C,), 0.1)
    gamma = 1.0 + nrm((C,), 0.1)
    beta = nrm((C,), 0.1)
    mean = nrm((C,), 0.1)
    var = uni((C,), 0.5, 1.5)
    conv_scale = gamma / jnp.sqrt(var + EPS)
    conv_shift = beta - mean * conv_scale + conv_b * conv_scale

    return dict(branch_w=branch_w, branch_scale=branch_scale,
                branch_shift=branch_shift, conv_w=conv_w,
                conv_scale=conv_scale.reshape(1, C),
                conv_shift=conv_shift.reshape(1, C))


if __name__ == "__main__":
    key = jax.random.PRNGKey(0)
    kx, kp = jax.random.split(key)
    # Small spatial size / batch; channels = 512 as hardcoded by the module.
    x = jax.random.normal(kx, (2, C, 16, 16), jnp.float32)
    params = init_params(kp)

    fwd = jax.jit(sppm_forward)
    out = jax.block_until_ready(fwd(x, params))
    assert out.shape == (2, C, 16, 16) and out.dtype == jnp.float32

    ref = jax.block_until_ready(sppm_reference(x, params))
    err = float(jnp.max(jnp.abs(out - ref)))
    scale = float(jnp.max(jnp.abs(ref))) + 1e-6
    # Tolerance documents the bf16 MXU operands used for the cat/3x3-conv stage
    # (inference-grade numerics); the pooling/1x1-conv stage stays f32.
    assert err <= 2.5e-2 * scale + 1e-3, f"mismatch: max abs err {err} (scale {scale})"

    print("KERNEL_OK")
</pallas_src>

<mosaic_0001>
module attributes {stable_mosaic.version = 11 : i64} {
  func.func @_pool_branch_kernel(%arg0: i32, %arg1: i32, %arg2: memref<1x512x256xf32, #tpu.memory_space<vmem>>, %arg3: memref<256x21xf32, #tpu.memory_space<vmem>>, %arg4: memref<1536x512xf32, #tpu.memory_space<vmem>>, %arg5: memref<1536x21xf32, #tpu.memory_space<vmem>>, %arg6: memref<1536x1xf32, #tpu.memory_space<vmem>>, %arg7: memref<1x1536x21xf32, #tpu.memory_space<vmem>>, %arg8: memref<512x21xf32, #tpu.memory_space<vmem>>) attributes {dimension_semantics = [#tpu.dimension_semantics<parallel>, #tpu.dimension_semantics<arbitrary>], iteration_bounds = array<i64: 2, 1>, scalar_prefetch = 0 : i64, scratch_operands = 1 : i64, tpu.core_type = #tpu.core_type<tc>, window_params = [{transform_indices = @transform_0, window_bounds = array<i64: 1, 512, 256>}, {transform_indices = @transform_1, window_bounds = array<i64: 256, 21>}, {pipeline_mode = #tpu.pipeline_mode<synchronous>, transform_indices = @transform_2, window_bounds = array<i64: 1536, 512>}, {pipeline_mode = #tpu.pipeline_mode<synchronous>, transform_indices = @transform_3, window_bounds = array<i64: 1536, 21>}, {pipeline_mode = #tpu.pipeline_mode<synchronous>, transform_indices = @transform_4, window_bounds = array<i64: 1536, 1>}, {transform_indices = @transform_5, window_bounds = array<i64: 1, 1536, 21>}]} {
    %c0_i32 = arith.constant 0 : i32
    %0 = arith.cmpi eq, %arg1, %c0_i32 : i32
    %1 = arith.extui %0 : i1 to i32
    %c0_i32_0 = arith.constant 0 : i32
    %2 = arith.cmpi ne, %1, %c0_i32_0 : i32
    scf.if %2 {
      %cst_11 = arith.constant 0.000000e+00 : f32
      %13 = vector.broadcast %cst_11 : f32 to vector<512x21xf32>
      %c0_12 = arith.constant 0 : index
      %c0_13 = arith.constant 0 : index
      %14 = vector.load %arg8[%c0_12, %c0_13] : memref<512x21xf32, #tpu.memory_space<vmem>>, vector<512x21xf32>
      tpu.vector_store %arg8[%c0_12, %c0_13], %13 {strides = array<i32>} : memref<512x21xf32, #tpu.memory_space<vmem>>, vector<512x21xf32>,
    } else {
    }
    %c0 = arith.constant 0 : index
    %c0_1 = arith.constant 0 : index
    %3 = vector.load %arg8[%c0, %c0_1] : memref<512x21xf32, #tpu.memory_space<vmem>>, vector<512x21xf32>
    %c0_2 = arith.constant 0 : index
    %c0_3 = arith.constant 0 : index
    %c0_4 = arith.constant 0 : index
    %4 = vector.load %arg2[%c0_2, %c0_3, %c0_4] : memref<1x512x256xf32, #tpu.memory_space<vmem>>, vector<1x512x256xf32>
    %5 = vector.shape_cast %4 : vector<1x512x256xf32> to vector<512x256xf32>
    %c0_5 = arith.constant 0 : index
    %c0_6 = arith.constant 0 : index
    %6 = vector.load %arg3[%c0_5, %c0_6] : memref<256x21xf32, #tpu.memory_space<vmem>>, vector<256x21xf32>
    %cst = arith.constant dense<0.000000e+00> : vector<512x21xf32>
    %7 = tpu.matmul %5, %6, %cst {dimension_numbers = #tpu.dot_dimension_numbers<[1], [0], [0], [1], [0, 0, 1, 1], [], []>} : vector<512x256xf32>, vector<256x21xf32>, vector<512x21xf32> -> vector<512x21xf32>
    %8 = arith.addf %3, %7 : vector<512x21xf32>
    %c0_7 = arith.constant 0 : index
    %c0_8 = arith.constant 0 : index
    %9 = vector.load %arg8[%c0_7, %c0_8] : memref<512x21xf32, #tpu.memory_space<vmem>>, vector<512x21xf32>
    tpu.vector_store %arg8[%c0_7, %c0_8], %8 {strides = array<i32>} : memref<512x21xf32, #tpu.memory_space<vmem>>, vector<512x21xf32>,
    %c0_i32_9 = arith.constant 0 : i32
    %10 = arith.cmpi eq, %arg1, %c0_i32_9 : i32
    %11 = arith.extui %10 : i1 to i32
    %c0_i32_10 = arith.constant 0 : i32
    %12 = arith.cmpi ne, %11, %c0_i32_10 : i32
    scf.if %12 {
      %c0_11 = arith.constant 0 : index
      %c0_12 = arith.constant 0 : index
      %13 = vector.load %arg4[%c0_11, %c0_12] : memref<1536x512xf32, #tpu.memory_space<vmem>>, vector<1536x512xf32>
      %c0_13 = arith.constant 0 : index
      %c0_14 = arith.constant 0 : index
      %14 = vector.load %arg8[%c0_13, %c0_14] : memref<512x21xf32, #tpu.memory_space<vmem>>, vector<512x21xf32>
      %cst_15 = arith.constant dense<0.000000e+00> : vector<1536x21xf32>
      %15 = tpu.matmul %13, %14, %cst_15 {dimension_numbers = #tpu.dot_dimension_numbers<[1], [0], [0], [1], [0, 0, 1, 1], [], []>} : vector<1536x512xf32>, vector<512x21xf32>, vector<1536x21xf32> -> vector<1536x21xf32>
      %c0_16 = arith.constant 0 : index
      %c0_17 = arith.constant 0 : index
      %16 = vector.load %arg5[%c0_16, %c0_17] : memref<1536x21xf32, #tpu.memory_space<vmem>>, vector<1536x21xf32>
      %c0_18 = arith.constant 0 : index
      %c0_19 = arith.constant 0 : index
      %17 = vector.load %arg6[%c0_18, %c0_19] : memref<1536x1xf32, #tpu.memory_space<vmem>>, vector<1536x1xf32>
      %18 = vector.broadcast %17 : vector<1536x1xf32> to vector<1536x21xf32>
      %19 = arith.addf %15, %18 : vector<1536x21xf32>
      %cst_20 = arith.constant 0.000000e+00 : f32
      %20 = vector.broadcast %cst_20 : f32 to vector<1536x21xf32>
      %21 = arith.maximumf %19, %20 : vector<1536x21xf32>
      %22 = arith.mulf %16, %21 : vector<1536x21xf32>
      %c0_21 = arith.constant 0 : index
      %c0_22 = arith.constant 0 : index
      %c0_23 = arith.constant 0 : index
      %23 = vector.load %arg7[%c0_21, %c0_22, %c0_23] : memref<1x1536x21xf32, #tpu.memory_space<vmem>>, vector<1x1536x21xf32>
      %24 = vector.shape_cast %23 : vector<1x1536x21xf32> to vector<1536x21xf32>
      %25 = vector.shape_cast %22 : vector<1536x21xf32> to vector<1x1536x21xf32>
      tpu.vector_store %arg7[%c0_21, %c0_22, %c0_23], %25 {strides = array<i32>} : memref<1x1536x21xf32, #tpu.memory_space<vmem>>, vector<1x1536x21xf32>,
    } else {
    }
    return
  }
  func.func @transform_0(%arg0: i32, %arg1: i32) -> (i32, i32, i32) {
    %c0_i32 = arith.constant 0 : i32
    %c0_i32_0 = arith.constant 0 : i32
    return %arg0, %c0_i32, %arg1 : i32, i32, i32
  }
  func.func @transform_1(%arg0: i32, %arg1: i32) -> (i32, i32) {
    %c0_i32 = arith.constant 0 : i32
    %c0_i32_0 = arith.constant 0 : i32
    return %arg1, %c0_i32 : i32, i32
  }
  func.func @transform_2(%arg0: i32, %arg1: i32) -> (i32, i32) {
    %c0_i32 = arith.constant 0 : i32
    %c0_i32_0 = arith.constant 0 : i32
    %c0_i32_1 = arith.constant 0 : i32
    return %c0_i32, %c0_i32_0 : i32, i32
  }
  func.func @transform_3(%arg0: i32, %arg1: i32) -> (i32, i32) {
    %c0_i32 = arith.constant 0 : i32
    %c0_i32_0 = arith.constant 0 : i32
    %c0_i32_1 = arith.constant 0 : i32
    return %c0_i32, %c0_i32_0 : i32, i32
  }
  func.func @transform_4(%arg0: i32, %arg1: i32) -> (i32, i32) {
    %c0_i32 = arith.constant 0 : i32
    %c0_i32_0 = arith.constant 0 : i32
    %c0_i32_1 = arith.constant 0 : i32
    return %c0_i32, %c0_i32_0 : i32, i32
  }
  func.func @transform_5(%arg0: i32, %arg1: i32) -> (i32, i32, i32) {
    %c0_i32 = arith.constant 0 : i32
    %c0_i32_0 = arith.constant 0 : i32
    %c0_i32_1 = arith.constant 0 : i32
    return %arg0, %c0_i32, %c0_i32_0 : i32, i32, i32
  }
}

module attributes {stable_mosaic.version = 11 : i64} {
  func.func @_spatial_kernel(%arg0: i32, %arg1: i32, %arg2: memref<1x512x192xbf16, #tpu.memory_space<vmem>>, %arg3: memref<192x256xbf16, #tpu.memory_space<vmem>>, %arg4: memref<512x1xf32, #tpu.memory_space<vmem>>, %arg5: memref<1x512x256xf32, #tpu.memory_space<vmem>>) attributes {dimension_semantics = [#tpu.dimension_semantics<parallel>, #tpu.dimension_semantics<parallel>], iteration_bounds = array<i64: 1, 2>, scalar_prefetch = 0 : i64, scratch_operands = 0 : i64, tpu.core_type = #tpu.core_type<tc>, window_params = [{transform_indices = @transform_0, window_bounds = array<i64: 1, 512, 192>}, {transform_indices = @transform_1, window_bounds = array<i64: 192, 256>}, {pipeline_mode = #tpu.pipeline_mode<synchronous>, transform_indices = @transform_2, window_bounds = array<i64: 512, 1>}, {transform_indices = @transform_3, window_bounds = array<i64: 1, 512, 256>}]} {
    %c0 = arith.constant 0 : index
    %c0_0 = arith.constant 0 : index
    %c0_1 = arith.constant 0 : index
    %0 = vector.load %arg2[%c0, %c0_0, %c0_1] : memref<1x512x192xbf16, #tpu.memory_space<vmem>>, vector<1x512x192xbf16>
    %1 = vector.shape_cast %0 : vector<1x512x192xbf16> to vector<512x192xbf16>
    %c0_2 = arith.constant 0 : index
    %c0_3 = arith.constant 0 : index
    %2 = vector.load %arg3[%c0_2, %c0_3] : memref<192x256xbf16, #tpu.memory_space<vmem>>, vector<192x256xbf16>
    %cst = arith.constant dense<0.000000e+00> : vector<512x256xf32>
    %3 = tpu.matmul %1, %2, %cst {dimension_numbers = #tpu.dot_dimension_numbers<[1], [0], [0], [1], [0, 0, 1, 1], [], []>} : vector<512x192xbf16>, vector<192x256xbf16>, vector<512x256xf32> -> vector<512x256xf32>
    %c0_4 = arith.constant 0 : index
    %c0_5 = arith.constant 0 : index
    %4 = vector.load %arg4[%c0_4, %c0_5] : memref<512x1xf32, #tpu.memory_space<vmem>>, vector<512x1xf32>
    %5 = vector.broadcast %4 : vector<512x1xf32> to vector<512x256xf32>
    %6 = arith.addf %3, %5 : vector<512x256xf32>
    %cst_6 = arith.constant 0.000000e+00 : f32
    %7 = vector.broadcast %cst_6 : f32 to vector<512x256xf32>
    %8 = arith.maximumf %6, %7 : vector<512x256xf32>
    %c0_7 = arith.constant 0 : index
    %c0_8 = arith.constant 0 : index
    %c0_9 = arith.constant 0 : index
    %9 = vector.load %arg5[%c0_7, %c0_8, %c0_9] : memref<1x512x256xf32, #tpu.memory_space<vmem>>, vector<1x512x256xf32>
    %10 = vector.shape_cast %9 : vector<1x512x256xf32> to vector<512x256xf32>
    %11 = vector.shape_cast %8 : vector<512x256xf32> to vector<1x512x256xf32>
    tpu.vector_store %arg5[%c0_7, %c0_8, %c0_9], %11 {strides = array<i32>} : memref<1x512x256xf32, #tpu.memory_space<vmem>>, vector<1x512x256xf32>,
    return
  }
  func.func @transform_0(%arg0: i32, %arg1: i32) -> (i32, i32, i32) {
    %c0_i32 = arith.constant 0 : i32
    %c0_i32_0 = arith.constant 0 : i32
    %c0_i32_1 = arith.constant 0 : i32
    return %arg1, %c0_i32, %c0_i32_0 : i32, i32, i32
  }
  func.func @transform_1(%arg0: i32, %arg1: i32) -> (i32, i32) {
    %c0_i32 = arith.constant 0 : i32
    %c0_i32_0 = arith.constant 0 : i32
    return %c0_i32, %arg0 : i32, i32
  }
  func.func @transform_2(%arg0: i32, %arg1: i32) -> (i32, i32) {
    %c0_i32 = arith.constant 0 : i32
    %c0_i32_0 = arith.constant 0 : i32
    %c0_i32_1 = arith.constant 0 : i32
    return %c0_i32, %c0_i32_0 : i32, i32
  }
  func.func @transform_3(%arg0: i32, %arg1: i32) -> (i32, i32, i32) {
    %c0_i32 = arith.constant 0 : i32
    %c0_i32_0 = arith.constant 0 : i32
    return %arg1, %c0_i32, %arg0 : i32, i32, i32
  }
}

</mosaic_0001>

<llo_original>
// kernel: sppm_forward.3
$region0: #{sppm_forward.3}
  #allocation0 [shape = 'u32[]', space=smem, size = 0x4, offset = 0x4, fixed_abs, tag = 'smem constant byte address 0x4 - core index']
  #allocation1 [shape = 'u32[144,128]{1,0:T(1,128)}', space=vmem, size = 0x12000, scoped, tag = 'internal scratch']
  %s0 = inlined_call_operand.vmem [shape: bf16[2,512,192], index: 0, kind: input, shape index: {}]
  %s1 = inlined_call_operand.vmem [shape: bf16[192,256], index: 1, kind: input, shape index: {}]
  %s2 = inlined_call_operand.vmem [shape: f32[512,1], index: 2, kind: input, shape index: {}]
  %s3 = inlined_call_operand.vmem [shape: f32[2,512,256], index: 3, kind: output, shape index: {}]
  %s4 = sld [smem:[#allocation0]]
  $region45: #{sppm_forward.3} parent=0
    _
  %s6 = ssub.s32 1, %s4
  %s7 = scalar_select 0, %s6, %s4
  loop: start=0, step=1, limit=4
  $region2: #{sppm_forward.3} parent=0 // loop_pre_header
    _
  $region3: #{sppm_forward.3} parent=0 // loop_header
    %s9 = sphi 0, %s13
    %p10 = scmp.ge.s32.totalorder %s9, 4
    %s16 = sphi 0, %s28
    %s17 = sphi 0, %s24
    %s18 = sphi 0, %s16
    %s19 = sphi 0, %s17
    %s20 = sphi 0, %s18
    %s21 = sphi 0, %s19
    %s31 = sphi 0, %s33
    %s34 = sphi 0, %s31
    %s35 = sphi 0, %s34
    %s51 = sphi 0, %s35
    %s57 = sphi 0, %s59
    %s60 = sphi 0, %s57
    %s61 = sphi 0, %s60
    %s77 = sphi 0, %s61
    %s81 = sphi 0, %s81
    %s83 = sphi 0, %s81
    %s84 = sphi 0, %s83
    %s98 = sphi 0, %s84
    %s106 = sphi 0, %s108
    %s109 = sphi 0, %s106
    %s110 = sphi 0, %s109
    %s126 = sphi 0, %s110
  $region4: #{sppm_forward.3} parent=0 // loop_header_branch
    %12 = sbr.rel (%p10) target = $region8
  $region5: #{sppm_forward.3} parent=0 // loop_body
    %s14 = ssub.s32 %s9, 1
    %s15 = ssub.s32 %s9, 2
    %s22 = sadd.s32 1, %s17
    %p23 = scmp.ge.s32.totalorder %s22, 2
    %s24 = scalar_select %p23, 0, %s22
    %s25 = sadd.s32 1, %s16
    %s26 = scalar_select %p23, %s25, %s16
    %p27 = scmp.ge.s32.totalorder %s26, 1
    %s28 = scalar_select %p27, 0, %s26
    %s29 = ssub.s32 %s17, %s24
    %p30 = scmp.eq.s32.totalorder %s29, 0
    %s32 = sadd.s32 %s31, 1
    %s33 = scalar_select %p30, %s31, %s32
    %p36 = pneg %p30
    %p37 = scmp.eq.s32.totalorder %s9, 1
    %p38 = por %p36, %p37
    %p39 = scmp.ne.s32.totalorder %s31, %s34
    %p40 = scmp.eq.s32.totalorder %s9, 0
    %p41 = por %p39, %p40
    %p42 = scmp.ne.s32.totalorder %s31, %s34
    %p43 = scmp.eq.s32.totalorder %s14, 1
    %p44 = por %p42, %p43
    %p45 = scmp.ne.s32.totalorder %s34, %s35
    %p46 = scmp.eq.s32.totalorder %s14, 0
    %p47 = por %p45, %p46
    %p48 = scmp.ne.s32.totalorder %s34, %s35
    %p49 = scmp.eq.s32.totalorder %s15, 1
    %p50 = por %p48, %p49
    %p52 = scmp.ne.s32.totalorder %s35, %s51
    %p53 = scmp.eq.s32.totalorder %s15, 0
    %p54 = por %p52, %p53
    %s55 = ssub.s32 %s16, %s28
    %p56 = scmp.eq.s32.totalorder %s55, 0
    %s58 = sadd.s32 %s57, 1
    %s59 = scalar_select %p56, %s57, %s58
    %p62 = pneg %p56
    %p63 = scmp.eq.s32.totalorder %s9, 1
    %p64 = por %p62, %p63
    %p65 = scmp.ne.s32.totalorder %s57, %s60
    %p66 = scmp.eq.s32.totalorder %s9, 0
    %p67 = por %p65, %p66
    %p68 = scmp.ne.s32.totalorder %s57, %s60
    %p69 = scmp.eq.s32.totalorder %s14, 1
    %p70 = por %p68, %p69
    %p71 = scmp.ne.s32.totalorder %s60, %s61
    %p72 = scmp.eq.s32.totalorder %s14, 0
    %p73 = por %p71, %p72
    %p74 = scmp.ne.s32.totalorder %s60, %s61
    %p75 = scmp.eq.s32.totalorder %s15, 1
    %p76 = por %p74, %p75
    %p78 = scmp.ne.s32.totalorder %s61, %s77
    %p79 = scmp.eq.s32.totalorder %s15, 0
    %p80 = por %p78, %p79
    %s82 = sadd.s32 %s81, 1
    %p85 = scmp.eq.s32.totalorder %s9, 1
    %p86 = scmp.ne.s32.totalorder %s81, %s83
    %p87 = scmp.eq.s32.totalorder %s9, 0
    %p88 = por %p86, %p87
    %p89 = scmp.ne.s32.totalorder %s81, %s83
    %p90 = scmp.eq.s32.totalorder %s14, 1
    %p91 = por %p89, %p90
    %p92 = scmp.ne.s32.totalorder %s83, %s84
    %p93 = scmp.eq.s32.totalorder %s14, 0
    %p94 = por %p92, %p93
    %p95 = scmp.ne.s32.totalorder %s83, %s84
    %p96 = scmp.eq.s32.totalorder %s15, 1
    %p97 = por %p95, %p96
    %p99 = scmp.ne.s32.totalorder %s84, %s98
    %p100 = scmp.eq.s32.totalorder %s15, 0
    %p101 = por %p99, %p100
    %s102 = ssub.s32 %s17, %s24
    %s103 = ssub.s32 %s16, %s28
    %s104 = sor.u32 %s102, %s103
    %p105 = scmp.eq.s32.totalorder %s104, 0
    %s107 = sadd.s32 %s106, 1
    %s108 = scalar_select %p105, %s106, %s107
    %p111 = pneg %p105
    %p112 = scmp.eq.s32.totalorder %s9, 1
    %p113 = por %p111, %p112
    %p114 = scmp.ne.s32.totalorder %s106, %s109
    %p115 = scmp.eq.s32.totalorder %s9, 0
    %p116 = por %p114, %p115
    %p117 = scmp.ne.s32.totalorder %s106, %s109
    %p118 = scmp.eq.s32.totalorder %s14, 1
    %p119 = por %p117, %p118
    %p120 = scmp.ne.s32.totalorder %s109, %s110
    %p121 = scmp.eq.s32.totalorder %s14, 0
    %p122 = por %p120, %p121
    %p123 = scmp.ne.s32.totalorder %s109, %s110
    %p124 = scmp.eq.s32.totalorder %s15, 1
    %p125 = por %p123, %p124
    %p127 = scmp.ne.s32.totalorder %s110, %s126
    %p128 = scmp.eq.s32.totalorder %s15, 0
    %p129 = por %p127, %p128
    %p130 = scmp.le.s32.totalorder 1, %s9
    %p131 = scmp.lt.s32.totalorder %s9, 3
    %p132 = pnand %p130, %p131
    %p133 = pneg %p132
    // Predicated region
    $region9: #{sppm_forward.3} parent=5 // pred_check
      _
    $region10: #{sppm_forward.3} parent=5 // pred_check_branch
      %135 = sbr.rel (%p132) target = $region12
    $region11: #{sppm_forward.3} parent=5 // pred_region
      %s136 = ssub.s32 %s9, 1
      // Predicated region
      $region13: #{sppm_forward.3} parent=11 // pred_check
        %p137 = pneg %p73
      $region14: #{sppm_forward.3} parent=11 // pred_check_branch
        %139 = sbr.rel (%p137) target = $region16
      $region15: #{sppm_forward.3} parent=11 // pred_region
        %s140 = smul.u32 2, %s18
        %p141 = scmp.lt.s32.totalorder %s140, 1
        %s142 = scalar_select %p141, %s140, 1
        %s143 = smul.addr %s142, 4
        %s144 = scalar_lea.vmem %s1, %s143
        %s145 = smul.u32 2, %s18
      $region16: #{sppm_forward.3} parent=11 // pred_fallthru
        _
      // Predicated region
      $region17: #{sppm_forward.3} parent=11 // pred_check
        %p146 = pneg %p94
      $region18: #{sppm_forward.3} parent=11 // pred_check_branch
        %148 = sbr.rel (%p146) target = $region20
      $region19: #{sppm_forward.3} parent=11 // pred_region
        _
      $region20: #{sppm_forward.3} parent=11 // pred_fallthru
        _
    $region12: #{sppm_forward.3} parent=5 // pred_fallthru
      _
    %p149 = scmp.lt.s32.totalorder %s9, 2
    // Predicated region
    $region21: #{sppm_forward.3} parent=5 // pred_check
      %p150 = pneg %p149
    $region22: #{sppm_forward.3} parent=5 // pred_check_branch
      %152 = sbr.rel (%p150) target = $region24
    $region23: #{sppm_forward.3} parent=5 // pred_region
      // Predicated region
      $region25: #{sppm_forward.3} parent=23 // pred_check
        %p153 = pneg %p41
      $region26: #{sppm_forward.3} parent=23 // pred_check_branch
        %155 = sbr.rel (%p153) target = $region28
      $region27: #{sppm_forward.3} parent=23 // pred_region
        %p156 = scmp.lt.s32.totalorder %s17, 1
        %s157 = scalar_select %p156, %s17, 1
        %s158 = smul.addr %s157, 128
        %s159 = smul.addr %s158, 4
        %s160 = scalar_lea.vmem %s0, %s159
      $region28: #{sppm_forward.3} parent=23 // pred_fallthru
        _
    $region24: #{sppm_forward.3} parent=5 // pred_fallthru
      _
    %p161 = scmp.le.s32.totalorder 1, %s9
    %p162 = scmp.lt.s32.totalorder %s9, 3
    %p163 = pnand %p161, %p162
    %p164 = pneg %p163
    // Predicated region
    $region29: #{sppm_forward.3} parent=5 // pred_check
      _
    $region30: #{sppm_forward.3} parent=5 // pred_check_branch
      %166 = sbr.rel (%p163) target = $region32
    $region31: #{sppm_forward.3} parent=5 // pred_region
      %s167 = ssub.s32 %s9, 1
      %p168 = scmp.lt.s32.totalorder %s19, 1
      %s169 = scalar_select %p168, %s19, 1
      %s170 = smul.addr %s169, 128
      %s171 = smul.addr %s170, 4
      %s172 = scalar_lea.vmem %s0, %s171
      %p173 = pneg %p47
      %p174 = pneg %p44
      %s175 = smul.u32 2, %s18
      %p176 = scmp.lt.s32.totalorder %s175, 1
      %s177 = scalar_select %p176, %s175, 1
      %s178 = smul.addr %s177, 4
      %s179 = scalar_lea.vmem %s1, %s178
      %p180 = pneg %p73
      %p181 = pneg %p70
      %p182 = pneg %p94
      %p183 = pneg %p91
      %p184 = pneg %p122
      %p185 = pneg %p119
      %s186 = smul.u32 2, %s18
      %p187 = scmp.lt.s32.totalorder %s19, 1
      %s188 = scalar_select %p187, %s19, 1
      %p189 = scmp.lt.s32.totalorder %s186, 1
      %s190 = scalar_select %p189, %s186, 1
      %s191 = smul.addr %s188, 128
      %s192 = sadd.s32 %s190, %s191
      %s193 = smul.addr %s192, 8
      %s194 = scalar_lea.vmem %s3, %s193
      %p195 = scmp.lt.s32.totalorder %s19, 1
      %s196 = scalar_select %p195, %s19, 1
      %s197 = smul.addr %s196, 128
      %s198 = smul.addr %s197, 4
      %s199 = scalar_lea.vmem %s0, %s198
      %s200 = smul.u32 2, %s18
      %p201 = scmp.lt.s32.totalorder %s200, 1
      %s202 = scalar_select %p201, %s200, 1
      %s203 = smul.addr %s202, 4
      %s204 = scalar_lea.vmem %s1, %s203
      %s205 = smul.u32 2, %s18
      %s206 = smul.u32 2, %s18
      %p207 = scmp.lt.s32.totalorder %s19, 1
      %s208 = scalar_select %p207, %s19, 1
      %p209 = scmp.lt.s32.totalorder %s206, 1
      %s210 = scalar_select %p209, %s206, 1
      %s211 = smul.addr %s208, 128
      %s212 = sadd.s32 %s210, %s211
      %s213 = smul.addr %s212, 8
      %s214 = scalar_lea.vmem %s3, %s213
      %s215 = smul.u32 2, %s18
      %v217 = vld [vmem:[%s199] sm:$0xff]
      %v218 = vld [vmem:[%s199 + $0x8] sm:$0xff]
      %v219 = vld [vmem:[%s199 + $0x10] sm:$0xff]
      %v220 = vld [vmem:[%s199 + $0x18] sm:$0xff]
      %v221 = vld [vmem:[%s199 + $0x20] sm:$0xff]
      %v222 = vld [vmem:[%s199 + $0x28] sm:$0xff]
      %v223 = vld [vmem:[%s199 + $0x30] sm:$0xff]
      %v224 = vld [vmem:[%s199 + $0x38] sm:$0xff]
      %v225 = vld [vmem:[%s199 + $0x40] sm:$0xff]
      %v226 = vld [vmem:[%s199 + $0x48] sm:$0xff]
      %v227 = vld [vmem:[%s199 + $0x50] sm:$0xff]
      %v228 = vld [vmem:[%s199 + $0x58] sm:$0xff]
      %v229 = vld [vmem:[%s199 + $0x60] sm:$0xff]
      %v230 = vld [vmem:[%s199 + $0x68] sm:$0xff]
      %v231 = vld [vmem:[%s199 + $0x70] sm:$0xff]
      %v232 = vld [vmem:[%s199 + $0x78] sm:$0xff]
      %v233 = vld [vmem:[%s199 + $0x80] sm:$0xff]
      %v234 = vld [vmem:[%s199 + $0x88] sm:$0xff]
      %v235 = vld [vmem:[%s199 + $0x90] sm:$0xff]
      %v236 = vld [vmem:[%s199 + $0x98] sm:$0xff]
      %v237 = vld [vmem:[%s199 + $0xa0] sm:$0xff]
      %v238 = vld [vmem:[%s199 + $0xa8] sm:$0xff]
      %v239 = vld [vmem:[%s199 + $0xb0] sm:$0xff]
      %v240 = vld [vmem:[%s199 + $0xb8] sm:$0xff]
      %v241 = vld [vmem:[%s199 + $0xc0] sm:$0xff]
      %v242 = vld [vmem:[%s199 + $0xc8] sm:$0xff]
      %v243 = vld [vmem:[%s199 + $0xd0] sm:$0xff]
      %v244 = vld [vmem:[%s199 + $0xd8] sm:$0xff]
      %v245 = vld [vmem:[%s199 + $0xe0] sm:$0xff]
      %v246 = vld [vmem:[%s199 + $0xe8] sm:$0xff]
      %v247 = vld [vmem:[%s199 + $0xf0] sm:$0xff]
      %v248 = vld [vmem:[%s199 + $0xf8] sm:$0xff]
      %v249 = vld [vmem:[%s199 + $0x100] sm:$0xff]
      %v250 = vld [vmem:[%s199 + $0x108] sm:$0xff]
      %v251 = vld [vmem:[%s199 + $0x110] sm:$0xff]
      %v252 = vld [vmem:[%s199 + $0x118] sm:$0xff]
      %v253 = vld [vmem:[%s199 + $0x120] sm:$0xff]
      %v254 = vld [vmem:[%s199 + $0x128] sm:$0xff]
      %v255 = vld [vmem:[%s199 + $0x130] sm:$0xff]
      %v256 = vld [vmem:[%s199 + $0x138] sm:$0xff]
      %v257 = vld [vmem:[%s199 + $0x140] sm:$0xff]
      %v258 = vld [vmem:[%s199 + $0x148] sm:$0xff]
      %v259 = vld [vmem:[%s199 + $0x150] sm:$0xff]
      %v260 = vld [vmem:[%s199 + $0x158] sm:$0xff]
      %v261 = vld [vmem:[%s199 + $0x160] sm:$0xff]
      %v262 = vld [vmem:[%s199 + $0x168] sm:$0xff]
      %v263 = vld [vmem:[%s199 + $0x170] sm:$0xff]
      %v264 = vld [vmem:[%s199 + $0x178] sm:$0xff]
      %v265 = vld [vmem:[%s199 + $0x180] sm:$0xff]
      %v266 = vld [vmem:[%s199 + $0x188] sm:$0xff]
      %v267 = vld [vmem:[%s199 + $0x190] sm:$0xff]
      %v268 = vld [vmem:[%s199 + $0x198] sm:$0xff]
      %v269 = vld [vmem:[%s199 + $0x1a0] sm:$0xff]
      %v270 = vld [vmem:[%s199 + $0x1a8] sm:$0xff]
      %v271 = vld [vmem:[%s199 + $0x1b0] sm:$0xff]
      %v272 = vld [vmem:[%s199 + $0x1b8] sm:$0xff]
      %v273 = vld [vmem:[%s199 + $0x1c0] sm:$0xff]
      %v274 = vld [vmem:[%s199 + $0x1c8] sm:$0xff]
      %v275 = vld [vmem:[%s199 + $0x1d0] sm:$0xff]
      %v276 = vld [vmem:[%s199 + $0x1d8] sm:$0xff]
      %v277 = vld [vmem:[%s199 + $0x1e0] sm:$0xff]
      %v278 = vld [vmem:[%s199 + $0x1e8] sm:$0xff]
      %v279 = vld [vmem:[%s199 + $0x1f0] sm:$0xff]
      %v280 = vld [vmem:[%s199 + $0x1f8] sm:$0xff]
      %v281 = vld [vmem:[%s204] sm:$0xff]
      %v282 = vld [vmem:[%s204 + $0x8] sm:$0xff]
      %v283 = vld [vmem:[%s204 + $0x10] sm:$0xff]
      %v284 = vld [vmem:[%s204 + $0x18] sm:$0xff]
      %v285 = vld [vmem:[%s204 + $0x20] sm:$0xff]
      %v286 = vld [vmem:[%s204 + $0x28] sm:$0xff]
      %v287 = vld [vmem:[%s204 + $0x30] sm:$0xff]
      %v288 = vld [vmem:[%s204 + $0x38] sm:$0xff]
      %v289 = vld [vmem:[%s204 + $0x40] sm:$0xff]
      %v290 = vld [vmem:[%s204 + $0x48] sm:$0xff]
      %v291 = vld [vmem:[%s204 + $0x50] sm:$0xff]
      %v292 = vld [vmem:[%s204 + $0x58] sm:$0xff]
      %v293 = vld [vmem:[%s204 + $0x60] sm:$0xff]
      %v294 = vld [vmem:[%s204 + $0x68] sm:$0xff]
      %v295 = vld [vmem:[%s204 + $0x70] sm:$0xff]
      %v296 = vld [vmem:[%s204 + $0x78] sm:$0xff]
      %v297 = vld [vmem:[%s204 + $0x80] sm:$0xff]
      %v298 = vld [vmem:[%s204 + $0x88] sm:$0xff]
      %v299 = vld [vmem:[%s204 + $0x90] sm:$0xff]
      %v300 = vld [vmem:[%s204 + $0x98] sm:$0xff]
      %v301 = vld [vmem:[%s204 + $0xa0] sm:$0xff]
      %v302 = vld [vmem:[%s204 + $0xa8] sm:$0xff]
      %v303 = vld [vmem:[%s204 + $0xb0] sm:$0xff]
      %v304 = vld [vmem:[%s204 + $0xb8] sm:$0xff]
      %v305 = vld [vmem:[%s2] sm:$0xff]
      %v306 = vld [vmem:[%s2 + $0x8] sm:$0xff]
      %v307 = vld [vmem:[%s2 + $0x10] sm:$0xff]
      %v308 = vld [vmem:[%s2 + $0x18] sm:$0xff]
      %v309 = vld [vmem:[%s2 + $0x20] sm:$0xff]
      %v310 = vld [vmem:[%s2 + $0x28] sm:$0xff]
      %v311 = vld [vmem:[%s2 + $0x30] sm:$0xff]
      %v312 = vld [vmem:[%s2 + $0x38] sm:$0xff]
      %v313 = vld [vmem:[%s2 + $0x40] sm:$0xff]
      %v314 = vld [vmem:[%s2 + $0x48] sm:$0xff]
      %v315 = vld [vmem:[%s2 + $0x50] sm:$0xff]
      %v316 = vld [vmem:[%s2 + $0x58] sm:$0xff]
      %v317 = vld [vmem:[%s2 + $0x60] sm:$0xff]
      %v318 = vld [vmem:[%s2 + $0x68] sm:$0xff]
      %v319 = vld [vmem:[%s2 + $0x70] sm:$0xff]
      %v320 = vld [vmem:[%s2 + $0x78] sm:$0xff]
      %v321 = vld [vmem:[%s2 + $0x80] sm:$0xff]
      %v322 = vld [vmem:[%s2 + $0x88] sm:$0xff]
      %v323 = vld [vmem:[%s2 + $0x90] sm:$0xff]
      %v324 = vld [vmem:[%s2 + $0x98] sm:$0xff]
      %v325 = vld [vmem:[%s2 + $0xa0] sm:$0xff]
      %v326 = vld [vmem:[%s2 + $0xa8] sm:$0xff]
      %v327 = vld [vmem:[%s2 + $0xb0] sm:$0xff]
      %v328 = vld [vmem:[%s2 + $0xb8] sm:$0xff]
      %v329 = vld [vmem:[%s2 + $0xc0] sm:$0xff]
      %v330 = vld [vmem:[%s2 + $0xc8] sm:$0xff]
      %v331 = vld [vmem:[%s2 + $0xd0] sm:$0xff]
      %v332 = vld [vmem:[%s2 + $0xd8] sm:$0xff]
      %v333 = vld [vmem:[%s2 + $0xe0] sm:$0xff]
      %v334 = vld [vmem:[%s2 + $0xe8] sm:$0xff]
      %v335 = vld [vmem:[%s2 + $0xf0] sm:$0xff]
      %v336 = vld [vmem:[%s2 + $0xf8] sm:$0xff]
      %v337 = vld [vmem:[%s2 + $0x100] sm:$0xff]
      %v338 = vld [vmem:[%s2 + $0x108] sm:$0xff]
      %v339 = vld [vmem:[%s2 + $0x110] sm:$0xff]
      %v340 = vld [vmem:[%s2 + $0x118] sm:$0xff]
      %v341 = vld [vmem:[%s2 + $0x120] sm:$0xff]
      %v342 = vld [vmem:[%s2 + $0x128] sm:$0xff]
      %v343 = vld [vmem:[%s2 + $0x130] sm:$0xff]
      %v344 = vld [vmem:[%s2 + $0x138] sm:$0xff]
      %v345 = vld [vmem:[%s2 + $0x140] sm:$0xff]
      %v346 = vld [vmem:[%s2 + $0x148] sm:$0xff]
      %v347 = vld [vmem:[%s2 + $0x150] sm:$0xff]
      %v348 = vld [vmem:[%s2 + $0x158] sm:$0xff]
      %v349 = vld [vmem:[%s2 + $0x160] sm:$0xff]
      %v350 = vld [vmem:[%s2 + $0x168] sm:$0xff]
      %v351 = vld [vmem:[%s2 + $0x170] sm:$0xff]
      %v352 = vld [vmem:[%s2 + $0x178] sm:$0xff]
      %v353 = vld [vmem:[%s2 + $0x180] sm:$0xff]
      %v354 = vld [vmem:[%s2 + $0x188] sm:$0xff]
      %v355 = vld [vmem:[%s2 + $0x190] sm:$0xff]
      %v356 = vld [vmem:[%s2 + $0x198] sm:$0xff]
      %v357 = vld [vmem:[%s2 + $0x1a0] sm:$0xff]
      %v358 = vld [vmem:[%s2 + $0x1a8] sm:$0xff]
      %v359 = vld [vmem:[%s2 + $0x1b0] sm:$0xff]
      %v360 = vld [vmem:[%s2 + $0x1b8] sm:$0xff]
      %v361 = vld [vmem:[%s2 + $0x1c0] sm:$0xff]
      %v362 = vld [vmem:[%s2 + $0x1c8] sm:$0xff]
      %v363 = vld [vmem:[%s2 + $0x1d0] sm:$0xff]
      %v364 = vld [vmem:[%s2 + $0x1d8] sm:$0xff]
      %v365 = vld [vmem:[%s2 + $0x1e0] sm:$0xff]
      %v366 = vld [vmem:[%s2 + $0x1e8] sm:$0xff]
      %v367 = vld [vmem:[%s2 + $0x1f0] sm:$0xff]
      %v368 = vld [vmem:[%s2 + $0x1f8] sm:$0xff]
      %370 = vset.pattern.permute.xlu0 0
      %371 = vperm.xlu0 %370, %v305
      %v372 = vpop.permute.xlu0 %371
      %375 = vset.pattern.permute.xlu0 0
      %376 = vperm.xlu0 %375, %v306
      %v377 = vpop.permute.xlu0 %376
      %380 = vset.pattern.permute.xlu0 0
      %381 = vperm.xlu0 %380, %v307
      %v382 = vpop.permute.xlu0 %381
      %385 = vset.pattern.permute.xlu0 0
      %386 = vperm.xlu0 %385, %v308
      %v387 = vpop.permute.xlu0 %386
      %390 = vset.pattern.permute.xlu0 0
      %391 = vperm.xlu0 %390, %v309
      %v392 = vpop.permute.xlu0 %391
      %395 = vset.pattern.permute.xlu0 0
      %396 = vperm.xlu0 %395, %v310
      %v397 = vpop.permute.xlu0 %396
      %400 = vset.pattern.permute.xlu0 0
      %401 = vperm.xlu0 %400, %v311
      %v402 = vpop.permute.xlu0 %401
      %405 = vset.pattern.permute.xlu0 0
      %406 = vperm.xlu0 %405, %v312
      %v407 = vpop.permute.xlu0 %406
      %410 = vset.pattern.permute.xlu0 0
      %411 = vperm.xlu0 %410, %v313
      %v412 = vpop.permute.xlu0 %411
      %415 = vset.pattern.permute.xlu0 0
      %416 = vperm.xlu0 %415, %v314
      %v417 = vpop.permute.xlu0 %416
      %420 = vset.pattern.permute.xlu0 0
      %421 = vperm.xlu0 %420, %v315
      %v422 = vpop.permute.xlu0 %421
      %425 = vset.pattern.permute.xlu0 0
      %426 = vperm.xlu0 %425, %v316
      %v427 = vpop.permute.xlu0 %426
      %430 = vset.pattern.permute.xlu0 0
      %431 = vperm.xlu0 %430, %v317
      %v432 = vpop.permute.xlu0 %431
      %435 = vset.pattern.permute.xlu0 0
      %436 = vperm.xlu0 %435, %v318
      %v437 = vpop.permute.xlu0 %436
      %440 = vset.pattern.permute.xlu0 0
      %441 = vperm.xlu0 %440, %v319
      %v442 = vpop.permute.xlu0 %441
      %445 = vset.pattern.permute.xlu0 0
      %446 = vperm.xlu0 %445, %v320
      %v447 = vpop.permute.xlu0 %446
      %450 = vset.pattern.permute.xlu0 0
      %451 = vperm.xlu0 %450, %v321
      %v452 = vpop.permute.xlu0 %451
      %455 = vset.pattern.permute.xlu0 0
      %456 = vperm.xlu0 %455, %v322
      %v457 = vpop.permute.xlu0 %456
      %460 = vset.pattern.permute.xlu0 0
      %461 = vperm.xlu0 %460, %v323
      %v462 = vpop.permute.xlu0 %461
      %465 = vset.pattern.permute.xlu0 0
      %466 = vperm.xlu0 %465, %v324
      %v467 = vpop.permute.xlu0 %466
      %470 = vset.pattern.permute.xlu0 0
      %471 = vperm.xlu0 %470, %v325
      %v472 = vpop.permute.xlu0 %471
      %475 = vset.pattern.permute.xlu0 0
      %476 = vperm.xlu0 %475, %v326
      %v477 = vpop.permute.xlu0 %476
      %480 = vset.pattern.permute.xlu0 0
      %481 = vperm.xlu0 %480, %v327
      %v482 = vpop.permute.xlu0 %481
      %485 = vset.pattern.permute.xlu0 0
      %486 = vperm.xlu0 %485, %v328
      %v487 = vpop.permute.xlu0 %486
      %490 = vset.pattern.permute.xlu0 0
      %491 = vperm.xlu0 %490, %v329
      %v492 = vpop.permute.xlu0 %491
      %495 = vset.pattern.permute.xlu0 0
      %496 = vperm.xlu0 %495, %v330
      %v497 = vpop.permute.xlu0 %496
      %500 = vset.pattern.permute.xlu0 0
      %501 = vperm.xlu0 %500, %v331
      %v502 = vpop.permute.xlu0 %501
      %505 = vset.pattern.permute.xlu0 0
      %506 = vperm.xlu0 %505, %v332
      %v507 = vpop.permute.xlu0 %506
      %510 = vset.pattern.permute.xlu0 0
      %511 = vperm.xlu0 %510, %v333
      %v512 = vpop.permute.xlu0 %511
      %515 = vset.pattern.permute.xlu0 0
      %516 = vperm.xlu0 %515, %v334
      %v517 = vpop.permute.xlu0 %516
      %520 = vset.pattern.permute.xlu0 0
      %521 = vperm.xlu0 %520, %v335
      %v522 = vpop.permute.xlu0 %521
      %525 = vset.pattern.permute.xlu0 0
      %526 = vperm.xlu0 %525, %v336
      %v527 = vpop.permute.xlu0 %526
      %530 = vset.pattern.permute.xlu0 0
      %531 = vperm.xlu0 %530, %v337
      %v532 = vpop.permute.xlu0 %531
      %535 = vset.pattern.permute.xlu0 0
      %536 = vperm.xlu0 %535, %v338
      %v537 = vpop.permute.xlu0 %536
      %540 = vset.pattern.permute.xlu0 0
      %541 = vperm.xlu0 %540, %v339
      %v542 = vpop.permute.xlu0 %541
      %545 = vset.pattern.permute.xlu0 0
      %546 = vperm.xlu0 %545, %v340
      %v547 = vpop.permute.xlu0 %546
      %550 = vset.pattern.permute.xlu0 0
      %551 = vperm.xlu0 %550, %v341
      %v552 = vpop.permute.xlu0 %551
      %555 = vset.pattern.permute.xlu0 0
      %556 = vperm.xlu0 %555, %v342
      %v557 = vpop.permute.xlu0 %556
      %560 = vset.pattern.permute.xlu0 0
      %561 = vperm.xlu0 %560, %v343
      %v562 = vpop.permute.xlu0 %561
      %565 = vset.pattern.permute.xlu0 0
      %566 = vperm.xlu0 %565, %v344
      %v567 = vpop.permute.xlu0 %566
      %570 = vset.pattern.permute.xlu0 0
      %571 = vperm.xlu0 %570, %v345
      %v572 = vpop.permute.xlu0 %571
      %575 = vset.pattern.permute.xlu0 0
      %576 = vperm.xlu0 %575, %v346
      %v577 = vpop.permute.xlu0 %576
      %580 = vset.pattern.permute.xlu0 0
      %581 = vperm.xlu0 %580, %v347
      %v582 = vpop.permute.xlu0 %581
      %585 = vset.pattern.permute.xlu0 0
      %586 = vperm.xlu0 %585, %v348
      %v587 = vpop.permute.xlu0 %586
      %590 = vset.pattern.permute.xlu0 0
      %591 = vperm.xlu0 %590, %v349
      %v592 = vpop.permute.xlu0 %591
      %595 = vset.pattern.permute.xlu0 0
      %596 = vperm.xlu0 %595, %v350
      %v597 = vpop.permute.xlu0 %596
      %600 = vset.pattern.permute.xlu0 0
      %601 = vperm.xlu0 %600, %v351
      %v602 = vpop.permute.xlu0 %601
      %605 = vset.pattern.permute.xlu0 0
      %606 = vperm.xlu0 %605, %v352
      %v607 = vpop.permute.xlu0 %606
      %610 = vset.pattern.permute.xlu0 0
      %611 = vperm.xlu0 %610, %v353
      %v612 = vpop.permute.xlu0 %611
      %615 = vset.pattern.permute.xlu0 0
      %616 = vperm.xlu0 %615, %v354
      %v617 = vpop.permute.xlu0 %616
      %620 = vset.pattern.permute.xlu0 0
      %621 = vperm.xlu0 %620, %v355
      %v622 = vpop.permute.xlu0 %621
      %625 = vset.pattern.permute.xlu0 0
      %626 = vperm.xlu0 %625, %v356
      %v627 = vpop.permute.xlu0 %626
      %630 = vset.pattern.permute.xlu0 0
      %631 = vperm.xlu0 %630, %v357
      %v632 = vpop.permute.xlu0 %631
      %635 = vset.pattern.permute.xlu0 0
      %636 = vperm.xlu0 %635, %v358
      %v637 = vpop.permute.xlu0 %636
      %640 = vset.pattern.permute.xlu0 0
      %641 = vperm.xlu0 %640, %v359
      %v642 = vpop.permute.xlu0 %641
      %645 = vset.pattern.permute.xlu0 0
      %646 = vperm.xlu0 %645, %v360
      %v647 = vpop.permute.xlu0 %646
      %650 = vset.pattern.permute.xlu0 0
      %651 = vperm.xlu0 %650, %v361
      %v652 = vpop.permute.xlu0 %651
      %655 = vset.pattern.permute.xlu0 0
      %656 = vperm.xlu0 %655, %v362
      %v657 = vpop.permute.xlu0 %656
      %660 = vset.pattern.permute.xlu0 0
      %661 = vperm.xlu0 %660, %v363
      %v662 = vpop.permute.xlu0 %661
      %665 = vset.pattern.permute.xlu0 0
      %666 = vperm.xlu0 %665, %v364
      %v667 = vpop.permute.xlu0 %666
      %670 = vset.pattern.permute.xlu0 0
      %671 = vperm.xlu0 %670, %v365
      %v672 = vpop.permute.xlu0 %671
      %675 = vset.pattern.permute.xlu0 0
      %676 = vperm.xlu0 %675, %v366
      %v677 = vpop.permute.xlu0 %676
      %680 = vset.pattern.permute.xlu0 0
      %681 = vperm.xlu0 %680, %v367
      %v682 = vpop.permute.xlu0 %681
      %685 = vset.pattern.permute.xlu0 0
      %686 = vperm.xlu0 %685, %v368
      %v687 = vpop.permute.xlu0 %686
      %v753 = vunpack.c.l.b16 %v217
      %v754 = vunpack.c.h.b16 %v217
      %v755 = vunpack.c.l.b16 %v218
      %v756 = vunpack.c.h.b16 %v218
      %v757 = vunpack.c.l.b16 %v219
      %v758 = vunpack.c.h.b16 %v219
      %v759 = vunpack.c.l.b16 %v220
      %v760 = vunpack.c.h.b16 %v220
      %v761 = vunpack.c.l.b16 %v221
      %v762 = vunpack.c.h.b16 %v221
      %v763 = vunpack.c.l.b16 %v222
      %v764 = vunpack.c.h.b16 %v222
      %v765 = vunpack.c.l.b16 %v223
      %v766 = vunpack.c.h.b16 %v223
      %v767 = vunpack.c.l.b16 %v224
      %v768 = vunpack.c.h.b16 %v224
      %v769 = vunpack.c.l.b16 %v225
      %v770 = vunpack.c.h.b16 %v225
      %v771 = vunpack.c.l.b16 %v226
      %v772 = vunpack.c.h.b16 %v226
      %v773 = vunpack.c.l.b16 %v227
      %v774 = vunpack.c.h.b16 %v227
      %v775 = vunpack.c.l.b16 %v228
      %v776 = vunpack.c.h.b16 %v228
      %v777 = vunpack.c.l.b16 %v229
      %v778 = vunpack.c.h.b16 %v229
      %v779 = vunpack.c.l.b16 %v230
      %v780 = vunpack.c.h.b16 %v230
      %v781 = vunpack.c.l.b16 %v231
      %v782 = vunpack.c.h.b16 %v231
      %v783 = vunpack.c.l.b16 %v232
      %v784 = vunpack.c.h.b16 %v232
      %v785 = vunpack.c.l.b16 %v233
      %v786 = vunpack.c.h.b16 %v233
      %v787 = vunpack.c.l.b16 %v234
      %v788 = vunpack.c.h.b16 %v234
      %v789 = vunpack.c.l.b16 %v235
      %v790 = vunpack.c.h.b16 %v235
      %v791 = vunpack.c.l.b16 %v236
      %v792 = vunpack.c.h.b16 %v236
      %v793 = vunpack.c.l.b16 %v237
      %v794 = vunpack.c.h.b16 %v237
      %v795 = vunpack.c.l.b16 %v238
      %v796 = vunpack.c.h.b16 %v238
      %v797 = vunpack.c.l.b16 %v239
      %v798 = vunpack.c.h.b16 %v239
      %v799 = vunpack.c.l.b16 %v240
      %v800 = vunpack.c.h.b16 %v240
      %v801 = vunpack.c.l.b16 %v241
      %v802 = vunpack.c.h.b16 %v241
      %v803 = vunpack.c.l.b16 %v242
      %v804 = vunpack.c.h.b16 %v242
      %v805 = vunpack.c.l.b16 %v243
      %v806 = vunpack.c.h.b16 %v243
      %v807 = vunpack.c.l.b16 %v244
      %v808 = vunpack.c.h.b16 %v244
      %v809 = vunpack.c.l.b16 %v245
      %v810 = vunpack.c.h.b16 %v245
      %v811 = vunpack.c.l.b16 %v246
      %v812 = vunpack.c.h.b16 %v246
      %v813 = vunpack.c.l.b16 %v247
      %v814 = vunpack.c.h.b16 %v247
      %v815 = vunpack.c.l.b16 %v248
      %v816 = vunpack.c.h.b16 %v248
      %v817 = vunpack.c.l.b16 %v249
      %v818 = vunpack.c.h.b16 %v249
      %v819 = vunpack.c.l.b16 %v250
      %v820 = vunpack.c.h.b16 %v250
      %v821 = vunpack.c.l.b16 %v251
      %v822 = vunpack.c.h.b16 %v251
      %v823 = vunpack.c.l.b16 %v252
      %v824 = vunpack.c.h.b16 %v252
      %v825 = vunpack.c.l.b16 %v253
      %v826 = vunpack.c.h.b16 %v253
      %v827 = vunpack.c.l.b16 %v254
      %v828 = vunpack.c.h.b16 %v254
      %v829 = vunpack.c.l.b16 %v255
      %v830 = vunpack.c.h.b16 %v255
      %v831 = vunpack.c.l.b16 %v256
      %v832 = vunpack.c.h.b16 %v256
      %v833 = vunpack.c.l.b16 %v257
      %v834 = vunpack.c.h.b16 %v257
      %v835 = vunpack.c.l.b16 %v258
      %v836 = vunpack.c.h.b16 %v258
      %v837 = vunpack.c.l.b16 %v259
      %v838 = vunpack.c.h.b16 %v259
      %v839 = vunpack.c.l.b16 %v260
      %v840 = vunpack.c.h.b16 %v260
      %v841 = vunpack.c.l.b16 %v261
      %v842 = vunpack.c.h.b16 %v261
      %v843 = vunpack.c.l.b16 %v262
      %v844 = vunpack.c.h.b16 %v262
      %v845 = vunpack.c.l.b16 %v263
      %v846 = vunpack.c.h.b16 %v263
      %v847 = vunpack.c.l.b16 %v264
      %v848 = vunpack.c.h.b16 %v264
      %v849 = vunpack.c.l.b16 %v265
      %v850 = vunpack.c.h.b16 %v265
      %v851 = vunpack.c.l.b16 %v266
      %v852 = vunpack.c.h.b16 %v266
      %v853 = vunpack.c.l.b16 %v267
      %v854 = vunpack.c.h.b16 %v267
      %v855 = vunpack.c.l.b16 %v268
      %v856 = vunpack.c.h.b16 %v268
      %v857 = vunpack.c.l.b16 %v269
      %v858 = vunpack.c.h.b16 %v269
      %v859 = vunpack.c.l.b16 %v270
      %v860 = vunpack.c.h.b16 %v270
      %v861 = vunpack.c.l.b16 %v271
      %v862 = vunpack.c.h.b16 %v271
      %v863 = vunpack.c.l.b16 %v272
      %v864 = vunpack.c.h.b16 %v272
      %v865 = vunpack.c.l.b16 %v273
      %v866 = vunpack.c.h.b16 %v273
      %v867 = vunpack.c.l.b16 %v274
      %v868 = vunpack.c.h.b16 %v274
      %v869 = vunpack.c.l.b16 %v275
      %v870 = vunpack.c.h.b16 %v275
      %v871 = vunpack.c.l.b16 %v276
      %v872 = vunpack.c.h.b16 %v276
      %v873 = vunpack.c.l.b16 %v277
      %v874 = vunpack.c.h.b16 %v277
      %v875 = vunpack.c.l.b16 %v278
      %v876 = vunpack.c.h.b16 %v278
      %v877 = vunpack.c.l.b16 %v279
      %v878 = vunpack.c.h.b16 %v279
      %v879 = vunpack.c.l.b16 %v280
      %v880 = vunpack.c.h.b16 %v280
      %v881 = vpack.c.b16 %v755, %v753
      %v882 = vpack.c.b16 %v756, %v754
      %v883 = vpack.c.b16 %v759, %v757
      %v884 = vpack.c.b16 %v760, %v758
      %v885 = vpack.c.b16 %v763, %v761
      %v886 = vpack.c.b16 %v764, %v762
      %v887 = vpack.c.b16 %v767, %v765
      %v888 = vpack.c.b16 %v768, %v766
      %v889 = vpack.c.b16 %v771, %v769
      %v890 = vpack.c.b16 %v772, %v770
      %v891 = vpack.c.b16 %v775, %v773
      %v892 = vpack.c.b16 %v776, %v774
      %v893 = vpack.c.b16 %v779, %v777
      %v894 = vpack.c.b16 %v780, %v778
      %v895 = vpack.c.b16 %v783, %v781
      %v896 = vpack.c.b16 %v784, %v782
      %v897 = vpack.c.b16 %v787, %v785
      %v898 = vpack.c.b16 %v788, %v786
      %v899 = vpack.c.b16 %v791, %v789
      %v900 = vpack.c.b16 %v792, %v790
      %v901 = vpack.c.b16 %v795, %v793
      %v902 = vpack.c.b16 %v796, %v794
      %v903 = vpack.c.b16 %v799, %v797
      %v904 = vpack.c.b16 %v800, %v798
      %v905 = vpack.c.b16 %v803, %v801
      %v906 = vpack.c.b16 %v804, %v802
      %v907 = vpack.c.b16 %v807, %v805
      %v908 = vpack.c.b16 %v808, %v806
      %v909 = vpack.c.b16 %v811, %v809
      %v910 = vpack.c.b16 %v812, %v810
      %v911 = vpack.c.b16 %v815, %v813
      %v912 = vpack.c.b16 %v816, %v814
      %v913 = vpack.c.b16 %v819, %v817
      %v914 = vpack.c.b16 %v820, %v818
      %v915 = vpack.c.b16 %v823, %v821
      %v916 = vpack.c.b16 %v824, %v822
      %v917 = vpack.c.b16 %v827, %v825
      %v918 = vpack.c.b16 %v828, %v826
      %v919 = vpack.c.b16 %v831, %v829
      %v920 = vpack.c.b16 %v832, %v830
      %v921 = vpack.c.b16 %v835, %v833
      %v922 = vpack.c.b16 %v836, %v834
      %v923 = vpack.c.b16 %v839, %v837
      %v924 = vpack.c.b16 %v840, %v838
      %v925 = vpack.c.b16 %v843, %v841
      %v926 = vpack.c.b16 %v844, %v842
      %v927 = vpack.c.b16 %v847, %v845
      %v928 = vpack.c.b16 %v848, %v846
      %v929 = vpack.c.b16 %v851, %v849
      %v930 = vpack.c.b16 %v852, %v850
      %v931 = vpack.c.b16 %v855, %v853
      %v932 = vpack.c.b16 %v856, %v854
      %v933 = vpack.c.b16 %v859, %v857
      %v934 = vpack.c.b16 %v860, %v858
      %v935 = vpack.c.b16 %v863, %v861
      %v936 = vpack.c.b16 %v864, %v862
      %v937 = vpack.c.b16 %v867, %v865
      %v938 = vpack.c.b16 %v868, %v866
      %v939 = vpack.c.b16 %v871, %v869
      %v940 = vpack.c.b16 %v872, %v870
      %v941 = vpack.c.b16 %v875, %v873
      %v942 = vpack.c.b16 %v876, %v874
      %v943 = vpack.c.b16 %v879, %v877
      %v944 = vpack.c.b16 %v880, %v878
      %v1001 = vunpack.c.l.b16 %v281
      %v1002 = vunpack.c.h.b16 %v281
      %v1003 = vunpack.c.l.b16 %v282
      %v1004 = vunpack.c.h.b16 %v282
      %v1005 = vunpack.c.l.b16 %v283
      %v1006 = vunpack.c.h.b16 %v283
      %v1007 = vunpack.c.l.b16 %v284
      %v1008 = vunpack.c.h.b16 %v284
      %v1009 = vunpack.c.l.b16 %v285
      %v1010 = vunpack.c.h.b16 %v285
      %v1011 = vunpack.c.l.b16 %v286
      %v1012 = vunpack.c.h.b16 %v286
      %v1013 = vunpack.c.l.b16 %v287
      %v1014 = vunpack.c.h.b16 %v287
      %v1015 = vunpack.c.l.b16 %v288
      %v1016 = vunpack.c.h.b16 %v288
      %v1017 = vunpack.c.l.b16 %v289
      %v1018 = vunpack.c.h.b16 %v289
      %v1019 = vunpack.c.l.b16 %v290
      %v1020 = vunpack.c.h.b16 %v290
      %v1021 = vunpack.c.l.b16 %v291
      %v1022 = vunpack.c.h.b16 %v291
      %v1023 = vunpack.c.l.b16 %v292
      %v1024 = vunpack.c.h.b16 %v292
      %v1025 = vunpack.c.l.b16 %v293
      %v1026 = vunpack.c.h.b16 %v293
      %v1027 = vunpack.c.l.b16 %v294
      %v1028 = vunpack.c.h.b16 %v294
      %v1029 = vunpack.c.l.b16 %v295
      %v1030 = vunpack.c.h.b16 %v295
      %v1031 = vunpack.c.l.b16 %v296
      %v1032 = vunpack.c.h.b16 %v296
      %v1033 = vunpack.c.l.b16 %v297
      %v1034 = vunpack.c.h.b16 %v297
      %v1035 = vunpack.c.l.b16 %v298
      %v1036 = vunpack.c.h.b16 %v298
      %v1037 = vunpack.c.l.b16 %v299
      %v1038 = vunpack.c.h.b16 %v299
      %v1039 = vunpack.c.l.b16 %v300
      %v1040 = vunpack.c.h.b16 %v300
      %v1041 = vunpack.c.l.b16 %v301
      %v1042 = vunpack.c.h.b16 %v301
      %v1043 = vunpack.c.l.b16 %v302
      %v1044 = vunpack.c.h.b16 %v302
      %v1045 = vunpack.c.l.b16 %v303
      %v1046 = vunpack.c.h.b16 %v303
      %v1047 = vunpack.c.l.b16 %v304
      %v1048 = vunpack.c.h.b16 %v304
      %v1049 = vpack.c.b16 %v1003, %v1001
      %v1050 = vpack.c.b16 %v1004, %v1002
      %v1051 = vpack.c.b16 %v1007, %v1005
      %v1052 = vpack.c.b16 %v1008, %v1006
      %v1053 = vpack.c.b16 %v1011, %v1009
      %v1054 = vpack.c.b16 %v1012, %v1010
      %v1055 = vpack.c.b16 %v1015, %v1013
      %v1056 = vpack.c.b16 %v1016, %v1014
      %v1057 = vpack.c.b16 %v1019, %v1017
      %v1058 = vpack.c.b16 %v1020, %v1018
      %v1059 = vpack.c.b16 %v1023, %v1021
      %v1060 = vpack.c.b16 %v1024, %v1022
      %v1061 = vpack.c.b16 %v1027, %v1025
      %v1062 = vpack.c.b16 %v1028, %v1026
      %v1063 = vpack.c.b16 %v1031, %v1029
      %v1064 = vpack.c.b16 %v1032, %v1030
      %v1065 = vpack.c.b16 %v1035, %v1033
      %v1066 = vpack.c.b16 %v1036, %v1034
      %v1067 = vpack.c.b16 %v1039, %v1037
      %v1068 = vpack.c.b16 %v1040, %v1038
      %v1069 = vpack.c.b16 %v1043, %v1041
      %v1070 = vpack.c.b16 %v1044, %v1042
      %v1071 = vpack.c.b16 %v1047, %v1045
      %v1072 = vpack.c.b16 %v1048, %v1046
      %vm1097 = vcmask 523264
      %v1099 = vsel %vm1097, %v882, 0
      %v1102 = vsel %vm1097, %v884, 0
      %v1105 = vsel %vm1097, %v886, 0
      %v1108 = vsel %vm1097, %v888, 0
      %v1111 = vsel %vm1097, %v890, 0
      %v1114 = vsel %vm1097, %v892, 0
      %v1117 = vsel %vm1097, %v894, 0
      %v1120 = vsel %vm1097, %v896, 0
      %v1123 = vsel %vm1097, %v898, 0
      %v1126 = vsel %vm1097, %v900, 0
      %v1129 = vsel %vm1097, %v902, 0
      %v1132 = vsel %vm1097, %v904, 0
      %v1135 = vsel %vm1097, %v906, 0
      %v1138 = vsel %vm1097, %v908, 0
      %v1141 = vsel %vm1097, %v910, 0
      %v1144 = vsel %vm1097, %v912, 0
      %v1147 = vsel %vm1097, %v914, 0
      %v1150 = vsel %vm1097, %v916, 0
      %v1153 = vsel %vm1097, %v918, 0
      %v1156 = vsel %vm1097, %v920, 0
      %v1159 = vsel %vm1097, %v922, 0
      %v1162 = vsel %vm1097, %v924, 0
      %v1165 = vsel %vm1097, %v926, 0
      %v1168 = vsel %vm1097, %v928, 0
      %v1171 = vsel %vm1097, %v930, 0
      %v1174 = vsel %vm1097, %v932, 0
      %v1177 = vsel %vm1097, %v934, 0
      %v1180 = vsel %vm1097, %v936, 0
      %v1183 = vsel %vm1097, %v938, 0
      %v1186 = vsel %vm1097, %v940, 0
      %v1189 = vsel %vm1097, %v942, 0
      %v1192 = vsel %vm1097, %v944, 0
      %1194 = vmatprep.subr.bf16.mxu0 %v1050
      %1195 = vmatpush1.bf16.msra.mxu0 %v1049
      %1196 = vmatprep.subr.bf16.mxu0 %v1052
      %1197 = vmatpush1.bf16.msra.mxu0 %v1051
      %1198 = vmatprep.subr.bf16.mxu0 %v1054
      %1199 = vmatpush1.bf16.msra.mxu0 %v1053
      %1200 = vmatprep.subr.bf16.mxu0 %v1056
      %1201 = vmatpush1.bf16.msra.mxu0 %v1055
      %1202 = vmatprep.subr.bf16.mxu0 %v1058
      %1203 = vmatpush1.bf16.msra.mxu0 %v1057
      %1204 = vmatprep.subr.bf16.mxu0 %v1060
      %1205 = vmatpush1.bf16.msra.mxu0 %v1059
      %1206 = vmatprep.subr.bf16.mxu0 %v1062
      %1207 = vmatpush1.bf16.msra.mxu0 %v1061
      %1208 = vmatprep.subr.bf16.mxu0 %v1064
      %1209 = vmatpush1.bf16.msra.mxu0 %v1063
      %1210 = vmatprep.subr.bf16.mxu0 %v1066
      %1211 = vmatpush1.bf16.msra.mxu0 %v1065
      %1212 = vmatprep.subr.bf16.mxu0 %v1068
      %1213 = vmatpush1.bf16.msra.mxu0 %v1067
      %1214 = vmatprep.subr.bf16.mxu0 %v1070
      %1215 = vmatpush1.bf16.msra.mxu0 %v1069
      %1216 = vmatprep.subr.bf16.mxu0 %v1072
      %1217 = vmatpush1.bf16.msra.mxu0 %v1071
      %1218 = vmatprep.subr.bf16.mxu0 0
      %1219 = vmatpush1.bf16.msra.mxu0 0
      %1220 = vmatprep.subr.bf16.mxu0 0
      %1221 = vmatpush1.bf16.msra.mxu0 0
      %1222 = vmatprep.subr.bf16.mxu0 0
      %1223 = vmatpush1.bf16.msra.mxu0 0
      %1224 = vmatprep.subr.bf16.mxu0 0
      %1225 = vmatpush1.bf16.msra.mxu0 0
      %1226 = vmatprep.mubr.bf16.mxu0 %v1099
      %1227 = vmatmul.mubr.bf16.gmra.mrb[0].mxu0 %v881
      %v1228 = vpop.f32.mrb[0].mxu0
      %v1229 = vadd.f32 %v372, %v1228
      %v1230 = vpop.f32.mrb[0].mxu0
      %v1231 = vadd.f32 %v372, %v1230
      %v1232 = vpop.f32.mrb[0].mxu0
      %v1233 = vadd.f32 %v377, %v1232
      %v1234 = vpop.f32.mrb[0].mxu0
      %v1235 = vadd.f32 %v377, %v1234
      %1236 = vmatprep.mubr.bf16.mxu0 %v1102
      %1237 = vmatmul.mubr.bf16.gmra.mrb[0].mxu0 %v883
      %v1238 = vpop.f32.mrb[0].mxu0
      %v1239 = vadd.f32 %v382, %v1238
      %v1240 = vpop.f32.mrb[0].mxu0
      %v1241 = vadd.f32 %v382, %v1240
      %v1242 = vpop.f32.mrb[0].mxu0
      %v1243 = vadd.f32 %v387, %v1242
      %v1244 = vpop.f32.mrb[0].mxu0
      %v1245 = vadd.f32 %v387, %v1244
      %1246 = vmatprep.mubr.bf16.mxu0 %v1105
      %1247 = vmatmul.mubr.bf16.gmra.mrb[0].mxu0 %v885
      %v1248 = vpop.f32.mrb[0].mxu0
      %v1249 = vadd.f32 %v392, %v1248
      %v1250 = vpop.f32.mrb[0].mxu0
      %v1251 = vadd.f32 %v392, %v1250
      %v1252 = vpop.f32.mrb[0].mxu0
      %v1253 = vadd.f32 %v397, %v1252
      %v1254 = vpop.f32.mrb[0].mxu0
      %v1255 = vadd.f32 %v397, %v1254
      %1256 = vmatprep.mubr.bf16.mxu0 %v1108
      %1257 = vmatmul.mubr.bf16.gmra.mrb[0].mxu0 %v887
      %v1258 = vpop.f32.mrb[0].mxu0
      %v1259 = vadd.f32 %v402, %v1258
      %v1260 = vpop.f32.mrb[0].mxu0
      %v1261 = vadd.f32 %v402, %v1260
      %v1262 = vpop.f32.mrb[0].mxu0
      %v1263 = vadd.f32 %v407, %v1262
      %v1264 = vpop.f32.mrb[0].mxu0
      %v1265 = vadd.f32 %v407, %v1264
      %1266 = vmatprep.mubr.bf16.mxu0 %v1111
      %1267 = vmatmul.mubr.bf16.gmra.mrb[0].mxu0 %v889
      %v1268 = vpop.f32.mrb[0].mxu0
      %v1269 = vadd.f32 %v412, %v1268
      %v1270 = vpop.f32.mrb[0].mxu0
      %v1271 = vadd.f32 %v412, %v1270
      %v1272 = vpop.f32.mrb[0].mxu0
      %v1273 = vadd.f32 %v417, %v1272
      %v1274 = vpop.f32.mrb[0].mxu0
      %v1275 = vadd.f32 %v417, %v1274
      %1276 = vmatprep.mubr.bf16.mxu0 %v1114
      %1277 = vmatmul.mubr.bf16.gmra.mrb[0].mxu0 %v891
      %v1278 = vpop.f32.mrb[0].mxu0
      %v1279 = vadd.f32 %v422, %v1278
      %v1280 = vpop.f32.mrb[0].mxu0
      %v1281 = vadd.f32 %v422, %v1280
      %v1282 = vpop.f32.mrb[0].mxu0
      %v1283 = vadd.f32 %v427, %v1282
      %v1284 = vpop.f32.mrb[0].mxu0
      %v1285 = vadd.f32 %v427, %v1284
      %1286 = vmatprep.mubr.bf16.mxu0 %v1117
      %1287 = vmatmul.mubr.bf16.gmra.mrb[0].mxu0 %v893
      %v1288 = vpop.f32.mrb[0].mxu0
      %v1289 = vadd.f32 %v432, %v1288
      %v1290 = vpop.f32.mrb[0].mxu0
      %v1291 = vadd.f32 %v432, %v1290
      %v1292 = vpop.f32.mrb[0].mxu0
      %v1293 = vadd.f32 %v437, %v1292
      %v1294 = vpop.f32.mrb[0].mxu0
      %v1295 = vadd.f32 %v437, %v1294
      %1296 = vmatprep.mubr.bf16.mxu0 %v1120
      %1297 = vmatmul.mubr.bf16.gmra.mrb[0].mxu0 %v895
      %v1298 = vpop.f32.mrb[0].mxu0
      %v1299 = vadd.f32 %v442, %v1298
      %v1300 = vpop.f32.mrb[0].mxu0
      %v1301 = vadd.f32 %v442, %v1300
      %v1302 = vpop.f32.mrb[0].mxu0
      %v1303 = vadd.f32 %v447, %v1302
      %v1304 = vpop.f32.mrb[0].mxu0
      %v1305 = vadd.f32 %v447, %v1304
      %1306 = vmatprep.mubr.bf16.mxu0 %v1123
      %1307 = vmatmul.mubr.bf16.gmra.mrb[0].mxu0 %v897
      %v1308 = vpop.f32.mrb[0].mxu0
      %v1309 = vadd.f32 %v452, %v1308
      %v1310 = vpop.f32.mrb[0].mxu0
      %v1311 = vadd.f32 %v452, %v1310
      %v1312 = vpop.f32.mrb[0].mxu0
      %v1313 = vadd.f32 %v457, %v1312
      %v1314 = vpop.f32.mrb[0].mxu0
      %v1315 = vadd.f32 %v457, %v1314
      %1316 = vmatprep.mubr.bf16.mxu0 %v1126
      %1317 = vmatmul.mubr.bf16.gmra.mrb[0].mxu0 %v899
      %v1318 = vpop.f32.mrb[0].mxu0
      %v1319 = vadd.f32 %v462, %v1318
      %v1320 = vpop.f32.mrb[0].mxu0
      %v1321 = vadd.f32 %v462, %v1320
      %v1322 = vpop.f32.mrb[0].mxu0
      %v1323 = vadd.f32 %v467, %v1322
      %v1324 = vpop.f32.mrb[0].mxu0
      %v1325 = vadd.f32 %v467, %v1324
      %1326 = vmatprep.mubr.bf16.mxu0 %v1129
      %1327 = vmatmul.mubr.bf16.gmra.mrb[0].mxu0 %v901
      %v1328 = vpop.f32.mrb[0].mxu0
      %v1329 = vadd.f32 %v472, %v1328
      %v1330 = vpop.f32.mrb[0].mxu0
      %v1331 = vadd.f32 %v472, %v1330
      %v1332 = vpop.f32.mrb[0].mxu0
      %v1333 = vadd.f32 %v477, %v1332
      %v1334 = vpop.f32.mrb[0].mxu0
      %v1335 = vadd.f32 %v477, %v1334
      %1336 = vmatprep.mubr.bf16.mxu0 %v1132
      %1337 = vmatmul.mubr.bf16.gmra.mrb[0].mxu0 %v903
      %v1338 = vpop.f32.mrb[0].mxu0
      %v1339 = vadd.f32 %v482, %v1338
      %v1340 = vpop.f32.mrb[0].mxu0
      %v1341 = vadd.f32 %v482, %v1340
      %v1342 = vpop.f32.mrb[0].mxu0
      %v1343 = vadd.f32 %v487, %v1342
      %v1344 = vpop.f32.mrb[0].mxu0
      %v1345 = vadd.f32 %v487, %v1344
      %1346 = vmatprep.mubr.bf16.mxu0 %v1135
      %1347 = vmatmul.mubr.bf16.gmra.mrb[0].mxu0 %v905
      %v1348 = vpop.f32.mrb[0].mxu0
      %v1349 = vadd.f32 %v492, %v1348
      %v1350 = vpop.f32.mrb[0].mxu0
      %v1351 = vadd.f32 %v492, %v1350
      %v1352 = vpop.f32.mrb[0].mxu0
      %v1353 = vadd.f32 %v497, %v1352
      %v1354 = vpop.f32.mrb[0].mxu0
      %v1355 = vadd.f32 %v497, %v1354
      %1356 = vmatprep.mubr.bf16.mxu0 %v1138
      %1357 = vmatmul.mubr.bf16.gmra.mrb[0].mxu0 %v907
      %v1358 = vpop.f32.mrb[0].mxu0
      %v1359 = vadd.f32 %v502, %v1358
      %v1360 = vpop.f32.mrb[0].mxu0
      %v1361 = vadd.f32 %v502, %v1360
      %v1362 = vpop.f32.mrb[0].mxu0
      %v1363 = vadd.f32 %v507, %v1362
      %v1364 = vpop.f32.mrb[0].mxu0
      %v1365 = vadd.f32 %v507, %v1364
      %1366 = vmatprep.mubr.bf16.mxu0 %v1141
      %1367 = vmatmul.mubr.bf16.gmra.mrb[0].mxu0 %v909
      %v1368 = vpop.f32.mrb[0].mxu0
      %v1369 = vadd.f32 %v512, %v1368
      %v1370 = vpop.f32.mrb[0].mxu0
      %v1371 = vadd.f32 %v512, %v1370
      %v1372 = vpop.f32.mrb[0].mxu0
      %v1373 = vadd.f32 %v517, %v1372
      %v1374 = vpop.f32.mrb[0].mxu0
      %v1375 = vadd.f32 %v517, %v1374
      %1376 = vmatprep.mubr.bf16.mxu0 %v1144
      %1377 = vmatmul.mubr.bf16.gmra.mrb[0].mxu0 %v911
      %v1378 = vpop.f32.mrb[0].mxu0
      %v1379 = vadd.f32 %v522, %v1378
      %v1380 = vpop.f32.mrb[0].mxu0
      %v1381 = vadd.f32 %v522, %v1380
      %v1382 = vpop.f32.mrb[0].mxu0
      %v1383 = vadd.f32 %v527, %v1382
      %v1384 = vpop.f32.mrb[0].mxu0
      %v1385 = vadd.f32 %v527, %v1384
      %1386 = vmatprep.mubr.bf16.mxu0 %v1147
      %1387 = vmatmul.mubr.bf16.gmra.mrb[0].mxu0 %v913
      %v1388 = vpop.f32.mrb[0].mxu0
      %v1389 = vadd.f32 %v532, %v1388
      %v1390 = vpop.f32.mrb[0].mxu0
      %v1391 = vadd.f32 %v532, %v1390
      %v1392 = vpop.f32.mrb[0].mxu0
      %v1393 = vadd.f32 %v537, %v1392
      %v1394 = vpop.f32.mrb[0].mxu0
      %v1395 = vadd.f32 %v537, %v1394
      %1396 = vmatprep.mubr.bf16.mxu0 %v1150
      %1397 = vmatmul.mubr.bf16.gmra.mrb[0].mxu0 %v915
      %v1398 = vpop.f32.mrb[0].mxu0
      %v1399 = vadd.f32 %v542, %v1398
      %v1400 = vpop.f32.mrb[0].mxu0
      %v1401 = vadd.f32 %v542, %v1400
      %v1402 = vpop.f32.mrb[0].mxu0
      %v1403 = vadd.f32 %v547, %v1402
      %v1404 = vpop.f32.mrb[0].mxu0
      %v1405 = vadd.f32 %v547, %v1404
      %1406 = vmatprep.mubr.bf16.mxu0 %v1153
      %1407 = vmatmul.mubr.bf16.gmra.mrb[0].mxu0 %v917
      %v1408 = vpop.f32.mrb[0].mxu0
      %v1409 = vadd.f32 %v552, %v1408
      %v1410 = vpop.f32.mrb[0].mxu0
      %v1411 = vadd.f32 %v552, %v1410
      %v1412 = vpop.f32.mrb[0].mxu0
      %v1413 = vadd.f32 %v557, %v1412
      %v1414 = vpop.f32.mrb[0].mxu0
      %v1415 = vadd.f32 %v557, %v1414
      %1416 = vmatprep.mubr.bf16.mxu0 %v1156
      %1417 = vmatmul.mubr.bf16.gmra.mrb[0].mxu0 %v919
      %v1418 = vpop.f32.mrb[0].mxu0
      %v1419 = vadd.f32 %v562, %v1418
      %v1420 = vpop.f32.mrb[0].mxu0
      %v1421 = vadd.f32 %v562, %v1420
      %v1422 = vpop.f32.mrb[0].mxu0
      %v1423 = vadd.f32 %v567, %v1422
      %v1424 = vpop.f32.mrb[0].mxu0
      %v1425 = vadd.f32 %v567, %v1424
      %1426 = vmatprep.mubr.bf16.mxu0 %v1159
      %1427 = vmatmul.mubr.bf16.gmra.mrb[0].mxu0 %v921
      %v1428 = vpop.f32.mrb[0].mxu0
      %v1429 = vadd.f32 %v572, %v1428
      %v1430 = vpop.f32.mrb[0].mxu0
      %v1431 = vadd.f32 %v572, %v1430
      %v1432 = vpop.f32.mrb[0].mxu0
      %v1433 = vadd.f32 %v577, %v1432
      %v1434 = vpop.f32.mrb[0].mxu0
      %v1435 = vadd.f32 %v577, %v1434
      %1436 = vmatprep.mubr.bf16.mxu0 %v1162
      %1437 = vmatmul.mubr.bf16.gmra.mrb[0].mxu0 %v923
      %v1438 = vpop.f32.mrb[0].mxu0
      %v1439 = vadd.f32 %v582, %v1438
      %v1440 = vpop.f32.mrb[0].mxu0
      %v1441 = vadd.f32 %v582, %v1440
      %v1442 = vpop.f32.mrb[0].mxu0
      %v1443 = vadd.f32 %v587, %v1442
      %v1444 = vpop.f32.mrb[0].mxu0
      %v1445 = vadd.f32 %v587, %v1444
      %1446 = vmatprep.mubr.bf16.mxu0 %v1165
      %1447 = vmatmul.mubr.bf16.gmra.mrb[0].mxu0 %v925
      %v1448 = vpop.f32.mrb[0].mxu0
      %v1449 = vadd.f32 %v592, %v1448
      %v1450 = vpop.f32.mrb[0].mxu0
      %v1451 = vadd.f32 %v592, %v1450
      %v1452 = vpop.f32.mrb[0].mxu0
      %v1453 = vadd.f32 %v597, %v1452
      %v1454 = vpop.f32.mrb[0].mxu0
      %v1455 = vadd.f32 %v597, %v1454
      %1456 = vmatprep.mubr.bf16.mxu0 %v1168
      %1457 = vmatmul.mubr.bf16.gmra.mrb[0].mxu0 %v927
      %v1458 = vpop.f32.mrb[0].mxu0
      %v1459 = vadd.f32 %v602, %v1458
      %v1460 = vpop.f32.mrb[0].mxu0
      %v1461 = vadd.f32 %v602, %v1460
      %v1462 = vpop.f32.mrb[0].mxu0
      %v1463 = vadd.f32 %v607, %v1462
      %v1464 = vpop.f32.mrb[0].mxu0
      %v1465 = vadd.f32 %v607, %v1464
      %1466 = vmatprep.mubr.bf16.mxu0 %v1171
      %1467 = vmatmul.mubr.bf16.gmra.mrb[0].mxu0 %v929
      %v1468 = vpop.f32.mrb[0].mxu0
      %v1469 = vadd.f32 %v612, %v1468
      %v1470 = vpop.f32.mrb[0].mxu0
      %v1471 = vadd.f32 %v612, %v1470
      %v1472 = vpop.f32.mrb[0].mxu0
      %v1473 = vadd.f32 %v617, %v1472
      %v1474 = vpop.f32.mrb[0].mxu0
      %v1475 = vadd.f32 %v617, %v1474
      %1476 = vmatprep.mubr.bf16.mxu0 %v1174
      %1477 = vmatmul.mubr.bf16.gmra.mrb[0].mxu0 %v931
      %v1478 = vpop.f32.mrb[0].mxu0
      %v1479 = vadd.f32 %v622, %v1478
      %v1480 = vpop.f32.mrb[0].mxu0
      %v1481 = vadd.f32 %v622, %v1480
      %v1482 = vpop.f32.mrb[0].mxu0
      %v1483 = vadd.f32 %v627, %v1482
      %v1484 = vpop.f32.mrb[0].mxu0
      %v1485 = vadd.f32 %v627, %v1484
      %1486 = vmatprep.mubr.bf16.mxu0 %v1177
      %1487 = vmatmul.mubr.bf16.gmra.mrb[0].mxu0 %v933
      %v1488 = vpop.f32.mrb[0].mxu0
      %v1489 = vadd.f32 %v632, %v1488
      %v1490 = vpop.f32.mrb[0].mxu0
      %v1491 = vadd.f32 %v632, %v1490
      %v1492 = vpop.f32.mrb[0].mxu0
      %v1493 = vadd.f32 %v637, %v1492
      %v1494 = vpop.f32.mrb[0].mxu0
      %v1495 = vadd.f32 %v637, %v1494
      %1496 = vmatprep.mubr.bf16.mxu0 %v1180
      %1497 = vmatmul.mubr.bf16.gmra.mrb[0].mxu0 %v935
      %v1498 = vpop.f32.mrb[0].mxu0
      %v1499 = vadd.f32 %v642, %v1498
      %v1500 = vpop.f32.mrb[0].mxu0
      %v1501 = vadd.f32 %v642, %v1500
      %v1502 = vpop.f32.mrb[0].mxu0
      %v1503 = vadd.f32 %v647, %v1502
      %v1504 = vpop.f32.mrb[0].mxu0
      %v1505 = vadd.f32 %v647, %v1504
      %1506 = vmatprep.mubr.bf16.mxu0 %v1183
      %1507 = vmatmul.mubr.bf16.gmra.mrb[0].mxu0 %v937
      %v1508 = vpop.f32.mrb[0].mxu0
      %v1509 = vadd.f32 %v652, %v1508
      %v1510 = vpop.f32.mrb[0].mxu0
      %v1511 = vadd.f32 %v652, %v1510
      %v1512 = vpop.f32.mrb[0].mxu0
      %v1513 = vadd.f32 %v657, %v1512
      %v1514 = vpop.f32.mrb[0].mxu0
      %v1515 = vadd.f32 %v657, %v1514
      %1516 = vmatprep.mubr.bf16.mxu0 %v1186
      %1517 = vmatmul.mubr.bf16.gmra.mrb[0].mxu0 %v939
      %v1518 = vpop.f32.mrb[0].mxu0
      %v1519 = vadd.f32 %v662, %v1518
      %v1520 = vpop.f32.mrb[0].mxu0
      %v1521 = vadd.f32 %v662, %v1520
      %v1522 = vpop.f32.mrb[0].mxu0
      %v1523 = vadd.f32 %v667, %v1522
      %v1524 = vpop.f32.mrb[0].mxu0
      %v1525 = vadd.f32 %v667, %v1524
      %1526 = vmatprep.mubr.bf16.mxu0 %v1189
      %1527 = vmatmul.mubr.bf16.gmra.mrb[0].mxu0 %v941
      %v1528 = vpop.f32.mrb[0].mxu0
      %v1529 = vadd.f32 %v672, %v1528
      %v1530 = vpop.f32.mrb[0].mxu0
      %v1531 = vadd.f32 %v672, %v1530
      %v1532 = vpop.f32.mrb[0].mxu0
      %v1533 = vadd.f32 %v677, %v1532
      %v1534 = vpop.f32.mrb[0].mxu0
      %v1535 = vadd.f32 %v677, %v1534
      %1536 = vmatprep.mubr.bf16.mxu0 %v1192
      %1537 = vmatmul.mubr.bf16.gmra.mrb[0].mxu0 %v943
      %v1538 = vpop.f32.mrb[0].mxu0
      %v1539 = vadd.f32 %v682, %v1538
      %v1540 = vpop.f32.mrb[0].mxu0
      %v1541 = vadd.f32 %v682, %v1540
      %v1542 = vpop.f32.mrb[0].mxu0
      %v1543 = vadd.f32 %v687, %v1542
      %v1544 = vpop.f32.mrb[0].mxu0
      %v1545 = vadd.f32 %v687, %v1544
      %1546 = vdwg.mxu0
      %v1547 = vmax.f32 %v1229, 0.0
      %v1548 = vmax.f32 %v1231, 0.0
      %v1549 = vmax.f32 %v1233, 0.0
      %v1550 = vmax.f32 %v1235, 0.0
      %v1551 = vmax.f32 %v1239, 0.0
      %v1552 = vmax.f32 %v1241, 0.0
      %v1553 = vmax.f32 %v1243, 0.0
      %v1554 = vmax.f32 %v1245, 0.0
      %v1555 = vmax.f32 %v1249, 0.0
      %v1556 = vmax.f32 %v1251, 0.0
      %v1557 = vmax.f32 %v1253, 0.0
      %v1558 = vmax.f32 %v1255, 0.0
      %v1559 = vmax.f32 %v1259, 0.0
      %v1560 = vmax.f32 %v1261, 0.0
      %v1561 = vmax.f32 %v1263, 0.0
      %v1562 = vmax.f32 %v1265, 0.0
      %v1563 = vmax.f32 %v1269, 0.0
      %v1564 = vmax.f32 %v1271, 0.0
      %v1565 = vmax.f32 %v1273, 0.0
      %v1566 = vmax.f32 %v1275, 0.0
      %v1567 = vmax.f32 %v1279, 0.0
      %v1568 = vmax.f32 %v1281, 0.0
      %v1569 = vmax.f32 %v1283, 0.0
      %v1570 = vmax.f32 %v1285, 0.0
      %v1571 = vmax.f32 %v1289, 0.0
      %v1572 = vmax.f32 %v1291, 0.0
      %v1573 = vmax.f32 %v1293, 0.0
      %v1574 = vmax.f32 %v1295, 0.0
      %v1575 = vmax.f32 %v1299, 0.0
      %v1576 = vmax.f32 %v1301, 0.0
      %v1577 = vmax.f32 %v1303, 0.0
      %v1578 = vmax.f32 %v1305, 0.0
      %v1579 = vmax.f32 %v1309, 0.0
      %v1580 = vmax.f32 %v1311, 0.0
      %v1581 = vmax.f32 %v1313, 0.0
      %v1582 = vmax.f32 %v1315, 0.0
      %v1583 = vmax.f32 %v1319, 0.0
      %v1584 = vmax.f32 %v1321, 0.0
      %v1585 = vmax.f32 %v1323, 0.0
      %v1586 = vmax.f32 %v1325, 0.0
      %v1587 = vmax.f32 %v1329, 0.0
      %v1588 = vmax.f32 %v1331, 0.0
      %v1589 = vmax.f32 %v1333, 0.0
      %v1590 = vmax.f32 %v1335, 0.0
      %v1591 = vmax.f32 %v1339, 0.0
      %v1592 = vmax.f32 %v1341, 0.0
      %v1593 = vmax.f32 %v1343, 0.0
      %v1594 = vmax.f32 %v1345, 0.0
      %v1595 = vmax.f32 %v1349, 0.0
      %v1596 = vmax.f32 %v1351, 0.0
      %v1597 = vmax.f32 %v1353, 0.0
      %v1598 = vmax.f32 %v1355, 0.0
      %v1599 = vmax.f32 %v1359, 0.0
      %v1600 = vmax.f32 %v1361, 0.0
      %v1601 = vmax.f32 %v1363, 0.0
      %v1602 = vmax.f32 %v1365, 0.0
      %v1603 = vmax.f32 %v1369, 0.0
      %v1604 = vmax.f32 %v1371, 0.0
      %v1605 = vmax.f32 %v1373, 0.0
      %v1606 = vmax.f32 %v1375, 0.0
      %v1607 = vmax.f32 %v1379, 0.0
      %v1608 = vmax.f32 %v1381, 0.0
      %v1609 = vmax.f32 %v1383, 0.0
      %v1610 = vmax.f32 %v1385, 0.0
      %v1611 = vmax.f32 %v1389, 0.0
      %v1612 = vmax.f32 %v1391, 0.0
      %v1613 = vmax.f32 %v1393, 0.0
      %v1614 = vmax.f32 %v1395, 0.0
      %v1615 = vmax.f32 %v1399, 0.0
      %v1616 = vmax.f32 %v1401, 0.0
      %v1617 = vmax.f32 %v1403, 0.0
      %v1618 = vmax.f32 %v1405, 0.0
      %v1619 = vmax.f32 %v1409, 0.0
      %v1620 = vmax.f32 %v1411, 0.0
      %v1621 = vmax.f32 %v1413, 0.0
      %v1622 = vmax.f32 %v1415, 0.0
      %v1623 = vmax.f32 %v1419, 0.0
      %v1624 = vmax.f32 %v1421, 0.0
      %v1625 = vmax.f32 %v1423, 0.0
      %v1626 = vmax.f32 %v1425, 0.0
      %v1627 = vmax.f32 %v1429, 0.0
      %v1628 = vmax.f32 %v1431, 0.0
      %v1629 = vmax.f32 %v1433, 0.0
      %v1630 = vmax.f32 %v1435, 0.0
      %v1631 = vmax.f32 %v1439, 0.0
      %v1632 = vmax.f32 %v1441, 0.0
      %v1633 = vmax.f32 %v1443, 0.0
      %v1634 = vmax.f32 %v1445, 0.0
      %v1635 = vmax.f32 %v1449, 0.0
      %v1636 = vmax.f32 %v1451, 0.0
      %v1637 = vmax.f32 %v1453, 0.0
      %v1638 = vmax.f32 %v1455, 0.0
      %v1639 = vmax.f32 %v1459, 0.0
      %v1640 = vmax.f32 %v1461, 0.0
      %v1641 = vmax.f32 %v1463, 0.0
      %v1642 = vmax.f32 %v1465, 0.0
      %v1643 = vmax.f32 %v1469, 0.0
      %v1644 = vmax.f32 %v1471, 0.0
      %v1645 = vmax.f32 %v1473, 0.0
      %v1646 = vmax.f32 %v1475, 0.0
      %v1647 = vmax.f32 %v1479, 0.0
      %v1648 = vmax.f32 %v1481, 0.0
      %v1649 = vmax.f32 %v1483, 0.0
      %v1650 = vmax.f32 %v1485, 0.0
      %v1651 = vmax.f32 %v1489, 0.0
      %v1652 = vmax.f32 %v1491, 0.0
      %v1653 = vmax.f32 %v1493, 0.0
      %v1654 = vmax.f32 %v1495, 0.0
      %v1655 = vmax.f32 %v1499, 0.0
      %v1656 = vmax.f32 %v1501, 0.0
      %v1657 = vmax.f32 %v1503, 0.0
      %v1658 = vmax.f32 %v1505, 0.0
      %v1659 = vmax.f32 %v1509, 0.0
      %v1660 = vmax.f32 %v1511, 0.0
      %v1661 = vmax.f32 %v1513, 0.0
      %v1662 = vmax.f32 %v1515, 0.0
      %v1663 = vmax.f32 %v1519, 0.0
      %v1664 = vmax.f32 %v1521, 0.0
      %v1665 = vmax.f32 %v1523, 0.0
      %v1666 = vmax.f32 %v1525, 0.0
      %v1667 = vmax.f32 %v1529, 0.0
      %v1668 = vmax.f32 %v1531, 0.0
      %v1669 = vmax.f32 %v1533, 0.0
      %v1670 = vmax.f32 %v1535, 0.0
      %v1671 = vmax.f32 %v1539, 0.0
      %v1672 = vmax.f32 %v1541, 0.0
      %v1673 = vmax.f32 %v1543, 0.0
      %v1674 = vmax.f32 %v1545, 0.0
      %1675 = vst [vmem:[%s214] sm:$0xff] %v1547
      %1676 = vst [vmem:[%s214 + $0x8] sm:$0xff] %v1548
      %1677 = vst [vmem:[%s214 + $0x10] sm:$0xff] %v1549
      %1678 = vst [vmem:[%s214 + $0x18] sm:$0xff] %v1550
      %1679 = vst [vmem:[%s214 + $0x20] sm:$0xff] %v1551
      %1680 = vst [vmem:[%s214 + $0x28] sm:$0xff] %v1552
      %1681 = vst [vmem:[%s214 + $0x30] sm:$0xff] %v1553
      %1682 = vst [vmem:[%s214 + $0x38] sm:$0xff] %v1554
      %1683 = vst [vmem:[%s214 + $0x40] sm:$0xff] %v1555
      %1684 = vst [vmem:[%s214 + $0x48] sm:$0xff] %v1556
      %1685 = vst [vmem:[%s214 + $0x50] sm:$0xff] %v1557
      %1686 = vst [vmem:[%s214 + $0x58] sm:$0xff] %v1558
      %1687 = vst [vmem:[%s214 + $0x60] sm:$0xff] %v1559
      %1688 = vst [vmem:[%s214 + $0x68] sm:$0xff] %v1560
      %1689 = vst [vmem:[%s214 + $0x70] sm:$0xff] %v1561
      %1690 = vst [vmem:[%s214 + $0x78] sm:$0xff] %v1562
      %1691 = vst [vmem:[%s214 + $0x80] sm:$0xff] %v1563
      %1692 = vst [vmem:[%s214 + $0x88] sm:$0xff] %v1564
      %1693 = vst [vmem:[%s214 + $0x90] sm:$0xff] %v1565
      %1694 = vst [vmem:[%s214 + $0x98] sm:$0xff] %v1566
      %1695 = vst [vmem:[%s214 + $0xa0] sm:$0xff] %v1567
      %1696 = vst [vmem:[%s214 + $0xa8] sm:$0xff] %v1568
      %1697 = vst [vmem:[%s214 + $0xb0] sm:$0xff] %v1569
      %1698 = vst [vmem:[%s214 + $0xb8] sm:$0xff] %v1570
      %1699 = vst [vmem:[%s214 + $0xc0] sm:$0xff] %v1571
      %1700 = vst [vmem:[%s214 + $0xc8] sm:$0xff] %v1572
      %1701 = vst [vmem:[%s214 + $0xd0] sm:$0xff] %v1573
      %1702 = vst [vmem:[%s214 + $0xd8] sm:$0xff] %v1574
      %1703 = vst [vmem:[%s214 + $0xe0] sm:$0xff] %v1575
      %1704 = vst [vmem:[%s214 + $0xe8] sm:$0xff] %v1576
      %1705 = vst [vmem:[%s214 + $0xf0] sm:$0xff] %v1577
      %1706 = vst [vmem:[%s214 + $0xf8] sm:$0xff] %v1578
      %1707 = vst [vmem:[%s214 + $0x100] sm:$0xff] %v1579
      %1708 = vst [vmem:[%s214 + $0x108] sm:$0xff] %v1580
      %1709 = vst [vmem:[%s214 + $0x110] sm:$0xff] %v1581
      %1710 = vst [vmem:[%s214 + $0x118] sm:$0xff] %v1582
      %1711 = vst [vmem:[%s214 + $0x120] sm:$0xff] %v1583
      %1712 = vst [vmem:[%s214 + $0x128] sm:$0xff] %v1584
      %1713 = vst [vmem:[%s214 + $0x130] sm:$0xff] %v1585
      %1714 = vst [vmem:[%s214 + $0x138] sm:$0xff] %v1586
      %1715 = vst [vmem:[%s214 + $0x140] sm:$0xff] %v1587
      %1716 = vst [vmem:[%s214 + $0x148] sm:$0xff] %v1588
      %1717 = vst [vmem:[%s214 + $0x150] sm:$0xff] %v1589
      %1718 = vst [vmem:[%s214 + $0x158] sm:$0xff] %v1590
      %1719 = vst [vmem:[%s214 + $0x160] sm:$0xff] %v1591
      %1720 = vst [vmem:[%s214 + $0x168] sm:$0xff] %v1592
      %1721 = vst [vmem:[%s214 + $0x170] sm:$0xff] %v1593
      %1722 = vst [vmem:[%s214 + $0x178] sm:$0xff] %v1594
      %1723 = vst [vmem:[%s214 + $0x180] sm:$0xff] %v1595
      %1724 = vst [vmem:[%s214 + $0x188] sm:$0xff] %v1596
      %1725 = vst [vmem:[%s214 + $0x190] sm:$0xff] %v1597
      %1726 = vst [vmem:[%s214 + $0x198] sm:$0xff] %v1598
      %1727 = vst [vmem:[%s214 + $0x1a0] sm:$0xff] %v1599
      %1728 = vst [vmem:[%s214 + $0x1a8] sm:$0xff] %v1600
      %1729 = vst [vmem:[%s214 + $0x1b0] sm:$0xff] %v1601
      %1730 = vst [vmem:[%s214 + $0x1b8] sm:$0xff] %v1602
      %1731 = vst [vmem:[%s214 + $0x1c0] sm:$0xff] %v1603
      %1732 = vst [vmem:[%s214 + $0x1c8] sm:$0xff] %v1604
      %1733 = vst [vmem:[%s214 + $0x1d0] sm:$0xff] %v1605
      %1734 = vst [vmem:[%s214 + $0x1d8] sm:$0xff] %v1606
      %1735 = vst [vmem:[%s214 + $0x1e0] sm:$0xff] %v1607
      %1736 = vst [vmem:[%s214 + $0x1e8] sm:$0xff] %v1608
      %1737 = vst [vmem:[%s214 + $0x1f0] sm:$0xff] %v1609
      %1738 = vst [vmem:[%s214 + $0x1f8] sm:$0xff] %v1610
      %1739 = vst [vmem:[%s214 + $0x200] sm:$0xff] %v1611
      %1740 = vst [vmem:[%s214 + $0x208] sm:$0xff] %v1612
      %1741 = vst [vmem:[%s214 + $0x210] sm:$0xff] %v1613
      %1742 = vst [vmem:[%s214 + $0x218] sm:$0xff] %v1614
      %1743 = vst [vmem:[%s214 + $0x220] sm:$0xff] %v1615
      %1744 = vst [vmem:[%s214 + $0x228] sm:$0xff] %v1616
      %1745 = vst [vmem:[%s214 + $0x230] sm:$0xff] %v1617
      %1746 = vst [vmem:[%s214 + $0x238] sm:$0xff] %v1618
      %1747 = vst [vmem:[%s214 + $0x240] sm:$0xff] %v1619
      %1748 = vst [vmem:[%s214 + $0x248] sm:$0xff] %v1620
      %1749 = vst [vmem:[%s214 + $0x250] sm:$0xff] %v1621
      %1750 = vst [vmem:[%s214 + $0x258] sm:$0xff] %v1622
      %1751 = vst [vmem:[%s214 + $0x260] sm:$0xff] %v1623
      %1752 = vst [vmem:[%s214 + $0x268] sm:$0xff] %v1624
      %1753 = vst [vmem:[%s214 + $0x270] sm:$0xff] %v1625
      %1754 = vst [vmem:[%s214 + $0x278] sm:$0xff] %v1626
      %1755 = vst [vmem:[%s214 + $0x280] sm:$0xff] %v1627
      %1756 = vst [vmem:[%s214 + $0x288] sm:$0xff] %v1628
      %1757 = vst [vmem:[%s214 + $0x290] sm:$0xff] %v1629
      %1758 = vst [vmem:[%s214 + $0x298] sm:$0xff] %v1630
      %1759 = vst [vmem:[%s214 + $0x2a0] sm:$0xff] %v1631
      %1760 = vst [vmem:[%s214 + $0x2a8] sm:$0xff] %v1632
      %1761 = vst [vmem:[%s214 + $0x2b0] sm:$0xff] %v1633
      %1762 = vst [vmem:[%s214 + $0x2b8] sm:$0xff] %v1634
      %1763 = vst [vmem:[%s214 + $0x2c0] sm:$0xff] %v1635
      %1764 = vst [vmem:[%s214 + $0x2c8] sm:$0xff] %v1636
      %1765 = vst [vmem:[%s214 + $0x2d0] sm:$0xff] %v1637
      %1766 = vst [vmem:[%s214 + $0x2d8] sm:$0xff] %v1638
      %1767 = vst [vmem:[%s214 + $0x2e0] sm:$0xff] %v1639
      %1768 = vst [vmem:[%s214 + $0x2e8] sm:$0xff] %v1640
      %1769 = vst [vmem:[%s214 + $0x2f0] sm:$0xff] %v1641
      %1770 = vst [vmem:[%s214 + $0x2f8] sm:$0xff] %v1642
      %1771 = vst [vmem:[%s214 + $0x300] sm:$0xff] %v1643
      %1772 = vst [vmem:[%s214 + $0x308] sm:$0xff] %v1644
      %1773 = vst [vmem:[%s214 + $0x310] sm:$0xff] %v1645
      %1774 = vst [vmem:[%s214 + $0x318] sm:$0xff] %v1646
      %1775 = vst [vmem:[%s214 + $0x320] sm:$0xff] %v1647
      %1776 = vst [vmem:[%s214 + $0x328] sm:$0xff] %v1648
      %1777 = vst [vmem:[%s214 + $0x330] sm:$0xff] %v1649
      %1778 = vst [vmem:[%s214 + $0x338] sm:$0xff] %v1650
      %1779 = vst [vmem:[%s214 + $0x340] sm:$0xff] %v1651
      %1780 = vst [vmem:[%s214 + $0x348] sm:$0xff] %v1652
      %1781 = vst [vmem:[%s214 + $0x350] sm:$0xff] %v1653
      %1782 = vst [vmem:[%s214 + $0x358] sm:$0xff] %v1654
      %1783 = vst [vmem:[%s214 + $0x360] sm:$0xff] %v1655
      %1784 = vst [vmem:[%s214 + $0x368] sm:$0xff] %v1656
      %1785 = vst [vmem:[%s214 + $0x370] sm:$0xff] %v1657
      %1786 = vst [vmem:[%s214 + $0x378] sm:$0xff] %v1658
      %1787 = vst [vmem:[%s214 + $0x380] sm:$0xff] %v1659
      %1788 = vst [vmem:[%s214 + $0x388] sm:$0xff] %v1660
      %1789 = vst [vmem:[%s214 + $0x390] sm:$0xff] %v1661
      %1790 = vst [vmem:[%s214 + $0x398] sm:$0xff] %v1662
      %1791 = vst [vmem:[%s214 + $0x3a0] sm:$0xff] %v1663
      %1792 = vst [vmem:[%s214 + $0x3a8] sm:$0xff] %v1664
      %1793 = vst [vmem:[%s214 + $0x3b0] sm:$0xff] %v1665
      %1794 = vst [vmem:[%s214 + $0x3b8] sm:$0xff] %v1666
      %1795 = vst [vmem:[%s214 + $0x3c0] sm:$0xff] %v1667
      %1796 = vst [vmem:[%s214 + $0x3c8] sm:$0xff] %v1668
      %1797 = vst [vmem:[%s214 + $0x3d0] sm:$0xff] %v1669
      %1798 = vst [vmem:[%s214 + $0x3d8] sm:$0xff] %v1670
      %1799 = vst [vmem:[%s214 + $0x3e0] sm:$0xff] %v1671
      %1800 = vst [vmem:[%s214 + $0x3e8] sm:$0xff] %v1672
      %1801 = vst [vmem:[%s214 + $0x3f0] sm:$0xff] %v1673
      %1802 = vst [vmem:[%s214 + $0x3f8] sm:$0xff] %v1674
      %s1803 = smul.u32 2, %s18
      %p1804 = scmp.lt.s32.totalorder %s19, 1
      %s1805 = scalar_select %p1804, %s19, 1
      %p1806 = scmp.lt.s32.totalorder %s1803, 1
      %s1807 = scalar_select %p1806, %s1803, 1
      %s1808 = smul.addr %s1805, 128
      %s1809 = sadd.s32 %s1807, %s1808
      %s1810 = smul.addr %s1809, 8
      %s1811 = scalar_lea.vmem %s3, %s1810
      // Predicated region
      $region33: #{sppm_forward.3} parent=31 // pred_check
        %p1812 = pneg %p119
      $region34: #{sppm_forward.3} parent=31 // pred_check_branch
        %1814 = sbr.rel (%p1812) target = $region36
      $region35: #{sppm_forward.3} parent=31 // pred_region
        %s1815 = smul.u32 2, %s18
      $region36: #{sppm_forward.3} parent=31 // pred_fallthru
        _
    $region32: #{sppm_forward.3} parent=5 // pred_fallthru
      _
    %p1816 = scmp.le.s32.totalorder 2, %s9
    // Predicated region
    $region37: #{sppm_forward.3} parent=5 // pred_check
      %p1817 = pneg %p1816
    $region38: #{sppm_forward.3} parent=5 // pred_check_branch
      %1819 = sbr.rel (%p1817) target = $region40
    $region39: #{sppm_forward.3} parent=5 // pred_region
      %s1820 = ssub.s32 %s9, 2
      // Predicated region
      $region41: #{sppm_forward.3} parent=39 // pred_check
        %p1821 = pneg %p125
      $region42: #{sppm_forward.3} parent=39 // pred_check_branch
        %1823 = sbr.rel (%p1821) target = $region44
      $region43: #{sppm_forward.3} parent=39 // pred_region
        %s1824 = smul.u32 2, %s20
        %p1825 = scmp.lt.s32.totalorder %s21, 1
        %s1826 = scalar_select %p1825, %s21, 1
        %p1827 = scmp.lt.s32.totalorder %s1824, 1
        %s1828 = scalar_select %p1827, %s1824, 1
        %s1829 = smul.addr %s1826, 128
        %s1830 = sadd.s32 %s1828, %s1829
        %s1831 = smul.addr %s1830, 8
        %s1832 = scalar_lea.vmem %s3, %s1831
      $region44: #{sppm_forward.3} parent=39 // pred_fallthru
        _
    $region40: #{sppm_forward.3} parent=5 // pred_fallthru
      _
  $region6: #{sppm_forward.3} parent=0 // loop_footer
    %s13 = sadd.s32 1, %s9
  $region7: #{sppm_forward.3} parent=0 // loop_footer_branch
    %8 = sbr.rel target = $region3
  $region8: #{sppm_forward.3} parent=0 // loop_exit
    _

// kernel: sppm_forward.2
$region0: #{sppm_forward.2}
  #allocation0 [shape = 'u32[]', space=smem, size = 0x4, offset = 0x4, fixed_abs, tag = 'smem constant byte address 0x4 - core index']
  #allocation1 [shape = 'u32[144,128]{1,0:T(1,128)}', space=vmem, size = 0x12000, scoped, tag = 'internal scratch']
  #allocation2 [shape = 'f32[512,21]{1,0:T(8,128)}', space=vmem, size = 0x40000, scoped, tag = 'scratch operand']
  %s0 = inlined_call_operand.vmem [shape: f32[2,512,256], index: 0, kind: input, shape index: {}]
  %s1 = inlined_call_operand.vmem [shape: f32[256,21], index: 1, kind: input, shape index: {}]
  %s2 = inlined_call_operand.vmem [shape: f32[1536,512], index: 2, kind: input, shape index: {}]
  %s3 = inlined_call_operand.vmem [shape: f32[1536,21], index: 3, kind: input, shape index: {}]
  %s4 = inlined_call_operand.vmem [shape: f32[1536,1], index: 4, kind: input, shape index: {}]
  %s5 = inlined_call_operand.vmem [shape: f32[2,1536,21], index: 5, kind: output, shape index: {}]
  %s6 = sld [smem:[#allocation0]]
  $region61: #{sppm_forward.2} parent=0
    _
  %s8 = ssub.s32 1, %s6
  %s9 = scalar_select 0, %s8, %s6
  loop: start=0, step=1, limit=4
  $region2: #{sppm_forward.2} parent=0 // loop_pre_header
    _
  $region3: #{sppm_forward.2} parent=0 // loop_header
    %s11 = sphi 0, %s15
    %p12 = scmp.ge.s32.totalorder %s11, 4
    %s18 = sphi 0, %s30
    %s19 = sphi 0, %s26
    %s20 = sphi 0, %s18
    %s21 = sphi 0, %s19
    %s22 = sphi 0, %s20
    %s23 = sphi 0, %s21
    %s35 = sphi 0, %s37
    %s38 = sphi 0, %s35
    %s39 = sphi 0, %s38
    %s55 = sphi 0, %s39
    %s61 = sphi 0, %s63
    %s64 = sphi 0, %s61
    %s65 = sphi 0, %s64
    %s81 = sphi 0, %s65
    %s85 = sphi 0, %s85
    %s87 = sphi 0, %s85
    %s88 = sphi 0, %s87
    %s102 = sphi 0, %s88
    %s106 = sphi 0, %s106
    %s108 = sphi 0, %s106
    %s109 = sphi 0, %s108
    %s123 = sphi 0, %s109
    %s127 = sphi 0, %s127
    %s129 = sphi 0, %s127
    %s130 = sphi 0, %s129
    %s144 = sphi 0, %s130
    %s150 = sphi 0, %s152
    %s153 = sphi 0, %s150
    %s154 = sphi 0, %s153
    %s170 = sphi 0, %s154
  $region4: #{sppm_forward.2} parent=0 // loop_header_branch
    %14 = sbr.rel (%p12) target = $region8
  $region5: #{sppm_forward.2} parent=0 // loop_body
    %s16 = ssub.s32 %s11, 1
    %s17 = ssub.s32 %s11, 2
    %s24 = sadd.s32 1, %s19
    %p25 = scmp.ge.s32.totalorder %s24, 1
    %s26 = scalar_select %p25, 0, %s24
    %s27 = sadd.s32 1, %s18
    %s28 = scalar_select %p25, %s27, %s18
    %p29 = scmp.ge.s32.totalorder %s28, 2
    %s30 = scalar_select %p29, 0, %s28
    %s31 = ssub.s32 %s18, %s30
    %s32 = ssub.s32 %s19, %s26
    %s33 = sor.u32 %s31, %s32
    %p34 = scmp.eq.s32.totalorder %s33, 0
    %s36 = sadd.s32 %s35, 1
    %s37 = scalar_select %p34, %s35, %s36
    %p40 = pneg %p34
    %p41 = scmp.eq.s32.totalorder %s11, 1
    %p42 = por %p40, %p41
    %p43 = scmp.ne.s32.totalorder %s35, %s38
    %p44 = scmp.eq.s32.totalorder %s11, 0
    %p45 = por %p43, %p44
    %p46 = scmp.ne.s32.totalorder %s35, %s38
    %p47 = scmp.eq.s32.totalorder %s16, 1
    %p48 = por %p46, %p47
    %p49 = scmp.ne.s32.totalorder %s38, %s39
    %p50 = scmp.eq.s32.totalorder %s16, 0
    %p51 = por %p49, %p50
    %p52 = scmp.ne.s32.totalorder %s38, %s39
    %p53 = scmp.eq.s32.totalorder %s17, 1
    %p54 = por %p52, %p53
    %p56 = scmp.ne.s32.totalorder %s39, %s55
    %p57 = scmp.eq.s32.totalorder %s17, 0
    %p58 = por %p56, %p57
    %s59 = ssub.s32 %s19, %s26
    %p60 = scmp.eq.s32.totalorder %s59, 0
    %s62 = sadd.s32 %s61, 1
    %s63 = scalar_select %p60, %s61, %s62
    %p66 = pneg %p60
    %p67 = scmp.eq.s32.totalorder %s11, 1
    %p68 = por %p66, %p67
    %p69 = scmp.ne.s32.totalorder %s61, %s64
    %p70 = scmp.eq.s32.totalorder %s11, 0
    %p71 = por %p69, %p70
    %p72 = scmp.ne.s32.totalorder %s61, %s64
    %p73 = scmp.eq.s32.totalorder %s16, 1
    %p74 = por %p72, %p73
    %p75 = scmp.ne.s32.totalorder %s64, %s65
    %p76 = scmp.eq.s32.totalorder %s16, 0
    %p77 = por %p75, %p76
    %p78 = scmp.ne.s32.totalorder %s64, %s65
    %p79 = scmp.eq.s32.totalorder %s17, 1
    %p80 = por %p78, %p79
    %p82 = scmp.ne.s32.totalorder %s65, %s81
    %p83 = scmp.eq.s32.totalorder %s17, 0
    %p84 = por %p82, %p83
    %s86 = sadd.s32 %s85, 1
    %p89 = scmp.eq.s32.totalorder %s11, 1
    %p90 = scmp.ne.s32.totalorder %s85, %s87
    %p91 = scmp.eq.s32.totalorder %s11, 0
    %p92 = por %p90, %p91
    %p93 = scmp.ne.s32.totalorder %s85, %s87
    %p94 = scmp.eq.s32.totalorder %s16, 1
    %p95 = por %p93, %p94
    %p96 = scmp.ne.s32.totalorder %s87, %s88
    %p97 = scmp.eq.s32.totalorder %s16, 0
    %p98 = por %p96, %p97
    %p99 = scmp.ne.s32.totalorder %s87, %s88
    %p100 = scmp.eq.s32.totalorder %s17, 1
    %p101 = por %p99, %p100
    %p103 = scmp.ne.s32.totalorder %s88, %s102
    %p104 = scmp.eq.s32.totalorder %s17, 0
    %p105 = por %p103, %p104
    %s107 = sadd.s32 %s106, 1
    %p110 = scmp.eq.s32.totalorder %s11, 1
    %p111 = scmp.ne.s32.totalorder %s106, %s108
    %p112 = scmp.eq.s32.totalorder %s11, 0
    %p113 = por %p111, %p112
    %p114 = scmp.ne.s32.totalorder %s106, %s108
    %p115 = scmp.eq.s32.totalorder %s16, 1
    %p116 = por %p114, %p115
    %p117 = scmp.ne.s32.totalorder %s108, %s109
    %p118 = scmp.eq.s32.totalorder %s16, 0
    %p119 = por %p117, %p118
    %p120 = scmp.ne.s32.totalorder %s108, %s109
    %p121 = scmp.eq.s32.totalorder %s17, 1
    %p122 = por %p120, %p121
    %p124 = scmp.ne.s32.totalorder %s109, %s123
    %p125 = scmp.eq.s32.totalorder %s17, 0
    %p126 = por %p124, %p125
    %s128 = sadd.s32 %s127, 1
    %p131 = scmp.eq.s32.totalorder %s11, 1
    %p132 = scmp.ne.s32.totalorder %s127, %s129
    %p133 = scmp.eq.s32.totalorder %s11, 0
    %p134 = por %p132, %p133
    %p135 = scmp.ne.s32.totalorder %s127, %s129
    %p136 = scmp.eq.s32.totalorder %s16, 1
    %p137 = por %p135, %p136
    %p138 = scmp.ne.s32.totalorder %s129, %s130
    %p139 = scmp.eq.s32.totalorder %s16, 0
    %p140 = por %p138, %p139
    %p141 = scmp.ne.s32.totalorder %s129, %s130
    %p142 = scmp.eq.s32.totalorder %s17, 1
    %p143 = por %p141, %p142
    %p145 = scmp.ne.s32.totalorder %s130, %s144
    %p146 = scmp.eq.s32.totalorder %s17, 0
    %p147 = por %p145, %p146
    %s148 = ssub.s32 %s18, %s30
    %p149 = scmp.eq.s32.totalorder %s148, 0
    %s151 = sadd.s32 %s150, 1
    %s152 = scalar_select %p149, %s150, %s151
    %p155 = pneg %p149
    %p156 = scmp.eq.s32.totalorder %s11, 1
    %p157 = por %p155, %p156
    %p158 = scmp.ne.s32.totalorder %s150, %s153
    %p159 = scmp.eq.s32.totalorder %s11, 0
    %p160 = por %p158, %p159
    %p161 = scmp.ne.s32.totalorder %s150, %s153
    %p162 = scmp.eq.s32.totalorder %s16, 1
    %p163 = por %p161, %p162
    %p164 = scmp.ne.s32.totalorder %s153, %s154
    %p165 = scmp.eq.s32.totalorder %s16, 0
    %p166 = por %p164, %p165
    %p167 = scmp.ne.s32.totalorder %s153, %s154
    %p168 = scmp.eq.s32.totalorder %s17, 1
    %p169 = por %p167, %p168
    %p171 = scmp.ne.s32.totalorder %s154, %s170
    %p172 = scmp.eq.s32.totalorder %s17, 0
    %p173 = por %p171, %p172
    %p174 = scmp.le.s32.totalorder 1, %s11
    %p175 = scmp.lt.s32.totalorder %s11, 3
    %p176 = pnand %p174, %p175
    %p177 = pneg %p176
    // Predicated region
    $region9: #{sppm_forward.2} parent=5 // pred_check
      _
    $region10: #{sppm_forward.2} parent=5 // pred_check_branch
      %179 = sbr.rel (%p176) target = $region12
    $region11: #{sppm_forward.2} parent=5 // pred_region
      %s180 = ssub.s32 %s11, 1
      // Predicated region
      $region13: #{sppm_forward.2} parent=11 // pred_check
        %p181 = pneg %p77
      $region14: #{sppm_forward.2} parent=11 // pred_check_branch
        %183 = sbr.rel (%p181) target = $region16
      $region15: #{sppm_forward.2} parent=11 // pred_region
        %s184 = smul.u32 32, %s21
        %p185 = scmp.lt.s32.totalorder %s184, 31
        %s186 = scalar_select %p185, %s184, 31
        %s187 = smul.addr %s186, 8
        %s188 = scalar_lea.vmem %s1, %s187
        %s189 = smul.u32 32, %s21
      $region16: #{sppm_forward.2} parent=11 // pred_fallthru
        _
      // Predicated region
      $region17: #{sppm_forward.2} parent=11 // pred_check
        %p190 = pneg %p98
      $region18: #{sppm_forward.2} parent=11 // pred_check_branch
        %192 = sbr.rel (%p190) target = $region20
      $region19: #{sppm_forward.2} parent=11 // pred_region
        _
      $region20: #{sppm_forward.2} parent=11 // pred_fallthru
        _
      // Predicated region
      $region21: #{sppm_forward.2} parent=11 // pred_check
        %p193 = pneg %p119
      $region22: #{sppm_forward.2} parent=11 // pred_check_branch
        %195 = sbr.rel (%p193) target = $region24
      $region23: #{sppm_forward.2} parent=11 // pred_region
        _
      $region24: #{sppm_forward.2} parent=11 // pred_fallthru
        _
      // Predicated region
      $region25: #{sppm_forward.2} parent=11 // pred_check
        %p196 = pneg %p140
      $region26: #{sppm_forward.2} parent=11 // pred_check_branch
        %198 = sbr.rel (%p196) target = $region28
      $region27: #{sppm_forward.2} parent=11 // pred_region
        _
      $region28: #{sppm_forward.2} parent=11 // pred_fallthru
        _
    $region12: #{sppm_forward.2} parent=5 // pred_fallthru
      _
    %p199 = scmp.lt.s32.totalorder %s11, 2
    // Predicated region
    $region29: #{sppm_forward.2} parent=5 // pred_check
      %p200 = pneg %p199
    $region30: #{sppm_forward.2} parent=5 // pred_check_branch
      %202 = sbr.rel (%p200) target = $region32
    $region31: #{sppm_forward.2} parent=5 // pred_region
      // Predicated region
      $region33: #{sppm_forward.2} parent=31 // pred_check
        %p203 = pneg %p45
      $region34: #{sppm_forward.2} parent=31 // pred_check_branch
        %205 = sbr.rel (%p203) target = $region36
      $region35: #{sppm_forward.2} parent=31 // pred_region
        %s206 = smul.u32 2, %s19
        %p207 = scmp.lt.s32.totalorder %s18, 1
        %s208 = scalar_select %p207, %s18, 1
        %p209 = scmp.lt.s32.totalorder %s206, 1
        %s210 = scalar_select %p209, %s206, 1
        %s211 = smul.addr %s208, 128
        %s212 = sadd.s32 %s210, %s211
        %s213 = smul.addr %s212, 8
        %s214 = scalar_lea.vmem %s0, %s213
        %s215 = smul.u32 2, %s19
      $region36: #{sppm_forward.2} parent=31 // pred_fallthru
        _
    $region32: #{sppm_forward.2} parent=5 // pred_fallthru
      _
    %p216 = scmp.le.s32.totalorder 1, %s11
    %p217 = scmp.lt.s32.totalorder %s11, 3
    %p218 = pnand %p216, %p217
    %p219 = pneg %p218
    // Predicated region
    $region37: #{sppm_forward.2} parent=5 // pred_check
      _
    $region38: #{sppm_forward.2} parent=5 // pred_check_branch
      %221 = sbr.rel (%p218) target = $region40
    $region39: #{sppm_forward.2} parent=5 // pred_region
      %s222 = ssub.s32 %s11, 1
      %s223 = smul.u32 2, %s21
      %p224 = scmp.lt.s32.totalorder %s20, 1
      %s225 = scalar_select %p224, %s20, 1
      %p226 = scmp.lt.s32.totalorder %s223, 1
      %s227 = scalar_select %p226, %s223, 1
      %s228 = smul.addr %s225, 128
      %s229 = sadd.s32 %s227, %s228
      %s230 = smul.addr %s229, 8
      %s231 = scalar_lea.vmem %s0, %s230
      %p232 = pneg %p51
      %p233 = pneg %p48
      %s234 = smul.u32 32, %s21
      %p235 = scmp.lt.s32.totalorder %s234, 31
      %s236 = scalar_select %p235, %s234, 31
      %s237 = smul.addr %s236, 8
      %s238 = scalar_lea.vmem %s1, %s237
      %p239 = pneg %p77
      %p240 = pneg %p74
      %p241 = pneg %p98
      %p242 = pneg %p95
      %p243 = pneg %p119
      %p244 = pneg %p116
      %p245 = pneg %p140
      %p246 = pneg %p137
      %p247 = pneg %p166
      %p248 = pneg %p163
      %p249 = scmp.lt.s32.totalorder %s20, 1
      %s250 = scalar_select %p249, %s20, 1
      %s251 = smul.addr %s250, 192
      %s252 = smul.addr %s251, 8
      %s253 = scalar_lea.vmem %s5, %s252
      %s254 = smul.u32 2, %s21
      %p255 = scmp.lt.s32.totalorder %s20, 1
      %s256 = scalar_select %p255, %s20, 1
      %p257 = scmp.lt.s32.totalorder %s254, 1
      %s258 = scalar_select %p257, %s254, 1
      %s259 = smul.addr %s256, 128
      %s260 = sadd.s32 %s258, %s259
      %s261 = smul.addr %s260, 8
      %s262 = scalar_lea.vmem %s0, %s261
      %s263 = smul.u32 2, %s21
      %s264 = smul.u32 32, %s21
      %p265 = scmp.lt.s32.totalorder %s264, 31
      %s266 = scalar_select %p265, %s264, 31
      %s267 = smul.addr %s266, 8
      %s268 = scalar_lea.vmem %s1, %s267
      %s269 = smul.u32 32, %s21
      %p270 = scmp.lt.s32.totalorder %s20, 1
      %s271 = scalar_select %p270, %s20, 1
      %s272 = smul.addr %s271, 192
      %s273 = smul.addr %s272, 8
      %s274 = scalar_lea.vmem %s5, %s273
      %p275 = scmp.eq.s32.totalorder %s21, 0
      // Predicated region
      $region41: #{sppm_forward.2} parent=39 // pred_check
        %p276 = pneg %p275
      $region42: #{sppm_forward.2} parent=39 // pred_check_branch
        %278 = sbr.rel (%p276) target = $region44
      $region43: #{sppm_forward.2} parent=39 // pred_region
        %vm279 = vcmask 171008
        %280 = vst.msk [vmem:[#allocation2] sm:$0xff] %vm279, 0.0
        %281 = vst.msk [vmem:[#allocation2 + $0x8] sm:$0xff] %vm279, 0.0
        %282 = vst.msk [vmem:[#allocation2 + $0x10] sm:$0xff] %vm279, 0.0
        %283 = vst.msk [vmem:[#allocation2 + $0x18] sm:$0xff] %vm279, 0.0
        %284 = vst.msk [vmem:[#allocation2 + $0x20] sm:$0xff] %vm279, 0.0
        %285 = vst.msk [vmem:[#allocation2 + $0x28] sm:$0xff] %vm279, 0.0
        %286 = vst.msk [vmem:[#allocation2 + $0x30] sm:$0xff] %vm279, 0.0
        %287 = vst.msk [vmem:[#allocation2 + $0x38] sm:$0xff] %vm279, 0.0
        %288 = vst.msk [vmem:[#allocation2 + $0x40] sm:$0xff] %vm279, 0.0
        %289 = vst.msk [vmem:[#allocation2 + $0x48] sm:$0xff] %vm279, 0.0
        %290 = vst.msk [vmem:[#allocation2 + $0x50] sm:$0xff] %vm279, 0.0
        %291 = vst.msk [vmem:[#allocation2 + $0x58] sm:$0xff] %vm279, 0.0
        %292 = vst.msk [vmem:[#allocation2 + $0x60] sm:$0xff] %vm279, 0.0
        %293 = vst.msk [vmem:[#allocation2 + $0x68] sm:$0xff] %vm279, 0.0
        %294 = vst.msk [vmem:[#allocation2 + $0x70] sm:$0xff] %vm279, 0.0
        %295 = vst.msk [vmem:[#allocation2 + $0x78] sm:$0xff] %vm279, 0.0
        %296 = vst.msk [vmem:[#allocation2 + $0x80] sm:$0xff] %vm279, 0.0
        %297 = vst.msk [vmem:[#allocation2 + $0x88] sm:$0xff] %vm279, 0.0
        %298 = vst.msk [vmem:[#allocation2 + $0x90] sm:$0xff] %vm279, 0.0
        %299 = vst.msk [vmem:[#allocation2 + $0x98] sm:$0xff] %vm279, 0.0
        %300 = vst.msk [vmem:[#allocation2 + $0xa0] sm:$0xff] %vm279, 0.0
        %301 = vst.msk [vmem:[#allocation2 + $0xa8] sm:$0xff] %vm279, 0.0
        %302 = vst.msk [vmem:[#allocation2 + $0xb0] sm:$0xff] %vm279, 0.0
        %303 = vst.msk [vmem:[#allocation2 + $0xb8] sm:$0xff] %vm279, 0.0
        %304 = vst.msk [vmem:[#allocation2 + $0xc0] sm:$0xff] %vm279, 0.0
        %305 = vst.msk [vmem:[#allocation2 + $0xc8] sm:$0xff] %vm279, 0.0
        %306 = vst.msk [vmem:[#allocation2 + $0xd0] sm:$0xff] %vm279, 0.0
        %307 = vst.msk [vmem:[#allocation2 + $0xd8] sm:$0xff] %vm279, 0.0
        %308 = vst.msk [vmem:[#allocation2 + $0xe0] sm:$0xff] %vm279, 0.0
        %309 = vst.msk [vmem:[#allocation2 + $0xe8] sm:$0xff] %vm279, 0.0
        %310 = vst.msk [vmem:[#allocation2 + $0xf0] sm:$0xff] %vm279, 0.0
        %311 = vst.msk [vmem:[#allocation2 + $0xf8] sm:$0xff] %vm279, 0.0
        %312 = vst.msk [vmem:[#allocation2 + $0x100] sm:$0xff] %vm279, 0.0
        %313 = vst.msk [vmem:[#allocation2 + $0x108] sm:$0xff] %vm279, 0.0
        %314 = vst.msk [vmem:[#allocation2 + $0x110] sm:$0xff] %vm279, 0.0
        %315 = vst.msk [vmem:[#allocation2 + $0x118] sm:$0xff] %vm279, 0.0
        %316 = vst.msk [vmem:[#allocation2 + $0x120] sm:$0xff] %vm279, 0.0
        %317 = vst.msk [vmem:[#allocation2 + $0x128] sm:$0xff] %vm279, 0.0
        %318 = vst.msk [vmem:[#allocation2 + $0x130] sm:$0xff] %vm279, 0.0
        %319 = vst.msk [vmem:[#allocation2 + $0x138] sm:$0xff] %vm279, 0.0
        %320 = vst.msk [vmem:[#allocation2 + $0x140] sm:$0xff] %vm279, 0.0
        %321 = vst.msk [vmem:[#allocation2 + $0x148] sm:$0xff] %vm279, 0.0
        %322 = vst.msk [vmem:[#allocation2 + $0x150] sm:$0xff] %vm279, 0.0
        %323 = vst.msk [vmem:[#allocation2 + $0x158] sm:$0xff] %vm279, 0.0
        %324 = vst.msk [vmem:[#allocation2 + $0x160] sm:$0xff] %vm279, 0.0
        %325 = vst.msk [vmem:[#allocation2 + $0x168] sm:$0xff] %vm279, 0.0
        %326 = vst.msk [vmem:[#allocation2 + $0x170] sm:$0xff] %vm279, 0.0
        %327 = vst.msk [vmem:[#allocation2 + $0x178] sm:$0xff] %vm279, 0.0
        %328 = vst.msk [vmem:[#allocation2 + $0x180] sm:$0xff] %vm279, 0.0
        %329 = vst.msk [vmem:[#allocation2 + $0x188] sm:$0xff] %vm279, 0.0
        %330 = vst.msk [vmem:[#allocation2 + $0x190] sm:$0xff] %vm279, 0.0
        %331 = vst.msk [vmem:[#allocation2 + $0x198] sm:$0xff] %vm279, 0.0
        %332 = vst.msk [vmem:[#allocation2 + $0x1a0] sm:$0xff] %vm279, 0.0
        %333 = vst.msk [vmem:[#allocation2 + $0x1a8] sm:$0xff] %vm279, 0.0
        %334 = vst.msk [vmem:[#allocation2 + $0x1b0] sm:$0xff] %vm279, 0.0
        %335 = vst.msk [vmem:[#allocation2 + $0x1b8] sm:$0xff] %vm279, 0.0
        %336 = vst.msk [vmem:[#allocation2 + $0x1c0] sm:$0xff] %vm279, 0.0
        %337 = vst.msk [vmem:[#allocation2 + $0x1c8] sm:$0xff] %vm279, 0.0
        %338 = vst.msk [vmem:[#allocation2 + $0x1d0] sm:$0xff] %vm279, 0.0
        %339 = vst.msk [vmem:[#allocation2 + $0x1d8] sm:$0xff] %vm279, 0.0
        %340 = vst.msk [vmem:[#allocation2 + $0x1e0] sm:$0xff] %vm279, 0.0
        %341 = vst.msk [vmem:[#allocation2 + $0x1e8] sm:$0xff] %vm279, 0.0
        %342 = vst.msk [vmem:[#allocation2 + $0x1f0] sm:$0xff] %vm279, 0.0
        %343 = vst.msk [vmem:[#allocation2 + $0x1f8] sm:$0xff] %vm279, 0.0
      $region44: #{sppm_forward.2} parent=39 // pred_fallthru
        _
      %v344 = vld [vmem:[#allocation2] sm:$0xff]
      %v345 = vld [vmem:[#allocation2 + $0x8] sm:$0xff]
      %v346 = vld [vmem:[#allocation2 + $0x10] sm:$0xff]
      %v347 = vld [vmem:[#allocation2 + $0x18] sm:$0xff]
      %v348 = vld [vmem:[#allocation2 + $0x20] sm:$0xff]
      %v349 = vld [vmem:[#allocation2 + $0x28] sm:$0xff]
      %v350 = vld [vmem:[#allocation2 + $0x30] sm:$0xff]
      %v351 = vld [vmem:[#allocation2 + $0x38] sm:$0xff]
      %v352 = vld [vmem:[#allocation2 + $0x40] sm:$0xff]
      %v353 = vld [vmem:[#allocation2 + $0x48] sm:$0xff]
      %v354 = vld [vmem:[#allocation2 + $0x50] sm:$0xff]
      %v355 = vld [vmem:[#allocation2 + $0x58] sm:$0xff]
      %v356 = vld [vmem:[#allocation2 + $0x60] sm:$0xff]
      %v357 = vld [vmem:[#allocation2 + $0x68] sm:$0xff]
      %v358 = vld [vmem:[#allocation2 + $0x70] sm:$0xff]
      %v359 = vld [vmem:[#allocation2 + $0x78] sm:$0xff]
      %v360 = vld [vmem:[#allocation2 + $0x80] sm:$0xff]
      %v361 = vld [vmem:[#allocation2 + $0x88] sm:$0xff]
      %v362 = vld [vmem:[#allocation2 + $0x90] sm:$0xff]
      %v363 = vld [vmem:[#allocation2 + $0x98] sm:$0xff]
      %v364 = vld [vmem:[#allocation2 + $0xa0] sm:$0xff]
      %v365 = vld [vmem:[#allocation2 + $0xa8] sm:$0xff]
      %v366 = vld [vmem:[#allocation2 + $0xb0] sm:$0xff]
      %v367 = vld [vmem:[#allocation2 + $0xb8] sm:$0xff]
      %v368 = vld [vmem:[#allocation2 + $0xc0] sm:$0xff]
      %v369 = vld [vmem:[#allocation2 + $0xc8] sm:$0xff]
      %v370 = vld [vmem:[#allocation2 + $0xd0] sm:$0xff]
      %v371 = vld [vmem:[#allocation2 + $0xd8] sm:$0xff]
      %v372 = vld [vmem:[#allocation2 + $0xe0] sm:$0xff]
      %v373 = vld [vmem:[#allocation2 + $0xe8] sm:$0xff]
      %v374 = vld [vmem:[#allocation2 + $0xf0] sm:$0xff]
      %v375 = vld [vmem:[#allocation2 + $0xf8] sm:$0xff]
      %v376 = vld [vmem:[#allocation2 + $0x100] sm:$0xff]
      %v377 = vld [vmem:[#allocation2 + $0x108] sm:$0xff]
      %v378 = vld [vmem:[#allocation2 + $0x110] sm:$0xff]
      %v379 = vld [vmem:[#allocation2 + $0x118] sm:$0xff]
      %v380 = vld [vmem:[#allocation2 + $0x120] sm:$0xff]
      %v381 = vld [vmem:[#allocation2 + $0x128] sm:$0xff]
      %v382 = vld [vmem:[#allocation2 + $0x130] sm:$0xff]
      %v383 = vld [vmem:[#allocation2 + $0x138] sm:$0xff]
      %v384 = vld [vmem:[#allocation2 + $0x140] sm:$0xff]
      %v385 = vld [vmem:[#allocation2 + $0x148] sm:$0xff]
      %v386 = vld [vmem:[#allocation2 + $0x150] sm:$0xff]
      %v387 = vld [vmem:[#allocation2 + $0x158] sm:$0xff]
      %v388 = vld [vmem:[#allocation2 + $0x160] sm:$0xff]
      %v389 = vld [vmem:[#allocation2 + $0x168] sm:$0xff]
      %v390 = vld [vmem:[#allocation2 + $0x170] sm:$0xff]
      %v391 = vld [vmem:[#allocation2 + $0x178] sm:$0xff]
      %v392 = vld [vmem:[#allocation2 + $0x180] sm:$0xff]
      %v393 = vld [vmem:[#allocation2 + $0x188] sm:$0xff]
      %v394 = vld [vmem:[#allocation2 + $0x190] sm:$0xff]
      %v395 = vld [vmem:[#allocation2 + $0x198] sm:$0xff]
      %v396 = vld [vmem:[#allocation2 + $0x1a0] sm:$0xff]
      %v397 = vld [vmem:[#allocation2 + $0x1a8] sm:$0xff]
      %v398 = vld [vmem:[#allocation2 + $0x1b0] sm:$0xff]
      %v399 = vld [vmem:[#allocation2 + $0x1b8] sm:$0xff]
      %v400 = vld [vmem:[#allocation2 + $0x1c0] sm:$0xff]
      %v401 = vld [vmem:[#allocation2 + $0x1c8] sm:$0xff]
      %v402 = vld [vmem:[#allocation2 + $0x1d0] sm:$0xff]
      %v403 = vld [vmem:[#allocation2 + $0x1d8] sm:$0xff]
      %v404 = vld [vmem:[#allocation2 + $0x1e0] sm:$0xff]
      %v405 = vld [vmem:[#allocation2 + $0x1e8] sm:$0xff]
      %v406 = vld [vmem:[#allocation2 + $0x1f0] sm:$0xff]
      %v407 = vld [vmem:[#allocation2 + $0x1f8] sm:$0xff]
      %v408 = vld [vmem:[%s262] sm:$0xff]
      %v409 = vld [vmem:[%s262 + $0x8] sm:$0xff]
      %v410 = vld [vmem:[%s262 + $0x10] sm:$0xff]
      %v411 = vld [vmem:[%s262 + $0x18] sm:$0xff]
      %v412 = vld [vmem:[%s262 + $0x20] sm:$0xff]
      %v413 = vld [vmem:[%s262 + $0x28] sm:$0xff]
      %v414 = vld [vmem:[%s262 + $0x30] sm:$0xff]
      %v415 = vld [vmem:[%s262 + $0x38] sm:$0xff]
      %v416 = vld [vmem:[%s262 + $0x40] sm:$0xff]
      %v417 = vld [vmem:[%s262 + $0x48] sm:$0xff]
      %v418 = vld [vmem:[%s262 + $0x50] sm:$0xff]
      %v419 = vld [vmem:[%s262 + $0x58] sm:$0xff]
      %v420 = vld [vmem:[%s262 + $0x60] sm:$0xff]
      %v421 = vld [vmem:[%s262 + $0x68] sm:$0xff]
      %v422 = vld [vmem:[%s262 + $0x70] sm:$0xff]
      %v423 = vld [vmem:[%s262 + $0x78] sm:$0xff]
      %v424 = vld [vmem:[%s262 + $0x80] sm:$0xff]
      %v425 = vld [vmem:[%s262 + $0x88] sm:$0xff]
      %v426 = vld [vmem:[%s262 + $0x90] sm:$0xff]
      %v427 = vld [vmem:[%s262 + $0x98] sm:$0xff]
      %v428 = vld [vmem:[%s262 + $0xa0] sm:$0xff]
      %v429 = vld [vmem:[%s262 + $0xa8] sm:$0xff]
      %v430 = vld [vmem:[%s262 + $0xb0] sm:$0xff]
      %v431 = vld [vmem:[%s262 + $0xb8] sm:$0xff]
      %v432 = vld [vmem:[%s262 + $0xc0] sm:$0xff]
      %v433 = vld [vmem:[%s262 + $0xc8] sm:$0xff]
      %v434 = vld [vmem:[%s262 + $0xd0] sm:$0xff]
      %v435 = vld [vmem:[%s262 + $0xd8] sm:$0xff]
      %v436 = vld [vmem:[%s262 + $0xe0] sm:$0xff]
      %v437 = vld [vmem:[%s262 + $0xe8] sm:$0xff]
      %v438 = vld [vmem:[%s262 + $0xf0] sm:$0xff]
      %v439 = vld [vmem:[%s262 + $0xf8] sm:$0xff]
      %v440 = vld [vmem:[%s262 + $0x100] sm:$0xff]
      %v441 = vld [vmem:[%s262 + $0x108] sm:$0xff]
      %v442 = vld [vmem:[%s262 + $0x110] sm:$0xff]
      %v443 = vld [vmem:[%s262 + $0x118] sm:$0xff]
      %v444 = vld [vmem:[%s262 + $0x120] sm:$0xff]
      %v445 = vld [vmem:[%s262 + $0x128] sm:$0xff]
      %v446 = vld [vmem:[%s262 + $0x130] sm:$0xff]
      %v447 = vld [vmem:[%s262 + $0x138] sm:$0xff]
      %v448 = vld [vmem:[%s262 + $0x140] sm:$0xff]
      %v449 = vld [vmem:[%s262 + $0x148] sm:$0xff]
      %v450 = vld [vmem:[%s262 + $0x150] sm:$0xff]
      %v451 = vld [vmem:[%s262 + $0x158] sm:$0xff]
      %v452 = vld [vmem:[%s262 + $0x160] sm:$0xff]
      %v453 = vld [vmem:[%s262 + $0x168] sm:$0xff]
      %v454 = vld [vmem:[%s262 + $0x170] sm:$0xff]
      %v455 = vld [vmem:[%s262 + $0x178] sm:$0xff]
      %v456 = vld [vmem:[%s262 + $0x180] sm:$0xff]
      %v457 = vld [vmem:[%s262 + $0x188] sm:$0xff]
      %v458 = vld [vmem:[%s262 + $0x190] sm:$0xff]
      %v459 = vld [vmem:[%s262 + $0x198] sm:$0xff]
      %v460 = vld [vmem:[%s262 + $0x1a0] sm:$0xff]
      %v461 = vld [vmem:[%s262 + $0x1a8] sm:$0xff]
      %v462 = vld [vmem:[%s262 + $0x1b0] sm:$0xff]
      %v463 = vld [vmem:[%s262 + $0x1b8] sm:$0xff]
      %v464 = vld [vmem:[%s262 + $0x1c0] sm:$0xff]
      %v465 = vld [vmem:[%s262 + $0x1c8] sm:$0xff]
      %v466 = vld [vmem:[%s262 + $0x1d0] sm:$0xff]
      %v467 = vld [vmem:[%s262 + $0x1d8] sm:$0xff]
      %v468 = vld [vmem:[%s262 + $0x1e0] sm:$0xff]
      %v469 = vld [vmem:[%s262 + $0x1e8] sm:$0xff]
      %v470 = vld [vmem:[%s262 + $0x1f0] sm:$0xff]
      %v471 = vld [vmem:[%s262 + $0x1f8] sm:$0xff]
      %v472 = vld [vmem:[%s262 + $0x200] sm:$0xff]
      %v473 = vld [vmem:[%s262 + $0x208] sm:$0xff]
      %v474 = vld [vmem:[%s262 + $0x210] sm:$0xff]
      %v475 = vld [vmem:[%s262 + $0x218] sm:$0xff]
      %v476 = vld [vmem:[%s262 + $0x220] sm:$0xff]
      %v477 = vld [vmem:[%s262 + $0x228] sm:$0xff]
      %v478 = vld [vmem:[%s262 + $0x230] sm:$0xff]
      %v479 = vld [vmem:[%s262 + $0x238] sm:$0xff]
      %v480 = vld [vmem:[%s262 + $0x240] sm:$0xff]
      %v481 = vld [vmem:[%s262 + $0x248] sm:$0xff]
      %v482 = vld [vmem:[%s262 + $0x250] sm:$0xff]
      %v483 = vld [vmem:[%s262 + $0x258] sm:$0xff]
      %v484 = vld [vmem:[%s262 + $0x260] sm:$0xff]
      %v485 = vld [vmem:[%s262 + $0x268] sm:$0xff]
      %v486 = vld [vmem:[%s262 + $0x270] sm:$0xff]
      %v487 = vld [vmem:[%s262 + $0x278] sm:$0xff]
      %v488 = vld [vmem:[%s262 + $0x280] sm:$0xff]
      %v489 = vld [vmem:[%s262 + $0x288] sm:$0xff]
      %v490 = vld [vmem:[%s262 + $0x290] sm:$0xff]
      %v491 = vld [vmem:[%s262 + $0x298] sm:$0xff]
      %v492 = vld [vmem:[%s262 + $0x2a0] sm:$0xff]
      %v493 = vld [vmem:[%s262 + $0x2a8] sm:$0xff]
      %v494 = vld [vmem:[%s262 + $0x2b0] sm:$0xff]
      %v495 = vld [vmem:[%s262 + $0x2b8] sm:$0xff]
      %v496 = vld [vmem:[%s262 + $0x2c0] sm:$0xff]
      %v497 = vld [vmem:[%s262 + $0x2c8] sm:$0xff]
      %v498 = vld [vmem:[%s262 + $0x2d0] sm:$0xff]
      %v499 = vld [vmem:[%s262 + $0x2d8] sm:$0xff]
      %v500 = vld [vmem:[%s262 + $0x2e0] sm:$0xff]
      %v501 = vld [vmem:[%s262 + $0x2e8] sm:$0xff]
      %v502 = vld [vmem:[%s262 + $0x2f0] sm:$0xff]
      %v503 = vld [vmem:[%s262 + $0x2f8] sm:$0xff]
      %v504 = vld [vmem:[%s262 + $0x300] sm:$0xff]
      %v505 = vld [vmem:[%s262 + $0x308] sm:$0xff]
      %v506 = vld [vmem:[%s262 + $0x310] sm:$0xff]
      %v507 = vld [vmem:[%s262 + $0x318] sm:$0xff]
      %v508 = vld [vmem:[%s262 + $0x320] sm:$0xff]
      %v509 = vld [vmem:[%s262 + $0x328] sm:$0xff]
      %v510 = vld [vmem:[%s262 + $0x330] sm:$0xff]
      %v511 = vld [vmem:[%s262 + $0x338] sm:$0xff]
      %v512 = vld [vmem:[%s262 + $0x340] sm:$0xff]
      %v513 = vld [vmem:[%s262 + $0x348] sm:$0xff]
      %v514 = vld [vmem:[%s262 + $0x350] sm:$0xff]
      %v515 = vld [vmem:[%s262 + $0x358] sm:$0xff]
      %v516 = vld [vmem:[%s262 + $0x360] sm:$0xff]
      %v517 = vld [vmem:[%s262 + $0x368] sm:$0xff]
      %v518 = vld [vmem:[%s262 + $0x370] sm:$0xff]
      %v519 = vld [vmem:[%s262 + $0x378] sm:$0xff]
      %v520 = vld [vmem:[%s262 + $0x380] sm:$0xff]
      %v521 = vld [vmem:[%s262 + $0x388] sm:$0xff]
      %v522 = vld [vmem:[%s262 + $0x390] sm:$0xff]
      %v523 = vld [vmem:[%s262 + $0x398] sm:$0xff]
      %v524 = vld [vmem:[%s262 + $0x3a0] sm:$0xff]
      %v525 = vld [vmem:[%s262 + $0x3a8] sm:$0xff]
      %v526 = vld [vmem:[%s262 + $0x3b0] sm:$0xff]
      %v527 = vld [vmem:[%s262 + $0x3b8] sm:$0xff]
      %v528 = vld [vmem:[%s262 + $0x3c0] sm:$0xff]
      %v529 = vld [vmem:[%s262 + $0x3c8] sm:$0xff]
      %v530 = vld [vmem:[%s262 + $0x3d0] sm:$0xff]
      %v531 = vld [vmem:[%s262 + $0x3d8] sm:$0xff]
      %v532 = vld [vmem:[%s262 + $0x3e0] sm:$0xff]
      %v533 = vld [vmem:[%s262 + $0x3e8] sm:$0xff]
      %v534 = vld [vmem:[%s262 + $0x3f0] sm:$0xff]
      %v535 = vld [vmem:[%s262 + $0x3f8] sm:$0xff]
      %v536 = vld [vmem:[%s268] sm:$0xff]
      %v537 = vld [vmem:[%s268 + $0x8] sm:$0xff]
      %v538 = vld [vmem:[%s268 + $0x10] sm:$0xff]
      %v539 = vld [vmem:[%s268 + $0x18] sm:$0xff]
      %v540 = vld [vmem:[%s268 + $0x20] sm:$0xff]
      %v541 = vld [vmem:[%s268 + $0x28] sm:$0xff]
      %v542 = vld [vmem:[%s268 + $0x30] sm:$0xff]
      %v543 = vld [vmem:[%s268 + $0x38] sm:$0xff]
      %v544 = vld [vmem:[%s268 + $0x40] sm:$0xff]
      %v545 = vld [vmem:[%s268 + $0x48] sm:$0xff]
      %v546 = vld [vmem:[%s268 + $0x50] sm:$0xff]
      %v547 = vld [vmem:[%s268 + $0x58] sm:$0xff]
      %v548 = vld [vmem:[%s268 + $0x60] sm:$0xff]
      %v549 = vld [vmem:[%s268 + $0x68] sm:$0xff]
      %v550 = vld [vmem:[%s268 + $0x70] sm:$0xff]
      %v551 = vld [vmem:[%s268 + $0x78] sm:$0xff]
      %v552 = vld [vmem:[%s268 + $0x80] sm:$0xff]
      %v553 = vld [vmem:[%s268 + $0x88] sm:$0xff]
      %v554 = vld [vmem:[%s268 + $0x90] sm:$0xff]
      %v555 = vld [vmem:[%s268 + $0x98] sm:$0xff]
      %v556 = vld [vmem:[%s268 + $0xa0] sm:$0xff]
      %v557 = vld [vmem:[%s268 + $0xa8] sm:$0xff]
      %v558 = vld [vmem:[%s268 + $0xb0] sm:$0xff]
      %v559 = vld [vmem:[%s268 + $0xb8] sm:$0xff]
      %v560 = vld [vmem:[%s268 + $0xc0] sm:$0xff]
      %v561 = vld [vmem:[%s268 + $0xc8] sm:$0xff]
      %v562 = vld [vmem:[%s268 + $0xd0] sm:$0xff]
      %v563 = vld [vmem:[%s268 + $0xd8] sm:$0xff]
      %v564 = vld [vmem:[%s268 + $0xe0] sm:$0xff]
      %v565 = vld [vmem:[%s268 + $0xe8] sm:$0xff]
      %v566 = vld [vmem:[%s268 + $0xf0] sm:$0xff]
      %v567 = vld [vmem:[%s268 + $0xf8] sm:$0xff]
      %568 = vmatprep.subr.mxu0 0.0
      %569 = vmatpush1.msra.mxu0 %v536
      %570 = vmatprep.subr.mxu0 0.0
      %571 = vmatpush1.msra.mxu0 %v537
      %572 = vmatprep.subr.mxu0 0.0
      %573 = vmatpush1.msra.mxu0 %v538
      %574 = vmatprep.subr.mxu0 0.0
      %575 = vmatpush1.msra.mxu0 %v539
      %576 = vmatprep.subr.mxu0 0.0
      %577 = vmatpush1.msra.mxu0 %v540
      %578 = vmatprep.subr.mxu0 0.0
      %579 = vmatpush1.msra.mxu0 %v541
      %580 = vmatprep.subr.mxu0 0.0
      %581 = vmatpush1.msra.mxu0 %v542
      %582 = vmatprep.subr.mxu0 0.0
      %583 = vmatpush1.msra.mxu0 %v543
      %584 = vmatprep.subr.mxu0 0.0
      %585 = vmatpush1.msra.mxu0 %v544
      %586 = vmatprep.subr.mxu0 0.0
      %587 = vmatpush1.msra.mxu0 %v545
      %588 = vmatprep.subr.mxu0 0.0
      %589 = vmatpush1.msra.mxu0 %v546
      %590 = vmatprep.subr.mxu0 0.0
      %591 = vmatpush1.msra.mxu0 %v547
      %592 = vmatprep.subr.mxu0 0.0
      %593 = vmatpush1.msra.mxu0 %v548
      %594 = vmatprep.subr.mxu0 0.0
      %595 = vmatpush1.msra.mxu0 %v549
      %596 = vmatprep.subr.mxu0 0.0
      %597 = vmatpush1.msra.mxu0 %v550
      %598 = vmatprep.subr.mxu0 0.0
      %599 = vmatpush1.msra.mxu0 %v551
      %600 = vmatprep.subr.mxu0 0.0
      %601 = vmatpush1.msra.mxu0 %v552
      %602 = vmatprep.subr.mxu0 0.0
      %603 = vmatpush1.msra.mxu0 %v553
      %604 = vmatprep.subr.mxu0 0.0
      %605 = vmatpush1.msra.mxu0 %v554
      %606 = vmatprep.subr.mxu0 0.0
      %607 = vmatpush1.msra.mxu0 %v555
      %608 = vmatprep.subr.mxu0 0.0
      %609 = vmatpush1.msra.mxu0 %v556
      %610 = vmatprep.subr.mxu0 0.0
      %611 = vmatpush1.msra.mxu0 %v557
      %612 = vmatprep.subr.mxu0 0.0
      %613 = vmatpush1.msra.mxu0 %v558
      %614 = vmatprep.subr.mxu0 0.0
      %615 = vmatpush1.msra.mxu0 %v559
      %616 = vmatprep.subr.mxu0 0.0
      %617 = vmatpush1.msra.mxu0 %v560
      %618 = vmatprep.subr.mxu0 0.0
      %619 = vmatpush1.msra.mxu0 %v561
      %620 = vmatprep.subr.mxu0 0.0
      %621 = vmatpush1.msra.mxu0 %v562
      %622 = vmatprep.subr.mxu0 0.0
      %623 = vmatpush1.msra.mxu0 %v563
      %624 = vmatprep.subr.mxu0 0.0
      %625 = vmatpush1.msra.mxu0 %v564
      %626 = vmatprep.subr.mxu0 0.0
      %627 = vmatpush1.msra.mxu0 %v565
      %628 = vmatprep.subr.mxu0 0.0
      %629 = vmatpush1.msra.mxu0 %v566
      %630 = vmatprep.subr.mxu0 0.0
      %631 = vmatpush1.msra.mxu0 %v567
      %632 = vmatprep.mubr.f32.mxu0 %v409
      %633 = vmatmul.mubr.f32.gmra.mrb[0].mxu0 %v408
      %v634 = vpop.f32.mrb[0].mxu0
      %v635 = vadd.f32 0.0, %v634
      %v636 = vpop.f32.mrb[0].mxu0
      %637 = vmatprep.mubr.f32.mxu0 %v411
      %638 = vmatmul.mubr.f32.gmra.mrb[0].mxu0 %v410
      %v639 = vpop.f32.mrb[0].mxu0
      %v640 = vadd.f32 0.0, %v639
      %v641 = vpop.f32.mrb[0].mxu0
      %642 = vmatprep.mubr.f32.mxu0 %v413
      %643 = vmatmul.mubr.f32.gmra.mrb[0].mxu0 %v412
      %v644 = vpop.f32.mrb[0].mxu0
      %v645 = vadd.f32 0.0, %v644
      %v646 = vpop.f32.mrb[0].mxu0
      %647 = vmatprep.mubr.f32.mxu0 %v415
      %648 = vmatmul.mubr.f32.gmra.mrb[0].mxu0 %v414
      %v649 = vpop.f32.mrb[0].mxu0
      %v650 = vadd.f32 0.0, %v649
      %v651 = vpop.f32.mrb[0].mxu0
      %652 = vmatprep.mubr.f32.mxu0 %v417
      %653 = vmatmul.mubr.f32.gmra.mrb[0].mxu0 %v416
      %v654 = vpop.f32.mrb[0].mxu0
      %v655 = vadd.f32 0.0, %v654
      %v656 = vpop.f32.mrb[0].mxu0
      %657 = vmatprep.mubr.f32.mxu0 %v419
      %658 = vmatmul.mubr.f32.gmra.mrb[0].mxu0 %v418
      %v659 = vpop.f32.mrb[0].mxu0
      %v660 = vadd.f32 0.0, %v659
      %v661 = vpop.f32.mrb[0].mxu0
      %662 = vmatprep.mubr.f32.mxu0 %v421
      %663 = vmatmul.mubr.f32.gmra.mrb[0].mxu0 %v420
      %v664 = vpop.f32.mrb[0].mxu0
      %v665 = vadd.f32 0.0, %v664
      %v666 = vpop.f32.mrb[0].mxu0
      %667 = vmatprep.mubr.f32.mxu0 %v423
      %668 = vmatmul.mubr.f32.gmra.mrb[0].mxu0 %v422
      %v669 = vpop.f32.mrb[0].mxu0
      %v670 = vadd.f32 0.0, %v669
      %v671 = vpop.f32.mrb[0].mxu0
      %672 = vmatprep.mubr.f32.mxu0 %v425
      %673 = vmatmul.mubr.f32.gmra.mrb[0].mxu0 %v424
      %v674 = vpop.f32.mrb[0].mxu0
      %v675 = vadd.f32 0.0, %v674
      %v676 = vpop.f32.mrb[0].mxu0
      %677 = vmatprep.mubr.f32.mxu0 %v427
      %678 = vmatmul.mubr.f32.gmra.mrb[0].mxu0 %v426
      %v679 = vpop.f32.mrb[0].mxu0
      %v680 = vadd.f32 0.0, %v679
      %v681 = vpop.f32.mrb[0].mxu0
      %682 = vmatprep.mubr.f32.mxu0 %v429
      %683 = vmatmul.mubr.f32.gmra.mrb[0].mxu0 %v428
      %v684 = vpop.f32.mrb[0].mxu0
      %v685 = vadd.f32 0.0, %v684
      %v686 = vpop.f32.mrb[0].mxu0
      %687 = vmatprep.mubr.f32.mxu0 %v431
      %688 = vmatmul.mubr.f32.gmra.mrb[0].mxu0 %v430
      %v689 = vpop.f32.mrb[0].mxu0
      %v690 = vadd.f32 0.0, %v689
      %v691 = vpop.f32.mrb[0].mxu0
      %692 = vmatprep.mubr.f32.mxu0 %v433
      %693 = vmatmul.mubr.f32.gmra.mrb[0].mxu0 %v432
      %v694 = vpop.f32.mrb[0].mxu0
      %v695 = vadd.f32 0.0, %v694
      %v696 = vpop.f32.mrb[0].mxu0
      %697 = vmatprep.mubr.f32.mxu0 %v435
      %698 = vmatmul.mubr.f32.gmra.mrb[0].mxu0 %v434
      %v699 = vpop.f32.mrb[0].mxu0
      %v700 = vadd.f32 0.0, %v699
      %v701 = vpop.f32.mrb[0].mxu0
      %702 = vmatprep.mubr.f32.mxu0 %v437
      %703 = vmatmul.mubr.f32.gmra.mrb[0].mxu0 %v436
      %v704 = vpop.f32.mrb[0].mxu0
      %v705 = vadd.f32 0.0, %v704
      %v706 = vpop.f32.mrb[0].mxu0
      %707 = vmatprep.mubr.f32.mxu0 %v439
      %708 = vmatmul.mubr.f32.gmra.mrb[0].mxu0 %v438
      %v709 = vpop.f32.mrb[0].mxu0
      %v710 = vadd.f32 0.0, %v709
      %v711 = vpop.f32.mrb[0].mxu0
      %712 = vmatprep.mubr.f32.mxu0 %v441
      %713 = vmatmul.mubr.f32.gmra.mrb[0].mxu0 %v440
      %v714 = vpop.f32.mrb[0].mxu0
      %v715 = vadd.f32 0.0, %v714
      %v716 = vpop.f32.mrb[0].mxu0
      %717 = vmatprep.mubr.f32.mxu0 %v443
      %718 = vmatmul.mubr.f32.gmra.mrb[0].mxu0 %v442
      %v719 = vpop.f32.mrb[0].mxu0
      %v720 = vadd.f32 0.0, %v719
      %v721 = vpop.f32.mrb[0].mxu0
      %722 = vmatprep.mubr.f32.mxu0 %v445
      %723 = vmatmul.mubr.f32.gmra.mrb[0].mxu0 %v444
      %v724 = vpop.f32.mrb[0].mxu0
      %v725 = vadd.f32 0.0, %v724
      %v726 = vpop.f32.mrb[0].mxu0
      %727 = vmatprep.mubr.f32.mxu0 %v447
      %728 = vmatmul.mubr.f32.gmra.mrb[0].mxu0 %v446
      %v729 = vpop.f32.mrb[0].mxu0
      %v730 = vadd.f32 0.0, %v729
      %v731 = vpop.f32.mrb[0].mxu0
      %732 = vmatprep.mubr.f32.mxu0 %v449
      %733 = vmatmul.mubr.f32.gmra.mrb[0].mxu0 %v448
      %v734 = vpop.f32.mrb[0].mxu0
      %v735 = vadd.f32 0.0, %v734
      %v736 = vpop.f32.mrb[0].mxu0
      %737 = vmatprep.mubr.f32.mxu0 %v451
      %738 = vmatmul.mubr.f32.gmra.mrb[0].mxu0 %v450
      %v739 = vpop.f32.mrb[0].mxu0
      %v740 = vadd.f32 0.0, %v739
      %v741 = vpop.f32.mrb[0].mxu0
      %742 = vmatprep.mubr.f32.mxu0 %v453
      %743 = vmatmul.mubr.f32.gmra.mrb[0].mxu0 %v452
      %v744 = vpop.f32.mrb[0].mxu0
      %v745 = vadd.f32 0.0, %v744
      %v746 = vpop.f32.mrb[0].mxu0
      %747 = vmatprep.mubr.f32.mxu0 %v455
      %748 = vmatmul.mubr.f32.gmra.mrb[0].mxu0 %v454
      %v749 = vpop.f32.mrb[0].mxu0
      %v750 = vadd.f32 0.0, %v749
      %v751 = vpop.f32.mrb[0].mxu0
      %752 = vmatprep.mubr.f32.mxu0 %v457
      %753 = vmatmul.mubr.f32.gmra.mrb[0].mxu0 %v456
      %v754 = vpop.f32.mrb[0].mxu0
      %v755 = vadd.f32 0.0, %v754
      %v756 = vpop.f32.mrb[0].mxu0
      %757 = vmatprep.mubr.f32.mxu0 %v459
      %758 = vmatmul.mubr.f32.gmra.mrb[0].mxu0 %v458
      %v759 = vpop.f32.mrb[0].mxu0
      %v760 = vadd.f32 0.0, %v759
      %v761 = vpop.f32.mrb[0].mxu0
      %762 = vmatprep.mubr.f32.mxu0 %v461
      %763 = vmatmul.mubr.f32.gmra.mrb[0].mxu0 %v460
      %v764 = vpop.f32.mrb[0].mxu0
      %v765 = vadd.f32 0.0, %v764
      %v766 = vpop.f32.mrb[0].mxu0
      %767 = vmatprep.mubr.f32.mxu0 %v463
      %768 = vmatmul.mubr.f32.gmra.mrb[0].mxu0 %v462
      %v769 = vpop.f32.mrb[0].mxu0
      %v770 = vadd.f32 0.0, %v769
      %v771 = vpop.f32.mrb[0].mxu0
      %772 = vmatprep.mubr.f32.mxu0 %v465
      %773 = vmatmul.mubr.f32.gmra.mrb[0].mxu0 %v464
      %v774 = vpop.f32.mrb[0].mxu0
      %v775 = vadd.f32 0.0, %v774
      %v776 = vpop.f32.mrb[0].mxu0
      %777 = vmatprep.mubr.f32.mxu0 %v467
      %778 = vmatmul.mubr.f32.gmra.mrb[0].mxu0 %v466
      %v779 = vpop.f32.mrb[0].mxu0
      %v780 = vadd.f32 0.0, %v779
      %v781 = vpop.f32.mrb[0].mxu0
      %782 = vmatprep.mubr.f32.mxu0 %v469
      %783 = vmatmul.mubr.f32.gmra.mrb[0].mxu0 %v468
      %v784 = vpop.f32.mrb[0].mxu0
      %v785 = vadd.f32 0.0, %v784
      %v786 = vpop.f32.mrb[0].mxu0
      %787 = vmatprep.mubr.f32.mxu0 %v471
      %788 = vmatmul.mubr.f32.gmra.mrb[0].mxu0 %v470
      %v789 = vpop.f32.mrb[0].mxu0
      %v790 = vadd.f32 0.0, %v789
      %v791 = vpop.f32.mrb[0].mxu0
      %792 = vmatprep.mubr.f32.mxu0 %v473
      %793 = vmatmul.mubr.f32.gmra.mrb[0].mxu0 %v472
      %v794 = vpop.f32.mrb[0].mxu0
      %v795 = vadd.f32 0.0, %v794
      %v796 = vpop.f32.mrb[0].mxu0
      %797 = vmatprep.mubr.f32.mxu0 %v475
      %798 = vmatmul.mubr.f32.gmra.mrb[0].mxu0 %v474
      %v799 = vpop.f32.mrb[0].mxu0
      %v800 = vadd.f32 0.0, %v799
      %v801 = vpop.f32.mrb[0].mxu0
      %802 = vmatprep.mubr.f32.mxu0 %v477
      %803 = vmatmul.mubr.f32.gmra.mrb[0].mxu0 %v476
      %v804 = vpop.f32.mrb[0].mxu0
      %v805 = vadd.f32 0.0, %v804
      %v806 = vpop.f32.mrb[0].mxu0
      %807 = vmatprep.mubr.f32.mxu0 %v479
      %808 = vmatmul.mubr.f32.gmra.mrb[0].mxu0 %v478
      %v809 = vpop.f32.mrb[0].mxu0
      %v810 = vadd.f32 0.0, %v809
      %v811 = vpop.f32.mrb[0].mxu0
      %812 = vmatprep.mubr.f32.mxu0 %v481
      %813 = vmatmul.mubr.f32.gmra.mrb[0].mxu0 %v480
      %v814 = vpop.f32.mrb[0].mxu0
      %v815 = vadd.f32 0.0, %v814
      %v816 = vpop.f32.mrb[0].mxu0
      %817 = vmatprep.mubr.f32.mxu0 %v483
      %818 = vmatmul.mubr.f32.gmra.mrb[0].mxu0 %v482
      %v819 = vpop.f32.mrb[0].mxu0
      %v820 = vadd.f32 0.0, %v819
      %v821 = vpop.f32.mrb[0].mxu0
      %822 = vmatprep.mubr.f32.mxu0 %v485
      %823 = vmatmul.mubr.f32.gmra.mrb[0].mxu0 %v484
      %v824 = vpop.f32.mrb[0].mxu0
      %v825 = vadd.f32 0.0, %v824
      %v826 = vpop.f32.mrb[0].mxu0
      %827 = vmatprep.mubr.f32.mxu0 %v487
      %828 = vmatmul.mubr.f32.gmra.mrb[0].mxu0 %v486
      %v829 = vpop.f32.mrb[0].mxu0
      %v830 = vadd.f32 0.0, %v829
      %v831 = vpop.f32.mrb[0].mxu0
      %832 = vmatprep.mubr.f32.mxu0 %v489
      %833 = vmatmul.mubr.f32.gmra.mrb[0].mxu0 %v488
      %v834 = vpop.f32.mrb[0].mxu0
      %v835 = vadd.f32 0.0, %v834
      %v836 = vpop.f32.mrb[0].mxu0
      %837 = vmatprep.mubr.f32.mxu0 %v491
      %838 = vmatmul.mubr.f32.gmra.mrb[0].mxu0 %v490
      %v839 = vpop.f32.mrb[0].mxu0
      %v840 = vadd.f32 0.0, %v839
      %v841 = vpop.f32.mrb[0].mxu0
      %842 = vmatprep.mubr.f32.mxu0 %v493
      %843 = vmatmul.mubr.f32.gmra.mrb[0].mxu0 %v492
      %v844 = vpop.f32.mrb[0].mxu0
      %v845 = vadd.f32 0.0, %v844
      %v846 = vpop.f32.mrb[0].mxu0
      %847 = vmatprep.mubr.f32.mxu0 %v495
      %848 = vmatmul.mubr.f32.gmra.mrb[0].mxu0 %v494
      %v849 = vpop.f32.mrb[0].mxu0
      %v850 = vadd.f32 0.0, %v849
      %v851 = vpop.f32.mrb[0].mxu0
      %852 = vmatprep.mubr.f32.mxu0 %v497
      %853 = vmatmul.mubr.f32.gmra.mrb[0].mxu0 %v496
      %v854 = vpop.f32.mrb[0].mxu0
      %v855 = vadd.f32 0.0, %v854
      %v856 = vpop.f32.mrb[0].mxu0
      %857 = vmatprep.mubr.f32.mxu0 %v499
      %858 = vmatmul.mubr.f32.gmra.mrb[0].mxu0 %v498
      %v859 = vpop.f32.mrb[0].mxu0
      %v860 = vadd.f32 0.0, %v859
      %v861 = vpop.f32.mrb[0].mxu0
      %862 = vmatprep.mubr.f32.mxu0 %v501
      %863 = vmatmul.mubr.f32.gmra.mrb[0].mxu0 %v500
      %v864 = vpop.f32.mrb[0].mxu0
      %v865 = vadd.f32 0.0, %v864
      %v866 = vpop.f32.mrb[0].mxu0
      %867 = vmatprep.mubr.f32.mxu0 %v503
      %868 = vmatmul.mubr.f32.gmra.mrb[0].mxu0 %v502
      %v869 = vpop.f32.mrb[0].mxu0
      %v870 = vadd.f32 0.0, %v869
      %v871 = vpop.f32.mrb[0].mxu0
      %872 = vmatprep.mubr.f32.mxu0 %v505
      %873 = vmatmul.mubr.f32.gmra.mrb[0].mxu0 %v504
      %v874 = vpop.f32.mrb[0].mxu0
      %v875 = vadd.f32 0.0, %v874
      %v876 = vpop.f32.mrb[0].mxu0
      %877 = vmatprep.mubr.f32.mxu0 %v507
      %878 = vmatmul.mubr.f32.gmra.mrb[0].mxu0 %v506
      %v879 = vpop.f32.mrb[0].mxu0
      %v880 = vadd.f32 0.0, %v879
      %v881 = vpop.f32.mrb[0].mxu0
      %882 = vmatprep.mubr.f32.mxu0 %v509
      %883 = vmatmul.mubr.f32.gmra.mrb[0].mxu0 %v508
      %v884 = vpop.f32.mrb[0].mxu0
      %v885 = vadd.f32 0.0, %v884
      %v886 = vpop.f32.mrb[0].mxu0
      %887 = vmatprep.mubr.f32.mxu0 %v511
      %888 = vmatmul.mubr.f32.gmra.mrb[0].mxu0 %v510
      %v889 = vpop.f32.mrb[0].mxu0
      %v890 = vadd.f32 0.0, %v889
      %v891 = vpop.f32.mrb[0].mxu0
      %892 = vmatprep.mubr.f32.mxu0 %v513
      %893 = vmatmul.mubr.f32.gmra.mrb[0].mxu0 %v512
      %v894 = vpop.f32.mrb[0].mxu0
      %v895 = vadd.f32 0.0, %v894
      %v896 = vpop.f32.mrb[0].mxu0
      %897 = vmatprep.mubr.f32.mxu0 %v515
      %898 = vmatmul.mubr.f32.gmra.mrb[0].mxu0 %v514
      %v899 = vpop.f32.mrb[0].mxu0
      %v900 = vadd.f32 0.0, %v899
      %v901 = vpop.f32.mrb[0].mxu0
      %902 = vmatprep.mubr.f32.mxu0 %v517
      %903 = vmatmul.mubr.f32.gmra.mrb[0].mxu0 %v516
      %v904 = vpop.f32.mrb[0].mxu0
      %v905 = vadd.f32 0.0, %v904
      %v906 = vpop.f32.mrb[0].mxu0
      %907 = vmatprep.mubr.f32.mxu0 %v519
      %908 = vmatmul.mubr.f32.gmra.mrb[0].mxu0 %v518
      %v909 = vpop.f32.mrb[0].mxu0
      %v910 = vadd.f32 0.0, %v909
      %v911 = vpop.f32.mrb[0].mxu0
      %912 = vmatprep.mubr.f32.mxu0 %v521
      %913 = vmatmul.mubr.f32.gmra.mrb[0].mxu0 %v520
      %v914 = vpop.f32.mrb[0].mxu0
      %v915 = vadd.f32 0.0, %v914
      %v916 = vpop.f32.mrb[0].mxu0
      %917 = vmatprep.mubr.f32.mxu0 %v523
      %918 = vmatmul.mubr.f32.gmra.mrb[0].mxu0 %v522
      %v919 = vpop.f32.mrb[0].mxu0
      %v920 = vadd.f32 0.0, %v919
      %v921 = vpop.f32.mrb[0].mxu0
      %922 = vmatprep.mubr.f32.mxu0 %v525
      %923 = vmatmul.mubr.f32.gmra.mrb[0].mxu0 %v524
      %v924 = vpop.f32.mrb[0].mxu0
      %v925 = vadd.f32 0.0, %v924
      %v926 = vpop.f32.mrb[0].mxu0
      %927 = vmatprep.mubr.f32.mxu0 %v527
      %928 = vmatmul.mubr.f32.gmra.mrb[0].mxu0 %v526
      %v929 = vpop.f32.mrb[0].mxu0
      %v930 = vadd.f32 0.0, %v929
      %v931 = vpop.f32.mrb[0].mxu0
      %932 = vmatprep.mubr.f32.mxu0 %v529
      %933 = vmatmul.mubr.f32.gmra.mrb[0].mxu0 %v528
      %v934 = vpop.f32.mrb[0].mxu0
      %v935 = vadd.f32 0.0, %v934
      %v936 = vpop.f32.mrb[0].mxu0
      %937 = vmatprep.mubr.f32.mxu0 %v531
      %938 = vmatmul.mubr.f32.gmra.mrb[0].mxu0 %v530
      %v939 = vpop.f32.mrb[0].mxu0
      %v940 = vadd.f32 0.0, %v939
      %v941 = vpop.f32.mrb[0].mxu0
      %942 = vmatprep.mubr.f32.mxu0 %v533
      %943 = vmatmul.mubr.f32.gmra.mrb[0].mxu0 %v532
      %v944 = vpop.f32.mrb[0].mxu0
      %v945 = vadd.f32 0.0, %v944
      %v946 = vpop.f32.mrb[0].mxu0
      %947 = vmatprep.mubr.f32.mxu0 %v535
      %948 = vmatmul.mubr.f32.gmra.mrb[0].mxu0 %v534
      %v949 = vpop.f32.mrb[0].mxu0
      %v950 = vadd.f32 0.0, %v949
      %v951 = vpop.f32.mrb[0].mxu0
      %952 = vdwg.mxu0
      %v953 = vadd.f32 %v344, %v635
      %v954 = vadd.f32 %v345, %v640
      %v955 = vadd.f32 %v346, %v645
      %v956 = vadd.f32 %v347, %v650
      %v957 = vadd.f32 %v348, %v655
      %v958 = vadd.f32 %v349, %v660
      %v959 = vadd.f32 %v350, %v665
      %v960 = vadd.f32 %v351, %v670
      %v961 = vadd.f32 %v352, %v675
      %v962 = vadd.f32 %v353, %v680
      %v963 = vadd.f32 %v354, %v685
      %v964 = vadd.f32 %v355, %v690
      %v965 = vadd.f32 %v356, %v695
      %v966 = vadd.f32 %v357, %v700
      %v967 = vadd.f32 %v358, %v705
      %v968 = vadd.f32 %v359, %v710
      %v969 = vadd.f32 %v360, %v715
      %v970 = vadd.f32 %v361, %v720
      %v971 = vadd.f32 %v362, %v725
      %v972 = vadd.f32 %v363, %v730
      %v973 = vadd.f32 %v364, %v735
      %v974 = vadd.f32 %v365, %v740
      %v975 = vadd.f32 %v366, %v745
      %v976 = vadd.f32 %v367, %v750
      %v977 = vadd.f32 %v368, %v755
      %v978 = vadd.f32 %v369, %v760
      %v979 = vadd.f32 %v370, %v765
      %v980 = vadd.f32 %v371, %v770
      %v981 = vadd.f32 %v372, %v775
      %v982 = vadd.f32 %v373, %v780
      %v983 = vadd.f32 %v374, %v785
      %v984 = vadd.f32 %v375, %v790
      %v985 = vadd.f32 %v376, %v795
      %v986 = vadd.f32 %v377, %v800
      %v987 = vadd.f32 %v378, %v805
      %v988 = vadd.f32 %v379, %v810
      %v989 = vadd.f32 %v380, %v815
      %v990 = vadd.f32 %v381, %v820
      %v991 = vadd.f32 %v382, %v825
      %v992 = vadd.f32 %v383, %v830
      %v993 = vadd.f32 %v384, %v835
      %v994 = vadd.f32 %v385, %v840
      %v995 = vadd.f32 %v386, %v845
      %v996 = vadd.f32 %v387, %v850
      %v997 = vadd.f32 %v388, %v855
      %v998 = vadd.f32 %v389, %v860
      %v999 = vadd.f32 %v390, %v865
      %v1000 = vadd.f32 %v391, %v870
      %v1001 = vadd.f32 %v392, %v875
      %v1002 = vadd.f32 %v393, %v880
      %v1003 = vadd.f32 %v394, %v885
      %v1004 = vadd.f32 %v395, %v890
      %v1005 = vadd.f32 %v396, %v895
      %v1006 = vadd.f32 %v397, %v900
      %v1007 = vadd.f32 %v398, %v905
      %v1008 = vadd.f32 %v399, %v910
      %v1009 = vadd.f32 %v400, %v915
      %v1010 = vadd.f32 %v401, %v920
      %v1011 = vadd.f32 %v402, %v925
      %v1012 = vadd.f32 %v403, %v930
      %v1013 = vadd.f32 %v404, %v935
      %v1014 = vadd.f32 %v405, %v940
      %v1015 = vadd.f32 %v406, %v945
      %v1016 = vadd.f32 %v407, %v950
      %vm1017 = vcmask 171008
      %1018 = vst.msk [vmem:[#allocation2] sm:$0xff] %vm1017, %v953
      %1019 = vst.msk [vmem:[#allocation2 + $0x8] sm:$0xff] %vm1017, %v954
      %1020 = vst.msk [vmem:[#allocation2 + $0x10] sm:$0xff] %vm1017, %v955
      %1021 = vst.msk [vmem:[#allocation2 + $0x18] sm:$0xff] %vm1017, %v956
      %1022 = vst.msk [vmem:[#allocation2 + $0x20] sm:$0xff] %vm1017, %v957
      %1023 = vst.msk [vmem:[#allocation2 + $0x28] sm:$0xff] %vm1017, %v958
      %1024 = vst.msk [vmem:[#allocation2 + $0x30] sm:$0xff] %vm1017, %v959
      %1025 = vst.msk [vmem:[#allocation2 + $0x38] sm:$0xff] %vm1017, %v960
      %1026 = vst.msk [vmem:[#allocation2 + $0x40] sm:$0xff] %vm1017, %v961
      %1027 = vst.msk [vmem:[#allocation2 + $0x48] sm:$0xff] %vm1017, %v962
      %1028 = vst.msk [vmem:[#allocation2 + $0x50] sm:$0xff] %vm1017, %v963
      %1029 = vst.msk [vmem:[#allocation2 + $0x58] sm:$0xff] %vm1017, %v964
      %1030 = vst.msk [vmem:[#allocation2 + $0x60] sm:$0xff] %vm1017, %v965
      %1031 = vst.msk [vmem:[#allocation2 + $0x68] sm:$0xff] %vm1017, %v966
      %1032 = vst.msk [vmem:[#allocation2 + $0x70] sm:$0xff] %vm1017, %v967
      %1033 = vst.msk [vmem:[#allocation2 + $0x78] sm:$0xff] %vm1017, %v968
      %1034 = vst.msk [vmem:[#allocation2 + $0x80] sm:$0xff] %vm1017, %v969
      %1035 = vst.msk [vmem:[#allocation2 + $0x88] sm:$0xff] %vm1017, %v970
      %1036 = vst.msk [vmem:[#allocation2 + $0x90] sm:$0xff] %vm1017, %v971
      %1037 = vst.msk [vmem:[#allocation2 + $0x98] sm:$0xff] %vm1017, %v972
      %1038 = vst.msk [vmem:[#allocation2 + $0xa0] sm:$0xff] %vm1017, %v973
      %1039 = vst.msk [vmem:[#allocation2 + $0xa8] sm:$0xff] %vm1017, %v974
      %1040 = vst.msk [vmem:[#allocation2 + $0xb0] sm:$0xff] %vm1017, %v975
      %1041 = vst.msk [vmem:[#allocation2 + $0xb8] sm:$0xff] %vm1017, %v976
      %1042 = vst.msk [vmem:[#allocation2 + $0xc0] sm:$0xff] %vm1017, %v977
      %1043 = vst.msk [vmem:[#allocation2 + $0xc8] sm:$0xff] %vm1017, %v978
      %1044 = vst.msk [vmem:[#allocation2 + $0xd0] sm:$0xff] %vm1017, %v979
      %1045 = vst.msk [vmem:[#allocation2 + $0xd8] sm:$0xff] %vm1017, %v980
      %1046 = vst.msk [vmem:[#allocation2 + $0xe0] sm:$0xff] %vm1017, %v981
      %1047 = vst.msk [vmem:[#allocation2 + $0xe8] sm:$0xff] %vm1017, %v982
      %1048 = vst.msk [vmem:[#allocation2 + $0xf0] sm:$0xff] %vm1017, %v983
      %1049 = vst.msk [vmem:[#allocation2 + $0xf8] sm:$0xff] %vm1017, %v984
      %1050 = vst.msk [vmem:[#allocation2 + $0x100] sm:$0xff] %vm1017, %v985
      %1051 = vst.msk [vmem:[#allocation2 + $0x108] sm:$0xff] %vm1017, %v986
      %1052 = vst.msk [vmem:[#allocation2 + $0x110] sm:$0xff] %vm1017, %v987
      %1053 = vst.msk [vmem:[#allocation2 + $0x118] sm:$0xff] %vm1017, %v988
      %1054 = vst.msk [vmem:[#allocation2 + $0x120] sm:$0xff] %vm1017, %v989
      %1055 = vst.msk [vmem:[#allocation2 + $0x128] sm:$0xff] %vm1017, %v990
      %1056 = vst.msk [vmem:[#allocation2 + $0x130] sm:$0xff] %vm1017, %v991
      %1057 = vst.msk [vmem:[#allocation2 + $0x138] sm:$0xff] %vm1017, %v992
      %1058 = vst.msk [vmem:[#allocation2 + $0x140] sm:$0xff] %vm1017, %v993
      %1059 = vst.msk [vmem:[#allocation2 + $0x148] sm:$0xff] %vm1017, %v994
      %1060 = vst.msk [vmem:[#allocation2 + $0x150] sm:$0xff] %vm1017, %v995
      %1061 = vst.msk [vmem:[#allocation2 + $0x158] sm:$0xff] %vm1017, %v996
      %1062 = vst.msk [vmem:[#allocation2 + $0x160] sm:$0xff] %vm1017, %v997
      %1063 = vst.msk [vmem:[#allocation2 + $0x168] sm:$0xff] %vm1017, %v998
      %1064 = vst.msk [vmem:[#allocation2 + $0x170] sm:$0xff] %vm1017, %v999
      %1065 = vst.msk [vmem:[#allocation2 + $0x178] sm:$0xff] %vm1017, %v1000
      %1066 = vst.msk [vmem:[#allocation2 + $0x180] sm:$0xff] %vm1017, %v1001
      %1067 = vst.msk [vmem:[#allocation2 + $0x188] sm:$0xff] %vm1017, %v1002
      %1068 = vst.msk [vmem:[#allocation2 + $0x190] sm:$0xff] %vm1017, %v1003
      %1069 = vst.msk [vmem:[#allocation2 + $0x198] sm:$0xff] %vm1017, %v1004
      %1070 = vst.msk [vmem:[#allocation2 + $0x1a0] sm:$0xff] %vm1017, %v1005
      %1071 = vst.msk [vmem:[#allocation2 + $0x1a8] sm:$0xff] %vm1017, %v1006
      %1072 = vst.msk [vmem:[#allocation2 + $0x1b0] sm:$0xff] %vm1017, %v1007
      %1073 = vst.msk [vmem:[#allocation2 + $0x1b8] sm:$0xff] %vm1017, %v1008
      %1074 = vst.msk [vmem:[#allocation2 + $0x1c0] sm:$0xff] %vm1017, %v1009
      %1075 = vst.msk [vmem:[#allocation2 + $0x1c8] sm:$0xff] %vm1017, %v1010
      %1076 = vst.msk [vmem:[#allocation2 + $0x1d0] sm:$0xff] %vm1017, %v1011
      %1077 = vst.msk [vmem:[#allocation2 + $0x1d8] sm:$0xff] %vm1017, %v1012
      %1078 = vst.msk [vmem:[#allocation2 + $0x1e0] sm:$0xff] %vm1017, %v1013
      %1079 = vst.msk [vmem:[#allocation2 + $0x1e8] sm:$0xff] %vm1017, %v1014
      %1080 = vst.msk [vmem:[#allocation2 + $0x1f0] sm:$0xff] %vm1017, %v1015
      %1081 = vst.msk [vmem:[#allocation2 + $0x1f8] sm:$0xff] %vm1017, %v1016
      // Predicated region
      $region45: #{sppm_forward.2} parent=39 // pred_check
        %p1082 = pneg %p275
      $region46: #{sppm_forward.2} parent=39 // pred_check_branch
        %1084 = sbr.rel (%p1082) target = $region48
      $region47: #{sppm_forward.2} parent=39 // pred_region
        %v1085 = vld [vmem:[%s2] sm:$0xff]
        %v1086 = vld [vmem:[%s2 + $0x8] sm:$0xff]
        %v1087 = vld [vmem:[%s2 + $0x10] sm:$0xff]
        %v1088 = vld [vmem:[%s2 + $0x18] sm:$0xff]
        %v1089 = vld [vmem:[%s2 + $0x20] sm:$0xff]
        %v1090 = vld [vmem:[%s2 + $0x28] sm:$0xff]
        %v1091 = vld [vmem:[%s2 + $0x30] sm:$0xff]
        %v1092 = vld [vmem:[%s2 + $0x38] sm:$0xff]
        %v1093 = vld [vmem:[%s2 + $0x40] sm:$0xff]
        %v1094 = vld [vmem:[%s2 + $0x48] sm:$0xff]
        %v1095 = vld [vmem:[%s2 + $0x50] sm:$0xff]
        %v1096 = vld [vmem:[%s2 + $0x58] sm:$0xff]
        %v1097 = vld [vmem:[%s2 + $0x60] sm:$0xff]
        %v1098 = vld [vmem:[%s2 + $0x68] sm:$0xff]
        %v1099 = vld [vmem:[%s2 + $0x70] sm:$0xff]
        %v1100 = vld [vmem:[%s2 + $0x78] sm:$0xff]
        %v1101 = vld [vmem:[%s2 + $0x80] sm:$0xff]
        %v1102 = vld [vmem:[%s2 + $0x88] sm:$0xff]
        %v1103 = vld [vmem:[%s2 + $0x90] sm:$0xff]
        %v1104 = vld [vmem:[%s2 + $0x98] sm:$0xff]
        %v1105 = vld [vmem:[%s2 + $0xa0] sm:$0xff]
        %v1106 = vld [vmem:[%s2 + $0xa8] sm:$0xff]
        %v1107 = vld [vmem:[%s2 + $0xb0] sm:$0xff]
        %v1108 = vld [vmem:[%s2 + $0xb8] sm:$0xff]
        %v1109 = vld [vmem:[%s2 + $0xc0] sm:$0xff]
        %v1110 = vld [vmem:[%s2 + $0xc8] sm:$0xff]
        %v1111 = vld [vmem:[%s2 + $0xd0] sm:$0xff]
        %v1112 = vld [vmem:[%s2 + $0xd8] sm:$0xff]
        %v1113 = vld [vmem:[%s2 + $0xe0] sm:$0xff]
        %v1114 = vld [vmem:[%s2 + $0xe8] sm:$0xff]
        %v1115 = vld [vmem:[%s2 + $0xf0] sm:$0xff]
        %v1116 = vld [vmem:[%s2 + $0xf8] sm:$0xff]
        %v1117 = vld [vmem:[%s2 + $0x100] sm:$0xff]
        %v1118 = vld [vmem:[%s2 + $0x108] sm:$0xff]
        %v1119 = vld [vmem:[%s2 + $0x110] sm:$0xff]
        %v1120 = vld [vmem:[%s2 + $0x118] sm:$0xff]
        %v1121 = vld [vmem:[%s2 + $0x120] sm:$0xff]
        %v1122 = vld [vmem:[%s2 + $0x128] sm:$0xff]
        %v1123 = vld [vmem:[%s2 + $0x130] sm:$0xff]
        %v1124 = vld [vmem:[%s2 + $0x138] sm:$0xff]
        %v1125 = vld [vmem:[%s2 + $0x140] sm:$0xff]
        %v1126 = vld [vmem:[%s2 + $0x148] sm:$0xff]
        %v1127 = vld [vmem:[%s2 + $0x150] sm:$0xff]
        %v1128 = vld [vmem:[%s2 + $0x158] sm:$0xff]
        %v1129 = vld [vmem:[%s2 + $0x160] sm:$0xff]
        %v1130 = vld [vmem:[%s2 + $0x168] sm:$0xff]
        %v1131 = vld [vmem:[%s2 + $0x170] sm:$0xff]
        %v1132 = vld [vmem:[%s2 + $0x178] sm:$0xff]
        %v1133 = vld [vmem:[%s2 + $0x180] sm:$0xff]
        %v1134 = vld [vmem:[%s2 + $0x188] sm:$0xff]
        %v1135 = vld [vmem:[%s2 + $0x190] sm:$0xff]
        %v1136 = vld [vmem:[%s2 + $0x198] sm:$0xff]
        %v1137 = vld [vmem:[%s2 + $0x1a0] sm:$0xff]
        %v1138 = vld [vmem:[%s2 + $0x1a8] sm:$0xff]
        %v1139 = vld [vmem:[%s2 + $0x1b0] sm:$0xff]
        %v1140 = vld [vmem:[%s2 + $0x1b8] sm:$0xff]
        %v1141 = vld [vmem:[%s2 + $0x1c0] sm:$0xff]
        %v1142 = vld [vmem:[%s2 + $0x1c8] sm:$0xff]
        %v1143 = vld [vmem:[%s2 + $0x1d0] sm:$0xff]
        %v1144 = vld [vmem:[%s2 + $0x1d8] sm:$0xff]
        %v1145 = vld [vmem:[%s2 + $0x1e0] sm:$0xff]
        %v1146 = vld [vmem:[%s2 + $0x1e8] sm:$0xff]
        %v1147 = vld [vmem:[%s2 + $0x1f0] sm:$0xff]
        %v1148 = vld [vmem:[%s2 + $0x1f8] sm:$0xff]
        %v1149 = vld [vmem:[%s2 + $0x200] sm:$0xff]
        %v1150 = vld [vmem:[%s2 + $0x208] sm:$0xff]
        %v1151 = vld [vmem:[%s2 + $0x210] sm:$0xff]
        %v1152 = vld [vmem:[%s2 + $0x218] sm:$0xff]
        %v1153 = vld [vmem:[%s2 + $0x220] sm:$0xff]
        %v1154 = vld [vmem:[%s2 + $0x228] sm:$0xff]
        %v1155 = vld [vmem:[%s2 + $0x230] sm:$0xff]
        %v1156 = vld [vmem:[%s2 + $0x238] sm:$0xff]
        %v1157 = vld [vmem:[%s2 + $0x240] sm:$0xff]
        %v1158 = vld [vmem:[%s2 + $0x248] sm:$0xff]
        %v1159 = vld [vmem:[%s2 + $0x250] sm:$0xff]
        %v1160 = vld [vmem:[%s2 + $0x258] sm:$0xff]
        %v1161 = vld [vmem:[%s2 + $0x260] sm:$0xff]
        %v1162 = vld [vmem:[%s2 + $0x268] sm:$0xff]
        %v1163 = vld [vmem:[%s2 + $0x270] sm:$0xff]
        %v1164 = vld [vmem:[%s2 + $0x278] sm:$0xff]
        %v1165 = vld [vmem:[%s2 + $0x280] sm:$0xff]
        %v1166 = vld [vmem:[%s2 + $0x288] sm:$0xff]
        %v1167 = vld [vmem:[%s2 + $0x290] sm:$0xff]
        %v1168 = vld [vmem:[%s2 + $0x298] sm:$0xff]
        %v1169 = vld [vmem:[%s2 + $0x2a0] sm:$0xff]
        %v1170 = vld [vmem:[%s2 + $0x2a8] sm:$0xff]
        %v1171 = vld [vmem:[%s2 + $0x2b0] sm:$0xff]
        %v1172 = vld [vmem:[%s2 + $0x2b8] sm:$0xff]
        %v1173 = vld [vmem:[%s2 + $0x2c0] sm:$0xff]
        %v1174 = vld [vmem:[%s2 + $0x2c8] sm:$0xff]
        %v1175 = vld [vmem:[%s2 + $0x2d0] sm:$0xff]
        %v1176 = vld [vmem:[%s2 + $0x2d8] sm:$0xff]
        %v1177 = vld [vmem:[%s2 + $0x2e0] sm:$0xff]
        %v1178 = vld [vmem:[%s2 + $0x2e8] sm:$0xff]
        %v1179 = vld [vmem:[%s2 + $0x2f0] sm:$0xff]
        %v1180 = vld [vmem:[%s2 + $0x2f8] sm:$0xff]
        %v1181 = vld [vmem:[%s2 + $0x300] sm:$0xff]
        %v1182 = vld [vmem:[%s2 + $0x308] sm:$0xff]
        %v1183 = vld [vmem:[%s2 + $0x310] sm:$0xff]
        %v1184 = vld [vmem:[%s2 + $0x318] sm:$0xff]
        %v1185 = vld [vmem:[%s2 + $0x320] sm:$0xff]
        %v1186 = vld [vmem:[%s2 + $0x328] sm:$0xff]
        %v1187 = vld [vmem:[%s2 + $0x330] sm:$0xff]
        %v1188 = vld [vmem:[%s2 + $0x338] sm:$0xff]
        %v1189 = vld [vmem:[%s2 + $0x340] sm:$0xff]
        %v1190 = vld [vmem:[%s2 + $0x348] sm:$0xff]
        %v1191 = vld [vmem:[%s2 + $0x350] sm:$0xff]
        %v1192 = vld [vmem:[%s2 + $0x358] sm:$0xff]
        %v1193 = vld [vmem:[%s2 + $0x360] sm:$0xff]
        %v1194 = vld [vmem:[%s2 + $0x368] sm:$0xff]
        %v1195 = vld [vmem:[%s2 + $0x370] sm:$0xff]
        %v1196 = vld [vmem:[%s2 + $0x378] sm:$0xff]
        %v1197 = vld [vmem:[%s2 + $0x380] sm:$0xff]
        %v1198 = vld [vmem:[%s2 + $0x388] sm:$0xff]
        %v1199 = vld [vmem:[%s2 + $0x390] sm:$0xff]
        %v1200 = vld [vmem:[%s2 + $0x398] sm:$0xff]
        %v1201 = vld [vmem:[%s2 + $0x3a0] sm:$0xff]
        %v1202 = vld [vmem:[%s2 + $0x3a8] sm:$0xff]
        %v1203 = vld [vmem:[%s2 + $0x3b0] sm:$0xff]
        %v1204 = vld [vmem:[%s2 + $0x3b8] sm:$0xff]
        %v1205 = vld [vmem:[%s2 + $0x3c0] sm:$0xff]
        %v1206 = vld [vmem:[%s2 + $0x3c8] sm:$0xff]
        %v1207 = vld [vmem:[%s2 + $0x3d0] sm:$0xff]
        %v1208 = vld [vmem:[%s2 + $0x3d8] sm:$0xff]
        %v1209 = vld [vmem:[%s2 + $0x3e0] sm:$0xff]
        %v1210 = vld [vmem:[%s2 + $0x3e8] sm:$0xff]
        %v1211 = vld [vmem:[%s2 + $0x3f0] sm:$0xff]
        %v1212 = vld [vmem:[%s2 + $0x3f8] sm:$0xff]
        %v1213 = vld [vmem:[%s2 + $0x400] sm:$0xff]
        %v1214 = vld [vmem:[%s2 + $0x408] sm:$0xff]
        %v1215 = vld [vmem:[%s2 + $0x410] sm:$0xff]
        %v1216 = vld [vmem:[%s2 + $0x418] sm:$0xff]
        %v1217 = vld [vmem:[%s2 + $0x420] sm:$0xff]
        %v1218 = vld [vmem:[%s2 + $0x428] sm:$0xff]
        %v1219 = vld [vmem:[%s2 + $0x430] sm:$0xff]
        %v1220 = vld [vmem:[%s2 + $0x438] sm:$0xff]
        %v1221 = vld [vmem:[%s2 + $0x440] sm:$0xff]
        %v1222 = vld [vmem:[%s2 + $0x448] sm:$0xff]
        %v1223 = vld [vmem:[%s2 + $0x450] sm:$0xff]
        %v1224 = vld [vmem:[%s2 + $0x458] sm:$0xff]
        %v1225 = vld [vmem:[%s2 + $0x460] sm:$0xff]
        %v1226 = vld [vmem:[%s2 + $0x468] sm:$0xff]
        %v1227 = vld [vmem:[%s2 + $0x470] sm:$0xff]
        %v1228 = vld [vmem:[%s2 + $0x478] sm:$0xff]
        %v1229 = vld [vmem:[%s2 + $0x480] sm:$0xff]
        %v1230 = vld [vmem:[%s2 + $0x488] sm:$0xff]
        %v1231 = vld [vmem:[%s2 + $0x490] sm:$0xff]
        %v1232 = vld [vmem:[%s2 + $0x498] sm:$0xff]
        %v1233 = vld [vmem:[%s2 + $0x4a0] sm:$0xff]
        %v1234 = vld [vmem:[%s2 + $0x4a8] sm:$0xff]
        %v1235 = vld [vmem:[%s2 + $0x4b0] sm:$0xff]
        %v1236 = vld [vmem:[%s2 + $0x4b8] sm:$0xff]
        %v1237 = vld [vmem:[%s2 + $0x4c0] sm:$0xff]
        %v1238 = vld [vmem:[%s2 + $0x4c8] sm:$0xff]
        %v1239 = vld [vmem:[%s2 + $0x4d0] sm:$0xff]
        %v1240 = vld [vmem:[%s2 + $0x4d8] sm:$0xff]
        %v1241 = vld [vmem:[%s2 + $0x4e0] sm:$0xff]
        %v1242 = vld [vmem:[%s2 + $0x4e8] sm:$0xff]
        %v1243 = vld [vmem:[%s2 + $0x4f0] sm:$0xff]
        %v1244 = vld [vmem:[%s2 + $0x4f8] sm:$0xff]
        %v1245 = vld [vmem:[%s2 + $0x500] sm:$0xff]
        %v1246 = vld [vmem:[%s2 + $0x508] sm:$0xff]
        %v1247 = vld [vmem:[%s2 + $0x510] sm:$0xff]
        %v1248 = vld [vmem:[%s2 + $0x518] sm:$0xff]
        %v1249 = vld [vmem:[%s2 + $0x520] sm:$0xff]
        %v1250 = vld [vmem:[%s2 + $0x528] sm:$0xff]
        %v1251 = vld [vmem:[%s2 + $0x530] sm:$0xff]
        %v1252 = vld [vmem:[%s2 + $0x538] sm:$0xff]
        %v1253 = vld [vmem:[%s2 + $0x540] sm:$0xff]
        %v1254 = vld [vmem:[%s2 + $0x548] sm:$0xff]
        %v1255 = vld [vmem:[%s2 + $0x550] sm:$0xff]
        %v1256 = vld [vmem:[%s2 + $0x558] sm:$0xff]
        %v1257 = vld [vmem:[%s2 + $0x560] sm:$0xff]
        %v1258 = vld [vmem:[%s2 + $0x568] sm:$0xff]
        %v1259 = vld [vmem:[%s2 + $0x570] sm:$0xff]
        %v1260 = vld [vmem:[%s2 + $0x578] sm:$0xff]
        %v1261 = vld [vmem:[%s2 + $0x580] sm:$0xff]
        %v1262 = vld [vmem:[%s2 + $0x588] sm:$0xff]
        %v1263 = vld [vmem:[%s2 + $0x590] sm:$0xff]
        %v1264 = vld [vmem:[%s2 + $0x598] sm:$0xff]
        %v1265 = vld [vmem:[%s2 + $0x5a0] sm:$0xff]
        %v1266 = vld [vmem:[%s2 + $0x5a8] sm:$0xff]
        %v1267 = vld [vmem:[%s2 + $0x5b0] sm:$0xff]
        %v1268 = vld [vmem:[%s2 + $0x5b8] sm:$0xff]
        %v1269 = vld [vmem:[%s2 + $0x5c0] sm:$0xff]
        %v1270 = vld [vmem:[%s2 + $0x5c8] sm:$0xff]
        %v1271 = vld [vmem:[%s2 + $0x5d0] sm:$0xff]
        %v1272 = vld [vmem:[%s2 + $0x5d8] sm:$0xff]
        %v1273 = vld [vmem:[%s2 + $0x5e0] sm:$0xff]
        %v1274 = vld [vmem:[%s2 + $0x5e8] sm:$0xff]
        %v1275 = vld [vmem:[%s2 + $0x5f0] sm:$0xff]
        %v1276 = vld [vmem:[%s2 + $0x5f8] sm:$0xff]
        %v1277 = vld [vmem:[%s2 + $0x600] sm:$0xff]
        %v1278 = vld [vmem:[%s2 + $0x608] sm:$0xff]
        %v1279 = vld [vmem:[%s2 + $0x610] sm:$0xff]
        %v1280 = vld [vmem:[%s2 + $0x618] sm:$0xff]
        %v1281 = vld [vmem:[%s2 + $0x620] sm:$0xff]
        %v1282 = vld [vmem:[%s2 + $0x628] sm:$0xff]
        %v1283 = vld [vmem:[%s2 + $0x630] sm:$0xff]
        %v1284 = vld [vmem:[%s2 + $0x638] sm:$0xff]
        %v1285 = vld [vmem:[%s2 + $0x640] sm:$0xff]
        %v1286 = vld [vmem:[%s2 + $0x648] sm:$0xff]
        %v1287 = vld [vmem:[%s2 + $0x650] sm:$0xff]
        %v1288 = vld [vmem:[%s2 + $0x658] sm:$0xff]
        %v1289 = vld [vmem:[%s2 + $0x660] sm:$0xff]
        %v1290 = vld [vmem:[%s2 + $0x668] sm:$0xff]
        %v1291 = vld [vmem:[%s2 + $0x670] sm:$0xff]
        %v1292 = vld [vmem:[%s2 + $0x678] sm:$0xff]
        %v1293 = vld [vmem:[%s2 + $0x680] sm:$0xff]
        %v1294 = vld [vmem:[%s2 + $0x688] sm:$0xff]
        %v1295 = vld [vmem:[%s2 + $0x690] sm:$0xff]
        %v1296 = vld [vmem:[%s2 + $0x698] sm:$0xff]
        %v1297 = vld [vmem:[%s2 + $0x6a0] sm:$0xff]
        %v1298 = vld [vmem:[%s2 + $0x6a8] sm:$0xff]
        %v1299 = vld [vmem:[%s2 + $0x6b0] sm:$0xff]
        %v1300 = vld [vmem:[%s2 + $0x6b8] sm:$0xff]
        %v1301 = vld [vmem:[%s2 + $0x6c0] sm:$0xff]
        %v1302 = vld [vmem:[%s2 + $0x6c8] sm:$0xff]
        %v1303 = vld [vmem:[%s2 + $0x6d0] sm:$0xff]
        %v1304 = vld [vmem:[%s2 + $0x6d8] sm:$0xff]
        %v1305 = vld [vmem:[%s2 + $0x6e0] sm:$0xff]
        %v1306 = vld [vmem:[%s2 + $0x6e8] sm:$0xff]
        %v1307 = vld [vmem:[%s2 + $0x6f0] sm:$0xff]
        %v1308 = vld [vmem:[%s2 + $0x6f8] sm:$0xff]
        %v1309 = vld [vmem:[%s2 + $0x700] sm:$0xff]
        %v1310 = vld [vmem:[%s2 + $0x708] sm:$0xff]
        %v1311 = vld [vmem:[%s2 + $0x710] sm:$0xff]
        %v1312 = vld [vmem:[%s2 + $0x718] sm:$0xff]
        %v1313 = vld [vmem:[%s2 + $0x720] sm:$0xff]
        %v1314 = vld [vmem:[%s2 + $0x728] sm:$0xff]
        %v1315 = vld [vmem:[%s2 + $0x730] sm:$0xff]
        %v1316 = vld [vmem:[%s2 + $0x738] sm:$0xff]
        %v1317 = vld [vmem:[%s2 + $0x740] sm:$0xff]
        %v1318 = vld [vmem:[%s2 + $0x748] sm:$0xff]
        %v1319 = vld [vmem:[%s2 + $0x750] sm:$0xff]
        %v1320 = vld [vmem:[%s2 + $0x758] sm:$0xff]
        %v1321 = vld [vmem:[%s2 + $0x760] sm:$0xff]
        %v1322 = vld [vmem:[%s2 + $0x768] sm:$0xff]
        %v1323 = vld [vmem:[%s2 + $0x770] sm:$0xff]
        %v1324 = vld [vmem:[%s2 + $0x778] sm:$0xff]
        %v1325 = vld [vmem:[%s2 + $0x780] sm:$0xff]
        %v1326 = vld [vmem:[%s2 + $0x788] sm:$0xff]
        %v1327 = vld [vmem:[%s2 + $0x790] sm:$0xff]
        %v1328 = vld [vmem:[%s2 + $0x798] sm:$0xff]
        %v1329 = vld [vmem:[%s2 + $0x7a0] sm:$0xff]
        %v1330 = vld [vmem:[%s2 + $0x7a8] sm:$0xff]
        %v1331 = vld [vmem:[%s2 + $0x7b0] sm:$0xff]
        %v1332 = vld [vmem:[%s2 + $0x7b8] sm:$0xff]
        %v1333 = vld [vmem:[%s2 + $0x7c0] sm:$0xff]
        %v1334 = vld [vmem:[%s2 + $0x7c8] sm:$0xff]
        %v1335 = vld [vmem:[%s2 + $0x7d0] sm:$0xff]
        %v1336 = vld [vmem:[%s2 + $0x7d8] sm:$0xff]
        %v1337 = vld [vmem:[%s2 + $0x7e0] sm:$0xff]
        %v1338 = vld [vmem:[%s2 + $0x7e8] sm:$0xff]
        %v1339 = vld [vmem:[%s2 + $0x7f0] sm:$0xff]
        %v1340 = vld [vmem:[%s2 + $0x7f8] sm:$0xff]
        %v1341 = vld [vmem:[%s2 + $0x800] sm:$0xff]
        %v1342 = vld [vmem:[%s2 + $0x808] sm:$0xff]
        %v1343 = vld [vmem:[%s2 + $0x810] sm:$0xff]
        %v1344 = vld [vmem:[%s2 + $0x818] sm:$0xff]
        %v1345 = vld [vmem:[%s2 + $0x820] sm:$0xff]
        %v1346 = vld [vmem:[%s2 + $0x828] sm:$0xff]
        %v1347 = vld [vmem:[%s2 + $0x830] sm:$0xff]
        %v1348 = vld [vmem:[%s2 + $0x838] sm:$0xff]
        %v1349 = vld [vmem:[%s2 + $0x840] sm:$0xff]
        %v1350 = vld [vmem:[%s2 + $0x848] sm:$0xff]
        %v1351 = vld [vmem:[%s2 + $0x850] sm:$0xff]
        %v1352 = vld [vmem:[%s2 + $0x858] sm:$0xff]
        %v1353 = vld [vmem:[%s2 + $0x860] sm:$0xff]
        %v1354 = vld [vmem:[%s2 + $0x868] sm:$0xff]
        %v1355 = vld [vmem:[%s2 + $0x870] sm:$0xff]
        %v1356 = vld [vmem:[%s2 + $0x878] sm:$0xff]
        %v1357 = vld [vmem:[%s2 + $0x880] sm:$0xff]
        %v1358 = vld [vmem:[%s2 + $0x888] sm:$0xff]
        %v1359 = vld [vmem:[%s2 + $0x890] sm:$0xff]
        %v1360 = vld [vmem:[%s2 + $0x898] sm:$0xff]
        %v1361 = vld [vmem:[%s2 + $0x8a0] sm:$0xff]
        %v1362 = vld [vmem:[%s2 + $0x8a8] sm:$0xff]
        %v1363 = vld [vmem:[%s2 + $0x8b0] sm:$0xff]
        %v1364 = vld [vmem:[%s2 + $0x8b8] sm:$0xff]
        %v1365 = vld [vmem:[%s2 + $0x8c0] sm:$0xff]
        %v1366 = vld [vmem:[%s2 + $0x8c8] sm:$0xff]
        %v1367 = vld [vmem:[%s2 + $0x8d0] sm:$0xff]
        %v1368 = vld [vmem:[%s2 + $0x8d8] sm:$0xff]
        %v1369 = vld [vmem:[%s2 + $0x8e0] sm:$0xff]
        %v1370 = vld [vmem:[%s2 + $0x8e8] sm:$0xff]
        %v1371 = vld [vmem:[%s2 + $0x8f0] sm:$0xff]
        %v1372 = vld [vmem:[%s2 + $0x8f8] sm:$0xff]
        %v1373 = vld [vmem:[%s2 + $0x900] sm:$0xff]
        %v1374 = vld [vmem:[%s2 + $0x908] sm:$0xff]
        %v1375 = vld [vmem:[%s2 + $0x910] sm:$0xff]
        %v1376 = vld [vmem:[%s2 + $0x918] sm:$0xff]
        %v1377 = vld [vmem:[%s2 + $0x920] sm:$0xff]
        %v1378 = vld [vmem:[%s2 + $0x928] sm:$0xff]
        %v1379 = vld [vmem:[%s2 + $0x930] sm:$0xff]
        %v1380 = vld [vmem:[%s2 + $0x938] sm:$0xff]
        %v1381 = vld [vmem:[%s2 + $0x940] sm:$0xff]
        %v1382 = vld [vmem:[%s2 + $0x948] sm:$0xff]
        %v1383 = vld [vmem:[%s2 + $0x950] sm:$0xff]
        %v1384 = vld [vmem:[%s2 + $0x958] sm:$0xff]
        %v1385 = vld [vmem:[%s2 + $0x960] sm:$0xff]
        %v1386 = vld [vmem:[%s2 + $0x968] sm:$0xff]
        %v1387 = vld [vmem:[%s2 + $0x970] sm:$0xff]
        %v1388 = vld [vmem:[%s2 + $0x978] sm:$0xff]
        %v1389 = vld [vmem:[%s2 + $0x980] sm:$0xff]
        %v1390 = vld [vmem:[%s2 + $0x988] sm:$0xff]
        %v1391 = vld [vmem:[%s2 + $0x990] sm:$0xff]
        %v1392 = vld [vmem:[%s2 + $0x998] sm:$0xff]
        %v1393 = vld [vmem:[%s2 + $0x9a0] sm:$0xff]
        %v1394 = vld [vmem:[%s2 + $0x9a8] sm:$0xff]
        %v1395 = vld [vmem:[%s2 + $0x9b0] sm:$0xff]
        %v1396 = vld [vmem:[%s2 + $0x9b8] sm:$0xff]
        %v1397 = vld [vmem:[%s2 + $0x9c0] sm:$0xff]
        %v1398 = vld [vmem:[%s2 + $0x9c8] sm:$0xff]
        %v1399 = vld [vmem:[%s2 + $0x9d0] sm:$0xff]
        %v1400 = vld [vmem:[%s2 + $0x9d8] sm:$0xff]
        %v1401 = vld [vmem:[%s2 + $0x9e0] sm:$0xff]
        %v1402 = vld [vmem:[%s2 + $0x9e8] sm:$0xff]
        %v1403 = vld [vmem:[%s2 + $0x9f0] sm:$0xff]
        %v1404 = vld [vmem:[%s2 + $0x9f8] sm:$0xff]
        %v1405 = vld [vmem:[%s2 + $0xa00] sm:$0xff]
        %v1406 = vld [vmem:[%s2 + $0xa08] sm:$0xff]
        %v1407 = vld [vmem:[%s2 + $0xa10] sm:$0xff]
        %v1408 = vld [vmem:[%s2 + $0xa18] sm:$0xff]
        %v1409 = vld [vmem:[%s2 + $0xa20] sm:$0xff]
        %v1410 = vld [vmem:[%s2 + $0xa28] sm:$0xff]
        %v1411 = vld [vmem:[%s2 + $0xa30] sm:$0xff]
        %v1412 = vld [vmem:[%s2 + $0xa38] sm:$0xff]
        %v1413 = vld [vmem:[%s2 + $0xa40] sm:$0xff]
        %v1414 = vld [vmem:[%s2 + $0xa48] sm:$0xff]
        %v1415 = vld [vmem:[%s2 + $0xa50] sm:$0xff]
        %v1416 = vld [vmem:[%s2 + $0xa58] sm:$0xff]
        %v1417 = vld [vmem:[%s2 + $0xa60] sm:$0xff]
        %v1418 = vld [vmem:[%s2 + $0xa68] sm:$0xff]
        %v1419 = vld [vmem:[%s2 + $0xa70] sm:$0xff]
        %v1420 = vld [vmem:[%s2 + $0xa78] sm:$0xff]
        %v1421 = vld [vmem:[%s2 + $0xa80] sm:$0xff]
        %v1422 = vld [vmem:[%s2 + $0xa88] sm:$0xff]
        %v1423 = vld [vmem:[%s2 + $0xa90] sm:$0xff]
        %v1424 = vld [vmem:[%s2 + $0xa98] sm:$0xff]
        %v1425 = vld [vmem:[%s2 + $0xaa0] sm:$0xff]
        %v1426 = vld [vmem:[%s2 + $0xaa8] sm:$0xff]
        %v1427 = vld [vmem:[%s2 + $0xab0] sm:$0xff]
        %v1428 = vld [vmem:[%s2 + $0xab8] sm:$0xff]
        %v1429 = vld [vmem:[%s2 + $0xac0] sm:$0xff]
        %v1430 = vld [vmem:[%s2 + $0xac8] sm:$0xff]
        %v1431 = vld [vmem:[%s2 + $0xad0] sm:$0xff]
        %v1432 = vld [vmem:[%s2 + $0xad8] sm:$0xff]
        %v1433 = vld [vmem:[%s2 + $0xae0] sm:$0xff]
        %v1434 = vld [vmem:[%s2 + $0xae8] sm:$0xff]
        %v1435 = vld [vmem:[%s2 + $0xaf0] sm:$0xff]
        %v1436 = vld [vmem:[%s2 + $0xaf8] sm:$0xff]
        %v1437 = vld [vmem:[%s2 + $0xb00] sm:$0xff]
        %v1438 = vld [vmem:[%s2 + $0xb08] sm:$0xff]
        %v1439 = vld [vmem:[%s2 + $0xb10] sm:$0xff]
        %v1440 = vld [vmem:[%s2 + $0xb18] sm:$0xff]
        %v1441 = vld [vmem:[%s2 + $0xb20] sm:$0xff]
        %v1442 = vld [vmem:[%s2 + $0xb28] sm:$0xff]
        %v1443 = vld [vmem:[%s2 + $0xb30] sm:$0xff]
        %v1444 = vld [vmem:[%s2 + $0xb38] sm:$0xff]
        %v1445 = vld [vmem:[%s2 + $0xb40] sm:$0xff]
        %v1446 = vld [vmem:[%s2 + $0xb48] sm:$0xff]
        %v1447 = vld [vmem:[%s2 + $0xb50] sm:$0xff]
        %v1448 = vld [vmem:[%s2 + $0xb58] sm:$0xff]
        %v1449 = vld [vmem:[%s2 + $0xb60] sm:$0xff]
        %v1450 = vld [vmem:[%s2 + $0xb68] sm:$0xff]
        %v1451 = vld [vmem:[%s2 + $0xb70] sm:$0xff]
        %v1452 = vld [vmem:[%s2 + $0xb78] sm:$0xff]
        %v1453 = vld [vmem:[%s2 + $0xb80] sm:$0xff]
        %v1454 = vld [vmem:[%s2 + $0xb88] sm:$0xff]
        %v1455 = vld [vmem:[%s2 + $0xb90] sm:$0xff]
        %v1456 = vld [vmem:[%s2 + $0xb98] sm:$0xff]
        %v1457 = vld [vmem:[%s2 + $0xba0] sm:$0xff]
        %v1458 = vld [vmem:[%s2 + $0xba8] sm:$0xff]
        %v1459 = vld [vmem:[%s2 + $0xbb0] sm:$0xff]
        %v1460 = vld [vmem:[%s2 + $0xbb8] sm:$0xff]
        %v1461 = vld [vmem:[%s2 + $0xbc0] sm:$0xff]
        %v1462 = vld [vmem:[%s2 + $0xbc8] sm:$0xff]
        %v1463 = vld [vmem:[%s2 + $0xbd0] sm:$0xff]
        %v1464 = vld [vmem:[%s2 + $0xbd8] sm:$0xff]
        %v1465 = vld [vmem:[%s2 + $0xbe0] sm:$0xff]
        %v1466 = vld [vmem:[%s2 + $0xbe8] sm:$0xff]
        %v1467 = vld [vmem:[%s2 + $0xbf0] sm:$0xff]
        %v1468 = vld [vmem:[%s2 + $0xbf8] sm:$0xff]
        %v1469 = vld [vmem:[%s2 + $0xc00] sm:$0xff]
        %v1470 = vld [vmem:[%s2 + $0xc08] sm:$0xff]
        %v1471 = vld [vmem:[%s2 + $0xc10] sm:$0xff]
        %v1472 = vld [vmem:[%s2 + $0xc18] sm:$0xff]
        %v1473 = vld [vmem:[%s2 + $0xc20] sm:$0xff]
        %v1474 = vld [vmem:[%s2 + $0xc28] sm:$0xff]
        %v1475 = vld [vmem:[%s2 + $0xc30] sm:$0xff]
        %v1476 = vld [vmem:[%s2 + $0xc38] sm:$0xff]
        %v1477 = vld [vmem:[%s2 + $0xc40] sm:$0xff]
        %v1478 = vld [vmem:[%s2 + $0xc48] sm:$0xff]
        %v1479 = vld [vmem:[%s2 + $0xc50] sm:$0xff]
        %v1480 = vld [vmem:[%s2 + $0xc58] sm:$0xff]
        %v1481 = vld [vmem:[%s2 + $0xc60] sm:$0xff]
        %v1482 = vld [vmem:[%s2 + $0xc68] sm:$0xff]
        %v1483 = vld [vmem:[%s2 + $0xc70] sm:$0xff]
        %v1484 = vld [vmem:[%s2 + $0xc78] sm:$0xff]
        %v1485 = vld [vmem:[%s2 + $0xc80] sm:$0xff]
        %v1486 = vld [vmem:[%s2 + $0xc88] sm:$0xff]
        %v1487 = vld [vmem:[%s2 + $0xc90] sm:$0xff]
        %v1488 = vld [vmem:[%s2 + $0xc98] sm:$0xff]
        %v1489 = vld [vmem:[%s2 + $0xca0] sm:$0xff]
        %v1490 = vld [vmem:[%s2 + $0xca8] sm:$0xff]
        %v1491 = vld [vmem:[%s2 + $0xcb0] sm:$0xff]
        %v1492 = vld [vmem:[%s2 + $0xcb8] sm:$0xff]
        %v1493 = vld [vmem:[%s2 + $0xcc0] sm:$0xff]
        %v1494 = vld [vmem:[%s2 + $0xcc8] sm:$0xff]
        %v1495 = vld [vmem:[%s2 + $0xcd0] sm:$0xff]
        %v1496 = vld [vmem:[%s2 + $0xcd8] sm:$0xff]
        %v1497 = vld [vmem:[%s2 + $0xce0] sm:$0xff]
        %v1498 = vld [vmem:[%s2 + $0xce8] sm:$0xff]
        %v1499 = vld [vmem:[%s2 + $0xcf0] sm:$0xff]
        %v1500 = vld [vmem:[%s2 + $0xcf8] sm:$0xff]
        %v1501 = vld [vmem:[%s2 + $0xd00] sm:$0xff]
        %v1502 = vld [vmem:[%s2 + $0xd08] sm:$0xff]
        %v1503 = vld [vmem:[%s2 + $0xd10] sm:$0xff]
        %v1504 = vld [vmem:[%s2 + $0xd18] sm:$0xff]
        %v1505 = vld [vmem:[%s2 + $0xd20] sm:$0xff]
        %v1506 = vld [vmem:[%s2 + $0xd28] sm:$0xff]
        %v1507 = vld [vmem:[%s2 + $0xd30] sm:$0xff]
        %v1508 = vld [vmem:[%s2 + $0xd38] sm:$0xff]
        %v1509 = vld [vmem:[%s2 + $0xd40] sm:$0xff]
        %v1510 = vld [vmem:[%s2 + $0xd48] sm:$0xff]
        %v1511 = vld [vmem:[%s2 + $0xd50] sm:$0xff]
        %v1512 = vld [vmem:[%s2 + $0xd58] sm:$0xff]
        %v1513 = vld [vmem:[%s2 + $0xd60] sm:$0xff]
        %v1514 = vld [vmem:[%s2 + $0xd68] sm:$0xff]
        %v1515 = vld [vmem:[%s2 + $0xd70] sm:$0xff]
        %v1516 = vld [vmem:[%s2 + $0xd78] sm:$0xff]
        %v1517 = vld [vmem:[%s2 + $0xd80] sm:$0xff]
        %v1518 = vld [vmem:[%s2 + $0xd88] sm:$0xff]
        %v1519 = vld [vmem:[%s2 + $0xd90] sm:$0xff]
        %v1520 = vld [vmem:[%s2 + $0xd98] sm:$0xff]
        %v1521 = vld [vmem:[%s2 + $0xda0] sm:$0xff]
        %v1522 = vld [vmem:[%s2 + $0xda8] sm:$0xff]
        %v1523 = vld [vmem:[%s2 + $0xdb0] sm:$0xff]
        %v1524 = vld [vmem:[%s2 + $0xdb8] sm:$0xff]
        %v1525 = vld [vmem:[%s2 + $0xdc0] sm:$0xff]
        %v1526 = vld [vmem:[%s2 + $0xdc8] sm:$0xff]
        %v1527 = vld [vmem:[%s2 + $0xdd0] sm:$0xff]
        %v1528 = vld [vmem:[%s2 + $0xdd8] sm:$0xff]
        %v1529 = vld [vmem:[%s2 + $0xde0] sm:$0xff]
        %v1530 = vld [vmem:[%s2 + $0xde8] sm:$0xff]
        %v1531 = vld [vmem:[%s2 + $0xdf0] sm:$0xff]
        %v1532 = vld [vmem:[%s2 + $0xdf8] sm:$0xff]
        %v1533 = vld [vmem:[%s2 + $0xe00] sm:$0xff]
        %v1534 = vld [vmem:[%s2 + $0xe08] sm:$0xff]
        %v1535 = vld [vmem:[%s2 + $0xe10] sm:$0xff]
        %v1536 = vld [vmem:[%s2 + $0xe18] sm:$0xff]
        %v1537 = vld [vmem:[%s2 + $0xe20] sm:$0xff]
        %v1538 = vld [vmem:[%s2 + $0xe28] sm:$0xff]
        %v1539 = vld [vmem:[%s2 + $0xe30] sm:$0xff]
        %v1540 = vld [vmem:[%s2 + $0xe38] sm:$0xff]
        %v1541 = vld [vmem:[%s2 + $0xe40] sm:$0xff]
        %v1542 = vld [vmem:[%s2 + $0xe48] sm:$0xff]
        %v1543 = vld [vmem:[%s2 + $0xe50] sm:$0xff]
        %v1544 = vld [vmem:[%s2 + $0xe58] sm:$0xff]
        %v1545 = vld [vmem:[%s2 + $0xe60] sm:$0xff]
        %v1546 = vld [vmem:[%s2 + $0xe68] sm:$0xff]
        %v1547 = vld [vmem:[%s2 + $0xe70] sm:$0xff]
        %v1548 = vld [vmem:[%s2 + $0xe78] sm:$0xff]
        %v1549 = vld [vmem:[%s2 + $0xe80] sm:$0xff]
        %v1550 = vld [vmem:[%s2 + $0xe88] sm:$0xff]
        %v1551 = vld [vmem:[%s2 + $0xe90] sm:$0xff]
        %v1552 = vld [vmem:[%s2 + $0xe98] sm:$0xff]
        %v1553 = vld [vmem:[%s2 + $0xea0] sm:$0xff]
        %v1554 = vld [vmem:[%s2 + $0xea8] sm:$0xff]
        %v1555 = vld [vmem:[%s2 + $0xeb0] sm:$0xff]
        %v1556 = vld [vmem:[%s2 + $0xeb8] sm:$0xff]
        %v1557 = vld [vmem:[%s2 + $0xec0] sm:$0xff]
        %v1558 = vld [vmem:[%s2 + $0xec8] sm:$0xff]
        %v1559 = vld [vmem:[%s2 + $0xed0] sm:$0xff]
        %v1560 = vld [vmem:[%s2 + $0xed8] sm:$0xff]
        %v1561 = vld [vmem:[%s2 + $0xee0] sm:$0xff]
        %v1562 = vld [vmem:[%s2 + $0xee8] sm:$0xff]
        %v1563 = vld [vmem:[%s2 + $0xef0] sm:$0xff]
        %v1564 = vld [vmem:[%s2 + $0xef8] sm:$0xff]
        %v1565 = vld [vmem:[%s2 + $0xf00] sm:$0xff]
        %v1566 = vld [vmem:[%s2 + $0xf08] sm:$0xff]
        %v1567 = vld [vmem:[%s2 + $0xf10] sm:$0xff]
        %v1568 = vld [vmem:[%s2 + $0xf18] sm:$0xff]
        %v1569 = vld [vmem:[%s2 + $0xf20] sm:$0xff]
        %v1570 = vld [vmem:[%s2 + $0xf28] sm:$0xff]
        %v1571 = vld [vmem:[%s2 + $0xf30] sm:$0xff]
        %v1572 = vld [vmem:[%s2 + $0xf38] sm:$0xff]
        %v1573 = vld [vmem:[%s2 + $0xf40] sm:$0xff]
        %v1574 = vld [vmem:[%s2 + $0xf48] sm:$0xff]
        %v1575 = vld [vmem:[%s2 + $0xf50] sm:$0xff]
        %v1576 = vld [vmem:[%s2 + $0xf58] sm:$0xff]
        %v1577 = vld [vmem:[%s2 + $0xf60] sm:$0xff]
        %v1578 = vld [vmem:[%s2 + $0xf68] sm:$0xff]
        %v1579 = vld [vmem:[%s2 + $0xf70] sm:$0xff]
        %v1580 = vld [vmem:[%s2 + $0xf78] sm:$0xff]
        %v1581 = vld [vmem:[%s2 + $0xf80] sm:$0xff]
        %v1582 = vld [vmem:[%s2 + $0xf88] sm:$0xff]
        %v1583 = vld [vmem:[%s2 + $0xf90] sm:$0xff]
        %v1584 = vld [vmem:[%s2 + $0xf98] sm:$0xff]
        %v1585 = vld [vmem:[%s2 + $0xfa0] sm:$0xff]
        %v1586 = vld [vmem:[%s2 + $0xfa8] sm:$0xff]
        %v1587 = vld [vmem:[%s2 + $0xfb0] sm:$0xff]
        %v1588 = vld [vmem:[%s2 + $0xfb8] sm:$0xff]
        %v1589 = vld [vmem:[%s2 + $0xfc0] sm:$0xff]
        %v1590 = vld [vmem:[%s2 + $0xfc8] sm:$0xff]
        %v1591 = vld [vmem:[%s2 + $0xfd0] sm:$0xff]
        %v1592 = vld [vmem:[%s2 + $0xfd8] sm:$0xff]
        %v1593 = vld [vmem:[%s2 + $0xfe0] sm:$0xff]
        %v1594 = vld [vmem:[%s2 + $0xfe8] sm:$0xff]
        %v1595 = vld [vmem:[%s2 + $0xff0] sm:$0xff]
        %v1596 = vld [vmem:[%s2 + $0xff8] sm:$0xff]
        %v1597 = vld [vmem:[%s2 + $0x1000] sm:$0xff]
        %v1598 = vld [vmem:[%s2 + $0x1008] sm:$0xff]
        %v1599 = vld [vmem:[%s2 + $0x1010] sm:$0xff]
        %v1600 = vld [vmem:[%s2 + $0x1018] sm:$0xff]
        %v1601 = vld [vmem:[%s2 + $0x1020] sm:$0xff]
        %v1602 = vld [vmem:[%s2 + $0x1028] sm:$0xff]
        %v1603 = vld [vmem:[%s2 + $0x1030] sm:$0xff]
        %v1604 = vld [vmem:[%s2 + $0x1038] sm:$0xff]
        %v1605 = vld [vmem:[%s2 + $0x1040] sm:$0xff]
        %v1606 = vld [vmem:[%s2 + $0x1048] sm:$0xff]
        %v1607 = vld [vmem:[%s2 + $0x1050] sm:$0xff]
        %v1608 = vld [vmem:[%s2 + $0x1058] sm:$0xff]
        %v1609 = vld [vmem:[%s2 + $0x1060] sm:$0xff]
        %v1610 = vld [vmem:[%s2 + $0x1068] sm:$0xff]
        %v1611 = vld [vmem:[%s2 + $0x1070] sm:$0xff]
        %v1612 = vld [vmem:[%s2 + $0x1078] sm:$0xff]
        %v1613 = vld [vmem:[%s2 + $0x1080] sm:$0xff]
        %v1614 = vld [vmem:[%s2 + $0x1088] sm:$0xff]
        %v1615 = vld [vmem:[%s2 + $0x1090] sm:$0xff]
        %v1616 = vld [vmem:[%s2 + $0x1098] sm:$0xff]
        %v1617 = vld [vmem:[%s2 + $0x10a0] sm:$0xff]
        %v1618 = vld [vmem:[%s2 + $0x10a8] sm:$0xff]
        %v1619 = vld [vmem:[%s2 + $0x10b0] sm:$0xff]
        %v1620 = vld [vmem:[%s2 + $0x10b8] sm:$0xff]
        %v1621 = vld [vmem:[%s2 + $0x10c0] sm:$0xff]
        %v1622 = vld [vmem:[%s2 + $0x10c8] sm:$0xff]
        %v1623 = vld [vmem:[%s2 + $0x10d0] sm:$0xff]
        %v1624 = vld [vmem:[%s2 + $0x10d8] sm:$0xff]
        %v1625 = vld [vmem:[%s2 + $0x10e0] sm:$0xff]
        %v1626 = vld [vmem:[%s2 + $0x10e8] sm:$0xff]
        %v1627 = vld [vmem:[%s2 + $0x10f0] sm:$0xff]
        %v1628 = vld [vmem:[%s2 + $0x10f8] sm:$0xff]
        %v1629 = vld [vmem:[%s2 + $0x1100] sm:$0xff]
        %v1630 = vld [vmem:[%s2 + $0x1108] sm:$0xff]
        %v1631 = vld [vmem:[%s2 + $0x1110] sm:$0xff]
        %v1632 = vld [vmem:[%s2 + $0x1118] sm:$0xff]
        %v1633 = vld [vmem:[%s2 + $0x1120] sm:$0xff]
        %v1634 = vld [vmem:[%s2 + $0x1128] sm:$0xff]
        %v1635 = vld [vmem:[%s2 + $0x1130] sm:$0xff]
        %v1636 = vld [vmem:[%s2 + $0x1138] sm:$0xff]
        %v1637 = vld [vmem:[%s2 + $0x1140] sm:$0xff]
        %v1638 = vld [vmem:[%s2 + $0x1148] sm:$0xff]
        %v1639 = vld [vmem:[%s2 + $0x1150] sm:$0xff]
        %v1640 = vld [vmem:[%s2 + $0x1158] sm:$0xff]
        %v1641 = vld [vmem:[%s2 + $0x1160] sm:$0xff]
        %v1642 = vld [vmem:[%s2 + $0x1168] sm:$0xff]
        %v1643 = vld [vmem:[%s2 + $0x1170] sm:$0xff]
        %v1644 = vld [vmem:[%s2 + $0x1178] sm:$0xff]
        %v1645 = vld [vmem:[%s2 + $0x1180] sm:$0xff]
        %v1646 = vld [vmem:[%s2 + $0x1188] sm:$0xff]
        %v1647 = vld [vmem:[%s2 + $0x1190] sm:$0xff]
        %v1648 = vld [vmem:[%s2 + $0x1198] sm:$0xff]
        %v1649 = vld [vmem:[%s2 + $0x11a0] sm:$0xff]
        %v1650 = vld [vmem:[%s2 + $0x11a8] sm:$0xff]
        %v1651 = vld [vmem:[%s2 + $0x11b0] sm:$0xff]
        %v1652 = vld [vmem:[%s2 + $0x11b8] sm:$0xff]
        %v1653 = vld [vmem:[%s2 + $0x11c0] sm:$0xff]
        %v1654 = vld [vmem:[%s2 + $0x11c8] sm:$0xff]
        %v1655 = vld [vmem:[%s2 + $0x11d0] sm:$0xff]
        %v1656 = vld [vmem:[%s2 + $0x11d8] sm:$0xff]
        %v1657 = vld [vmem:[%s2 + $0x11e0] sm:$0xff]
        %v1658 = vld [vmem:[%s2 + $0x11e8] sm:$0xff]
        %v1659 = vld [vmem:[%s2 + $0x11f0] sm:$0xff]
        %v1660 = vld [vmem:[%s2 + $0x11f8] sm:$0xff]
        %v1661 = vld [vmem:[%s2 + $0x1200] sm:$0xff]
        %v1662 = vld [vmem:[%s2 + $0x1208] sm:$0xff]
        %v1663 = vld [vmem:[%s2 + $0x1210] sm:$0xff]
        %v1664 = vld [vmem:[%s2 + $0x1218] sm:$0xff]
        %v1665 = vld [vmem:[%s2 + $0x1220] sm:$0xff]
        %v1666 = vld [vmem:[%s2 + $0x1228] sm:$0xff]
        %v1667 = vld [vmem:[%s2 + $0x1230] sm:$0xff]
        %v1668 = vld [vmem:[%s2 + $0x1238] sm:$0xff]
        %v1669 = vld [vmem:[%s2 + $0x1240] sm:$0xff]
        %v1670 = vld [vmem:[%s2 + $0x1248] sm:$0xff]
        %v1671 = vld [vmem:[%s2 + $0x1250] sm:$0xff]
        %v1672 = vld [vmem:[%s2 + $0x1258] sm:$0xff]
        %v1673 = vld [vmem:[%s2 + $0x1260] sm:$0xff]
        %v1674 = vld [vmem:[%s2 + $0x1268] sm:$0xff]
        %v1675 = vld [vmem:[%s2 + $0x1270] sm:$0xff]
        %v1676 = vld [vmem:[%s2 + $0x1278] sm:$0xff]
        %v1677 = vld [vmem:[%s2 + $0x1280] sm:$0xff]
        %v1678 = vld [vmem:[%s2 + $0x1288] sm:$0xff]
        %v1679 = vld [vmem:[%s2 + $0x1290] sm:$0xff]
        %v1680 = vld [vmem:[%s2 + $0x1298] sm:$0xff]
        %v1681 = vld [vmem:[%s2 + $0x12a0] sm:$0xff]
        %v1682 = vld [vmem:[%s2 + $0x12a8] sm:$0xff]
        %v1683 = vld [vmem:[%s2 + $0x12b0] sm:$0xff]
        %v1684 = vld [vmem:[%s2 + $0x12b8] sm:$0xff]
        %v1685 = vld [vmem:[%s2 + $0x12c0] sm:$0xff]
        %v1686 = vld [vmem:[%s2 + $0x12c8] sm:$0xff]
        %v1687 = vld [vmem:[%s2 + $0x12d0] sm:$0xff]
        %v1688 = vld [vmem:[%s2 + $0x12d8] sm:$0xff]
        %v1689 = vld [vmem:[%s2 + $0x12e0] sm:$0xff]
        %v1690 = vld [vmem:[%s2 + $0x12e8] sm:$0xff]
        %v1691 = vld [vmem:[%s2 + $0x12f0] sm:$0xff]
        %v1692 = vld [vmem:[%s2 + $0x12f8] sm:$0xff]
        %v1693 = vld [vmem:[%s2 + $0x1300] sm:$0xff]
        %v1694 = vld [vmem:[%s2 + $0x1308] sm:$0xff]
        %v1695 = vld [vmem:[%s2 + $0x1310] sm:$0xff]
        %v1696 = vld [vmem:[%s2 + $0x1318] sm:$0xff]
        %v1697 = vld [vmem:[%s2 + $0x1320] sm:$0xff]
        %v1698 = vld [vmem:[%s2 + $0x1328] sm:$0xff]
        %v1699 = vld [vmem:[%s2 + $0x1330] sm:$0xff]
        %v1700 = vld [vmem:[%s2 + $0x1338] sm:$0xff]
        %v1701 = vld [vmem:[%s2 + $0x1340] sm:$0xff]
        %v1702 = vld [vmem:[%s2 + $0x1348] sm:$0xff]
        %v1703 = vld [vmem:[%s2 + $0x1350] sm:$0xff]
        %v1704 = vld [vmem:[%s2 + $0x1358] sm:$0xff]
        %v1705 = vld [vmem:[%s2 + $0x1360] sm:$0xff]
        %v1706 = vld [vmem:[%s2 + $0x1368] sm:$0xff]
        %v1707 = vld [vmem:[%s2 + $0x1370] sm:$0xff]
        %v1708 = vld [vmem:[%s2 + $0x1378] sm:$0xff]
        %v1709 = vld [vmem:[%s2 + $0x1380] sm:$0xff]
        %v1710 = vld [vmem:[%s2 + $0x1388] sm:$0xff]
        %v1711 = vld [vmem:[%s2 + $0x1390] sm:$0xff]
        %v1712 = vld [vmem:[%s2 + $0x1398] sm:$0xff]
        %v1713 = vld [vmem:[%s2 + $0x13a0] sm:$0xff]
        %v1714 = vld [vmem:[%s2 + $0x13a8] sm:$0xff]
        %v1715 = vld [vmem:[%s2 + $0x13b0] sm:$0xff]
        %v1716 = vld [vmem:[%s2 + $0x13b8] sm:$0xff]
        %v1717 = vld [vmem:[%s2 + $0x13c0] sm:$0xff]
        %v1718 = vld [vmem:[%s2 + $0x13c8] sm:$0xff]
        %v1719 = vld [vmem:[%s2 + $0x13d0] sm:$0xff]
        %v1720 = vld [vmem:[%s2 + $0x13d8] sm:$0xff]
        %v1721 = vld [vmem:[%s2 + $0x13e0] sm:$0xff]
        %v1722 = vld [vmem:[%s2 + $0x13e8] sm:$0xff]
        %v1723 = vld [vmem:[%s2 + $0x13f0] sm:$0xff]
        %v1724 = vld [vmem:[%s2 + $0x13f8] sm:$0xff]
        %v1725 = vld [vmem:[%s2 + $0x1400] sm:$0xff]
        %v1726 = vld [vmem:[%s2 + $0x1408] sm:$0xff]
        %v1727 = vld [vmem:[%s2 + $0x1410] sm:$0xff]
        %v1728 = vld [vmem:[%s2 + $0x1418] sm:$0xff]
        %v1729 = vld [vmem:[%s2 + $0x1420] sm:$0xff]
        %v1730 = vld [vmem:[%s2 + $0x1428] sm:$0xff]
        %v1731 = vld [vmem:[%s2 + $0x1430] sm:$0xff]
        %v1732 = vld [vmem:[%s2 + $0x1438] sm:$0xff]
        %v1733 = vld [vmem:[%s2 + $0x1440] sm:$0xff]
        %v1734 = vld [vmem:[%s2 + $0x1448] sm:$0xff]
        %v1735 = vld [vmem:[%s2 + $0x1450] sm:$0xff]
        %v1736 = vld [vmem:[%s2 + $0x1458] sm:$0xff]
        %v1737 = vld [vmem:[%s2 + $0x1460] sm:$0xff]
        %v1738 = vld [vmem:[%s2 + $0x1468] sm:$0xff]
        %v1739 = vld [vmem:[%s2 + $0x1470] sm:$0xff]
        %v1740 = vld [vmem:[%s2 + $0x1478] sm:$0xff]
        %v1741 = vld [vmem:[%s2 + $0x1480] sm:$0xff]
        %v1742 = vld [vmem:[%s2 + $0x1488] sm:$0xff]
        %v1743 = vld [vmem:[%s2 + $0x1490] sm:$0xff]
        %v1744 = vld [vmem:[%s2 + $0x1498] sm:$0xff]
        %v1745 = vld [vmem:[%s2 + $0x14a0] sm:$0xff]
        %v1746 = vld [vmem:[%s2 + $0x14a8] sm:$0xff]
        %v1747 = vld [vmem:[%s2 + $0x14b0] sm:$0xff]
        %v1748 = vld [vmem:[%s2 + $0x14b8] sm:$0xff]
        %v1749 = vld [vmem:[%s2 + $0x14c0] sm:$0xff]
        %v1750 = vld [vmem:[%s2 + $0x14c8] sm:$0xff]
        %v1751 = vld [vmem:[%s2 + $0x14d0] sm:$0xff]
        %v1752 = vld [vmem:[%s2 + $0x14d8] sm:$0xff]
        %v1753 = vld [vmem:[%s2 + $0x14e0] sm:$0xff]
        %v1754 = vld [vmem:[%s2 + $0x14e8] sm:$0xff]
        %v1755 = vld [vmem:[%s2 + $0x14f0] sm:$0xff]
        %v1756 = vld [vmem:[%s2 + $0x14f8] sm:$0xff]
        %v1757 = vld [vmem:[%s2 + $0x1500] sm:$0xff]
        %v1758 = vld [vmem:[%s2 + $0x1508] sm:$0xff]
        %v1759 = vld [vmem:[%s2 + $0x1510] sm:$0xff]
        %v1760 = vld [vmem:[%s2 + $0x1518] sm:$0xff]
        %v1761 = vld [vmem:[%s2 + $0x1520] sm:$0xff]
        %v1762 = vld [vmem:[%s2 + $0x1528] sm:$0xff]
        %v1763 = vld [vmem:[%s2 + $0x1530] sm:$0xff]
        %v1764 = vld [vmem:[%s2 + $0x1538] sm:$0xff]
        %v1765 = vld [vmem:[%s2 + $0x1540] sm:$0xff]
        %v1766 = vld [vmem:[%s2 + $0x1548] sm:$0xff]
        %v1767 = vld [vmem:[%s2 + $0x1550] sm:$0xff]
        %v1768 = vld [vmem:[%s2 + $0x1558] sm:$0xff]
        %v1769 = vld [vmem:[%s2 + $0x1560] sm:$0xff]
        %v1770 = vld [vmem:[%s2 + $0x1568] sm:$0xff]
        %v1771 = vld [vmem:[%s2 + $0x1570] sm:$0xff]
        %v1772 = vld [vmem:[%s2 + $0x1578] sm:$0xff]
        %v1773 = vld [vmem:[%s2 + $0x1580] sm:$0xff]
        %v1774 = vld [vmem:[%s2 + $0x1588] sm:$0xff]
        %v1775 = vld [vmem:[%s2 + $0x1590] sm:$0xff]
        %v1776 = vld [vmem:[%s2 + $0x1598] sm:$0xff]
        %v1777 = vld [vmem:[%s2 + $0x15a0] sm:$0xff]
        %v1778 = vld [vmem:[%s2 + $0x15a8] sm:$0xff]
        %v1779 = vld [vmem:[%s2 + $0x15b0] sm:$0xff]
        %v1780 = vld [vmem:[%s2 + $0x15b8] sm:$0xff]
        %v1781 = vld [vmem:[%s2 + $0x15c0] sm:$0xff]
        %v1782 = vld [vmem:[%s2 + $0x15c8] sm:$0xff]
        %v1783 = vld [vmem:[%s2 + $0x15d0] sm:$0xff]
        %v1784 = vld [vmem:[%s2 + $0x15d8] sm:$0xff]
        %v1785 = vld [vmem:[%s2 + $0x15e0] sm:$0xff]
        %v1786 = vld [vmem:[%s2 + $0x15e8] sm:$0xff]
        %v1787 = vld [vmem:[%s2 + $0x15f0] sm:$0xff]
        %v1788 = vld [vmem:[%s2 + $0x15f8] sm:$0xff]
        %v1789 = vld [vmem:[%s2 + $0x1600] sm:$0xff]
        %v1790 = vld [vmem:[%s2 + $0x1608] sm:$0xff]
        %v1791 = vld [vmem:[%s2 + $0x1610] sm:$0xff]
        %v1792 = vld [vmem:[%s2 + $0x1618] sm:$0xff]
        %v1793 = vld [vmem:[%s2 + $0x1620] sm:$0xff]
        %v1794 = vld [vmem:[%s2 + $0x1628] sm:$0xff]
        %v1795 = vld [vmem:[%s2 + $0x1630] sm:$0xff]
        %v1796 = vld [vmem:[%s2 + $0x1638] sm:$0xff]
        %v1797 = vld [vmem:[%s2 + $0x1640] sm:$0xff]
        %v1798 = vld [vmem:[%s2 + $0x1648] sm:$0xff]
        %v1799 = vld [vmem:[%s2 + $0x1650] sm:$0xff]
        %v1800 = vld [vmem:[%s2 + $0x1658] sm:$0xff]
        %v1801 = vld [vmem:[%s2 + $0x1660] sm:$0xff]
        %v1802 = vld [vmem:[%s2 + $0x1668] sm:$0xff]
        %v1803 = vld [vmem:[%s2 + $0x1670] sm:$0xff]
        %v1804 = vld [vmem:[%s2 + $0x1678] sm:$0xff]
        %v1805 = vld [vmem:[%s2 + $0x1680] sm:$0xff]
        %v1806 = vld [vmem:[%s2 + $0x1688] sm:$0xff]
        %v1807 = vld [vmem:[%s2 + $0x1690] sm:$0xff]
        %v1808 = vld [vmem:[%s2 + $0x1698] sm:$0xff]
        %v1809 = vld [vmem:[%s2 + $0x16a0] sm:$0xff]
        %v1810 = vld [vmem:[%s2 + $0x16a8] sm:$0xff]
        %v1811 = vld [vmem:[%s2 + $0x16b0] sm:$0xff]
        %v1812 = vld [vmem:[%s2 + $0x16b8] sm:$0xff]
        %v1813 = vld [vmem:[%s2 + $0x16c0] sm:$0xff]
        %v1814 = vld [vmem:[%s2 + $0x16c8] sm:$0xff]
        %v1815 = vld [vmem:[%s2 + $0x16d0] sm:$0xff]
        %v1816 = vld [vmem:[%s2 + $0x16d8] sm:$0xff]
        %v1817 = vld [vmem:[%s2 + $0x16e0] sm:$0xff]
        %v1818 = vld [vmem:[%s2 + $0x16e8] sm:$0xff]
        %v1819 = vld [vmem:[%s2 + $0x16f0] sm:$0xff]
        %v1820 = vld [vmem:[%s2 + $0x16f8] sm:$0xff]
        %v1821 = vld [vmem:[%s2 + $0x1700] sm:$0xff]
        %v1822 = vld [vmem:[%s2 + $0x1708] sm:$0xff]
        %v1823 = vld [vmem:[%s2 + $0x1710] sm:$0xff]
        %v1824 = vld [vmem:[%s2 + $0x1718] sm:$0xff]
        %v1825 = vld [vmem:[%s2 + $0x1720] sm:$0xff]
        %v1826 = vld [vmem:[%s2 + $0x1728] sm:$0xff]
        %v1827 = vld [vmem:[%s2 + $0x1730] sm:$0xff]
        %v1828 = vld [vmem:[%s2 + $0x1738] sm:$0xff]
        %v1829 = vld [vmem:[%s2 + $0x1740] sm:$0xff]
        %v1830 = vld [vmem:[%s2 + $0x1748] sm:$0xff]
        %v1831 = vld [vmem:[%s2 + $0x1750] sm:$0xff]
        %v1832 = vld [vmem:[%s2 + $0x1758] sm:$0xff]
        %v1833 = vld [vmem:[%s2 + $0x1760] sm:$0xff]
        %v1834 = vld [vmem:[%s2 + $0x1768] sm:$0xff]
        %v1835 = vld [vmem:[%s2 + $0x1770] sm:$0xff]
        %v1836 = vld [vmem:[%s2 + $0x1778] sm:$0xff]
        %v1837 = vld [vmem:[%s2 + $0x1780] sm:$0xff]
        %v1838 = vld [vmem:[%s2 + $0x1788] sm:$0xff]
        %v1839 = vld [vmem:[%s2 + $0x1790] sm:$0xff]
        %v1840 = vld [vmem:[%s2 + $0x1798] sm:$0xff]
        %v1841 = vld [vmem:[%s2 + $0x17a0] sm:$0xff]
        %v1842 = vld [vmem:[%s2 + $0x17a8] sm:$0xff]
        %v1843 = vld [vmem:[%s2 + $0x17b0] sm:$0xff]
        %v1844 = vld [vmem:[%s2 + $0x17b8] sm:$0xff]
        %v1845 = vld [vmem:[%s2 + $0x17c0] sm:$0xff]
        %v1846 = vld [vmem:[%s2 + $0x17c8] sm:$0xff]
        %v1847 = vld [vmem:[%s2 + $0x17d0] sm:$0xff]
        %v1848 = vld [vmem:[%s2 + $0x17d8] sm:$0xff]
        %v1849 = vld [vmem:[%s2 + $0x17e0] sm:$0xff]
        %v1850 = vld [vmem:[%s2 + $0x17e8] sm:$0xff]
        %v1851 = vld [vmem:[%s2 + $0x17f0] sm:$0xff]
        %v1852 = vld [vmem:[%s2 + $0x17f8] sm:$0xff]
        %v1853 = vld [vmem:[#allocation2] sm:$0xff]
        %v1854 = vld [vmem:[#allocation2 + $0x8] sm:$0xff]
        %v1855 = vld [vmem:[#allocation2 + $0x10] sm:$0xff]
        %v1856 = vld [vmem:[#allocation2 + $0x18] sm:$0xff]
        %v1857 = vld [vmem:[#allocation2 + $0x20] sm:$0xff]
        %v1858 = vld [vmem:[#allocation2 + $0x28] sm:$0xff]
        %v1859 = vld [vmem:[#allocation2 + $0x30] sm:$0xff]
        %v1860 = vld [vmem:[#allocation2 + $0x38] sm:$0xff]
        %v1861 = vld [vmem:[#allocation2 + $0x40] sm:$0xff]
        %v1862 = vld [vmem:[#allocation2 + $0x48] sm:$0xff]
        %v1863 = vld [vmem:[#allocation2 + $0x50] sm:$0xff]
        %v1864 = vld [vmem:[#allocation2 + $0x58] sm:$0xff]
        %v1865 = vld [vmem:[#allocation2 + $0x60] sm:$0xff]
        %v1866 = vld [vmem:[#allocation2 + $0x68] sm:$0xff]
        %v1867 = vld [vmem:[#allocation2 + $0x70] sm:$0xff]
        %v1868 = vld [vmem:[#allocation2 + $0x78] sm:$0xff]
        %v1869 = vld [vmem:[#allocation2 + $0x80] sm:$0xff]
        %v1870 = vld [vmem:[#allocation2 + $0x88] sm:$0xff]
        %v1871 = vld [vmem:[#allocation2 + $0x90] sm:$0xff]
        %v1872 = vld [vmem:[#allocation2 + $0x98] sm:$0xff]
        %v1873 = vld [vmem:[#allocation2 + $0xa0] sm:$0xff]
        %v1874 = vld [vmem:[#allocation2 + $0xa8] sm:$0xff]
        %v1875 = vld [vmem:[#allocation2 + $0xb0] sm:$0xff]
        %v1876 = vld [vmem:[#allocation2 + $0xb8] sm:$0xff]
        %v1877 = vld [vmem:[#allocation2 + $0xc0] sm:$0xff]
        %v1878 = vld [vmem:[#allocation2 + $0xc8] sm:$0xff]
        %v1879 = vld [vmem:[#allocation2 + $0xd0] sm:$0xff]
        %v1880 = vld [vmem:[#allocation2 + $0xd8] sm:$0xff]
        %v1881 = vld [vmem:[#allocation2 + $0xe0] sm:$0xff]
        %v1882 = vld [vmem:[#allocation2 + $0xe8] sm:$0xff]
        %v1883 = vld [vmem:[#allocation2 + $0xf0] sm:$0xff]
        %v1884 = vld [vmem:[#allocation2 + $0xf8] sm:$0xff]
        %v1885 = vld [vmem:[#allocation2 + $0x100] sm:$0xff]
        %v1886 = vld [vmem:[#allocation2 + $0x108] sm:$0xff]
        %v1887 = vld [vmem:[#allocation2 + $0x110] sm:$0xff]
        %v1888 = vld [vmem:[#allocation2 + $0x118] sm:$0xff]
        %v1889 = vld [vmem:[#allocation2 + $0x120] sm:$0xff]
        %v1890 = vld [vmem:[#allocation2 + $0x128] sm:$0xff]
        %v1891 = vld [vmem:[#allocation2 + $0x130] sm:$0xff]
        %v1892 = vld [vmem:[#allocation2 + $0x138] sm:$0xff]
        %v1893 = vld [vmem:[#allocation2 + $0x140] sm:$0xff]
        %v1894 = vld [vmem:[#allocation2 + $0x148] sm:$0xff]
        %v1895 = vld [vmem:[#allocation2 + $0x150] sm:$0xff]
        %v1896 = vld [vmem:[#allocation2 + $0x158] sm:$0xff]
        %v1897 = vld [vmem:[#allocation2 + $0x160] sm:$0xff]
        %v1898 = vld [vmem:[#allocation2 + $0x168] sm:$0xff]
        %v1899 = vld [vmem:[#allocation2 + $0x170] sm:$0xff]
        %v1900 = vld [vmem:[#allocation2 + $0x178] sm:$0xff]
        %v1901 = vld [vmem:[#allocation2 + $0x180] sm:$0xff]
        %v1902 = vld [vmem:[#allocation2 + $0x188] sm:$0xff]
        %v1903 = vld [vmem:[#allocation2 + $0x190] sm:$0xff]
        %v1904 = vld [vmem:[#allocation2 + $0x198] sm:$0xff]
        %v1905 = vld [vmem:[#allocation2 + $0x1a0] sm:$0xff]
        %v1906 = vld [vmem:[#allocation2 + $0x1a8] sm:$0xff]
        %v1907 = vld [vmem:[#allocation2 + $0x1b0] sm:$0xff]
        %v1908 = vld [vmem:[#allocation2 + $0x1b8] sm:$0xff]
        %v1909 = vld [vmem:[#allocation2 + $0x1c0] sm:$0xff]
        %v1910 = vld [vmem:[#allocation2 + $0x1c8] sm:$0xff]
        %v1911 = vld [vmem:[#allocation2 + $0x1d0] sm:$0xff]
        %v1912 = vld [vmem:[#allocation2 + $0x1d8] sm:$0xff]
        %v1913 = vld [vmem:[#allocation2 + $0x1e0] sm:$0xff]
        %v1914 = vld [vmem:[#allocation2 + $0x1e8] sm:$0xff]
        %v1915 = vld [vmem:[#allocation2 + $0x1f0] sm:$0xff]
        %v1916 = vld [vmem:[#allocation2 + $0x1f8] sm:$0xff]
        %v1917 = vld [vmem:[%s3] sm:$0xff]
        %v1918 = vld [vmem:[%s3 + $0x8] sm:$0xff]
        %v1919 = vld [vmem:[%s3 + $0x10] sm:$0xff]
        %v1920 = vld [vmem:[%s3 + $0x18] sm:$0xff]
        %v1921 = vld [vmem:[%s3 + $0x20] sm:$0xff]
        %v1922 = vld [vmem:[%s3 + $0x28] sm:$0xff]
        %v1923 = vld [vmem:[%s3 + $0x30] sm:$0xff]
        %v1924 = vld [vmem:[%s3 + $0x38] sm:$0xff]
        %v1925 = vld [vmem:[%s3 + $0x40] sm:$0xff]
        %v1926 = vld [vmem:[%s3 + $0x48] sm:$0xff]
        %v1927 = vld [vmem:[%s3 + $0x50] sm:$0xff]
        %v1928 = vld [vmem:[%s3 + $0x58] sm:$0xff]
        %v1929 = vld [vmem:[%s3 + $0x60] sm:$0xff]
        %v1930 = vld [vmem:[%s3 + $0x68] sm:$0xff]
        %v1931 = vld [vmem:[%s3 + $0x70] sm:$0xff]
        %v1932 = vld [vmem:[%s3 + $0x78] sm:$0xff]
        %v1933 = vld [vmem:[%s3 + $0x80] sm:$0xff]
        %v1934 = vld [vmem:[%s3 + $0x88] sm:$0xff]
        %v1935 = vld [vmem:[%s3 + $0x90] sm:$0xff]
        %v1936 = vld [vmem:[%s3 + $0x98] sm:$0xff]
        %v1937 = vld [vmem:[%s3 + $0xa0] sm:$0xff]
        %v1938 = vld [vmem:[%s3 + $0xa8] sm:$0xff]
        %v1939 = vld [vmem:[%s3 + $0xb0] sm:$0xff]
        %v1940 = vld [vmem:[%s3 + $0xb8] sm:$0xff]
        %v1941 = vld [vmem:[%s3 + $0xc0] sm:$0xff]
        %v1942 = vld [vmem:[%s3 + $0xc8] sm:$0xff]
        %v1943 = vld [vmem:[%s3 + $0xd0] sm:$0xff]
        %v1944 = vld [vmem:[%s3 + $0xd8] sm:$0xff]
        %v1945 = vld [vmem:[%s3 + $0xe0] sm:$0xff]
        %v1946 = vld [vmem:[%s3 + $0xe8] sm:$0xff]
        %v1947 = vld [vmem:[%s3 + $0xf0] sm:$0xff]
        %v1948 = vld [vmem:[%s3 + $0xf8] sm:$0xff]
        %v1949 = vld [vmem:[%s3 + $0x100] sm:$0xff]
        %v1950 = vld [vmem:[%s3 + $0x108] sm:$0xff]
        %v1951 = vld [vmem:[%s3 + $0x110] sm:$0xff]
        %v1952 = vld [vmem:[%s3 + $0x118] sm:$0xff]
        %v1953 = vld [vmem:[%s3 + $0x120] sm:$0xff]
        %v1954 = vld [vmem:[%s3 + $0x128] sm:$0xff]
        %v1955 = vld [vmem:[%s3 + $0x130] sm:$0xff]
        %v1956 = vld [vmem:[%s3 + $0x138] sm:$0xff]
        %v1957 = vld [vmem:[%s3 + $0x140] sm:$0xff]
        %v1958 = vld [vmem:[%s3 + $0x148] sm:$0xff]
        %v1959 = vld [vmem:[%s3 + $0x150] sm:$0xff]
        %v1960 = vld [vmem:[%s3 + $0x158] sm:$0xff]
        %v1961 = vld [vmem:[%s3 + $0x160] sm:$0xff]
        %v1962 = vld [vmem:[%s3 + $0x168] sm:$0xff]
        %v1963 = vld [vmem:[%s3 + $0x170] sm:$0xff]
        %v1964 = vld [vmem:[%s3 + $0x178] sm:$0xff]
        %v1965 = vld [vmem:[%s3 + $0x180] sm:$0xff]
        %v1966 = vld [vmem:[%s3 + $0x188] sm:$0xff]
        %v1967 = vld [vmem:[%s3 + $0x190] sm:$0xff]
        %v1968 = vld [vmem:[%s3 + $0x198] sm:$0xff]
        %v1969 = vld [vmem:[%s3 + $0x1a0] sm:$0xff]
        %v1970 = vld [vmem:[%s3 + $0x1a8] sm:$0xff]
        %v1971 = vld [vmem:[%s3 + $0x1b0] sm:$0xff]
        %v1972 = vld [vmem:[%s3 + $0x1b8] sm:$0xff]
        %v1973 = vld [vmem:[%s3 + $0x1c0] sm:$0xff]
        %v1974 = vld [vmem:[%s3 + $0x1c8] sm:$0xff]
        %v1975 = vld [vmem:[%s3 + $0x1d0] sm:$0xff]
        %v1976 = vld [vmem:[%s3 + $0x1d8] sm:$0xff]
        %v1977 = vld [vmem:[%s3 + $0x1e0] sm:$0xff]
        %v1978 = vld [vmem:[%s3 + $0x1e8] sm:$0xff]
        %v1979 = vld [vmem:[%s3 + $0x1f0] sm:$0xff]
        %v1980 = vld [vmem:[%s3 + $0x1f8] sm:$0xff]
        %v1981 = vld [vmem:[%s3 + $0x200] sm:$0xff]
        %v1982 = vld [vmem:[%s3 + $0x208] sm:$0xff]
        %v1983 = vld [vmem:[%s3 + $0x210] sm:$0xff]
        %v1984 = vld [vmem:[%s3 + $0x218] sm:$0xff]
        %v1985 = vld [vmem:[%s3 + $0x220] sm:$0xff]
        %v1986 = vld [vmem:[%s3 + $0x228] sm:$0xff]
        %v1987 = vld [vmem:[%s3 + $0x230] sm:$0xff]
        %v1988 = vld [vmem:[%s3 + $0x238] sm:$0xff]
        %v1989 = vld [vmem:[%s3 + $0x240] sm:$0xff]
        %v1990 = vld [vmem:[%s3 + $0x248] sm:$0xff]
        %v1991 = vld [vmem:[%s3 + $0x250] sm:$0xff]
        %v1992 = vld [vmem:[%s3 + $0x258] sm:$0xff]
        %v1993 = vld [vmem:[%s3 + $0x260] sm:$0xff]
        %v1994 = vld [vmem:[%s3 + $0x268] sm:$0xff]
        %v1995 = vld [vmem:[%s3 + $0x270] sm:$0xff]
        %v1996 = vld [vmem:[%s3 + $0x278] sm:$0xff]
        %v1997 = vld [vmem:[%s3 + $0x280] sm:$0xff]
        %v1998 = vld [vmem:[%s3 + $0x288] sm:$0xff]
        %v1999 = vld [vmem:[%s3 + $0x290] sm:$0xff]
        %v2000 = vld [vmem:[%s3 + $0x298] sm:$0xff]
        %v2001 = vld [vmem:[%s3 + $0x2a0] sm:$0xff]
        %v2002 = vld [vmem:[%s3 + $0x2a8] sm:$0xff]
        %v2003 = vld [vmem:[%s3 + $0x2b0] sm:$0xff]
        %v2004 = vld [vmem:[%s3 + $0x2b8] sm:$0xff]
        %v2005 = vld [vmem:[%s3 + $0x2c0] sm:$0xff]
        %v2006 = vld [vmem:[%s3 + $0x2c8] sm:$0xff]
        %v2007 = vld [vmem:[%s3 + $0x2d0] sm:$0xff]
        %v2008 = vld [vmem:[%s3 + $0x2d8] sm:$0xff]
        %v2009 = vld [vmem:[%s3 + $0x2e0] sm:$0xff]
        %v2010 = vld [vmem:[%s3 + $0x2e8] sm:$0xff]
        %v2011 = vld [vmem:[%s3 + $0x2f0] sm:$0xff]
        %v2012 = vld [vmem:[%s3 + $0x2f8] sm:$0xff]
        %v2013 = vld [vmem:[%s3 + $0x300] sm:$0xff]
        %v2014 = vld [vmem:[%s3 + $0x308] sm:$0xff]
        %v2015 = vld [vmem:[%s3 + $0x310] sm:$0xff]
        %v2016 = vld [vmem:[%s3 + $0x318] sm:$0xff]
        %v2017 = vld [vmem:[%s3 + $0x320] sm:$0xff]
        %v2018 = vld [vmem:[%s3 + $0x328] sm:$0xff]
        %v2019 = vld [vmem:[%s3 + $0x330] sm:$0xff]
        %v2020 = vld [vmem:[%s3 + $0x338] sm:$0xff]
        %v2021 = vld [vmem:[%s3 + $0x340] sm:$0xff]
        %v2022 = vld [vmem:[%s3 + $0x348] sm:$0xff]
        %v2023 = vld [vmem:[%s3 + $0x350] sm:$0xff]
        %v2024 = vld [vmem:[%s3 + $0x358] sm:$0xff]
        %v2025 = vld [vmem:[%s3 + $0x360] sm:$0xff]
        %v2026 = vld [vmem:[%s3 + $0x368] sm:$0xff]
        %v2027 = vld [vmem:[%s3 + $0x370] sm:$0xff]
        %v2028 = vld [vmem:[%s3 + $0x378] sm:$0xff]
        %v2029 = vld [vmem:[%s3 + $0x380] sm:$0xff]
        %v2030 = vld [vmem:[%s3 + $0x388] sm:$0xff]
        %v2031 = vld [vmem:[%s3 + $0x390] sm:$0xff]
        %v2032 = vld [vmem:[%s3 + $0x398] sm:$0xff]
        %v2033 = vld [vmem:[%s3 + $0x3a0] sm:$0xff]
        %v2034 = vld [vmem:[%s3 + $0x3a8] sm:$0xff]
        %v2035 = vld [vmem:[%s3 + $0x3b0] sm:$0xff]
        %v2036 = vld [vmem:[%s3 + $0x3b8] sm:$0xff]
        %v2037 = vld [vmem:[%s3 + $0x3c0] sm:$0xff]
        %v2038 = vld [vmem:[%s3 + $0x3c8] sm:$0xff]
        %v2039 = vld [vmem:[%s3 + $0x3d0] sm:$0xff]
        %v2040 = vld [vmem:[%s3 + $0x3d8] sm:$0xff]
        %v2041 = vld [vmem:[%s3 + $0x3e0] sm:$0xff]
        %v2042 = vld [vmem:[%s3 + $0x3e8] sm:$0xff]
        %v2043 = vld [vmem:[%s3 + $0x3f0] sm:$0xff]
        %v2044 = vld [vmem:[%s3 + $0x3f8] sm:$0xff]
        %v2045 = vld [vmem:[%s3 + $0x400] sm:$0xff]
        %v2046 = vld [vmem:[%s3 + $0x408] sm:$0xff]
        %v2047 = vld [vmem:[%s3 + $0x410] sm:$0xff]
        %v2048 = vld [vmem:[%s3 + $0x418] sm:$0xff]
        %v2049 = vld [vmem:[%s3 + $0x420] sm:$0xff]
        %v2050 = vld [vmem:[%s3 + $0x428] sm:$0xff]
        %v2051 = vld [vmem:[%s3 + $0x430] sm:$0xff]
        %v2052 = vld [vmem:[%s3 + $0x438] sm:$0xff]
        %v2053 = vld [vmem:[%s3 + $0x440] sm:$0xff]
        %v2054 = vld [vmem:[%s3 + $0x448] sm:$0xff]
        %v2055 = vld [vmem:[%s3 + $0x450] sm:$0xff]
        %v2056 = vld [vmem:[%s3 + $0x458] sm:$0xff]
        %v2057 = vld [vmem:[%s3 + $0x460] sm:$0xff]
        %v2058 = vld [vmem:[%s3 + $0x468] sm:$0xff]
        %v2059 = vld [vmem:[%s3 + $0x470] sm:$0xff]
        %v2060 = vld [vmem:[%s3 + $0x478] sm:$0xff]
        %v2061 = vld [vmem:[%s3 + $0x480] sm:$0xff]
        %v2062 = vld [vmem:[%s3 + $0x488] sm:$0xff]
        %v2063 = vld [vmem:[%s3 + $0x490] sm:$0xff]
        %v2064 = vld [vmem:[%s3 + $0x498] sm:$0xff]
        %v2065 = vld [vmem:[%s3 + $0x4a0] sm:$0xff]
        %v2066 = vld [vmem:[%s3 + $0x4a8] sm:$0xff]
        %v2067 = vld [vmem:[%s3 + $0x4b0] sm:$0xff]
        %v2068 = vld [vmem:[%s3 + $0x4b8] sm:$0xff]
        %v2069 = vld [vmem:[%s3 + $0x4c0] sm:$0xff]
        %v2070 = vld [vmem:[%s3 + $0x4c8] sm:$0xff]
        %v2071 = vld [vmem:[%s3 + $0x4d0] sm:$0xff]
        %v2072 = vld [vmem:[%s3 + $0x4d8] sm:$0xff]
        %v2073 = vld [vmem:[%s3 + $0x4e0] sm:$0xff]
        %v2074 = vld [vmem:[%s3 + $0x4e8] sm:$0xff]
        %v2075 = vld [vmem:[%s3 + $0x4f0] sm:$0xff]
        %v2076 = vld [vmem:[%s3 + $0x4f8] sm:$0xff]
        %v2077 = vld [vmem:[%s3 + $0x500] sm:$0xff]
        %v2078 = vld [vmem:[%s3 + $0x508] sm:$0xff]
        %v2079 = vld [vmem:[%s3 + $0x510] sm:$0xff]
        %v2080 = vld [vmem:[%s3 + $0x518] sm:$0xff]
        %v2081 = vld [vmem:[%s3 + $0x520] sm:$0xff]
        %v2082 = vld [vmem:[%s3 + $0x528] sm:$0xff]
        %v2083 = vld [vmem:[%s3 + $0x530] sm:$0xff]
        %v2084 = vld [vmem:[%s3 + $0x538] sm:$0xff]
        %v2085 = vld [vmem:[%s3 + $0x540] sm:$0xff]
        %v2086 = vld [vmem:[%s3 + $0x548] sm:$0xff]
        %v2087 = vld [vmem:[%s3 + $0x550] sm:$0xff]
        %v2088 = vld [vmem:[%s3 + $0x558] sm:$0xff]
        %v2089 = vld [vmem:[%s3 + $0x560] sm:$0xff]
        %v2090 = vld [vmem:[%s3 + $0x568] sm:$0xff]
        %v2091 = vld [vmem:[%s3 + $0x570] sm:$0xff]
        %v2092 = vld [vmem:[%s3 + $0x578] sm:$0xff]
        %v2093 = vld [vmem:[%s3 + $0x580] sm:$0xff]
        %v2094 = vld [vmem:[%s3 + $0x588] sm:$0xff]
        %v2095 = vld [vmem:[%s3 + $0x590] sm:$0xff]
        %v2096 = vld [vmem:[%s3 + $0x598] sm:$0xff]
        %v2097 = vld [vmem:[%s3 + $0x5a0] sm:$0xff]
        %v2098 = vld [vmem:[%s3 + $0x5a8] sm:$0xff]
        %v2099 = vld [vmem:[%s3 + $0x5b0] sm:$0xff]
        %v2100 = vld [vmem:[%s3 + $0x5b8] sm:$0xff]
        %v2101 = vld [vmem:[%s3 + $0x5c0] sm:$0xff]
        %v2102 = vld [vmem:[%s3 + $0x5c8] sm:$0xff]
        %v2103 = vld [vmem:[%s3 + $0x5d0] sm:$0xff]
        %v2104 = vld [vmem:[%s3 + $0x5d8] sm:$0xff]
        %v2105 = vld [vmem:[%s3 + $0x5e0] sm:$0xff]
        %v2106 = vld [vmem:[%s3 + $0x5e8] sm:$0xff]
        %v2107 = vld [vmem:[%s3 + $0x5f0] sm:$0xff]
        %v2108 = vld [vmem:[%s3 + $0x5f8] sm:$0xff]
        %v2109 = vld [vmem:[%s4] sm:$0xff]
        %v2110 = vld [vmem:[%s4 + $0x8] sm:$0xff]
        %v2111 = vld [vmem:[%s4 + $0x10] sm:$0xff]
        %v2112 = vld [vmem:[%s4 + $0x18] sm:$0xff]
        %v2113 = vld [vmem:[%s4 + $0x20] sm:$0xff]
        %v2114 = vld [vmem:[%s4 + $0x28] sm:$0xff]
        %v2115 = vld [vmem:[%s4 + $0x30] sm:$0xff]
        %v2116 = vld [vmem:[%s4 + $0x38] sm:$0xff]
        %v2117 = vld [vmem:[%s4 + $0x40] sm:$0xff]
        %v2118 = vld [vmem:[%s4 + $0x48] sm:$0xff]
        %v2119 = vld [vmem:[%s4 + $0x50] sm:$0xff]
        %v2120 = vld [vmem:[%s4 + $0x58] sm:$0xff]
        %v2121 = vld [vmem:[%s4 + $0x60] sm:$0xff]
        %v2122 = vld [vmem:[%s4 + $0x68] sm:$0xff]
        %v2123 = vld [vmem:[%s4 + $0x70] sm:$0xff]
        %v2124 = vld [vmem:[%s4 + $0x78] sm:$0xff]
        %v2125 = vld [vmem:[%s4 + $0x80] sm:$0xff]
        %v2126 = vld [vmem:[%s4 + $0x88] sm:$0xff]
        %v2127 = vld [vmem:[%s4 + $0x90] sm:$0xff]
        %v2128 = vld [vmem:[%s4 + $0x98] sm:$0xff]
        %v2129 = vld [vmem:[%s4 + $0xa0] sm:$0xff]
        %v2130 = vld [vmem:[%s4 + $0xa8] sm:$0xff]
        %v2131 = vld [vmem:[%s4 + $0xb0] sm:$0xff]
        %v2132 = vld [vmem:[%s4 + $0xb8] sm:$0xff]
        %v2133 = vld [vmem:[%s4 + $0xc0] sm:$0xff]
        %v2134 = vld [vmem:[%s4 + $0xc8] sm:$0xff]
        %v2135 = vld [vmem:[%s4 + $0xd0] sm:$0xff]
        %v2136 = vld [vmem:[%s4 + $0xd8] sm:$0xff]
        %v2137 = vld [vmem:[%s4 + $0xe0] sm:$0xff]
        %v2138 = vld [vmem:[%s4 + $0xe8] sm:$0xff]
        %v2139 = vld [vmem:[%s4 + $0xf0] sm:$0xff]
        %v2140 = vld [vmem:[%s4 + $0xf8] sm:$0xff]
        %v2141 = vld [vmem:[%s4 + $0x100] sm:$0xff]
        %v2142 = vld [vmem:[%s4 + $0x108] sm:$0xff]
        %v2143 = vld [vmem:[%s4 + $0x110] sm:$0xff]
        %v2144 = vld [vmem:[%s4 + $0x118] sm:$0xff]
        %v2145 = vld [vmem:[%s4 + $0x120] sm:$0xff]
        %v2146 = vld [vmem:[%s4 + $0x128] sm:$0xff]
        %v2147 = vld [vmem:[%s4 + $0x130] sm:$0xff]
        %v2148 = vld [vmem:[%s4 + $0x138] sm:$0xff]
        %v2149 = vld [vmem:[%s4 + $0x140] sm:$0xff]
        %v2150 = vld [vmem:[%s4 + $0x148] sm:$0xff]
        %v2151 = vld [vmem:[%s4 + $0x150] sm:$0xff]
        %v2152 = vld [vmem:[%s4 + $0x158] sm:$0xff]
        %v2153 = vld [vmem:[%s4 + $0x160] sm:$0xff]
        %v2154 = vld [vmem:[%s4 + $0x168] sm:$0xff]
        %v2155 = vld [vmem:[%s4 + $0x170] sm:$0xff]
        %v2156 = vld [vmem:[%s4 + $0x178] sm:$0xff]
        %v2157 = vld [vmem:[%s4 + $0x180] sm:$0xff]
        %v2158 = vld [vmem:[%s4 + $0x188] sm:$0xff]
        %v2159 = vld [vmem:[%s4 + $0x190] sm:$0xff]
        %v2160 = vld [vmem:[%s4 + $0x198] sm:$0xff]
        %v2161 = vld [vmem:[%s4 + $0x1a0] sm:$0xff]
        %v2162 = vld [vmem:[%s4 + $0x1a8] sm:$0xff]
        %v2163 = vld [vmem:[%s4 + $0x1b0] sm:$0xff]
        %v2164 = vld [vmem:[%s4 + $0x1b8] sm:$0xff]
        %v2165 = vld [vmem:[%s4 + $0x1c0] sm:$0xff]
        %v2166 = vld [vmem:[%s4 + $0x1c8] sm:$0xff]
        %v2167 = vld [vmem:[%s4 + $0x1d0] sm:$0xff]
        %v2168 = vld [vmem:[%s4 + $0x1d8] sm:$0xff]
        %v2169 = vld [vmem:[%s4 + $0x1e0] sm:$0xff]
        %v2170 = vld [vmem:[%s4 + $0x1e8] sm:$0xff]
        %v2171 = vld [vmem:[%s4 + $0x1f0] sm:$0xff]
        %v2172 = vld [vmem:[%s4 + $0x1f8] sm:$0xff]
        %v2173 = vld [vmem:[%s4 + $0x200] sm:$0xff]
        %v2174 = vld [vmem:[%s4 + $0x208] sm:$0xff]
        %v2175 = vld [vmem:[%s4 + $0x210] sm:$0xff]
        %v2176 = vld [vmem:[%s4 + $0x218] sm:$0xff]
        %v2177 = vld [vmem:[%s4 + $0x220] sm:$0xff]
        %v2178 = vld [vmem:[%s4 + $0x228] sm:$0xff]
        %v2179 = vld [vmem:[%s4 + $0x230] sm:$0xff]
        %v2180 = vld [vmem:[%s4 + $0x238] sm:$0xff]
        %v2181 = vld [vmem:[%s4 + $0x240] sm:$0xff]
        %v2182 = vld [vmem:[%s4 + $0x248] sm:$0xff]
        %v2183 = vld [vmem:[%s4 + $0x250] sm:$0xff]
        %v2184 = vld [vmem:[%s4 + $0x258] sm:$0xff]
        %v2185 = vld [vmem:[%s4 + $0x260] sm:$0xff]
        %v2186 = vld [vmem:[%s4 + $0x268] sm:$0xff]
        %v2187 = vld [vmem:[%s4 + $0x270] sm:$0xff]
        %v2188 = vld [vmem:[%s4 + $0x278] sm:$0xff]
        %v2189 = vld [vmem:[%s4 + $0x280] sm:$0xff]
        %v2190 = vld [vmem:[%s4 + $0x288] sm:$0xff]
        %v2191 = vld [vmem:[%s4 + $0x290] sm:$0xff]
        %v2192 = vld [vmem:[%s4 + $0x298] sm:$0xff]
        %v2193 = vld [vmem:[%s4 + $0x2a0] sm:$0xff]
        %v2194 = vld [vmem:[%s4 + $0x2a8] sm:$0xff]
        %v2195 = vld [vmem:[%s4 + $0x2b0] sm:$0xff]
        %v2196 = vld [vmem:[%s4 + $0x2b8] sm:$0xff]
        %v2197 = vld [vmem:[%s4 + $0x2c0] sm:$0xff]
        %v2198 = vld [vmem:[%s4 + $0x2c8] sm:$0xff]
        %v2199 = vld [vmem:[%s4 + $0x2d0] sm:$0xff]
        %v2200 = vld [vmem:[%s4 + $0x2d8] sm:$0xff]
        %v2201 = vld [vmem:[%s4 + $0x2e0] sm:$0xff]
        %v2202 = vld [vmem:[%s4 + $0x2e8] sm:$0xff]
        %v2203 = vld [vmem:[%s4 + $0x2f0] sm:$0xff]
        %v2204 = vld [vmem:[%s4 + $0x2f8] sm:$0xff]
        %v2205 = vld [vmem:[%s4 + $0x300] sm:$0xff]
        %v2206 = vld [vmem:[%s4 + $0x308] sm:$0xff]
        %v2207 = vld [vmem:[%s4 + $0x310] sm:$0xff]
        %v2208 = vld [vmem:[%s4 + $0x318] sm:$0xff]
        %v2209 = vld [vmem:[%s4 + $0x320] sm:$0xff]
        %v2210 = vld [vmem:[%s4 + $0x328] sm:$0xff]
        %v2211 = vld [vmem:[%s4 + $0x330] sm:$0xff]
        %v2212 = vld [vmem:[%s4 + $0x338] sm:$0xff]
        %v2213 = vld [vmem:[%s4 + $0x340] sm:$0xff]
        %v2214 = vld [vmem:[%s4 + $0x348] sm:$0xff]
        %v2215 = vld [vmem:[%s4 + $0x350] sm:$0xff]
        %v2216 = vld [vmem:[%s4 + $0x358] sm:$0xff]
        %v2217 = vld [vmem:[%s4 + $0x360] sm:$0xff]
        %v2218 = vld [vmem:[%s4 + $0x368] sm:$0xff]
        %v2219 = vld [vmem:[%s4 + $0x370] sm:$0xff]
        %v2220 = vld [vmem:[%s4 + $0x378] sm:$0xff]
        %v2221 = vld [vmem:[%s4 + $0x380] sm:$0xff]
        %v2222 = vld [vmem:[%s4 + $0x388] sm:$0xff]
        %v2223 = vld [vmem:[%s4 + $0x390] sm:$0xff]
        %v2224 = vld [vmem:[%s4 + $0x398] sm:$0xff]
        %v2225 = vld [vmem:[%s4 + $0x3a0] sm:$0xff]
        %v2226 = vld [vmem:[%s4 + $0x3a8] sm:$0xff]
        %v2227 = vld [vmem:[%s4 + $0x3b0] sm:$0xff]
        %v2228 = vld [vmem:[%s4 + $0x3b8] sm:$0xff]
        %v2229 = vld [vmem:[%s4 + $0x3c0] sm:$0xff]
        %v2230 = vld [vmem:[%s4 + $0x3c8] sm:$0xff]
        %v2231 = vld [vmem:[%s4 + $0x3d0] sm:$0xff]
        %v2232 = vld [vmem:[%s4 + $0x3d8] sm:$0xff]
        %v2233 = vld [vmem:[%s4 + $0x3e0] sm:$0xff]
        %v2234 = vld [vmem:[%s4 + $0x3e8] sm:$0xff]
        %v2235 = vld [vmem:[%s4 + $0x3f0] sm:$0xff]
        %v2236 = vld [vmem:[%s4 + $0x3f8] sm:$0xff]
        %v2237 = vld [vmem:[%s4 + $0x400] sm:$0xff]
        %v2238 = vld [vmem:[%s4 + $0x408] sm:$0xff]
        %v2239 = vld [vmem:[%s4 + $0x410] sm:$0xff]
        %v2240 = vld [vmem:[%s4 + $0x418] sm:$0xff]
        %v2241 = vld [vmem:[%s4 + $0x420] sm:$0xff]
        %v2242 = vld [vmem:[%s4 + $0x428] sm:$0xff]
        %v2243 = vld [vmem:[%s4 + $0x430] sm:$0xff]
        %v2244 = vld [vmem:[%s4 + $0x438] sm:$0xff]
        %v2245 = vld [vmem:[%s4 + $0x440] sm:$0xff]
        %v2246 = vld [vmem:[%s4 + $0x448] sm:$0xff]
        %v2247 = vld [vmem:[%s4 + $0x450] sm:$0xff]
        %v2248 = vld [vmem:[%s4 + $0x458] sm:$0xff]
        %v2249 = vld [vmem:[%s4 + $0x460] sm:$0xff]
        %v2250 = vld [vmem:[%s4 + $0x468] sm:$0xff]
        %v2251 = vld [vmem:[%s4 + $0x470] sm:$0xff]
        %v2252 = vld [vmem:[%s4 + $0x478] sm:$0xff]
        %v2253 = vld [vmem:[%s4 + $0x480] sm:$0xff]
        %v2254 = vld [vmem:[%s4 + $0x488] sm:$0xff]
        %v2255 = vld [vmem:[%s4 + $0x490] sm:$0xff]
        %v2256 = vld [vmem:[%s4 + $0x498] sm:$0xff]
        %v2257 = vld [vmem:[%s4 + $0x4a0] sm:$0xff]
        %v2258 = vld [vmem:[%s4 + $0x4a8] sm:$0xff]
        %v2259 = vld [vmem:[%s4 + $0x4b0] sm:$0xff]
        %v2260 = vld [vmem:[%s4 + $0x4b8] sm:$0xff]
        %v2261 = vld [vmem:[%s4 + $0x4c0] sm:$0xff]
        %v2262 = vld [vmem:[%s4 + $0x4c8] sm:$0xff]
        %v2263 = vld [vmem:[%s4 + $0x4d0] sm:$0xff]
        %v2264 = vld [vmem:[%s4 + $0x4d8] sm:$0xff]
        %v2265 = vld [vmem:[%s4 + $0x4e0] sm:$0xff]
        %v2266 = vld [vmem:[%s4 + $0x4e8] sm:$0xff]
        %v2267 = vld [vmem:[%s4 + $0x4f0] sm:$0xff]
        %v2268 = vld [vmem:[%s4 + $0x4f8] sm:$0xff]
        %v2269 = vld [vmem:[%s4 + $0x500] sm:$0xff]
        %v2270 = vld [vmem:[%s4 + $0x508] sm:$0xff]
        %v2271 = vld [vmem:[%s4 + $0x510] sm:$0xff]
        %v2272 = vld [vmem:[%s4 + $0x518] sm:$0xff]
        %v2273 = vld [vmem:[%s4 + $0x520] sm:$0xff]
        %v2274 = vld [vmem:[%s4 + $0x528] sm:$0xff]
        %v2275 = vld [vmem:[%s4 + $0x530] sm:$0xff]
        %v2276 = vld [vmem:[%s4 + $0x538] sm:$0xff]
        %v2277 = vld [vmem:[%s4 + $0x540] sm:$0xff]
        %v2278 = vld [vmem:[%s4 + $0x548] sm:$0xff]
        %v2279 = vld [vmem:[%s4 + $0x550] sm:$0xff]
        %v2280 = vld [vmem:[%s4 + $0x558] sm:$0xff]
        %v2281 = vld [vmem:[%s4 + $0x560] sm:$0xff]
        %v2282 = vld [vmem:[%s4 + $0x568] sm:$0xff]
        %v2283 = vld [vmem:[%s4 + $0x570] sm:$0xff]
        %v2284 = vld [vmem:[%s4 + $0x578] sm:$0xff]
        %v2285 = vld [vmem:[%s4 + $0x580] sm:$0xff]
        %v2286 = vld [vmem:[%s4 + $0x588] sm:$0xff]
        %v2287 = vld [vmem:[%s4 + $0x590] sm:$0xff]
        %v2288 = vld [vmem:[%s4 + $0x598] sm:$0xff]
        %v2289 = vld [vmem:[%s4 + $0x5a0] sm:$0xff]
        %v2290 = vld [vmem:[%s4 + $0x5a8] sm:$0xff]
        %v2291 = vld [vmem:[%s4 + $0x5b0] sm:$0xff]
        %v2292 = vld [vmem:[%s4 + $0x5b8] sm:$0xff]
        %v2293 = vld [vmem:[%s4 + $0x5c0] sm:$0xff]
        %v2294 = vld [vmem:[%s4 + $0x5c8] sm:$0xff]
        %v2295 = vld [vmem:[%s4 + $0x5d0] sm:$0xff]
        %v2296 = vld [vmem:[%s4 + $0x5d8] sm:$0xff]
        %v2297 = vld [vmem:[%s4 + $0x5e0] sm:$0xff]
        %v2298 = vld [vmem:[%s4 + $0x5e8] sm:$0xff]
        %v2299 = vld [vmem:[%s4 + $0x5f0] sm:$0xff]
        %v2300 = vld [vmem:[%s4 + $0x5f8] sm:$0xff]
        %2302 = vset.pattern.permute.xlu0 0
        %2303 = vperm.xlu0 %2302, %v2109
        %v2304 = vpop.permute.xlu0 %2303
        %2307 = vset.pattern.permute.xlu0 0
        %2308 = vperm.xlu0 %2307, %v2110
        %v2309 = vpop.permute.xlu0 %2308
        %2312 = vset.pattern.permute.xlu0 0
        %2313 = vperm.xlu0 %2312, %v2111
        %v2314 = vpop.permute.xlu0 %2313
        %2317 = vset.pattern.permute.xlu0 0
        %2318 = vperm.xlu0 %2317, %v2112
        %v2319 = vpop.permute.xlu0 %2318
        %2322 = vset.pattern.permute.xlu0 0
        %2323 = vperm.xlu0 %2322, %v2113
        %v2324 = vpop.permute.xlu0 %2323
        %2327 = vset.pattern.permute.xlu0 0
        %2328 = vperm.xlu0 %2327, %v2114
        %v2329 = vpop.permute.xlu0 %2328
        %2332 = vset.pattern.permute.xlu0 0
        %2333 = vperm.xlu0 %2332, %v2115
        %v2334 = vpop.permute.xlu0 %2333
        %2337 = vset.pattern.permute.xlu0 0
        %2338 = vperm.xlu0 %2337, %v2116
        %v2339 = vpop.permute.xlu0 %2338
        %2342 = vset.pattern.permute.xlu0 0
        %2343 = vperm.xlu0 %2342, %v2117
        %v2344 = vpop.permute.xlu0 %2343
        %2347 = vset.pattern.permute.xlu0 0
        %2348 = vperm.xlu0 %2347, %v2118
        %v2349 = vpop.permute.xlu0 %2348
        %2352 = vset.pattern.permute.xlu0 0
        %2353 = vperm.xlu0 %2352, %v2119
        %v2354 = vpop.permute.xlu0 %2353
        %2357 = vset.pattern.permute.xlu0 0
        %2358 = vperm.xlu0 %2357, %v2120
        %v2359 = vpop.permute.xlu0 %2358
        %2362 = vset.pattern.permute.xlu0 0
        %2363 = vperm.xlu0 %2362, %v2121
        %v2364 = vpop.permute.xlu0 %2363
        %2367 = vset.pattern.permute.xlu0 0
        %2368 = vperm.xlu0 %2367, %v2122
        %v2369 = vpop.permute.xlu0 %2368
        %2372 = vset.pattern.permute.xlu0 0
        %2373 = vperm.xlu0 %2372, %v2123
        %v2374 = vpop.permute.xlu0 %2373
        %2377 = vset.pattern.permute.xlu0 0
        %2378 = vperm.xlu0 %2377, %v2124
        %v2379 = vpop.permute.xlu0 %2378
        %2382 = vset.pattern.permute.xlu0 0
        %2383 = vperm.xlu0 %2382, %v2125
        %v2384 = vpop.permute.xlu0 %2383
        %2387 = vset.pattern.permute.xlu0 0
        %2388 = vperm.xlu0 %2387, %v2126
        %v2389 = vpop.permute.xlu0 %2388
        %2392 = vset.pattern.permute.xlu0 0
        %2393 = vperm.xlu0 %2392, %v2127
        %v2394 = vpop.permute.xlu0 %2393
        %2397 = vset.pattern.permute.xlu0 0
        %2398 = vperm.xlu0 %2397, %v2128
        %v2399 = vpop.permute.xlu0 %2398
        %2402 = vset.pattern.permute.xlu0 0
        %2403 = vperm.xlu0 %2402, %v2129
        %v2404 = vpop.permute.xlu0 %2403
        %2407 = vset.pattern.permute.xlu0 0
        %2408 = vperm.xlu0 %2407, %v2130
        %v2409 = vpop.permute.xlu0 %2408
        %2412 = vset.pattern.permute.xlu0 0
        %2413 = vperm.xlu0 %2412, %v2131
        %v2414 = vpop.permute.xlu0 %2413
        %2417 = vset.pattern.permute.xlu0 0
        %2418 = vperm.xlu0 %2417, %v2132
        %v2419 = vpop.permute.xlu0 %2418
        %2422 = vset.pattern.permute.xlu0 0
        %2423 = vperm.xlu0 %2422, %v2133
        %v2424 = vpop.permute.xlu0 %2423
        %2427 = vset.pattern.permute.xlu0 0
        %2428 = vperm.xlu0 %2427, %v2134
        %v2429 = vpop.permute.xlu0 %2428
        %2432 = vset.pattern.permute.xlu0 0
        %2433 = vperm.xlu0 %2432, %v2135
        %v2434 = vpop.permute.xlu0 %2433
        %2437 = vset.pattern.permute.xlu0 0
        %2438 = vperm.xlu0 %2437, %v2136
        %v2439 = vpop.permute.xlu0 %2438
        %2442 = vset.pattern.permute.xlu0 0
        %2443 = vperm.xlu0 %2442, %v2137
        %v2444 = vpop.permute.xlu0 %2443
        %2447 = vset.pattern.permute.xlu0 0
        %2448 = vperm.xlu0 %2447, %v2138
        %v2449 = vpop.permute.xlu0 %2448
        %2452 = vset.pattern.permute.xlu0 0
        %2453 = vperm.xlu0 %2452, %v2139
        %v2454 = vpop.permute.xlu0 %2453
        %2457 = vset.pattern.permute.xlu0 0
        %2458 = vperm.xlu0 %2457, %v2140
        %v2459 = vpop.permute.xlu0 %2458
        %2462 = vset.pattern.permute.xlu0 0
        %2463 = vperm.xlu0 %2462, %v2141
        %v2464 = vpop.permute.xlu0 %2463
        %2467 = vset.pattern.permute.xlu0 0
        %2468 = vperm.xlu0 %2467, %v2142
        %v2469 = vpop.permute.xlu0 %2468
        %2472 = vset.pattern.permute.xlu0 0
        %2473 = vperm.xlu0 %2472, %v2143
        %v2474 = vpop.permute.xlu0 %2473
        %2477 = vset.pattern.permute.xlu0 0
        %2478 = vperm.xlu0 %2477, %v2144
        %v2479 = vpop.permute.xlu0 %2478
        %2482 = vset.pattern.permute.xlu0 0
        %2483 = vperm.xlu0 %2482, %v2145
        %v2484 = vpop.permute.xlu0 %2483
        %2487 = vset.pattern.permute.xlu0 0
        %2488 = vperm.xlu0 %2487, %v2146
        %v2489 = vpop.permute.xlu0 %2488
        %2492 = vset.pattern.permute.xlu0 0
        %2493 = vperm.xlu0 %2492, %v2147
        %v2494 = vpop.permute.xlu0 %2493
        %2497 = vset.pattern.permute.xlu0 0
        %2498 = vperm.xlu0 %2497, %v2148
        %v2499 = vpop.permute.xlu0 %2498
        %2502 = vset.pattern.permute.xlu0 0
        %2503 = vperm.xlu0 %2502, %v2149
        %v2504 = vpop.permute.xlu0 %2503
        %2507 = vset.pattern.permute.xlu0 0
        %2508 = vperm.xlu0 %2507, %v2150
        %v2509 = vpop.permute.xlu0 %2508
        %2512 = vset.pattern.permute.xlu0 0
        %2513 = vperm.xlu0 %2512, %v2151
        %v2514 = vpop.permute.xlu0 %2513
        %2517 = vset.pattern.permute.xlu0 0
        %2518 = vperm.xlu0 %2517, %v2152
        %v2519 = vpop.permute.xlu0 %2518
        %2522 = vset.pattern.permute.xlu0 0
        %2523 = vperm.xlu0 %2522, %v2153
        %v2524 = vpop.permute.xlu0 %2523
        %2527 = vset.pattern.permute.xlu0 0
        %2528 = vperm.xlu0 %2527, %v2154
        %v2529 = vpop.permute.xlu0 %2528
        %2532 = vset.pattern.permute.xlu0 0
        %2533 = vperm.xlu0 %2532, %v2155
        %v2534 = vpop.permute.xlu0 %2533
        %2537 = vset.pattern.permute.xlu0 0
        %2538 = vperm.xlu0 %2537, %v2156
        %v2539 = vpop.permute.xlu0 %2538
        %2542 = vset.pattern.permute.xlu0 0
        %2543 = vperm.xlu0 %2542, %v2157
        %v2544 = vpop.permute.xlu0 %2543
        %2547 = vset.pattern.permute.xlu0 0
        %2548 = vperm.xlu0 %2547, %v2158
        %v2549 = vpop.permute.xlu0 %2548
        %2552 = vset.pattern.permute.xlu0 0
        %2553 = vperm.xlu0 %2552, %v2159
        %v2554 = vpop.permute.xlu0 %2553
        %2557 = vset.pattern.permute.xlu0 0
        %2558 = vperm.xlu0 %2557, %v2160
        %v2559 = vpop.permute.xlu0 %2558
        %2562 = vset.pattern.permute.xlu0 0
        %2563 = vperm.xlu0 %2562, %v2161
        %v2564 = vpop.permute.xlu0 %2563
        %2567 = vset.pattern.permute.xlu0 0
        %2568 = vperm.xlu0 %2567, %v2162
        %v2569 = vpop.permute.xlu0 %2568
        %2572 = vset.pattern.permute.xlu0 0
        %2573 = vperm.xlu0 %2572, %v2163
        %v2574 = vpop.permute.xlu0 %2573
        %2577 = vset.pattern.permute.xlu0 0
        %2578 = vperm.xlu0 %2577, %v2164
        %v2579 = vpop.permute.xlu0 %2578
        %2582 = vset.pattern.permute.xlu0 0
        %2583 = vperm.xlu0 %2582, %v2165
        %v2584 = vpop.permute.xlu0 %2583
        %2587 = vset.pattern.permute.xlu0 0
        %2588 = vperm.xlu0 %2587, %v2166
        %v2589 = vpop.permute.xlu0 %2588
        %2592 = vset.pattern.permute.xlu0 0
        %2593 = vperm.xlu0 %2592, %v2167
        %v2594 = vpop.permute.xlu0 %2593
        %2597 = vset.pattern.permute.xlu0 0
        %2598 = vperm.xlu0 %2597, %v2168
        %v2599 = vpop.permute.xlu0 %2598
        %2602 = vset.pattern.permute.xlu0 0
        %2603 = vperm.xlu0 %2602, %v2169
        %v2604 = vpop.permute.xlu0 %2603
        %2607 = vset.pattern.permute.xlu0 0
        %2608 = vperm.xlu0 %2607, %v2170
        %v2609 = vpop.permute.xlu0 %2608
        %2612 = vset.pattern.permute.xlu0 0
        %2613 = vperm.xlu0 %2612, %v2171
        %v2614 = vpop.permute.xlu0 %2613
        %2617 = vset.pattern.permute.xlu0 0
        %2618 = vperm.xlu0 %2617, %v2172
        %v2619 = vpop.permute.xlu0 %2618
        %2622 = vset.pattern.permute.xlu0 0
        %2623 = vperm.xlu0 %2622, %v2173
        %v2624 = vpop.permute.xlu0 %2623
        %2627 = vset.pattern.permute.xlu0 0
        %2628 = vperm.xlu0 %2627, %v2174
        %v2629 = vpop.permute.xlu0 %2628
        %2632 = vset.pattern.permute.xlu0 0
        %2633 = vperm.xlu0 %2632, %v2175
        %v2634 = vpop.permute.xlu0 %2633
        %2637 = vset.pattern.permute.xlu0 0
        %2638 = vperm.xlu0 %2637, %v2176
        %v2639 = vpop.permute.xlu0 %2638
        %2642 = vset.pattern.permute.xlu0 0
        %2643 = vperm.xlu0 %2642, %v2177
        %v2644 = vpop.permute.xlu0 %2643
        %2647 = vset.pattern.permute.xlu0 0
        %2648 = vperm.xlu0 %2647, %v2178
        %v2649 = vpop.permute.xlu0 %2648
        %2652 = vset.pattern.permute.xlu0 0
        %2653 = vperm.xlu0 %2652, %v2179
        %v2654 = vpop.permute.xlu0 %2653
        %2657 = vset.pattern.permute.xlu0 0
        %2658 = vperm.xlu0 %2657, %v2180
        %v2659 = vpop.permute.xlu0 %2658
        %2662 = vset.pattern.permute.xlu0 0
        %2663 = vperm.xlu0 %2662, %v2181
        %v2664 = vpop.permute.xlu0 %2663
        %2667 = vset.pattern.permute.xlu0 0
        %2668 = vperm.xlu0 %2667, %v2182
        %v2669 = vpop.permute.xlu0 %2668
        %2672 = vset.pattern.permute.xlu0 0
        %2673 = vperm.xlu0 %2672, %v2183
        %v2674 = vpop.permute.xlu0 %2673
        %2677 = vset.pattern.permute.xlu0 0
        %2678 = vperm.xlu0 %2677, %v2184
        %v2679 = vpop.permute.xlu0 %2678
        %2682 = vset.pattern.permute.xlu0 0
        %2683 = vperm.xlu0 %2682, %v2185
        %v2684 = vpop.permute.xlu0 %2683
        %2687 = vset.pattern.permute.xlu0 0
        %2688 = vperm.xlu0 %2687, %v2186
        %v2689 = vpop.permute.xlu0 %2688
        %2692 = vset.pattern.permute.xlu0 0
        %2693 = vperm.xlu0 %2692, %v2187
        %v2694 = vpop.permute.xlu0 %2693
        %2697 = vset.pattern.permute.xlu0 0
        %2698 = vperm.xlu0 %2697, %v2188
        %v2699 = vpop.permute.xlu0 %2698
        %2702 = vset.pattern.permute.xlu0 0
        %2703 = vperm.xlu0 %2702, %v2189
        %v2704 = vpop.permute.xlu0 %2703
        %2707 = vset.pattern.permute.xlu0 0
        %2708 = vperm.xlu0 %2707, %v2190
        %v2709 = vpop.permute.xlu0 %2708
        %2712 = vset.pattern.permute.xlu0 0
        %2713 = vperm.xlu0 %2712, %v2191
        %v2714 = vpop.permute.xlu0 %2713
        %2717 = vset.pattern.permute.xlu0 0
        %2718 = vperm.xlu0 %2717, %v2192
        %v2719 = vpop.permute.xlu0 %2718
        %2722 = vset.pattern.permute.xlu0 0
        %2723 = vperm.xlu0 %2722, %v2193
        %v2724 = vpop.permute.xlu0 %2723
        %2727 = vset.pattern.permute.xlu0 0
        %2728 = vperm.xlu0 %2727, %v2194
        %v2729 = vpop.permute.xlu0 %2728
        %2732 = vset.pattern.permute.xlu0 0
        %2733 = vperm.xlu0 %2732, %v2195
        %v2734 = vpop.permute.xlu0 %2733
        %2737 = vset.pattern.permute.xlu0 0
        %2738 = vperm.xlu0 %2737, %v2196
        %v2739 = vpop.permute.xlu0 %2738
        %2742 = vset.pattern.permute.xlu0 0
        %2743 = vperm.xlu0 %2742, %v2197
        %v2744 = vpop.permute.xlu0 %2743
        %2747 = vset.pattern.permute.xlu0 0
        %2748 = vperm.xlu0 %2747, %v2198
        %v2749 = vpop.permute.xlu0 %2748
        %2752 = vset.pattern.permute.xlu0 0
        %2753 = vperm.xlu0 %2752, %v2199
        %v2754 = vpop.permute.xlu0 %2753
        %2757 = vset.pattern.permute.xlu0 0
        %2758 = vperm.xlu0 %2757, %v2200
        %v2759 = vpop.permute.xlu0 %2758
        %2762 = vset.pattern.permute.xlu0 0
        %2763 = vperm.xlu0 %2762, %v2201
        %v2764 = vpop.permute.xlu0 %2763
        %2767 = vset.pattern.permute.xlu0 0
        %2768 = vperm.xlu0 %2767, %v2202
        %v2769 = vpop.permute.xlu0 %2768
        %2772 = vset.pattern.permute.xlu0 0
        %2773 = vperm.xlu0 %2772, %v2203
        %v2774 = vpop.permute.xlu0 %2773
        %2777 = vset.pattern.permute.xlu0 0
        %2778 = vperm.xlu0 %2777, %v2204
        %v2779 = vpop.permute.xlu0 %2778
        %2782 = vset.pattern.permute.xlu0 0
        %2783 = vperm.xlu0 %2782, %v2205
        %v2784 = vpop.permute.xlu0 %2783
        %2787 = vset.pattern.permute.xlu0 0
        %2788 = vperm.xlu0 %2787, %v2206
        %v2789 = vpop.permute.xlu0 %2788
        %2792 = vset.pattern.permute.xlu0 0
        %2793 = vperm.xlu0 %2792, %v2207
        %v2794 = vpop.permute.xlu0 %2793
        %2797 = vset.pattern.permute.xlu0 0
        %2798 = vperm.xlu0 %2797, %v2208
        %v2799 = vpop.permute.xlu0 %2798
        %2802 = vset.pattern.permute.xlu0 0
        %2803 = vperm.xlu0 %2802, %v2209
        %v2804 = vpop.permute.xlu0 %2803
        %2807 = vset.pattern.permute.xlu0 0
        %2808 = vperm.xlu0 %2807, %v2210
        %v2809 = vpop.permute.xlu0 %2808
        %2812 = vset.pattern.permute.xlu0 0
        %2813 = vperm.xlu0 %2812, %v2211
        %v2814 = vpop.permute.xlu0 %2813
        %2817 = vset.pattern.permute.xlu0 0
        %2818 = vperm.xlu0 %2817, %v2212
        %v2819 = vpop.permute.xlu0 %2818
        %2822 = vset.pattern.permute.xlu0 0
        %2823 = vperm.xlu0 %2822, %v2213
        %v2824 = vpop.permute.xlu0 %2823
        %2827 = vset.pattern.permute.xlu0 0
        %2828 = vperm.xlu0 %2827, %v2214
        %v2829 = vpop.permute.xlu0 %2828
        %2832 = vset.pattern.permute.xlu0 0
        %2833 = vperm.xlu0 %2832, %v2215
        %v2834 = vpop.permute.xlu0 %2833
        %2837 = vset.pattern.permute.xlu0 0
        %2838 = vperm.xlu0 %2837, %v2216
        %v2839 = vpop.permute.xlu0 %2838
        %2842 = vset.pattern.permute.xlu0 0
        %2843 = vperm.xlu0 %2842, %v2217
        %v2844 = vpop.permute.xlu0 %2843
        %2847 = vset.pattern.permute.xlu0 0
        %2848 = vperm.xlu0 %2847, %v2218
        %v2849 = vpop.permute.xlu0 %2848
        %2852 = vset.pattern.permute.xlu0 0
        %2853 = vperm.xlu0 %2852, %v2219
        %v2854 = vpop.permute.xlu0 %2853
        %2857 = vset.pattern.permute.xlu0 0
        %2858 = vperm.xlu0 %2857, %v2220
        %v2859 = vpop.permute.xlu0 %2858
        %2862 = vset.pattern.permute.xlu0 0
        %2863 = vperm.xlu0 %2862, %v2221
        %v2864 = vpop.permute.xlu0 %2863
        %2867 = vset.pattern.permute.xlu0 0
        %2868 = vperm.xlu0 %2867, %v2222
        %v2869 = vpop.permute.xlu0 %2868
        %2872 = vset.pattern.permute.xlu0 0
        %2873 = vperm.xlu0 %2872, %v2223
        %v2874 = vpop.permute.xlu0 %2873
        %2877 = vset.pattern.permute.xlu0 0
        %2878 = vperm.xlu0 %2877, %v2224
        %v2879 = vpop.permute.xlu0 %2878
        %2882 = vset.pattern.permute.xlu0 0
        %2883 = vperm.xlu0 %2882, %v2225
        %v2884 = vpop.permute.xlu0 %2883
        %2887 = vset.pattern.permute.xlu0 0
        %2888 = vperm.xlu0 %2887, %v2226
        %v2889 = vpop.permute.xlu0 %2888
        %2892 = vset.pattern.permute.xlu0 0
        %2893 = vperm.xlu0 %2892, %v2227
        %v2894 = vpop.permute.xlu0 %2893
        %2897 = vset.pattern.permute.xlu0 0
        %2898 = vperm.xlu0 %2897, %v2228
        %v2899 = vpop.permute.xlu0 %2898
        %2902 = vset.pattern.permute.xlu0 0
        %2903 = vperm.xlu0 %2902, %v2229
        %v2904 = vpop.permute.xlu0 %2903
        %2907 = vset.pattern.permute.xlu0 0
        %2908 = vperm.xlu0 %2907, %v2230
        %v2909 = vpop.permute.xlu0 %2908
        %2912 = vset.pattern.permute.xlu0 0
        %2913 = vperm.xlu0 %2912, %v2231
        %v2914 = vpop.permute.xlu0 %2913
        %2917 = vset.pattern.permute.xlu0 0
        %2918 = vperm.xlu0 %2917, %v2232
        %v2919 = vpop.permute.xlu0 %2918
        %2922 = vset.pattern.permute.xlu0 0
        %2923 = vperm.xlu0 %2922, %v2233
        %v2924 = vpop.permute.xlu0 %2923
        %2927 = vset.pattern.permute.xlu0 0
        %2928 = vperm.xlu0 %2927, %v2234
        %v2929 = vpop.permute.xlu0 %2928
        %2932 = vset.pattern.permute.xlu0 0
        %2933 = vperm.xlu0 %2932, %v2235
        %v2934 = vpop.permute.xlu0 %2933
        %2937 = vset.pattern.permute.xlu0 0
        %2938 = vperm.xlu0 %2937, %v2236
        %v2939 = vpop.permute.xlu0 %2938
        %2942 = vset.pattern.permute.xlu0 0
        %2943 = vperm.xlu0 %2942, %v2237
        %v2944 = vpop.permute.xlu0 %2943
        %2947 = vset.pattern.permute.xlu0 0
        %2948 = vperm.xlu0 %2947, %v2238
        %v2949 = vpop.permute.xlu0 %2948
        %2952 = vset.pattern.permute.xlu0 0
        %2953 = vperm.xlu0 %2952, %v2239
        %v2954 = vpop.permute.xlu0 %2953
        %2957 = vset.pattern.permute.xlu0 0
        %2958 = vperm.xlu0 %2957, %v2240
        %v2959 = vpop.permute.xlu0 %2958
        %2962 = vset.pattern.permute.xlu0 0
        %2963 = vperm.xlu0 %2962, %v2241
        %v2964 = vpop.permute.xlu0 %2963
        %2967 = vset.pattern.permute.xlu0 0
        %2968 = vperm.xlu0 %2967, %v2242
        %v2969 = vpop.permute.xlu0 %2968
        %2972 = vset.pattern.permute.xlu0 0
        %2973 = vperm.xlu0 %2972, %v2243
        %v2974 = vpop.permute.xlu0 %2973
        %2977 = vset.pattern.permute.xlu0 0
        %2978 = vperm.xlu0 %2977, %v2244
        %v2979 = vpop.permute.xlu0 %2978
        %2982 = vset.pattern.permute.xlu0 0
        %2983 = vperm.xlu0 %2982, %v2245
        %v2984 = vpop.permute.xlu0 %2983
        %2987 = vset.pattern.permute.xlu0 0
        %2988 = vperm.xlu0 %2987, %v2246
        %v2989 = vpop.permute.xlu0 %2988
        %2992 = vset.pattern.permute.xlu0 0
        %2993 = vperm.xlu0 %2992, %v2247
        %v2994 = vpop.permute.xlu0 %2993
        %2997 = vset.pattern.permute.xlu0 0
        %2998 = vperm.xlu0 %2997, %v2248
        %v2999 = vpop.permute.xlu0 %2998
        %3002 = vset.pattern.permute.xlu0 0
        %3003 = vperm.xlu0 %3002, %v2249
        %v3004 = vpop.permute.xlu0 %3003
        %3007 = vset.pattern.permute.xlu0 0
        %3008 = vperm.xlu0 %3007, %v2250
        %v3009 = vpop.permute.xlu0 %3008
        %3012 = vset.pattern.permute.xlu0 0
        %3013 = vperm.xlu0 %3012, %v2251
        %v3014 = vpop.permute.xlu0 %3013
        %3017 = vset.pattern.permute.xlu0 0
        %3018 = vperm.xlu0 %3017, %v2252
        %v3019 = vpop.permute.xlu0 %3018
        %3022 = vset.pattern.permute.xlu0 0
        %3023 = vperm.xlu0 %3022, %v2253
        %v3024 = vpop.permute.xlu0 %3023
        %3027 = vset.pattern.permute.xlu0 0
        %3028 = vperm.xlu0 %3027, %v2254
        %v3029 = vpop.permute.xlu0 %3028
        %3032 = vset.pattern.permute.xlu0 0
        %3033 = vperm.xlu0 %3032, %v2255
        %v3034 = vpop.permute.xlu0 %3033
        %3037 = vset.pattern.permute.xlu0 0
        %3038 = vperm.xlu0 %3037, %v2256
        %v3039 = vpop.permute.xlu0 %3038
        %3042 = vset.pattern.permute.xlu0 0
        %3043 = vperm.xlu0 %3042, %v2257
        %v3044 = vpop.permute.xlu0 %3043
        %3047 = vset.pattern.permute.xlu0 0
        %3048 = vperm.xlu0 %3047, %v2258
        %v3049 = vpop.permute.xlu0 %3048
        %3052 = vset.pattern.permute.xlu0 0
        %3053 = vperm.xlu0 %3052, %v2259
        %v3054 = vpop.permute.xlu0 %3053
        %3057 = vset.pattern.permute.xlu0 0
        %3058 = vperm.xlu0 %3057, %v2260
        %v3059 = vpop.permute.xlu0 %3058
        %3062 = vset.pattern.permute.xlu0 0
        %3063 = vperm.xlu0 %3062, %v2261
        %v3064 = vpop.permute.xlu0 %3063
        %3067 = vset.pattern.permute.xlu0 0
        %3068 = vperm.xlu0 %3067, %v2262
        %v3069 = vpop.permute.xlu0 %3068
        %3072 = vset.pattern.permute.xlu0 0
        %3073 = vperm.xlu0 %3072, %v2263
        %v3074 = vpop.permute.xlu0 %3073
        %3077 = vset.pattern.permute.xlu0 0
        %3078 = vperm.xlu0 %3077, %v2264
        %v3079 = vpop.permute.xlu0 %3078
        %3082 = vset.pattern.permute.xlu0 0
        %3083 = vperm.xlu0 %3082, %v2265
        %v3084 = vpop.permute.xlu0 %3083
        %3087 = vset.pattern.permute.xlu0 0
        %3088 = vperm.xlu0 %3087, %v2266
        %v3089 = vpop.permute.xlu0 %3088
        %3092 = vset.pattern.permute.xlu0 0
        %3093 = vperm.xlu0 %3092, %v2267
        %v3094 = vpop.permute.xlu0 %3093
        %3097 = vset.pattern.permute.xlu0 0
        %3098 = vperm.xlu0 %3097, %v2268
        %v3099 = vpop.permute.xlu0 %3098
        %3102 = vset.pattern.permute.xlu0 0
        %3103 = vperm.xlu0 %3102, %v2269
        %v3104 = vpop.permute.xlu0 %3103
        %3107 = vset.pattern.permute.xlu0 0
        %3108 = vperm.xlu0 %3107, %v2270
        %v3109 = vpop.permute.xlu0 %3108
        %3112 = vset.pattern.permute.xlu0 0
        %3113 = vperm.xlu0 %3112, %v2271
        %v3114 = vpop.permute.xlu0 %3113
        %3117 = vset.pattern.permute.xlu0 0
        %3118 = vperm.xlu0 %3117, %v2272
        %v3119 = vpop.permute.xlu0 %3118
        %3122 = vset.pattern.permute.xlu0 0
        %3123 = vperm.xlu0 %3122, %v2273
        %v3124 = vpop.permute.xlu0 %3123
        %3127 = vset.pattern.permute.xlu0 0
        %3128 = vperm.xlu0 %3127, %v2274
        %v3129 = vpop.permute.xlu0 %3128
        %3132 = vset.pattern.permute.xlu0 0
        %3133 = vperm.xlu0 %3132, %v2275
        %v3134 = vpop.permute.xlu0 %3133
        %3137 = vset.pattern.permute.xlu0 0
        %3138 = vperm.xlu0 %3137, %v2276
        %v3139 = vpop.permute.xlu0 %3138
        %3142 = vset.pattern.permute.xlu0 0
        %3143 = vperm.xlu0 %3142, %v2277
        %v3144 = vpop.permute.xlu0 %3143
        %3147 = vset.pattern.permute.xlu0 0
        %3148 = vperm.xlu0 %3147, %v2278
        %v3149 = vpop.permute.xlu0 %3148
        %3152 = vset.pattern.permute.xlu0 0
        %3153 = vperm.xlu0 %3152, %v2279
        %v3154 = vpop.permute.xlu0 %3153
        %3157 = vset.pattern.permute.xlu0 0
        %3158 = vperm.xlu0 %3157, %v2280
        %v3159 = vpop.permute.xlu0 %3158
        %3162 = vset.pattern.permute.xlu0 0
        %3163 = vperm.xlu0 %3162, %v2281
        %v3164 = vpop.permute.xlu0 %3163
        %3167 = vset.pattern.permute.xlu0 0
        %3168 = vperm.xlu0 %3167, %v2282
        %v3169 = vpop.permute.xlu0 %3168
        %3172 = vset.pattern.permute.xlu0 0
        %3173 = vperm.xlu0 %3172, %v2283
        %v3174 = vpop.permute.xlu0 %3173
        %3177 = vset.pattern.permute.xlu0 0
        %3178 = vperm.xlu0 %3177, %v2284
        %v3179 = vpop.permute.xlu0 %3178
        %3182 = vset.pattern.permute.xlu0 0
        %3183 = vperm.xlu0 %3182, %v2285
        %v3184 = vpop.permute.xlu0 %3183
        %3187 = vset.pattern.permute.xlu0 0
        %3188 = vperm.xlu0 %3187, %v2286
        %v3189 = vpop.permute.xlu0 %3188
        %3192 = vset.pattern.permute.xlu0 0
        %3193 = vperm.xlu0 %3192, %v2287
        %v3194 = vpop.permute.xlu0 %3193
        %3197 = vset.pattern.permute.xlu0 0
        %3198 = vperm.xlu0 %3197, %v2288
        %v3199 = vpop.permute.xlu0 %3198
        %3202 = vset.pattern.permute.xlu0 0
        %3203 = vperm.xlu0 %3202, %v2289
        %v3204 = vpop.permute.xlu0 %3203
        %3207 = vset.pattern.permute.xlu0 0
        %3208 = vperm.xlu0 %3207, %v2290
        %v3209 = vpop.permute.xlu0 %3208
        %3212 = vset.pattern.permute.xlu0 0
        %3213 = vperm.xlu0 %3212, %v2291
        %v3214 = vpop.permute.xlu0 %3213
        %3217 = vset.pattern.permute.xlu0 0
        %3218 = vperm.xlu0 %3217, %v2292
        %v3219 = vpop.permute.xlu0 %3218
        %3222 = vset.pattern.permute.xlu0 0
        %3223 = vperm.xlu0 %3222, %v2293
        %v3224 = vpop.permute.xlu0 %3223
        %3227 = vset.pattern.permute.xlu0 0
        %3228 = vperm.xlu0 %3227, %v2294
        %v3229 = vpop.permute.xlu0 %3228
        %3232 = vset.pattern.permute.xlu0 0
        %3233 = vperm.xlu0 %3232, %v2295
        %v3234 = vpop.permute.xlu0 %3233
        %3237 = vset.pattern.permute.xlu0 0
        %3238 = vperm.xlu0 %3237, %v2296
        %v3239 = vpop.permute.xlu0 %3238
        %3242 = vset.pattern.permute.xlu0 0
        %3243 = vperm.xlu0 %3242, %v2297
        %v3244 = vpop.permute.xlu0 %3243
        %3247 = vset.pattern.permute.xlu0 0
        %3248 = vperm.xlu0 %3247, %v2298
        %v3249 = vpop.permute.xlu0 %3248
        %3252 = vset.pattern.permute.xlu0 0
        %3253 = vperm.xlu0 %3252, %v2299
        %v3254 = vpop.permute.xlu0 %3253
        %3257 = vset.pattern.permute.xlu0 0
        %3258 = vperm.xlu0 %3257, %v2300
        %v3259 = vpop.permute.xlu0 %3258
        %3261 = vmatprep.subr.mxu0 0.0
        %3262 = vmatpush1.msra.mxu0 %v1853
        %3263 = vmatprep.subr.mxu0 0.0
        %3264 = vmatpush1.msra.mxu0 %v1854
        %3265 = vmatprep.subr.mxu0 0.0
        %3266 = vmatpush1.msra.mxu0 %v1855
        %3267 = vmatprep.subr.mxu0 0.0
        %3268 = vmatpush1.msra.mxu0 %v1856
        %3269 = vmatprep.subr.mxu0 0.0
        %3270 = vmatpush1.msra.mxu0 %v1857
        %3271 = vmatprep.subr.mxu0 0.0
        %3272 = vmatpush1.msra.mxu0 %v1858
        %3273 = vmatprep.subr.mxu0 0.0
        %3274 = vmatpush1.msra.mxu0 %v1859
        %3275 = vmatprep.subr.mxu0 0.0
        %3276 = vmatpush1.msra.mxu0 %v1860
        %3277 = vmatprep.subr.mxu0 0.0
        %3278 = vmatpush1.msra.mxu0 %v1861
        %3279 = vmatprep.subr.mxu0 0.0
        %3280 = vmatpush1.msra.mxu0 %v1862
        %3281 = vmatprep.subr.mxu0 0.0
        %3282 = vmatpush1.msra.mxu0 %v1863
        %3283 = vmatprep.subr.mxu0 0.0
        %3284 = vmatpush1.msra.mxu0 %v1864
        %3285 = vmatprep.subr.mxu0 0.0
        %3286 = vmatpush1.msra.mxu0 %v1865
        %3287 = vmatprep.subr.mxu0 0.0
        %3288 = vmatpush1.msra.mxu0 %v1866
        %3289 = vmatprep.subr.mxu0 0.0
        %3290 = vmatpush1.msra.mxu0 %v1867
        %3291 = vmatprep.subr.mxu0 0.0
        %3292 = vmatpush1.msra.mxu0 %v1868
        %3293 = vmatprep.subr.mxu0 0.0
        %3294 = vmatpush1.msra.mxu0 %v1869
        %3295 = vmatprep.subr.mxu0 0.0
        %3296 = vmatpush1.msra.mxu0 %v1870
        %3297 = vmatprep.subr.mxu0 0.0
        %3298 = vmatpush1.msra.mxu0 %v1871
        %3299 = vmatprep.subr.mxu0 0.0
        %3300 = vmatpush1.msra.mxu0 %v1872
        %3301 = vmatprep.subr.mxu0 0.0
        %3302 = vmatpush1.msra.mxu0 %v1873
        %3303 = vmatprep.subr.mxu0 0.0
        %3304 = vmatpush1.msra.mxu0 %v1874
        %3305 = vmatprep.subr.mxu0 0.0
        %3306 = vmatpush1.msra.mxu0 %v1875
        %3307 = vmatprep.subr.mxu0 0.0
        %3308 = vmatpush1.msra.mxu0 %v1876
        %3309 = vmatprep.subr.mxu0 0.0
        %3310 = vmatpush1.msra.mxu0 %v1877
        %3311 = vmatprep.subr.mxu0 0.0
        %3312 = vmatpush1.msra.mxu0 %v1878
        %3313 = vmatprep.subr.mxu0 0.0
        %3314 = vmatpush1.msra.mxu0 %v1879
        %3315 = vmatprep.subr.mxu0 0.0
        %3316 = vmatpush1.msra.mxu0 %v1880
        %3317 = vmatprep.subr.mxu0 0.0
        %3318 = vmatpush1.msra.mxu0 %v1881
        %3319 = vmatprep.subr.mxu0 0.0
        %3320 = vmatpush1.msra.mxu0 %v1882
        %3321 = vmatprep.subr.mxu0 0.0
        %3322 = vmatpush1.msra.mxu0 %v1883
        %3323 = vmatprep.subr.mxu0 0.0
        %3324 = vmatpush1.msra.mxu0 %v1884
        %3325 = vmatprep.mubr.f32.mxu0 %v1086
        %3326 = vmatmul.mubr.f32.gmra.mrb[0].mxu0 %v1085
        %v3327 = vpop.f32.mrb[0].mxu0
        %v3328 = vadd.f32 %v2304, %v3327
        %v3329 = vpop.f32.mrb[0].mxu0
        %3330 = vmatprep.mubr.f32.mxu0 %v1090
        %3331 = vmatmul.mubr.f32.gmra.mrb[0].mxu0 %v1089
        %v3332 = vpop.f32.mrb[0].mxu0
        %v3333 = vadd.f32 %v2309, %v3332
        %v3334 = vpop.f32.mrb[0].mxu0
        %3335 = vmatprep.mubr.f32.mxu0 %v1094
        %3336 = vmatmul.mubr.f32.gmra.mrb[0].mxu0 %v1093
        %v3337 = vpop.f32.mrb[0].mxu0
        %v3338 = vadd.f32 %v2314, %v3337
        %v3339 = vpop.f32.mrb[0].mxu0
        %3340 = vmatprep.mubr.f32.mxu0 %v1098
        %3341 = vmatmul.mubr.f32.gmra.mrb[0].mxu0 %v1097
        %v3342 = vpop.f32.mrb[0].mxu0
        %v3343 = vadd.f32 %v2319, %v3342
        %v3344 = vpop.f32.mrb[0].mxu0
        %3345 = vmatprep.mubr.f32.mxu0 %v1102
        %3346 = vmatmul.mubr.f32.gmra.mrb[0].mxu0 %v1101
        %v3347 = vpop.f32.mrb[0].mxu0
        %v3348 = vadd.f32 %v2324, %v3347
        %v3349 = vpop.f32.mrb[0].mxu0
        %3350 = vmatprep.mubr.f32.mxu0 %v1106
        %3351 = vmatmul.mubr.f32.gmra.mrb[0].mxu0 %v1105
        %v3352 = vpop.f32.mrb[0].mxu0
        %v3353 = vadd.f32 %v2329, %v3352
        %v3354 = vpop.f32.mrb[0].mxu0
        %3355 = vmatprep.mubr.f32.mxu0 %v1110
        %3356 = vmatmul.mubr.f32.gmra.mrb[0].mxu0 %v1109
        %v3357 = vpop.f32.mrb[0].mxu0
        %v3358 = vadd.f32 %v2334, %v3357
        %v3359 = vpop.f32.mrb[0].mxu0
        %3360 = vmatprep.mubr.f32.mxu0 %v1114
        %3361 = vmatmul.mubr.f32.gmra.mrb[0].mxu0 %v1113
        %v3362 = vpop.f32.mrb[0].mxu0
        %v3363 = vadd.f32 %v2339, %v3362
        %v3364 = vpop.f32.mrb[0].mxu0
        %3365 = vmatprep.mubr.f32.mxu0 %v1118
        %3366 = vmatmul.mubr.f32.gmra.mrb[0].mxu0 %v1117
        %v3367 = vpop.f32.mrb[0].mxu0
        %v3368 = vadd.f32 %v2344, %v3367
        %v3369 = vpop.f32.mrb[0].mxu0
        %3370 = vmatprep.mubr.f32.mxu0 %v1122
        %3371 = vmatmul.mubr.f32.gmra.mrb[0].mxu0 %v1121
        %v3372 = vpop.f32.mrb[0].mxu0
        %v3373 = vadd.f32 %v2349, %v3372
        %v3374 = vpop.f32.mrb[0].mxu0
        %3375 = vmatprep.mubr.f32.mxu0 %v1126
        %3376 = vmatmul.mubr.f32.gmra.mrb[0].mxu0 %v1125
        %v3377 = vpop.f32.mrb[0].mxu0
        %v3378 = vadd.f32 %v2354, %v3377
        %v3379 = vpop.f32.mrb[0].mxu0
        %3380 = vmatprep.mubr.f32.mxu0 %v1130
        %3381 = vmatmul.mubr.f32.gmra.mrb[0].mxu0 %v1129
        %v3382 = vpop.f32.mrb[0].mxu0
        %v3383 = vadd.f32 %v2359, %v3382
        %v3384 = vpop.f32.mrb[0].mxu0
        %3385 = vmatprep.mubr.f32.mxu0 %v1134
        %3386 = vmatmul.mubr.f32.gmra.mrb[0].mxu0 %v1133
        %v3387 = vpop.f32.mrb[0].mxu0
        %v3388 = vadd.f32 %v2364, %v3387
        %v3389 = vpop.f32.mrb[0].mxu0
        %3390 = vmatprep.mubr.f32.mxu0 %v1138
        %3391 = vmatmul.mubr.f32.gmra.mrb[0].mxu0 %v1137
        %v3392 = vpop.f32.mrb[0].mxu0
        %v3393 = vadd.f32 %v2369, %v3392
        %v3394 = vpop.f32.mrb[0].mxu0
        %3395 = vmatprep.mubr.f32.mxu0 %v1142
        %3396 = vmatmul.mubr.f32.gmra.mrb[0].mxu0 %v1141
        %v3397 = vpop.f32.mrb[0].mxu0
        %v3398 = vadd.f32 %v2374, %v3397
        %v3399 = vpop.f32.mrb[0].mxu0
        %3400 = vmatprep.mubr.f32.mxu0 %v1146
        %3401 = vmatmul.mubr.f32.gmra.mrb[0].mxu0 %v1145
        %v3402 = vpop.f32.mrb[0].mxu0
        %v3403 = vadd.f32 %v2379, %v3402
        %v3404 = vpop.f32.mrb[0].mxu0
        %3405 = vmatprep.mubr.f32.mxu0 %v1150
        %3406 = vmatmul.mubr.f32.gmra.mrb[0].mxu0 %v1149
        %v3407 = vpop.f32.mrb[0].mxu0
        %v3408 = vadd.f32 %v2384, %v3407
        %v3409 = vpop.f32.mrb[0].mxu0
        %3410 = vmatprep.mubr.f32.mxu0 %v1154
        %3411 = vmatmul.mubr.f32.gmra.mrb[0].mxu0 %v1153
        %v3412 = vpop.f32.mrb[0].mxu0
        %v3413 = vadd.f32 %v2389, %v3412
        %v3414 = vpop.f32.mrb[0].mxu0
        %3415 = vmatprep.mubr.f32.mxu0 %v1158
        %3416 = vmatmul.mubr.f32.gmra.mrb[0].mxu0 %v1157
        %v3417 = vpop.f32.mrb[0].mxu0
        %v3418 = vadd.f32 %v2394, %v3417
        %v3419 = vpop.f32.mrb[0].mxu0
        %3420 = vmatprep.mubr.f32.mxu0 %v1162
        %3421 = vmatmul.mubr.f32.gmra.mrb[0].mxu0 %v1161
        %v3422 = vpop.f32.mrb[0].mxu0
        %v3423 = vadd.f32 %v2399, %v3422
        %v3424 = vpop.f32.mrb[0].mxu0
        %3425 = vmatprep.mubr.f32.mxu0 %v1166
        %3426 = vmatmul.mubr.f32.gmra.mrb[0].mxu0 %v1165
        %v3427 = vpop.f32.mrb[0].mxu0
        %v3428 = vadd.f32 %v2404, %v3427
        %v3429 = vpop.f32.mrb[0].mxu0
        %3430 = vmatprep.mubr.f32.mxu0 %v1170
        %3431 = vmatmul.mubr.f32.gmra.mrb[0].mxu0 %v1169
        %v3432 = vpop.f32.mrb[0].mxu0
        %v3433 = vadd.f32 %v2409, %v3432
        %v3434 = vpop.f32.mrb[0].mxu0
        %3435 = vmatprep.mubr.f32.mxu0 %v1174
        %3436 = vmatmul.mubr.f32.gmra.mrb[0].mxu0 %v1173
        %v3437 = vpop.f32.mrb[0].mxu0
        %v3438 = vadd.f32 %v2414, %v3437
        %v3439 = vpop.f32.mrb[0].mxu0
        %3440 = vmatprep.mubr.f32.mxu0 %v1178
        %3441 = vmatmul.mubr.f32.gmra.mrb[0].mxu0 %v1177
        %v3442 = vpop.f32.mrb[0].mxu0
        %v3443 = vadd.f32 %v2419, %v3442
        %v3444 = vpop.f32.mrb[0].mxu0
        %3445 = vmatprep.mubr.f32.mxu0 %v1182
        %3446 = vmatmul.mubr.f32.gmra.mrb[0].mxu0 %v1181
        %v3447 = vpop.f32.mrb[0].mxu0
        %v3448 = vadd.f32 %v2424, %v3447
        %v3449 = vpop.f32.mrb[0].mxu0
        %3450 = vmatprep.mubr.f32.mxu0 %v1186
        %3451 = vmatmul.mubr.f32.gmra.mrb[0].mxu0 %v1185
        %v3452 = vpop.f32.mrb[0].mxu0
        %v3453 = vadd.f32 %v2429, %v3452
        %v3454 = vpop.f32.mrb[0].mxu0
        %3455 = vmatprep.mubr.f32.mxu0 %v1190
        %3456 = vmatmul.mubr.f32.gmra.mrb[0].mxu0 %v1189
        %v3457 = vpop.f32.mrb[0].mxu0
        %v3458 = vadd.f32 %v2434, %v3457
        %v3459 = vpop.f32.mrb[0].mxu0
        %3460 = vmatprep.mubr.f32.mxu0 %v1194
        %3461 = vmatmul.mubr.f32.gmra.mrb[0].mxu0 %v1193
        %v3462 = vpop.f32.mrb[0].mxu0
        %v3463 = vadd.f32 %v2439, %v3462
        %v3464 = vpop.f32.mrb[0].mxu0
        %3465 = vmatprep.mubr.f32.mxu0 %v1198
        %3466 = vmatmul.mubr.f32.gmra.mrb[0].mxu0 %v1197
        %v3467 = vpop.f32.mrb[0].mxu0
        %v3468 = vadd.f32 %v2444, %v3467
        %v3469 = vpop.f32.mrb[0].mxu0
        %3470 = vmatprep.mubr.f32.mxu0 %v1202
        %3471 = vmatmul.mubr.f32.gmra.mrb[0].mxu0 %v1201
        %v3472 = vpop.f32.mrb[0].mxu0
        %v3473 = vadd.f32 %v2449, %v3472
        %v3474 = vpop.f32.mrb[0].mxu0
        %3475 = vmatprep.mubr.f32.mxu0 %v1206
        %3476 = vmatmul.mubr.f32.gmra.mrb[0].mxu0 %v1205
        %v3477 = vpop.f32.mrb[0].mxu0
        %v3478 = vadd.f32 %v2454, %v3477
        %v3479 = vpop.f32.mrb[0].mxu0
        %3480 = vmatprep.mubr.f32.mxu0 %v1210
        %3481 = vmatmul.mubr.f32.gmra.mrb[0].mxu0 %v1209
        %v3482 = vpop.f32.mrb[0].mxu0
        %v3483 = vadd.f32 %v2459, %v3482
        %v3484 = vpop.f32.mrb[0].mxu0
        %3485 = vmatprep.mubr.f32.mxu0 %v1214
        %3486 = vmatmul.mubr.f32.gmra.mrb[0].mxu0 %v1213
        %v3487 = vpop.f32.mrb[0].mxu0
        %v3488 = vadd.f32 %v2464, %v3487
        %v3489 = vpop.f32.mrb[0].mxu0
        %3490 = vmatprep.mubr.f32.mxu0 %v1218
        %3491 = vmatmul.mubr.f32.gmra.mrb[0].mxu0 %v1217
        %v3492 = vpop.f32.mrb[0].mxu0
        %v3493 = vadd.f32 %v2469, %v3492
        %v3494 = vpop.f32.mrb[0].mxu0
        %3495 = vmatprep.mubr.f32.mxu0 %v1222
        %3496 = vmatmul.mubr.f32.gmra.mrb[0].mxu0 %v1221
        %v3497 = vpop.f32.mrb[0].mxu0
        %v3498 = vadd.f32 %v2474, %v3497
        %v3499 = vpop.f32.mrb[0].mxu0
        %3500 = vmatprep.mubr.f32.mxu0 %v1226
        %3501 = vmatmul.mubr.f32.gmra.mrb[0].mxu0 %v1225
        %v3502 = vpop.f32.mrb[0].mxu0
        %v3503 = vadd.f32 %v2479, %v3502
        %v3504 = vpop.f32.mrb[0].mxu0
        %3505 = vmatprep.mubr.f32.mxu0 %v1230
        %3506 = vmatmul.mubr.f32.gmra.mrb[0].mxu0 %v1229
        %v3507 = vpop.f32.mrb[0].mxu0
        %v3508 = vadd.f32 %v2484, %v3507
        %v3509 = vpop.f32.mrb[0].mxu0
        %3510 = vmatprep.mubr.f32.mxu0 %v1234
        %3511 = vmatmul.mubr.f32.gmra.mrb[0].mxu0 %v1233
        %v3512 = vpop.f32.mrb[0].mxu0
        %v3513 = vadd.f32 %v2489, %v3512
        %v3514 = vpop.f32.mrb[0].mxu0
        %3515 = vmatprep.mubr.f32.mxu0 %v1238
        %3516 = vmatmul.mubr.f32.gmra.mrb[0].mxu0 %v1237
        %v3517 = vpop.f32.mrb[0].mxu0
        %v3518 = vadd.f32 %v2494, %v3517
        %v3519 = vpop.f32.mrb[0].mxu0
        %3520 = vmatprep.mubr.f32.mxu0 %v1242
        %3521 = vmatmul.mubr.f32.gmra.mrb[0].mxu0 %v1241
        %v3522 = vpop.f32.mrb[0].mxu0
        %v3523 = vadd.f32 %v2499, %v3522
        %v3524 = vpop.f32.mrb[0].mxu0
        %3525 = vmatprep.mubr.f32.mxu0 %v1246
        %3526 = vmatmul.mubr.f32.gmra.mrb[0].mxu0 %v1245
        %v3527 = vpop.f32.mrb[0].mxu0
        %v3528 = vadd.f32 %v2504, %v3527
        %v3529 = vpop.f32.mrb[0].mxu0
        %3530 = vmatprep.mubr.f32.mxu0 %v1250
        %3531 = vmatmul.mubr.f32.gmra.mrb[0].mxu0 %v1249
        %v3532 = vpop.f32.mrb[0].mxu0
        %v3533 = vadd.f32 %v2509, %v3532
        %v3534 = vpop.f32.mrb[0].mxu0
        %3535 = vmatprep.mubr.f32.mxu0 %v1254
        %3536 = vmatmul.mubr.f32.gmra.mrb[0].mxu0 %v1253
        %v3537 = vpop.f32.mrb[0].mxu0
        %v3538 = vadd.f32 %v2514, %v3537
        %v3539 = vpop.f32.mrb[0].mxu0
        %3540 = vmatprep.mubr.f32.mxu0 %v1258
        %3541 = vmatmul.mubr.f32.gmra.mrb[0].mxu0 %v1257
        %v3542 = vpop.f32.mrb[0].mxu0
        %v3543 = vadd.f32 %v2519, %v3542
        %v3544 = vpop.f32.mrb[0].mxu0
        %3545 = vmatprep.mubr.f32.mxu0 %v1262
        %3546 = vmatmul.mubr.f32.gmra.mrb[0].mxu0 %v1261
        %v3547 = vpop.f32.mrb[0].mxu0
        %v3548 = vadd.f32 %v2524, %v3547
        %v3549 = vpop.f32.mrb[0].mxu0
        %3550 = vmatprep.mubr.f32.mxu0 %v1266
        %3551 = vmatmul.mubr.f32.gmra.mrb[0].mxu0 %v1265
        %v3552 = vpop.f32.mrb[0].mxu0
        %v3553 = vadd.f32 %v2529, %v3552
        %v3554 = vpop.f32.mrb[0].mxu0
        %3555 = vmatprep.mubr.f32.mxu0 %v1270
        %3556 = vmatmul.mubr.f32.gmra.mrb[0].mxu0 %v1269
        %v3557 = vpop.f32.mrb[0].mxu0
        %v3558 = vadd.f32 %v2534, %v3557
        %v3559 = vpop.f32.mrb[0].mxu0
        %3560 = vmatprep.mubr.f32.mxu0 %v1274
        %3561 = vmatmul.mubr.f32.gmra.mrb[0].mxu0 %v1273
        %v3562 = vpop.f32.mrb[0].mxu0
        %v3563 = vadd.f32 %v2539, %v3562
        %v3564 = vpop.f32.mrb[0].mxu0
        %3565 = vmatprep.mubr.f32.mxu0 %v1278
        %3566 = vmatmul.mubr.f32.gmra.mrb[0].mxu0 %v1277
        %v3567 = vpop.f32.mrb[0].mxu0
        %v3568 = vadd.f32 %v2544, %v3567
        %v3569 = vpop.f32.mrb[0].mxu0
        %3570 = vmatprep.mubr.f32.mxu0 %v1282
        %3571 = vmatmul.mubr.f32.gmra.mrb[0].mxu0 %v1281
        %v3572 = vpop.f32.mrb[0].mxu0
        %v3573 = vadd.f32 %v2549, %v3572
        %v3574 = vpop.f32.mrb[0].mxu0
        %3575 = vmatprep.mubr.f32.mxu0 %v1286
        %3576 = vmatmul.mubr.f32.gmra.mrb[0].mxu0 %v1285
        %v3577 = vpop.f32.mrb[0].mxu0
        %v3578 = vadd.f32 %v2554, %v3577
        %v3579 = vpop.f32.mrb[0].mxu0
        %3580 = vmatprep.mubr.f32.mxu0 %v1290
        %3581 = vmatmul.mubr.f32.gmra.mrb[0].mxu0 %v1289
        %v3582 = vpop.f32.mrb[0].mxu0
        %v3583 = vadd.f32 %v2559, %v3582
        %v3584 = vpop.f32.mrb[0].mxu0
        %3585 = vmatprep.mubr.f32.mxu0 %v1294
        %3586 = vmatmul.mubr.f32.gmra.mrb[0].mxu0 %v1293
        %v3587 = vpop.f32.mrb[0].mxu0
        %v3588 = vadd.f32 %v2564, %v3587
        %v3589 = vpop.f32.mrb[0].mxu0
        %3590 = vmatprep.mubr.f32.mxu0 %v1298
        %3591 = vmatmul.mubr.f32.gmra.mrb[0].mxu0 %v1297
        %v3592 = vpop.f32.mrb[0].mxu0
        %v3593 = vadd.f32 %v2569, %v3592
        %v3594 = vpop.f32.mrb[0].mxu0
        %3595 = vmatprep.mubr.f32.mxu0 %v1302
        %3596 = vmatmul.mubr.f32.gmra.mrb[0].mxu0 %v1301
        %v3597 = vpop.f32.mrb[0].mxu0
        %v3598 = vadd.f32 %v2574, %v3597
        %v3599 = vpop.f32.mrb[0].mxu0
        %3600 = vmatprep.mubr.f32.mxu0 %v1306
        %3601 = vmatmul.mubr.f32.gmra.mrb[0].mxu0 %v1305
        %v3602 = vpop.f32.mrb[0].mxu0
        %v3603 = vadd.f32 %v2579, %v3602
        %v3604 = vpop.f32.mrb[0].mxu0
        %3605 = vmatprep.mubr.f32.mxu0 %v1310
        %3606 = vmatmul.mubr.f32.gmra.mrb[0].mxu0 %v1309
        %v3607 = vpop.f32.mrb[0].mxu0
        %v3608 = vadd.f32 %v2584, %v3607
        %v3609 = vpop.f32.mrb[0].mxu0
        %3610 = vmatprep.mubr.f32.mxu0 %v1314
        %3611 = vmatmul.mubr.f32.gmra.mrb[0].mxu0 %v1313
        %v3612 = vpop.f32.mrb[0].mxu0
        %v3613 = vadd.f32 %v2589, %v3612
        %v3614 = vpop.f32.mrb[0].mxu0
        %3615 = vmatprep.mubr.f32.mxu0 %v1318
        %3616 = vmatmul.mubr.f32.gmra.mrb[0].mxu0 %v1317
        %v3617 = vpop.f32.mrb[0].mxu0
        %v3618 = vadd.f32 %v2594, %v3617
        %v3619 = vpop.f32.mrb[0].mxu0
        %3620 = vmatprep.mubr.f32.mxu0 %v1322
        %3621 = vmatmul.mubr.f32.gmra.mrb[0].mxu0 %v1321
        %v3622 = vpop.f32.mrb[0].mxu0
        %v3623 = vadd.f32 %v2599, %v3622
        %v3624 = vpop.f32.mrb[0].mxu0
        %3625 = vmatprep.mubr.f32.mxu0 %v1326
        %3626 = vmatmul.mubr.f32.gmra.mrb[0].mxu0 %v1325
        %v3627 = vpop.f32.mrb[0].mxu0
        %v3628 = vadd.f32 %v2604, %v3627
        %v3629 = vpop.f32.mrb[0].mxu0
        %3630 = vmatprep.mubr.f32.mxu0 %v1330
        %3631 = vmatmul.mubr.f32.gmra.mrb[0].mxu0 %v1329
        %v3632 = vpop.f32.mrb[0].mxu0
        %v3633 = vadd.f32 %v2609, %v3632
        %v3634 = vpop.f32.mrb[0].mxu0
        %3635 = vmatprep.mubr.f32.mxu0 %v1334
        %3636 = vmatmul.mubr.f32.gmra.mrb[0].mxu0 %v1333
        %v3637 = vpop.f32.mrb[0].mxu0
        %v3638 = vadd.f32 %v2614, %v3637
        %v3639 = vpop.f32.mrb[0].mxu0
        %3640 = vmatprep.mubr.f32.mxu0 %v1338
        %3641 = vmatmul.mubr.f32.gmra.mrb[0].mxu0 %v1337
        %v3642 = vpop.f32.mrb[0].mxu0
        %v3643 = vadd.f32 %v2619, %v3642
        %v3644 = vpop.f32.mrb[0].mxu0
        %3645 = vmatprep.mubr.f32.mxu0 %v1342
        %3646 = vmatmul.mubr.f32.gmra.mrb[0].mxu0 %v1341
        %v3647 = vpop.f32.mrb[0].mxu0
        %v3648 = vadd.f32 %v2624, %v3647
        %v3649 = vpop.f32.mrb[0].mxu0
        %3650 = vmatprep.mubr.f32.mxu0 %v1346
        %3651 = vmatmul.mubr.f32.gmra.mrb[0].mxu0 %v1345
        %v3652 = vpop.f32.mrb[0].mxu0
        %v3653 = vadd.f32 %v2629, %v3652
        %v3654 = vpop.f32.mrb[0].mxu0
        %3655 = vmatprep.mubr.f32.mxu0 %v1350
        %3656 = vmatmul.mubr.f32.gmra.mrb[0].mxu0 %v1349
        %v3657 = vpop.f32.mrb[0].mxu0
        %v3658 = vadd.f32 %v2634, %v3657
        %v3659 = vpop.f32.mrb[0].mxu0
        %3660 = vmatprep.mubr.f32.mxu0 %v1354
        %3661 = vmatmul.mubr.f32.gmra.mrb[0].mxu0 %v1353
        %v3662 = vpop.f32.mrb[0].mxu0
        %v3663 = vadd.f32 %v2639, %v3662
        %v3664 = vpop.f32.mrb[0].mxu0
        %3665 = vmatprep.mubr.f32.mxu0 %v1358
        %3666 = vmatmul.mubr.f32.gmra.mrb[0].mxu0 %v1357
        %v3667 = vpop.f32.mrb[0].mxu0
        %v3668 = vadd.f32 %v2644, %v3667
        %v3669 = vpop.f32.mrb[0].mxu0
        %3670 = vmatprep.mubr.f32.mxu0 %v1362
        %3671 = vmatmul.mubr.f32.gmra.mrb[0].mxu0 %v1361
        %v3672 = vpop.f32.mrb[0].mxu0
        %v3673 = vadd.f32 %v2649, %v3672
        %v3674 = vpop.f32.mrb[0].mxu0
        %3675 = vmatprep.mubr.f32.mxu0 %v1366
        %3676 = vmatmul.mubr.f32.gmra.mrb[0].mxu0 %v1365
        %v3677 = vpop.f32.mrb[0].mxu0
        %v3678 = vadd.f32 %v2654, %v3677
        %v3679 = vpop.f32.mrb[0].mxu0
        %3680 = vmatprep.mubr.f32.mxu0 %v1370
        %3681 = vmatmul.mubr.f32.gmra.mrb[0].mxu0 %v1369
        %v3682 = vpop.f32.mrb[0].mxu0
        %v3683 = vadd.f32 %v2659, %v3682
        %v3684 = vpop.f32.mrb[0].mxu0
        %3685 = vmatprep.mubr.f32.mxu0 %v1374
        %3686 = vmatmul.mubr.f32.gmra.mrb[0].mxu0 %v1373
        %v3687 = vpop.f32.mrb[0].mxu0
        %v3688 = vadd.f32 %v2664, %v3687
        %v3689 = vpop.f32.mrb[0].mxu0
        %3690 = vmatprep.mubr.f32.mxu0 %v1378
        %3691 = vmatmul.mubr.f32.gmra.mrb[0].mxu0 %v1377
        %v3692 = vpop.f32.mrb[0].mxu0
        %v3693 = vadd.f32 %v2669, %v3692
        %v3694 = vpop.f32.mrb[0].mxu0
        %3695 = vmatprep.mubr.f32.mxu0 %v1382
        %3696 = vmatmul.mubr.f32.gmra.mrb[0].mxu0 %v1381
        %v3697 = vpop.f32.mrb[0].mxu0
        %v3698 = vadd.f32 %v2674, %v3697
        %v3699 = vpop.f32.mrb[0].mxu0
        %3700 = vmatprep.mubr.f32.mxu0 %v1386
        %3701 = vmatmul.mubr.f32.gmra.mrb[0].mxu0 %v1385
        %v3702 = vpop.f32.mrb[0].mxu0
        %v3703 = vadd.f32 %v2679, %v3702
        %v3704 = vpop.f32.mrb[0].mxu0
        %3705 = vmatprep.mubr.f32.mxu0 %v1390
        %3706 = vmatmul.mubr.f32.gmra.mrb[0].mxu0 %v1389
        %v3707 = vpop.f32.mrb[0].mxu0
        %v3708 = vadd.f32 %v2684, %v3707
        %v3709 = vpop.f32.mrb[0].mxu0
        %3710 = vmatprep.mubr.f32.mxu0 %v1394
        %3711 = vmatmul.mubr.f32.gmra.mrb[0].mxu0 %v1393
        %v3712 = vpop.f32.mrb[0].mxu0
        %v3713 = vadd.f32 %v2689, %v3712
        %v3714 = vpop.f32.mrb[0].mxu0
        %3715 = vmatprep.mubr.f32.mxu0 %v1398
        %3716 = vmatmul.mubr.f32.gmra.mrb[0].mxu0 %v1397
        %v3717 = vpop.f32.mrb[0].mxu0
        %v3718 = vadd.f32 %v2694, %v3717
        %v3719 = vpop.f32.mrb[0].mxu0
        %3720 = vmatprep.mubr.f32.mxu0 %v1402
        %3721 = vmatmul.mubr.f32.gmra.mrb[0].mxu0 %v1401
        %v3722 = vpop.f32.mrb[0].mxu0
        %v3723 = vadd.f32 %v2699, %v3722
        %v3724 = vpop.f32.mrb[0].mxu0
        %3725 = vmatprep.mubr.f32.mxu0 %v1406
        %3726 = vmatmul.mubr.f32.gmra.mrb[0].mxu0 %v1405
        %v3727 = vpop.f32.mrb[0].mxu0
        %v3728 = vadd.f32 %v2704, %v3727
        %v3729 = vpop.f32.mrb[0].mxu0
        %3730 = vmatprep.mubr.f32.mxu0 %v1410
        %3731 = vmatmul.mubr.f32.gmra.mrb[0].mxu0 %v1409
        %v3732 = vpop.f32.mrb[0].mxu0
        %v3733 = vadd.f32 %v2709, %v3732
        %v3734 = vpop.f32.mrb[0].mxu0
        %3735 = vmatprep.mubr.f32.mxu0 %v1414
        %3736 = vmatmul.mubr.f32.gmra.mrb[0].mxu0 %v1413
        %v3737 = vpop.f32.mrb[0].mxu0
        %v3738 = vadd.f32 %v2714, %v3737
        %v3739 = vpop.f32.mrb[0].mxu0
        %3740 = vmatprep.mubr.f32.mxu0 %v1418
        %3741 = vmatmul.mubr.f32.gmra.mrb[0].mxu0 %v1417
        %v3742 = vpop.f32.mrb[0].mxu0
        %v3743 = vadd.f32 %v2719, %v3742
        %v3744 = vpop.f32.mrb[0].mxu0
        %3745 = vmatprep.mubr.f32.mxu0 %v1422
        %3746 = vmatmul.mubr.f32.gmra.mrb[0].mxu0 %v1421
        %v3747 = vpop.f32.mrb[0].mxu0
        %v3748 = vadd.f32 %v2724, %v3747
        %v3749 = vpop.f32.mrb[0].mxu0
        %3750 = vmatprep.mubr.f32.mxu0 %v1426
        %3751 = vmatmul.mubr.f32.gmra.mrb[0].mxu0 %v1425
        %v3752 = vpop.f32.mrb[0].mxu0
        %v3753 = vadd.f32 %v2729, %v3752
        %v3754 = vpop.f32.mrb[0].mxu0
        %3755 = vmatprep.mubr.f32.mxu0 %v1430
        %3756 = vmatmul.mubr.f32.gmra.mrb[0].mxu0 %v1429
        %v3757 = vpop.f32.mrb[0].mxu0
        %v3758 = vadd.f32 %v2734, %v3757
        %v3759 = vpop.f32.mrb[0].mxu0
        %3760 = vmatprep.mubr.f32.mxu0 %v1434
        %3761 = vmatmul.mubr.f32.gmra.mrb[0].mxu0 %v1433
        %v3762 = vpop.f32.mrb[0].mxu0
        %v3763 = vadd.f32 %v2739, %v3762
        %v3764 = vpop.f32.mrb[0].mxu0
        %3765 = vmatprep.mubr.f32.mxu0 %v1438
        %3766 = vmatmul.mubr.f32.gmra.mrb[0].mxu0 %v1437
        %v3767 = vpop.f32.mrb[0].mxu0
        %v3768 = vadd.f32 %v2744, %v3767
        %v3769 = vpop.f32.mrb[0].mxu0
        %3770 = vmatprep.mubr.f32.mxu0 %v1442
        %3771 = vmatmul.mubr.f32.gmra.mrb[0].mxu0 %v1441
        %v3772 = vpop.f32.mrb[0].mxu0
        %v3773 = vadd.f32 %v2749, %v3772
        %v3774 = vpop.f32.mrb[0].mxu0
        %3775 = vmatprep.mubr.f32.mxu0 %v1446
        %3776 = vmatmul.mubr.f32.gmra.mrb[0].mxu0 %v1445
        %v3777 = vpop.f32.mrb[0].mxu0
        %v3778 = vadd.f32 %v2754, %v3777
        %v3779 = vpop.f32.mrb[0].mxu0
        %3780 = vmatprep.mubr.f32.mxu0 %v1450
        %3781 = vmatmul.mubr.f32.gmra.mrb[0].mxu0 %v1449
        %v3782 = vpop.f32.mrb[0].mxu0
        %v3783 = vadd.f32 %v2759, %v3782
        %v3784 = vpop.f32.mrb[0].mxu0
        %3785 = vmatprep.mubr.f32.mxu0 %v1454
        %3786 = vmatmul.mubr.f32.gmra.mrb[0].mxu0 %v1453
        %v3787 = vpop.f32.mrb[0].mxu0
        %v3788 = vadd.f32 %v2764, %v3787
        %v3789 = vpop.f32.mrb[0].mxu0
        %3790 = vmatprep.mubr.f32.mxu0 %v1458
        %3791 = vmatmul.mubr.f32.gmra.mrb[0].mxu0 %v1457
        %v3792 = vpop.f32.mrb[0].mxu0
        %v3793 = vadd.f32 %v2769, %v3792
        %v3794 = vpop.f32.mrb[0].mxu0
        %3795 = vmatprep.mubr.f32.mxu0 %v1462
        %3796 = vmatmul.mubr.f32.gmra.mrb[0].mxu0 %v1461
        %v3797 = vpop.f32.mrb[0].mxu0
        %v3798 = vadd.f32 %v2774, %v3797
        %v3799 = vpop.f32.mrb[0].mxu0
        %3800 = vmatprep.mubr.f32.mxu0 %v1466
        %3801 = vmatmul.mubr.f32.gmra.mrb[0].mxu0 %v1465
        %v3802 = vpop.f32.mrb[0].mxu0
        %v3803 = vadd.f32 %v2779, %v3802
        %v3804 = vpop.f32.mrb[0].mxu0
        %3805 = vmatprep.mubr.f32.mxu0 %v1470
        %3806 = vmatmul.mubr.f32.gmra.mrb[0].mxu0 %v1469
        %v3807 = vpop.f32.mrb[0].mxu0
        %v3808 = vadd.f32 %v2784, %v3807
        %v3809 = vpop.f32.mrb[0].mxu0
        %3810 = vmatprep.mubr.f32.mxu0 %v1474
        %3811 = vmatmul.mubr.f32.gmra.mrb[0].mxu0 %v1473
        %v3812 = vpop.f32.mrb[0].mxu0
        %v3813 = vadd.f32 %v2789, %v3812
        %v3814 = vpop.f32.mrb[0].mxu0
        %3815 = vmatprep.mubr.f32.mxu0 %v1478
        %3816 = vmatmul.mubr.f32.gmra.mrb[0].mxu0 %v1477
        %v3817 = vpop.f32.mrb[0].mxu0
        %v3818 = vadd.f32 %v2794, %v3817
        %v3819 = vpop.f32.mrb[0].mxu0
        %3820 = vmatprep.mubr.f32.mxu0 %v1482
        %3821 = vmatmul.mubr.f32.gmra.mrb[0].mxu0 %v1481
        %v3822 = vpop.f32.mrb[0].mxu0
        %v3823 = vadd.f32 %v2799, %v3822
        %v3824 = vpop.f32.mrb[0].mxu0
        %3825 = vmatprep.mubr.f32.mxu0 %v1486
        %3826 = vmatmul.mubr.f32.gmra.mrb[0].mxu0 %v1485
        %v3827 = vpop.f32.mrb[0].mxu0
        %v3828 = vadd.f32 %v2804, %v3827
        %v3829 = vpop.f32.mrb[0].mxu0
        %3830 = vmatprep.mubr.f32.mxu0 %v1490
        %3831 = vmatmul.mubr.f32.gmra.mrb[0].mxu0 %v1489
        %v3832 = vpop.f32.mrb[0].mxu0
        %v3833 = vadd.f32 %v2809, %v3832
        %v3834 = vpop.f32.mrb[0].mxu0
        %3835 = vmatprep.mubr.f32.mxu0 %v1494
        %3836 = vmatmul.mubr.f32.gmra.mrb[0].mxu0 %v1493
        %v3837 = vpop.f32.mrb[0].mxu0
        %v3838 = vadd.f32 %v2814, %v3837
        %v3839 = vpop.f32.mrb[0].mxu0
        %3840 = vmatprep.mubr.f32.mxu0 %v1498
        %3841 = vmatmul.mubr.f32.gmra.mrb[0].mxu0 %v1497
        %v3842 = vpop.f32.mrb[0].mxu0
        %v3843 = vadd.f32 %v2819, %v3842
        %v3844 = vpop.f32.mrb[0].mxu0
        %3845 = vmatprep.mubr.f32.mxu0 %v1502
        %3846 = vmatmul.mubr.f32.gmra.mrb[0].mxu0 %v1501
        %v3847 = vpop.f32.mrb[0].mxu0
        %v3848 = vadd.f32 %v2824, %v3847
        %v3849 = vpop.f32.mrb[0].mxu0
        %3850 = vmatprep.mubr.f32.mxu0 %v1506
        %3851 = vmatmul.mubr.f32.gmra.mrb[0].mxu0 %v1505
        %v3852 = vpop.f32.mrb[0].mxu0
        %v3853 = vadd.f32 %v2829, %v3852
        %v3854 = vpop.f32.mrb[0].mxu0
        %3855 = vmatprep.mubr.f32.mxu0 %v1510
        %3856 = vmatmul.mubr.f32.gmra.mrb[0].mxu0 %v1509
        %v3857 = vpop.f32.mrb[0].mxu0
        %v3858 = vadd.f32 %v2834, %v3857
        %v3859 = vpop.f32.mrb[0].mxu0
        %3860 = vmatprep.mubr.f32.mxu0 %v1514
        %3861 = vmatmul.mubr.f32.gmra.mrb[0].mxu0 %v1513
        %v3862 = vpop.f32.mrb[0].mxu0
        %v3863 = vadd.f32 %v2839, %v3862
        %v3864 = vpop.f32.mrb[0].mxu0
        %3865 = vmatprep.mubr.f32.mxu0 %v1518
        %3866 = vmatmul.mubr.f32.gmra.mrb[0].mxu0 %v1517
        %v3867 = vpop.f32.mrb[0].mxu0
        %v3868 = vadd.f32 %v2844, %v3867
        %v3869 = vpop.f32.mrb[0].mxu0
        %3870 = vmatprep.mubr.f32.mxu0 %v1522
        %3871 = vmatmul.mubr.f32.gmra.mrb[0].mxu0 %v1521
        %v3872 = vpop.f32.mrb[0].mxu0
        %v3873 = vadd.f32 %v2849, %v3872
        %v3874 = vpop.f32.mrb[0].mxu0
        %3875 = vmatprep.mubr.f32.mxu0 %v1526
        %3876 = vmatmul.mubr.f32.gmra.mrb[0].mxu0 %v1525
        %v3877 = vpop.f32.mrb[0].mxu0
        %v3878 = vadd.f32 %v2854, %v3877
        %v3879 = vpop.f32.mrb[0].mxu0
        %3880 = vmatprep.mubr.f32.mxu0 %v1530
        %3881 = vmatmul.mubr.f32.gmra.mrb[0].mxu0 %v1529
        %v3882 = vpop.f32.mrb[0].mxu0
        %v3883 = vadd.f32 %v2859, %v3882
        %v3884 = vpop.f32.mrb[0].mxu0
        %3885 = vmatprep.mubr.f32.mxu0 %v1534
        %3886 = vmatmul.mubr.f32.gmra.mrb[0].mxu0 %v1533
        %v3887 = vpop.f32.mrb[0].mxu0
        %v3888 = vadd.f32 %v2864, %v3887
        %v3889 = vpop.f32.mrb[0].mxu0
        %3890 = vmatprep.mubr.f32.mxu0 %v1538
        %3891 = vmatmul.mubr.f32.gmra.mrb[0].mxu0 %v1537
        %v3892 = vpop.f32.mrb[0].mxu0
        %v3893 = vadd.f32 %v2869, %v3892
        %v3894 = vpop.f32.mrb[0].mxu0
        %3895 = vmatprep.mubr.f32.mxu0 %v1542
        %3896 = vmatmul.mubr.f32.gmra.mrb[0].mxu0 %v1541
        %v3897 = vpop.f32.mrb[0].mxu0
        %v3898 = vadd.f32 %v2874, %v3897
        %v3899 = vpop.f32.mrb[0].mxu0
        %3900 = vmatprep.mubr.f32.mxu0 %v1546
        %3901 = vmatmul.mubr.f32.gmra.mrb[0].mxu0 %v1545
        %v3902 = vpop.f32.mrb[0].mxu0
        %v3903 = vadd.f32 %v2879, %v3902
        %v3904 = vpop.f32.mrb[0].mxu0
        %3905 = vmatprep.mubr.f32.mxu0 %v1550
        %3906 = vmatmul.mubr.f32.gmra.mrb[0].mxu0 %v1549
        %v3907 = vpop.f32.mrb[0].mxu0
        %v3908 = vadd.f32 %v2884, %v3907
        %v3909 = vpop.f32.mrb[0].mxu0
        %3910 = vmatprep.mubr.f32.mxu0 %v1554
        %3911 = vmatmul.mubr.f32.gmra.mrb[0].mxu0 %v1553
        %v3912 = vpop.f32.mrb[0].mxu0
        %v3913 = vadd.f32 %v2889, %v3912
        %v3914 = vpop.f32.mrb[0].mxu0
        %3915 = vmatprep.mubr.f32.mxu0 %v1558
        %3916 = vmatmul.mubr.f32.gmra.mrb[0].mxu0 %v1557
        %v3917 = vpop.f32.mrb[0].mxu0
        %v3918 = vadd.f32 %v2894, %v3917
        %v3919 = vpop.f32.mrb[0].mxu0
        %3920 = vmatprep.mubr.f32.mxu0 %v1562
        %3921 = vmatmul.mubr.f32.gmra.mrb[0].mxu0 %v1561
        %v3922 = vpop.f32.mrb[0].mxu0
        %v3923 = vadd.f32 %v2899, %v3922
        %v3924 = vpop.f32.mrb[0].mxu0
        %3925 = vmatprep.mubr.f32.mxu0 %v1566
        %3926 = vmatmul.mubr.f32.gmra.mrb[0].mxu0 %v1565
        %v3927 = vpop.f32.mrb[0].mxu0
        %v3928 = vadd.f32 %v2904, %v3927
        %v3929 = vpop.f32.mrb[0].mxu0
        %3930 = vmatprep.mubr.f32.mxu0 %v1570
        %3931 = vmatmul.mubr.f32.gmra.mrb[0].mxu0 %v1569
        %v3932 = vpop.f32.mrb[0].mxu0
        %v3933 = vadd.f32 %v2909, %v3932
        %v3934 = vpop.f32.mrb[0].mxu0
        %3935 = vmatprep.mubr.f32.mxu0 %v1574
        %3936 = vmatmul.mubr.f32.gmra.mrb[0].mxu0 %v1573
        %v3937 = vpop.f32.mrb[0].mxu0
        %v3938 = vadd.f32 %v2914, %v3937
        %v3939 = vpop.f32.mrb[0].mxu0
        %3940 = vmatprep.mubr.f32.mxu0 %v1578
        %3941 = vmatmul.mubr.f32.gmra.mrb[0].mxu0 %v1577
        %v3942 = vpop.f32.mrb[0].mxu0
        %v3943 = vadd.f32 %v2919, %v3942
        %v3944 = vpop.f32.mrb[0].mxu0
        %3945 = vmatprep.mubr.f32.mxu0 %v1582
        %3946 = vmatmul.mubr.f32.gmra.mrb[0].mxu0 %v1581
        %v3947 = vpop.f32.mrb[0].mxu0
        %v3948 = vadd.f32 %v2924, %v3947
        %v3949 = vpop.f32.mrb[0].mxu0
        %3950 = vmatprep.mubr.f32.mxu0 %v1586
        %3951 = vmatmul.mubr.f32.gmra.mrb[0].mxu0 %v1585
        %v3952 = vpop.f32.mrb[0].mxu0
        %v3953 = vadd.f32 %v2929, %v3952
        %v3954 = vpop.f32.mrb[0].mxu0
        %3955 = vmatprep.mubr.f32.mxu0 %v1590
        %3956 = vmatmul.mubr.f32.gmra.mrb[0].mxu0 %v1589
        %v3957 = vpop.f32.mrb[0].mxu0
        %v3958 = vadd.f32 %v2934, %v3957
        %v3959 = vpop.f32.mrb[0].mxu0
        %3960 = vmatprep.mubr.f32.mxu0 %v1594
        %3961 = vmatmul.mubr.f32.gmra.mrb[0].mxu0 %v1593
        %v3962 = vpop.f32.mrb[0].mxu0
        %v3963 = vadd.f32 %v2939, %v3962
        %v3964 = vpop.f32.mrb[0].mxu0
        %3965 = vmatprep.mubr.f32.mxu0 %v1598
        %3966 = vmatmul.mubr.f32.gmra.mrb[0].mxu0 %v1597
        %v3967 = vpop.f32.mrb[0].mxu0
        %v3968 = vadd.f32 %v2944, %v3967
        %v3969 = vpop.f32.mrb[0].mxu0
        %3970 = vmatprep.mubr.f32.mxu0 %v1602
        %3971 = vmatmul.mubr.f32.gmra.mrb[0].mxu0 %v1601
        %v3972 = vpop.f32.mrb[0].mxu0
        %v3973 = vadd.f32 %v2949, %v3972
        %v3974 = vpop.f32.mrb[0].mxu0
        %3975 = vmatprep.mubr.f32.mxu0 %v1606
        %3976 = vmatmul.mubr.f32.gmra.mrb[0].mxu0 %v1605
        %v3977 = vpop.f32.mrb[0].mxu0
        %v3978 = vadd.f32 %v2954, %v3977
        %v3979 = vpop.f32.mrb[0].mxu0
        %3980 = vmatprep.mubr.f32.mxu0 %v1610
        %3981 = vmatmul.mubr.f32.gmra.mrb[0].mxu0 %v1609
        %v3982 = vpop.f32.mrb[0].mxu0
        %v3983 = vadd.f32 %v2959, %v3982
        %v3984 = vpop.f32.mrb[0].mxu0
        %3985 = vmatprep.mubr.f32.mxu0 %v1614
        %3986 = vmatmul.mubr.f32.gmra.mrb[0].mxu0 %v1613
        %v3987 = vpop.f32.mrb[0].mxu0
        %v3988 = vadd.f32 %v2964, %v3987
        %v3989 = vpop.f32.mrb[0].mxu0
        %3990 = vmatprep.mubr.f32.mxu0 %v1618
        %3991 = vmatmul.mubr.f32.gmra.mrb[0].mxu0 %v1617
        %v3992 = vpop.f32.mrb[0].mxu0
        %v3993 = vadd.f32 %v2969, %v3992
        %v3994 = vpop.f32.mrb[0].mxu0
        %3995 = vmatprep.mubr.f32.mxu0 %v1622
        %3996 = vmatmul.mubr.f32.gmra.mrb[0].mxu0 %v1621
        %v3997 = vpop.f32.mrb[0].mxu0
        %v3998 = vadd.f32 %v2974, %v3997
        %v3999 = vpop.f32.mrb[0].mxu0
        %4000 = vmatprep.mubr.f32.mxu0 %v1626
        %4001 = vmatmul.mubr.f32.gmra.mrb[0].mxu0 %v1625
        %v4002 = vpop.f32.mrb[0].mxu0
        %v4003 = vadd.f32 %v2979, %v4002
        %v4004 = vpop.f32.mrb[0].mxu0
        %4005 = vmatprep.mubr.f32.mxu0 %v1630
        %4006 = vmatmul.mubr.f32.gmra.mrb[0].mxu0 %v1629
        %v4007 = vpop.f32.mrb[0].mxu0
        %v4008 = vadd.f32 %v2984, %v4007
        %v4009 = vpop.f32.mrb[0].mxu0
        %4010 = vmatprep.mubr.f32.mxu0 %v1634
        %4011 = vmatmul.mubr.f32.gmra.mrb[0].mxu0 %v1633
        %v4012 = vpop.f32.mrb[0].mxu0
        %v4013 = vadd.f32 %v2989, %v4012
        %v4014 = vpop.f32.mrb[0].mxu0
        %4015 = vmatprep.mubr.f32.mxu0 %v1638
        %4016 = vmatmul.mubr.f32.gmra.mrb[0].mxu0 %v1637
        %v4017 = vpop.f32.mrb[0].mxu0
        %v4018 = vadd.f32 %v2994, %v4017
        %v4019 = vpop.f32.mrb[0].mxu0
        %4020 = vmatprep.mubr.f32.mxu0 %v1642
        %4021 = vmatmul.mubr.f32.gmra.mrb[0].mxu0 %v1641
        %v4022 = vpop.f32.mrb[0].mxu0
        %v4023 = vadd.f32 %v2999, %v4022
        %v4024 = vpop.f32.mrb[0].mxu0
        %4025 = vmatprep.mubr.f32.mxu0 %v1646
        %4026 = vmatmul.mubr.f32.gmra.mrb[0].mxu0 %v1645
        %v4027 = vpop.f32.mrb[0].mxu0
        %v4028 = vadd.f32 %v3004, %v4027
        %v4029 = vpop.f32.mrb[0].mxu0
        %4030 = vmatprep.mubr.f32.mxu0 %v1650
        %4031 = vmatmul.mubr.f32.gmra.mrb[0].mxu0 %v1649
        %v4032 = vpop.f32.mrb[0].mxu0
        %v4033 = vadd.f32 %v3009, %v4032
        %v4034 = vpop.f32.mrb[0].mxu0
        %4035 = vmatprep.mubr.f32.mxu0 %v1654
        %4036 = vmatmul.mubr.f32.gmra.mrb[0].mxu0 %v1653
        %v4037 = vpop.f32.mrb[0].mxu0
        %v4038 = vadd.f32 %v3014, %v4037
        %v4039 = vpop.f32.mrb[0].mxu0
        %4040 = vmatprep.mubr.f32.mxu0 %v1658
        %4041 = vmatmul.mubr.f32.gmra.mrb[0].mxu0 %v1657
        %v4042 = vpop.f32.mrb[0].mxu0
        %v4043 = vadd.f32 %v3019, %v4042
        %v4044 = vpop.f32.mrb[0].mxu0
        %4045 = vmatprep.mubr.f32.mxu0 %v1662
        %4046 = vmatmul.mubr.f32.gmra.mrb[0].mxu0 %v1661
        %v4047 = vpop.f32.mrb[0].mxu0
        %v4048 = vadd.f32 %v3024, %v4047
        %v4049 = vpop.f32.mrb[0].mxu0
        %4050 = vmatprep.mubr.f32.mxu0 %v1666
        %4051 = vmatmul.mubr.f32.gmra.mrb[0].mxu0 %v1665
        %v4052 = vpop.f32.mrb[0].mxu0
        %v4053 = vadd.f32 %v3029, %v4052
        %v4054 = vpop.f32.mrb[0].mxu0
        %4055 = vmatprep.mubr.f32.mxu0 %v1670
        %4056 = vmatmul.mubr.f32.gmra.mrb[0].mxu0 %v1669
        %v4057 = vpop.f32.mrb[0].mxu0
        %v4058 = vadd.f32 %v3034, %v4057
        %v4059 = vpop.f32.mrb[0].mxu0
        %4060 = vmatprep.mubr.f32.mxu0 %v1674
        %4061 = vmatmul.mubr.f32.gmra.mrb[0].mxu0 %v1673
        %v4062 = vpop.f32.mrb[0].mxu0
        %v4063 = vadd.f32 %v3039, %v4062
        %v4064 = vpop.f32.mrb[0].mxu0
        %4065 = vmatprep.mubr.f32.mxu0 %v1678
        %4066 = vmatmul.mubr.f32.gmra.mrb[0].mxu0 %v1677
        %v4067 = vpop.f32.mrb[0].mxu0
        %v4068 = vadd.f32 %v3044, %v4067
        %v4069 = vpop.f32.mrb[0].mxu0
        %4070 = vmatprep.mubr.f32.mxu0 %v1682
        %4071 = vmatmul.mubr.f32.gmra.mrb[0].mxu0 %v1681
        %v4072 = vpop.f32.mrb[0].mxu0
        %v4073 = vadd.f32 %v3049, %v4072
        %v4074 = vpop.f32.mrb[0].mxu0
        %4075 = vmatprep.mubr.f32.mxu0 %v1686
        %4076 = vmatmul.mubr.f32.gmra.mrb[0].mxu0 %v1685
        %v4077 = vpop.f32.mrb[0].mxu0
        %v4078 = vadd.f32 %v3054, %v4077
        %v4079 = vpop.f32.mrb[0].mxu0
        %4080 = vmatprep.mubr.f32.mxu0 %v1690
        %4081 = vmatmul.mubr.f32.gmra.mrb[0].mxu0 %v1689
        %v4082 = vpop.f32.mrb[0].mxu0
        %v4083 = vadd.f32 %v3059, %v4082
        %v4084 = vpop.f32.mrb[0].mxu0
        %4085 = vmatprep.mubr.f32.mxu0 %v1694
        %4086 = vmatmul.mubr.f32.gmra.mrb[0].mxu0 %v1693
        %v4087 = vpop.f32.mrb[0].mxu0
        %v4088 = vadd.f32 %v3064, %v4087
        %v4089 = vpop.f32.mrb[0].mxu0
        %4090 = vmatprep.mubr.f32.mxu0 %v1698
        %4091 = vmatmul.mubr.f32.gmra.mrb[0].mxu0 %v1697
        %v4092 = vpop.f32.mrb[0].mxu0
        %v4093 = vadd.f32 %v3069, %v4092
        %v4094 = vpop.f32.mrb[0].mxu0
        %4095 = vmatprep.mubr.f32.mxu0 %v1702
        %4096 = vmatmul.mubr.f32.gmra.mrb[0].mxu0 %v1701
        %v4097 = vpop.f32.mrb[0].mxu0
        %v4098 = vadd.f32 %v3074, %v4097
        %v4099 = vpop.f32.mrb[0].mxu0
        %4100 = vmatprep.mubr.f32.mxu0 %v1706
        %4101 = vmatmul.mubr.f32.gmra.mrb[0].mxu0 %v1705
        %v4102 = vpop.f32.mrb[0].mxu0
        %v4103 = vadd.f32 %v3079, %v4102
        %v4104 = vpop.f32.mrb[0].mxu0
        %4105 = vmatprep.mubr.f32.mxu0 %v1710
        %4106 = vmatmul.mubr.f32.gmra.mrb[0].mxu0 %v1709
        %v4107 = vpop.f32.mrb[0].mxu0
        %v4108 = vadd.f32 %v3084, %v4107
        %v4109 = vpop.f32.mrb[0].mxu0
        %4110 = vmatprep.mubr.f32.mxu0 %v1714
        %4111 = vmatmul.mubr.f32.gmra.mrb[0].mxu0 %v1713
        %v4112 = vpop.f32.mrb[0].mxu0
        %v4113 = vadd.f32 %v3089, %v4112
        %v4114 = vpop.f32.mrb[0].mxu0
        %4115 = vmatprep.mubr.f32.mxu0 %v1718
        %4116 = vmatmul.mubr.f32.gmra.mrb[0].mxu0 %v1717
        %v4117 = vpop.f32.mrb[0].mxu0
        %v4118 = vadd.f32 %v3094, %v4117
        %v4119 = vpop.f32.mrb[0].mxu0
        %4120 = vmatprep.mubr.f32.mxu0 %v1722
        %4121 = vmatmul.mubr.f32.gmra.mrb[0].mxu0 %v1721
        %v4122 = vpop.f32.mrb[0].mxu0
        %v4123 = vadd.f32 %v3099, %v4122
        %v4124 = vpop.f32.mrb[0].mxu0
        %4125 = vmatprep.mubr.f32.mxu0 %v1726
        %4126 = vmatmul.mubr.f32.gmra.mrb[0].mxu0 %v1725
        %v4127 = vpop.f32.mrb[0].mxu0
        %v4128 = vadd.f32 %v3104, %v4127
        %v4129 = vpop.f32.mrb[0].mxu0
        %4130 = vmatprep.mubr.f32.mxu0 %v1730
        %4131 = vmatmul.mubr.f32.gmra.mrb[0].mxu0 %v1729
        %v4132 = vpop.f32.mrb[0].mxu0
        %v4133 = vadd.f32 %v3109, %v4132
        %v4134 = vpop.f32.mrb[0].mxu0
        %4135 = vmatprep.mubr.f32.mxu0 %v1734
        %4136 = vmatmul.mubr.f32.gmra.mrb[0].mxu0 %v1733
        %v4137 = vpop.f32.mrb[0].mxu0
        %v4138 = vadd.f32 %v3114, %v4137
        %v4139 = vpop.f32.mrb[0].mxu0
        %4140 = vmatprep.mubr.f32.mxu0 %v1738
        %4141 = vmatmul.mubr.f32.gmra.mrb[0].mxu0 %v1737
        %v4142 = vpop.f32.mrb[0].mxu0
        %v4143 = vadd.f32 %v3119, %v4142
        %v4144 = vpop.f32.mrb[0].mxu0
        %4145 = vmatprep.mubr.f32.mxu0 %v1742
        %4146 = vmatmul.mubr.f32.gmra.mrb[0].mxu0 %v1741
        %v4147 = vpop.f32.mrb[0].mxu0
        %v4148 = vadd.f32 %v3124, %v4147
        %v4149 = vpop.f32.mrb[0].mxu0
        %4150 = vmatprep.mubr.f32.mxu0 %v1746
        %4151 = vmatmul.mubr.f32.gmra.mrb[0].mxu0 %v1745
        %v4152 = vpop.f32.mrb[0].mxu0
        %v4153 = vadd.f32 %v3129, %v4152
        %v4154 = vpop.f32.mrb[0].mxu0
        %4155 = vmatprep.mubr.f32.mxu0 %v1750
        %4156 = vmatmul.mubr.f32.gmra.mrb[0].mxu0 %v1749
        %v4157 = vpop.f32.mrb[0].mxu0
        %v4158 = vadd.f32 %v3134, %v4157
        %v4159 = vpop.f32.mrb[0].mxu0
        %4160 = vmatprep.mubr.f32.mxu0 %v1754
        %4161 = vmatmul.mubr.f32.gmra.mrb[0].mxu0 %v1753
        %v4162 = vpop.f32.mrb[0].mxu0
        %v4163 = vadd.f32 %v3139, %v4162
        %v4164 = vpop.f32.mrb[0].mxu0
        %4165 = vmatprep.mubr.f32.mxu0 %v1758
        %4166 = vmatmul.mubr.f32.gmra.mrb[0].mxu0 %v1757
        %v4167 = vpop.f32.mrb[0].mxu0
        %v4168 = vadd.f32 %v3144, %v4167
        %v4169 = vpop.f32.mrb[0].mxu0
        %4170 = vmatprep.mubr.f32.mxu0 %v1762
        %4171 = vmatmul.mubr.f32.gmra.mrb[0].mxu0 %v1761
        %v4172 = vpop.f32.mrb[0].mxu0
        %v4173 = vadd.f32 %v3149, %v4172
        %v4174 = vpop.f32.mrb[0].mxu0
        %4175 = vmatprep.mubr.f32.mxu0 %v1766
        %4176 = vmatmul.mubr.f32.gmra.mrb[0].mxu0 %v1765
        %v4177 = vpop.f32.mrb[0].mxu0
        %v4178 = vadd.f32 %v3154, %v4177
        %v4179 = vpop.f32.mrb[0].mxu0
        %4180 = vmatprep.mubr.f32.mxu0 %v1770
        %4181 = vmatmul.mubr.f32.gmra.mrb[0].mxu0 %v1769
        %v4182 = vpop.f32.mrb[0].mxu0
        %v4183 = vadd.f32 %v3159, %v4182
        %v4184 = vpop.f32.mrb[0].mxu0
        %4185 = vmatprep.mubr.f32.mxu0 %v1774
        %4186 = vmatmul.mubr.f32.gmra.mrb[0].mxu0 %v1773
        %v4187 = vpop.f32.mrb[0].mxu0
        %v4188 = vadd.f32 %v3164, %v4187
        %v4189 = vpop.f32.mrb[0].mxu0
        %4190 = vmatprep.mubr.f32.mxu0 %v1778
        %4191 = vmatmul.mubr.f32.gmra.mrb[0].mxu0 %v1777
        %v4192 = vpop.f32.mrb[0].mxu0
        %v4193 = vadd.f32 %v3169, %v4192
        %v4194 = vpop.f32.mrb[0].mxu0
        %4195 = vmatprep.mubr.f32.mxu0 %v1782
        %4196 = vmatmul.mubr.f32.gmra.mrb[0].mxu0 %v1781
        %v4197 = vpop.f32.mrb[0].mxu0
        %v4198 = vadd.f32 %v3174, %v4197
        %v4199 = vpop.f32.mrb[0].mxu0
        %4200 = vmatprep.mubr.f32.mxu0 %v1786
        %4201 = vmatmul.mubr.f32.gmra.mrb[0].mxu0 %v1785
        %v4202 = vpop.f32.mrb[0].mxu0
        %v4203 = vadd.f32 %v3179, %v4202
        %v4204 = vpop.f32.mrb[0].mxu0
        %4205 = vmatprep.mubr.f32.mxu0 %v1790
        %4206 = vmatmul.mubr.f32.gmra.mrb[0].mxu0 %v1789
        %v4207 = vpop.f32.mrb[0].mxu0
        %v4208 = vadd.f32 %v3184, %v4207
        %v4209 = vpop.f32.mrb[0].mxu0
        %4210 = vmatprep.mubr.f32.mxu0 %v1794
        %4211 = vmatmul.mubr.f32.gmra.mrb[0].mxu0 %v1793
        %v4212 = vpop.f32.mrb[0].mxu0
        %v4213 = vadd.f32 %v3189, %v4212
        %v4214 = vpop.f32.mrb[0].mxu0
        %4215 = vmatprep.mubr.f32.mxu0 %v1798
        %4216 = vmatmul.mubr.f32.gmra.mrb[0].mxu0 %v1797
        %v4217 = vpop.f32.mrb[0].mxu0
        %v4218 = vadd.f32 %v3194, %v4217
        %v4219 = vpop.f32.mrb[0].mxu0
        %4220 = vmatprep.mubr.f32.mxu0 %v1802
        %4221 = vmatmul.mubr.f32.gmra.mrb[0].mxu0 %v1801
        %v4222 = vpop.f32.mrb[0].mxu0
        %v4223 = vadd.f32 %v3199, %v4222
        %v4224 = vpop.f32.mrb[0].mxu0
        %4225 = vmatprep.mubr.f32.mxu0 %v1806
        %4226 = vmatmul.mubr.f32.gmra.mrb[0].mxu0 %v1805
        %v4227 = vpop.f32.mrb[0].mxu0
        %v4228 = vadd.f32 %v3204, %v4227
        %v4229 = vpop.f32.mrb[0].mxu0
        %4230 = vmatprep.mubr.f32.mxu0 %v1810
        %4231 = vmatmul.mubr.f32.gmra.mrb[0].mxu0 %v1809
        %v4232 = vpop.f32.mrb[0].mxu0
        %v4233 = vadd.f32 %v3209, %v4232
        %v4234 = vpop.f32.mrb[0].mxu0
        %4235 = vmatprep.mubr.f32.mxu0 %v1814
        %4236 = vmatmul.mubr.f32.gmra.mrb[0].mxu0 %v1813
        %v4237 = vpop.f32.mrb[0].mxu0
        %v4238 = vadd.f32 %v3214, %v4237
        %v4239 = vpop.f32.mrb[0].mxu0
        %4240 = vmatprep.mubr.f32.mxu0 %v1818
        %4241 = vmatmul.mubr.f32.gmra.mrb[0].mxu0 %v1817
        %v4242 = vpop.f32.mrb[0].mxu0
        %v4243 = vadd.f32 %v3219, %v4242
        %v4244 = vpop.f32.mrb[0].mxu0
        %4245 = vmatprep.mubr.f32.mxu0 %v1822
        %4246 = vmatmul.mubr.f32.gmra.mrb[0].mxu0 %v1821
        %v4247 = vpop.f32.mrb[0].mxu0
        %v4248 = vadd.f32 %v3224, %v4247
        %v4249 = vpop.f32.mrb[0].mxu0
        %4250 = vmatprep.mubr.f32.mxu0 %v1826
        %4251 = vmatmul.mubr.f32.gmra.mrb[0].mxu0 %v1825
        %v4252 = vpop.f32.mrb[0].mxu0
        %v4253 = vadd.f32 %v3229, %v4252
        %v4254 = vpop.f32.mrb[0].mxu0
        %4255 = vmatprep.mubr.f32.mxu0 %v1830
        %4256 = vmatmul.mubr.f32.gmra.mrb[0].mxu0 %v1829
        %v4257 = vpop.f32.mrb[0].mxu0
        %v4258 = vadd.f32 %v3234, %v4257
        %v4259 = vpop.f32.mrb[0].mxu0
        %4260 = vmatprep.mubr.f32.mxu0 %v1834
        %4261 = vmatmul.mubr.f32.gmra.mrb[0].mxu0 %v1833
        %v4262 = vpop.f32.mrb[0].mxu0
        %v4263 = vadd.f32 %v3239, %v4262
        %v4264 = vpop.f32.mrb[0].mxu0
        %4265 = vmatprep.mubr.f32.mxu0 %v1838
        %4266 = vmatmul.mubr.f32.gmra.mrb[0].mxu0 %v1837
        %v4267 = vpop.f32.mrb[0].mxu0
        %v4268 = vadd.f32 %v3244, %v4267
        %v4269 = vpop.f32.mrb[0].mxu0
        %4270 = vmatprep.mubr.f32.mxu0 %v1842
        %4271 = vmatmul.mubr.f32.gmra.mrb[0].mxu0 %v1841
        %v4272 = vpop.f32.mrb[0].mxu0
        %v4273 = vadd.f32 %v3249, %v4272
        %v4274 = vpop.f32.mrb[0].mxu0
        %4275 = vmatprep.mubr.f32.mxu0 %v1846
        %4276 = vmatmul.mubr.f32.gmra.mrb[0].mxu0 %v1845
        %v4277 = vpop.f32.mrb[0].mxu0
        %v4278 = vadd.f32 %v3254, %v4277
        %v4279 = vpop.f32.mrb[0].mxu0
        %4280 = vmatprep.mubr.f32.mxu0 %v1850
        %4281 = vmatmul.mubr.f32.gmra.mrb[0].mxu0 %v1849
        %v4282 = vpop.f32.mrb[0].mxu0
        %v4283 = vadd.f32 %v3259, %v4282
        %v4284 = vpop.f32.mrb[0].mxu0
        %4285 = vdwg.mxu0
        %4286 = vmatprep.subr.mxu0 0.0
        %4287 = vmatpush1.msra.mxu0 %v1885
        %4288 = vmatprep.subr.mxu0 0.0
        %4289 = vmatpush1.msra.mxu0 %v1886
        %4290 = vmatprep.subr.mxu0 0.0
        %4291 = vmatpush1.msra.mxu0 %v1887
        %4292 = vmatprep.subr.mxu0 0.0
        %4293 = vmatpush1.msra.mxu0 %v1888
        %4294 = vmatprep.subr.mxu0 0.0
        %4295 = vmatpush1.msra.mxu0 %v1889
        %4296 = vmatprep.subr.mxu0 0.0
        %4297 = vmatpush1.msra.mxu0 %v1890
        %4298 = vmatprep.subr.mxu0 0.0
        %4299 = vmatpush1.msra.mxu0 %v1891
        %4300 = vmatprep.subr.mxu0 0.0
        %4301 = vmatpush1.msra.mxu0 %v1892
        %4302 = vmatprep.subr.mxu0 0.0
        %4303 = vmatpush1.msra.mxu0 %v1893
        %4304 = vmatprep.subr.mxu0 0.0
        %4305 = vmatpush1.msra.mxu0 %v1894
        %4306 = vmatprep.subr.mxu0 0.0
        %4307 = vmatpush1.msra.mxu0 %v1895
        %4308 = vmatprep.subr.mxu0 0.0
        %4309 = vmatpush1.msra.mxu0 %v1896
        %4310 = vmatprep.subr.mxu0 0.0
        %4311 = vmatpush1.msra.mxu0 %v1897
        %4312 = vmatprep.subr.mxu0 0.0
        %4313 = vmatpush1.msra.mxu0 %v1898
        %4314 = vmatprep.subr.mxu0 0.0
        %4315 = vmatpush1.msra.mxu0 %v1899
        %4316 = vmatprep.subr.mxu0 0.0
        %4317 = vmatpush1.msra.mxu0 %v1900
        %4318 = vmatprep.subr.mxu0 0.0
        %4319 = vmatpush1.msra.mxu0 %v1901
        %4320 = vmatprep.subr.mxu0 0.0
        %4321 = vmatpush1.msra.mxu0 %v1902
        %4322 = vmatprep.subr.mxu0 0.0
        %4323 = vmatpush1.msra.mxu0 %v1903
        %4324 = vmatprep.subr.mxu0 0.0
        %4325 = vmatpush1.msra.mxu0 %v1904
        %4326 = vmatprep.subr.mxu0 0.0
        %4327 = vmatpush1.msra.mxu0 %v1905
        %4328 = vmatprep.subr.mxu0 0.0
        %4329 = vmatpush1.msra.mxu0 %v1906
        %4330 = vmatprep.subr.mxu0 0.0
        %4331 = vmatpush1.msra.mxu0 %v1907
        %4332 = vmatprep.subr.mxu0 0.0
        %4333 = vmatpush1.msra.mxu0 %v1908
        %4334 = vmatprep.subr.mxu0 0.0
        %4335 = vmatpush1.msra.mxu0 %v1909
        %4336 = vmatprep.subr.mxu0 0.0
        %4337 = vmatpush1.msra.mxu0 %v1910
        %4338 = vmatprep.subr.mxu0 0.0
        %4339 = vmatpush1.msra.mxu0 %v1911
        %4340 = vmatprep.subr.mxu0 0.0
        %4341 = vmatpush1.msra.mxu0 %v1912
        %4342 = vmatprep.subr.mxu0 0.0
        %4343 = vmatpush1.msra.mxu0 %v1913
        %4344 = vmatprep.subr.mxu0 0.0
        %4345 = vmatpush1.msra.mxu0 %v1914
        %4346 = vmatprep.subr.mxu0 0.0
        %4347 = vmatpush1.msra.mxu0 %v1915
        %4348 = vmatprep.subr.mxu0 0.0
        %4349 = vmatpush1.msra.mxu0 %v1916
        %4350 = vmatprep.mubr.f32.mxu0 %v1088
        %4351 = vmatmul.mubr.f32.gmra.mrb[0].mxu0 %v1087
        %v4352 = vpop.f32.mrb[0].mxu0
        %v4353 = vadd.f32 %v3328, %v4352
        %v4354 = vpop.f32.mrb[0].mxu0
        %4355 = vmatprep.mubr.f32.mxu0 %v1092
        %4356 = vmatmul.mubr.f32.gmra.mrb[0].mxu0 %v1091
        %v4357 = vpop.f32.mrb[0].mxu0
        %v4358 = vadd.f32 %v3333, %v4357
        %v4359 = vpop.f32.mrb[0].mxu0
        %4360 = vmatprep.mubr.f32.mxu0 %v1096
        %4361 = vmatmul.mubr.f32.gmra.mrb[0].mxu0 %v1095
        %v4362 = vpop.f32.mrb[0].mxu0
        %v4363 = vadd.f32 %v3338, %v4362
        %v4364 = vpop.f32.mrb[0].mxu0
        %4365 = vmatprep.mubr.f32.mxu0 %v1100
        %4366 = vmatmul.mubr.f32.gmra.mrb[0].mxu0 %v1099
        %v4367 = vpop.f32.mrb[0].mxu0
        %v4368 = vadd.f32 %v3343, %v4367
        %v4369 = vpop.f32.mrb[0].mxu0
        %4370 = vmatprep.mubr.f32.mxu0 %v1104
        %4371 = vmatmul.mubr.f32.gmra.mrb[0].mxu0 %v1103
        %v4372 = vpop.f32.mrb[0].mxu0
        %v4373 = vadd.f32 %v3348, %v4372
        %v4374 = vpop.f32.mrb[0].mxu0
        %4375 = vmatprep.mubr.f32.mxu0 %v1108
        %4376 = vmatmul.mubr.f32.gmra.mrb[0].mxu0 %v1107
        %v4377 = vpop.f32.mrb[0].mxu0
        %v4378 = vadd.f32 %v3353, %v4377
        %v4379 = vpop.f32.mrb[0].mxu0
        %4380 = vmatprep.mubr.f32.mxu0 %v1112
        %4381 = vmatmul.mubr.f32.gmra.mrb[0].mxu0 %v1111
        %v4382 = vpop.f32.mrb[0].mxu0
        %v4383 = vadd.f32 %v3358, %v4382
        %v4384 = vpop.f32.mrb[0].mxu0
        %4385 = vmatprep.mubr.f32.mxu0 %v1116
        %4386 = vmatmul.mubr.f32.gmra.mrb[0].mxu0 %v1115
        %v4387 = vpop.f32.mrb[0].mxu0
        %v4388 = vadd.f32 %v3363, %v4387
        %v4389 = vpop.f32.mrb[0].mxu0
        %4390 = vmatprep.mubr.f32.mxu0 %v1120
        %4391 = vmatmul.mubr.f32.gmra.mrb[0].mxu0 %v1119
        %v4392 = vpop.f32.mrb[0].mxu0
        %v4393 = vadd.f32 %v3368, %v4392
        %v4394 = vpop.f32.mrb[0].mxu0
        %4395 = vmatprep.mubr.f32.mxu0 %v1124
        %4396 = vmatmul.mubr.f32.gmra.mrb[0].mxu0 %v1123
        %v4397 = vpop.f32.mrb[0].mxu0
        %v4398 = vadd.f32 %v3373, %v4397
        %v4399 = vpop.f32.mrb[0].mxu0
        %4400 = vmatprep.mubr.f32.mxu0 %v1128
        %4401 = vmatmul.mubr.f32.gmra.mrb[0].mxu0 %v1127
        %v4402 = vpop.f32.mrb[0].mxu0
        %v4403 = vadd.f32 %v3378, %v4402
        %v4404 = vpop.f32.mrb[0].mxu0
        %4405 = vmatprep.mubr.f32.mxu0 %v1132
        %4406 = vmatmul.mubr.f32.gmra.mrb[0].mxu0 %v1131
        %v4407 = vpop.f32.mrb[0].mxu0
        %v4408 = vadd.f32 %v3383, %v4407
        %v4409 = vpop.f32.mrb[0].mxu0
        %4410 = vmatprep.mubr.f32.mxu0 %v1136
        %4411 = vmatmul.mubr.f32.gmra.mrb[0].mxu0 %v1135
        %v4412 = vpop.f32.mrb[0].mxu0
        %v4413 = vadd.f32 %v3388, %v4412
        %v4414 = vpop.f32.mrb[0].mxu0
        %4415 = vmatprep.mubr.f32.mxu0 %v1140
        %4416 = vmatmul.mubr.f32.gmra.mrb[0].mxu0 %v1139
        %v4417 = vpop.f32.mrb[0].mxu0
        %v4418 = vadd.f32 %v3393, %v4417
        %v4419 = vpop.f32.mrb[0].mxu0
        %4420 = vmatprep.mubr.f32.mxu0 %v1144
        %4421 = vmatmul.mubr.f32.gmra.mrb[0].mxu0 %v1143
        %v4422 = vpop.f32.mrb[0].mxu0
        %v4423 = vadd.f32 %v3398, %v4422
        %v4424 = vpop.f32.mrb[0].mxu0
        %4425 = vmatprep.mubr.f32.mxu0 %v1148
        %4426 = vmatmul.mubr.f32.gmra.mrb[0].mxu0 %v1147
        %v4427 = vpop.f32.mrb[0].mxu0
        %v4428 = vadd.f32 %v3403, %v4427
        %v4429 = vpop.f32.mrb[0].mxu0
        %4430 = vmatprep.mubr.f32.mxu0 %v1152
        %4431 = vmatmul.mubr.f32.gmra.mrb[0].mxu0 %v1151
        %v4432 = vpop.f32.mrb[0].mxu0
        %v4433 = vadd.f32 %v3408, %v4432
        %v4434 = vpop.f32.mrb[0].mxu0
        %4435 = vmatprep.mubr.f32.mxu0 %v1156
        %4436 = vmatmul.mubr.f32.gmra.mrb[0].mxu0 %v1155
        %v4437 = vpop.f32.mrb[0].mxu0
        %v4438 = vadd.f32 %v3413, %v4437
        %v4439 = vpop.f32.mrb[0].mxu0
        %4440 = vmatprep.mubr.f32.mxu0 %v1160
        %4441 = vmatmul.mubr.f32.gmra.mrb[0].mxu0 %v1159
        %v4442 = vpop.f32.mrb[0].mxu0
        %v4443 = vadd.f32 %v3418, %v4442
        %v4444 = vpop.f32.mrb[0].mxu0
        %4445 = vmatprep.mubr.f32.mxu0 %v1164
        %4446 = vmatmul.mubr.f32.gmra.mrb[0].mxu0 %v1163
        %v4447 = vpop.f32.mrb[0].mxu0
        %v4448 = vadd.f32 %v3423, %v4447
        %v4449 = vpop.f32.mrb[0].mxu0
        %4450 = vmatprep.mubr.f32.mxu0 %v1168
        %4451 = vmatmul.mubr.f32.gmra.mrb[0].mxu0 %v1167
        %v4452 = vpop.f32.mrb[0].mxu0
        %v4453 = vadd.f32 %v3428, %v4452
        %v4454 = vpop.f32.mrb[0].mxu0
        %4455 = vmatprep.mubr.f32.mxu0 %v1172
        %4456 = vmatmul.mubr.f32.gmra.mrb[0].mxu0 %v1171
        %v4457 = vpop.f32.mrb[0].mxu0
        %v4458 = vadd.f32 %v3433, %v4457
        %v4459 = vpop.f32.mrb[0].mxu0
        %4460 = vmatprep.mubr.f32.mxu0 %v1176
        %4461 = vmatmul.mubr.f32.gmra.mrb[0].mxu0 %v1175
        %v4462 = vpop.f32.mrb[0].mxu0
        %v4463 = vadd.f32 %v3438, %v4462
        %v4464 = vpop.f32.mrb[0].mxu0
        %4465 = vmatprep.mubr.f32.mxu0 %v1180
        %4466 = vmatmul.mubr.f32.gmra.mrb[0].mxu0 %v1179
        %v4467 = vpop.f32.mrb[0].mxu0
        %v4468 = vadd.f32 %v3443, %v4467
        %v4469 = vpop.f32.mrb[0].mxu0
        %4470 = vmatprep.mubr.f32.mxu0 %v1184
        %4471 = vmatmul.mubr.f32.gmra.mrb[0].mxu0 %v1183
        %v4472 = vpop.f32.mrb[0].mxu0
        %v4473 = vadd.f32 %v3448, %v4472
        %v4474 = vpop.f32.mrb[0].mxu0
        %4475 = vmatprep.mubr.f32.mxu0 %v1188
        %4476 = vmatmul.mubr.f32.gmra.mrb[0].mxu0 %v1187
        %v4477 = vpop.f32.mrb[0].mxu0
        %v4478 = vadd.f32 %v3453, %v4477
        %v4479 = vpop.f32.mrb[0].mxu0
        %4480 = vmatprep.mubr.f32.mxu0 %v1192
        %4481 = vmatmul.mubr.f32.gmra.mrb[0].mxu0 %v1191
        %v4482 = vpop.f32.mrb[0].mxu0
        %v4483 = vadd.f32 %v3458, %v4482
        %v4484 = vpop.f32.mrb[0].mxu0
        %4485 = vmatprep.mubr.f32.mxu0 %v1196
        %4486 = vmatmul.mubr.f32.gmra.mrb[0].mxu0 %v1195
        %v4487 = vpop.f32.mrb[0].mxu0
        %v4488 = vadd.f32 %v3463, %v4487
        %v4489 = vpop.f32.mrb[0].mxu0
        %4490 = vmatprep.mubr.f32.mxu0 %v1200
        %4491 = vmatmul.mubr.f32.gmra.mrb[0].mxu0 %v1199
        %v4492 = vpop.f32.mrb[0].mxu0
        %v4493 = vadd.f32 %v3468, %v4492
        %v4494 = vpop.f32.mrb[0].mxu0
        %4495 = vmatprep.mubr.f32.mxu0 %v1204
        %4496 = vmatmul.mubr.f32.gmra.mrb[0].mxu0 %v1203
        %v4497 = vpop.f32.mrb[0].mxu0
        %v4498 = vadd.f32 %v3473, %v4497
        %v4499 = vpop.f32.mrb[0].mxu0
        %4500 = vmatprep.mubr.f32.mxu0 %v1208
        %4501 = vmatmul.mubr.f32.gmra.mrb[0].mxu0 %v1207
        %v4502 = vpop.f32.mrb[0].mxu0
        %v4503 = vadd.f32 %v3478, %v4502
        %v4504 = vpop.f32.mrb[0].mxu0
        %4505 = vmatprep.mubr.f32.mxu0 %v1212
        %4506 = vmatmul.mubr.f32.gmra.mrb[0].mxu0 %v1211
        %v4507 = vpop.f32.mrb[0].mxu0
        %v4508 = vadd.f32 %v3483, %v4507
        %v4509 = vpop.f32.mrb[0].mxu0
        %4510 = vmatprep.mubr.f32.mxu0 %v1216
        %4511 = vmatmul.mubr.f32.gmra.mrb[0].mxu0 %v1215
        %v4512 = vpop.f32.mrb[0].mxu0
        %v4513 = vadd.f32 %v3488, %v4512
        %v4514 = vpop.f32.mrb[0].mxu0
        %4515 = vmatprep.mubr.f32.mxu0 %v1220
        %4516 = vmatmul.mubr.f32.gmra.mrb[0].mxu0 %v1219
        %v4517 = vpop.f32.mrb[0].mxu0
        %v4518 = vadd.f32 %v3493, %v4517
        %v4519 = vpop.f32.mrb[0].mxu0
        %4520 = vmatprep.mubr.f32.mxu0 %v1224
        %4521 = vmatmul.mubr.f32.gmra.mrb[0].mxu0 %v1223
        %v4522 = vpop.f32.mrb[0].mxu0
        %v4523 = vadd.f32 %v3498, %v4522
        %v4524 = vpop.f32.mrb[0].mxu0
        %4525 = vmatprep.mubr.f32.mxu0 %v1228
        %4526 = vmatmul.mubr.f32.gmra.mrb[0].mxu0 %v1227
        %v4527 = vpop.f32.mrb[0].mxu0
        %v4528 = vadd.f32 %v3503, %v4527
        %v4529 = vpop.f32.mrb[0].mxu0
        %4530 = vmatprep.mubr.f32.mxu0 %v1232
        %4531 = vmatmul.mubr.f32.gmra.mrb[0].mxu0 %v1231
        %v4532 = vpop.f32.mrb[0].mxu0
        %v4533 = vadd.f32 %v3508, %v4532
        %v4534 = vpop.f32.mrb[0].mxu0
        %4535 = vmatprep.mubr.f32.mxu0 %v1236
        %4536 = vmatmul.mubr.f32.gmra.mrb[0].mxu0 %v1235
        %v4537 = vpop.f32.mrb[0].mxu0
        %v4538 = vadd.f32 %v3513, %v4537
        %v4539 = vpop.f32.mrb[0].mxu0
        %4540 = vmatprep.mubr.f32.mxu0 %v1240
        %4541 = vmatmul.mubr.f32.gmra.mrb[0].mxu0 %v1239
        %v4542 = vpop.f32.mrb[0].mxu0
        %v4543 = vadd.f32 %v3518, %v4542
        %v4544 = vpop.f32.mrb[0].mxu0
        %4545 = vmatprep.mubr.f32.mxu0 %v1244
        %4546 = vmatmul.mubr.f32.gmra.mrb[0].mxu0 %v1243
        %v4547 = vpop.f32.mrb[0].mxu0
        %v4548 = vadd.f32 %v3523, %v4547
        %v4549 = vpop.f32.mrb[0].mxu0
        %4550 = vmatprep.mubr.f32.mxu0 %v1248
        %4551 = vmatmul.mubr.f32.gmra.mrb[0].mxu0 %v1247
        %v4552 = vpop.f32.mrb[0].mxu0
        %v4553 = vadd.f32 %v3528, %v4552
        %v4554 = vpop.f32.mrb[0].mxu0
        %4555 = vmatprep.mubr.f32.mxu0 %v1252
        %4556 = vmatmul.mubr.f32.gmra.mrb[0].mxu0 %v1251
        %v4557 = vpop.f32.mrb[0].mxu0
        %v4558 = vadd.f32 %v3533, %v4557
        %v4559 = vpop.f32.mrb[0].mxu0
        %4560 = vmatprep.mubr.f32.mxu0 %v1256
        %4561 = vmatmul.mubr.f32.gmra.mrb[0].mxu0 %v1255
        %v4562 = vpop.f32.mrb[0].mxu0
        %v4563 = vadd.f32 %v3538, %v4562
        %v4564 = vpop.f32.mrb[0].mxu0
        %4565 = vmatprep.mubr.f32.mxu0 %v1260
        %4566 = vmatmul.mubr.f32.gmra.mrb[0].mxu0 %v1259
        %v4567 = vpop.f32.mrb[0].mxu0
        %v4568 = vadd.f32 %v3543, %v4567
        %v4569 = vpop.f32.mrb[0].mxu0
        %4570 = vmatprep.mubr.f32.mxu0 %v1264
        %4571 = vmatmul.mubr.f32.gmra.mrb[0].mxu0 %v1263
        %v4572 = vpop.f32.mrb[0].mxu0
        %v4573 = vadd.f32 %v3548, %v4572
        %v4574 = vpop.f32.mrb[0].mxu0
        %4575 = vmatprep.mubr.f32.mxu0 %v1268
        %4576 = vmatmul.mubr.f32.gmra.mrb[0].mxu0 %v1267
        %v4577 = vpop.f32.mrb[0].mxu0
        %v4578 = vadd.f32 %v3553, %v4577
        %v4579 = vpop.f32.mrb[0].mxu0
        %4580 = vmatprep.mubr.f32.mxu0 %v1272
        %4581 = vmatmul.mubr.f32.gmra.mrb[0].mxu0 %v1271
        %v4582 = vpop.f32.mrb[0].mxu0
        %v4583 = vadd.f32 %v3558, %v4582
        %v4584 = vpop.f32.mrb[0].mxu0
        %4585 = vmatprep.mubr.f32.mxu0 %v1276
        %4586 = vmatmul.mubr.f32.gmra.mrb[0].mxu0 %v1275
        %v4587 = vpop.f32.mrb[0].mxu0
        %v4588 = vadd.f32 %v3563, %v4587
        %v4589 = vpop.f32.mrb[0].mxu0
        %4590 = vmatprep.mubr.f32.mxu0 %v1280
        %4591 = vmatmul.mubr.f32.gmra.mrb[0].mxu0 %v1279
        %v4592 = vpop.f32.mrb[0].mxu0
        %v4593 = vadd.f32 %v3568, %v4592
        %v4594 = vpop.f32.mrb[0].mxu0
        %4595 = vmatprep.mubr.f32.mxu0 %v1284
        %4596 = vmatmul.mubr.f32.gmra.mrb[0].mxu0 %v1283
        %v4597 = vpop.f32.mrb[0].mxu0
        %v4598 = vadd.f32 %v3573, %v4597
        %v4599 = vpop.f32.mrb[0].mxu0
        %4600 = vmatprep.mubr.f32.mxu0 %v1288
        %4601 = vmatmul.mubr.f32.gmra.mrb[0].mxu0 %v1287
        %v4602 = vpop.f32.mrb[0].mxu0
        %v4603 = vadd.f32 %v3578, %v4602
        %v4604 = vpop.f32.mrb[0].mxu0
        %4605 = vmatprep.mubr.f32.mxu0 %v1292
        %4606 = vmatmul.mubr.f32.gmra.mrb[0].mxu0 %v1291
        %v4607 = vpop.f32.mrb[0].mxu0
        %v4608 = vadd.f32 %v3583, %v4607
        %v4609 = vpop.f32.mrb[0].mxu0
        %4610 = vmatprep.mubr.f32.mxu0 %v1296
        %4611 = vmatmul.mubr.f32.gmra.mrb[0].mxu0 %v1295
        %v4612 = vpop.f32.mrb[0].mxu0
        %v4613 = vadd.f32 %v3588, %v4612
        %v4614 = vpop.f32.mrb[0].mxu0
        %4615 = vmatprep.mubr.f32.mxu0 %v1300
        %4616 = vmatmul.mubr.f32.gmra.mrb[0].mxu0 %v1299
        %v4617 = vpop.f32.mrb[0].mxu0
        %v4618 = vadd.f32 %v3593, %v4617
        %v4619 = vpop.f32.mrb[0].mxu0
        %4620 = vmatprep.mubr.f32.mxu0 %v1304
        %4621 = vmatmul.mubr.f32.gmra.mrb[0].mxu0 %v1303
        %v4622 = vpop.f32.mrb[0].mxu0
        %v4623 = vadd.f32 %v3598, %v4622
        %v4624 = vpop.f32.mrb[0].mxu0
        %4625 = vmatprep.mubr.f32.mxu0 %v1308
        %4626 = vmatmul.mubr.f32.gmra.mrb[0].mxu0 %v1307
        %v4627 = vpop.f32.mrb[0].mxu0
        %v4628 = vadd.f32 %v3603, %v4627
        %v4629 = vpop.f32.mrb[0].mxu0
        %4630 = vmatprep.mubr.f32.mxu0 %v1312
        %4631 = vmatmul.mubr.f32.gmra.mrb[0].mxu0 %v1311
        %v4632 = vpop.f32.mrb[0].mxu0
        %v4633 = vadd.f32 %v3608, %v4632
        %v4634 = vpop.f32.mrb[0].mxu0
        %4635 = vmatprep.mubr.f32.mxu0 %v1316
        %4636 = vmatmul.mubr.f32.gmra.mrb[0].mxu0 %v1315
        %v4637 = vpop.f32.mrb[0].mxu0
        %v4638 = vadd.f32 %v3613, %v4637
        %v4639 = vpop.f32.mrb[0].mxu0
        %4640 = vmatprep.mubr.f32.mxu0 %v1320
        %4641 = vmatmul.mubr.f32.gmra.mrb[0].mxu0 %v1319
        %v4642 = vpop.f32.mrb[0].mxu0
        %v4643 = vadd.f32 %v3618, %v4642
        %v4644 = vpop.f32.mrb[0].mxu0
        %4645 = vmatprep.mubr.f32.mxu0 %v1324
        %4646 = vmatmul.mubr.f32.gmra.mrb[0].mxu0 %v1323
        %v4647 = vpop.f32.mrb[0].mxu0
        %v4648 = vadd.f32 %v3623, %v4647
        %v4649 = vpop.f32.mrb[0].mxu0
        %4650 = vmatprep.mubr.f32.mxu0 %v1328
        %4651 = vmatmul.mubr.f32.gmra.mrb[0].mxu0 %v1327
        %v4652 = vpop.f32.mrb[0].mxu0
        %v4653 = vadd.f32 %v3628, %v4652
        %v4654 = vpop.f32.mrb[0].mxu0
        %4655 = vmatprep.mubr.f32.mxu0 %v1332
        %4656 = vmatmul.mubr.f32.gmra.mrb[0].mxu0 %v1331
        %v4657 = vpop.f32.mrb[0].mxu0
        %v4658 = vadd.f32 %v3633, %v4657
        %v4659 = vpop.f32.mrb[0].mxu0
        %4660 = vmatprep.mubr.f32.mxu0 %v1336
        %4661 = vmatmul.mubr.f32.gmra.mrb[0].mxu0 %v1335
        %v4662 = vpop.f32.mrb[0].mxu0
        %v4663 = vadd.f32 %v3638, %v4662
        %v4664 = vpop.f32.mrb[0].mxu0
        %4665 = vmatprep.mubr.f32.mxu0 %v1340
        %4666 = vmatmul.mubr.f32.gmra.mrb[0].mxu0 %v1339
        %v4667 = vpop.f32.mrb[0].mxu0
        %v4668 = vadd.f32 %v3643, %v4667
        %v4669 = vpop.f32.mrb[0].mxu0
        %4670 = vmatprep.mubr.f32.mxu0 %v1344
        %4671 = vmatmul.mubr.f32.gmra.mrb[0].mxu0 %v1343
        %v4672 = vpop.f32.mrb[0].mxu0
        %v4673 = vadd.f32 %v3648, %v4672
        %v4674 = vpop.f32.mrb[0].mxu0
        %4675 = vmatprep.mubr.f32.mxu0 %v1348
        %4676 = vmatmul.mubr.f32.gmra.mrb[0].mxu0 %v1347
        %v4677 = vpop.f32.mrb[0].mxu0
        %v4678 = vadd.f32 %v3653, %v4677
        %v4679 = vpop.f32.mrb[0].mxu0
        %4680 = vmatprep.mubr.f32.mxu0 %v1352
        %4681 = vmatmul.mubr.f32.gmra.mrb[0].mxu0 %v1351
        %v4682 = vpop.f32.mrb[0].mxu0
        %v4683 = vadd.f32 %v3658, %v4682
        %v4684 = vpop.f32.mrb[0].mxu0
        %4685 = vmatprep.mubr.f32.mxu0 %v1356
        %4686 = vmatmul.mubr.f32.gmra.mrb[0].mxu0 %v1355
        %v4687 = vpop.f32.mrb[0].mxu0
        %v4688 = vadd.f32 %v3663, %v4687
        %v4689 = vpop.f32.mrb[0].mxu0
        %4690 = vmatprep.mubr.f32.mxu0 %v1360
        %4691 = vmatmul.mubr.f32.gmra.mrb[0].mxu0 %v1359
        %v4692 = vpop.f32.mrb[0].mxu0
        %v4693 = vadd.f32 %v3668, %v4692
        %v4694 = vpop.f32.mrb[0].mxu0
        %4695 = vmatprep.mubr.f32.mxu0 %v1364
        %4696 = vmatmul.mubr.f32.gmra.mrb[0].mxu0 %v1363
        %v4697 = vpop.f32.mrb[0].mxu0
        %v4698 = vadd.f32 %v3673, %v4697
        %v4699 = vpop.f32.mrb[0].mxu0
        %4700 = vmatprep.mubr.f32.mxu0 %v1368
        %4701 = vmatmul.mubr.f32.gmra.mrb[0].mxu0 %v1367
        %v4702 = vpop.f32.mrb[0].mxu0
        %v4703 = vadd.f32 %v3678, %v4702
        %v4704 = vpop.f32.mrb[0].mxu0
        %4705 = vmatprep.mubr.f32.mxu0 %v1372
        %4706 = vmatmul.mubr.f32.gmra.mrb[0].mxu0 %v1371
        %v4707 = vpop.f32.mrb[0].mxu0
        %v4708 = vadd.f32 %v3683, %v4707
        %v4709 = vpop.f32.mrb[0].mxu0
        %4710 = vmatprep.mubr.f32.mxu0 %v1376
        %4711 = vmatmul.mubr.f32.gmra.mrb[0].mxu0 %v1375
        %v4712 = vpop.f32.mrb[0].mxu0
        %v4713 = vadd.f32 %v3688, %v4712
        %v4714 = vpop.f32.mrb[0].mxu0
        %4715 = vmatprep.mubr.f32.mxu0 %v1380
        %4716 = vmatmul.mubr.f32.gmra.mrb[0].mxu0 %v1379
        %v4717 = vpop.f32.mrb[0].mxu0
        %v4718 = vadd.f32 %v3693, %v4717
        %v4719 = vpop.f32.mrb[0].mxu0
        %4720 = vmatprep.mubr.f32.mxu0 %v1384
        %4721 = vmatmul.mubr.f32.gmra.mrb[0].mxu0 %v1383
        %v4722 = vpop.f32.mrb[0].mxu0
        %v4723 = vadd.f32 %v3698, %v4722
        %v4724 = vpop.f32.mrb[0].mxu0
        %4725 = vmatprep.mubr.f32.mxu0 %v1388
        %4726 = vmatmul.mubr.f32.gmra.mrb[0].mxu0 %v1387
        %v4727 = vpop.f32.mrb[0].mxu0
        %v4728 = vadd.f32 %v3703, %v4727
        %v4729 = vpop.f32.mrb[0].mxu0
        %4730 = vmatprep.mubr.f32.mxu0 %v1392
        %4731 = vmatmul.mubr.f32.gmra.mrb[0].mxu0 %v1391
        %v4732 = vpop.f32.mrb[0].mxu0
        %v4733 = vadd.f32 %v3708, %v4732
        %v4734 = vpop.f32.mrb[0].mxu0
        %4735 = vmatprep.mubr.f32.mxu0 %v1396
        %4736 = vmatmul.mubr.f32.gmra.mrb[0].mxu0 %v1395
        %v4737 = vpop.f32.mrb[0].mxu0
        %v4738 = vadd.f32 %v3713, %v4737
        %v4739 = vpop.f32.mrb[0].mxu0
        %4740 = vmatprep.mubr.f32.mxu0 %v1400
        %4741 = vmatmul.mubr.f32.gmra.mrb[0].mxu0 %v1399
        %v4742 = vpop.f32.mrb[0].mxu0
        %v4743 = vadd.f32 %v3718, %v4742
        %v4744 = vpop.f32.mrb[0].mxu0
        %4745 = vmatprep.mubr.f32.mxu0 %v1404
        %4746 = vmatmul.mubr.f32.gmra.mrb[0].mxu0 %v1403
        %v4747 = vpop.f32.mrb[0].mxu0
        %v4748 = vadd.f32 %v3723, %v4747
        %v4749 = vpop.f32.mrb[0].mxu0
        %4750 = vmatprep.mubr.f32.mxu0 %v1408
        %4751 = vmatmul.mubr.f32.gmra.mrb[0].mxu0 %v1407
        %v4752 = vpop.f32.mrb[0].mxu0
        %v4753 = vadd.f32 %v3728, %v4752
        %v4754 = vpop.f32.mrb[0].mxu0
        %4755 = vmatprep.mubr.f32.mxu0 %v1412
        %4756 = vmatmul.mubr.f32.gmra.mrb[0].mxu0 %v1411
        %v4757 = vpop.f32.mrb[0].mxu0
        %v4758 = vadd.f32 %v3733, %v4757
        %v4759 = vpop.f32.mrb[0].mxu0
        %4760 = vmatprep.mubr.f32.mxu0 %v1416
        %4761 = vmatmul.mubr.f32.gmra.mrb[0].mxu0 %v1415
        %v4762 = vpop.f32.mrb[0].mxu0
        %v4763 = vadd.f32 %v3738, %v4762
        %v4764 = vpop.f32.mrb[0].mxu0
        %4765 = vmatprep.mubr.f32.mxu0 %v1420
        %4766 = vmatmul.mubr.f32.gmra.mrb[0].mxu0 %v1419
        %v4767 = vpop.f32.mrb[0].mxu0
        %v4768 = vadd.f32 %v3743, %v4767
        %v4769 = vpop.f32.mrb[0].mxu0
        %4770 = vmatprep.mubr.f32.mxu0 %v1424
        %4771 = vmatmul.mubr.f32.gmra.mrb[0].mxu0 %v1423
        %v4772 = vpop.f32.mrb[0].mxu0
        %v4773 = vadd.f32 %v3748, %v4772
        %v4774 = vpop.f32.mrb[0].mxu0
        %4775 = vmatprep.mubr.f32.mxu0 %v1428
        %4776 = vmatmul.mubr.f32.gmra.mrb[0].mxu0 %v1427
        %v4777 = vpop.f32.mrb[0].mxu0
        %v4778 = vadd.f32 %v3753, %v4777
        %v4779 = vpop.f32.mrb[0].mxu0
        %4780 = vmatprep.mubr.f32.mxu0 %v1432
        %4781 = vmatmul.mubr.f32.gmra.mrb[0].mxu0 %v1431
        %v4782 = vpop.f32.mrb[0].mxu0
        %v4783 = vadd.f32 %v3758, %v4782
        %v4784 = vpop.f32.mrb[0].mxu0
        %4785 = vmatprep.mubr.f32.mxu0 %v1436
        %4786 = vmatmul.mubr.f32.gmra.mrb[0].mxu0 %v1435
        %v4787 = vpop.f32.mrb[0].mxu0
        %v4788 = vadd.f32 %v3763, %v4787
        %v4789 = vpop.f32.mrb[0].mxu0
        %4790 = vmatprep.mubr.f32.mxu0 %v1440
        %4791 = vmatmul.mubr.f32.gmra.mrb[0].mxu0 %v1439
        %v4792 = vpop.f32.mrb[0].mxu0
        %v4793 = vadd.f32 %v3768, %v4792
        %v4794 = vpop.f32.mrb[0].mxu0
        %4795 = vmatprep.mubr.f32.mxu0 %v1444
        %4796 = vmatmul.mubr.f32.gmra.mrb[0].mxu0 %v1443
        %v4797 = vpop.f32.mrb[0].mxu0
        %v4798 = vadd.f32 %v3773, %v4797
        %v4799 = vpop.f32.mrb[0].mxu0
        %4800 = vmatprep.mubr.f32.mxu0 %v1448
        %4801 = vmatmul.mubr.f32.gmra.mrb[0].mxu0 %v1447
        %v4802 = vpop.f32.mrb[0].mxu0
        %v4803 = vadd.f32 %v3778, %v4802
        %v4804 = vpop.f32.mrb[0].mxu0
        %4805 = vmatprep.mubr.f32.mxu0 %v1452
        %4806 = vmatmul.mubr.f32.gmra.mrb[0].mxu0 %v1451
        %v4807 = vpop.f32.mrb[0].mxu0
        %v4808 = vadd.f32 %v3783, %v4807
        %v4809 = vpop.f32.mrb[0].mxu0
        %4810 = vmatprep.mubr.f32.mxu0 %v1456
        %4811 = vmatmul.mubr.f32.gmra.mrb[0].mxu0 %v1455
        %v4812 = vpop.f32.mrb[0].mxu0
        %v4813 = vadd.f32 %v3788, %v4812
        %v4814 = vpop.f32.mrb[0].mxu0
        %4815 = vmatprep.mubr.f32.mxu0 %v1460
        %4816 = vmatmul.mubr.f32.gmra.mrb[0].mxu0 %v1459
        %v4817 = vpop.f32.mrb[0].mxu0
        %v4818 = vadd.f32 %v3793, %v4817
        %v4819 = vpop.f32.mrb[0].mxu0
        %4820 = vmatprep.mubr.f32.mxu0 %v1464
        %4821 = vmatmul.mubr.f32.gmra.mrb[0].mxu0 %v1463
        %v4822 = vpop.f32.mrb[0].mxu0
        %v4823 = vadd.f32 %v3798, %v4822
        %v4824 = vpop.f32.mrb[0].mxu0
        %4825 = vmatprep.mubr.f32.mxu0 %v1468
        %4826 = vmatmul.mubr.f32.gmra.mrb[0].mxu0 %v1467
        %v4827 = vpop.f32.mrb[0].mxu0
        %v4828 = vadd.f32 %v3803, %v4827
        %v4829 = vpop.f32.mrb[0].mxu0
        %4830 = vmatprep.mubr.f32.mxu0 %v1472
        %4831 = vmatmul.mubr.f32.gmra.mrb[0].mxu0 %v1471
        %v4832 = vpop.f32.mrb[0].mxu0
        %v4833 = vadd.f32 %v3808, %v4832
        %v4834 = vpop.f32.mrb[0].mxu0
        %4835 = vmatprep.mubr.f32.mxu0 %v1476
        %4836 = vmatmul.mubr.f32.gmra.mrb[0].mxu0 %v1475
        %v4837 = vpop.f32.mrb[0].mxu0
        %v4838 = vadd.f32 %v3813, %v4837
        %v4839 = vpop.f32.mrb[0].mxu0
        %4840 = vmatprep.mubr.f32.mxu0 %v1480
        %4841 = vmatmul.mubr.f32.gmra.mrb[0].mxu0 %v1479
        %v4842 = vpop.f32.mrb[0].mxu0
        %v4843 = vadd.f32 %v3818, %v4842
        %v4844 = vpop.f32.mrb[0].mxu0
        %4845 = vmatprep.mubr.f32.mxu0 %v1484
        %4846 = vmatmul.mubr.f32.gmra.mrb[0].mxu0 %v1483
        %v4847 = vpop.f32.mrb[0].mxu0
        %v4848 = vadd.f32 %v3823, %v4847
        %v4849 = vpop.f32.mrb[0].mxu0
        %4850 = vmatprep.mubr.f32.mxu0 %v1488
        %4851 = vmatmul.mubr.f32.gmra.mrb[0].mxu0 %v1487
        %v4852 = vpop.f32.mrb[0].mxu0
        %v4853 = vadd.f32 %v3828, %v4852
        %v4854 = vpop.f32.mrb[0].mxu0
        %4855 = vmatprep.mubr.f32.mxu0 %v1492
        %4856 = vmatmul.mubr.f32.gmra.mrb[0].mxu0 %v1491
        %v4857 = vpop.f32.mrb[0].mxu0
        %v4858 = vadd.f32 %v3833, %v4857
        %v4859 = vpop.f32.mrb[0].mxu0
        %4860 = vmatprep.mubr.f32.mxu0 %v1496
        %4861 = vmatmul.mubr.f32.gmra.mrb[0].mxu0 %v1495
        %v4862 = vpop.f32.mrb[0].mxu0
        %v4863 = vadd.f32 %v3838, %v4862
        %v4864 = vpop.f32.mrb[0].mxu0
        %4865 = vmatprep.mubr.f32.mxu0 %v1500
        %4866 = vmatmul.mubr.f32.gmra.mrb[0].mxu0 %v1499
        %v4867 = vpop.f32.mrb[0].mxu0
        %v4868 = vadd.f32 %v3843, %v4867
        %v4869 = vpop.f32.mrb[0].mxu0
        %4870 = vmatprep.mubr.f32.mxu0 %v1504
        %4871 = vmatmul.mubr.f32.gmra.mrb[0].mxu0 %v1503
        %v4872 = vpop.f32.mrb[0].mxu0
        %v4873 = vadd.f32 %v3848, %v4872
        %v4874 = vpop.f32.mrb[0].mxu0
        %4875 = vmatprep.mubr.f32.mxu0 %v1508
        %4876 = vmatmul.mubr.f32.gmra.mrb[0].mxu0 %v1507
        %v4877 = vpop.f32.mrb[0].mxu0
        %v4878 = vadd.f32 %v3853, %v4877
        %v4879 = vpop.f32.mrb[0].mxu0
        %4880 = vmatprep.mubr.f32.mxu0 %v1512
        %4881 = vmatmul.mubr.f32.gmra.mrb[0].mxu0 %v1511
        %v4882 = vpop.f32.mrb[0].mxu0
        %v4883 = vadd.f32 %v3858, %v4882
        %v4884 = vpop.f32.mrb[0].mxu0
        %4885 = vmatprep.mubr.f32.mxu0 %v1516
        %4886 = vmatmul.mubr.f32.gmra.mrb[0].mxu0 %v1515
        %v4887 = vpop.f32.mrb[0].mxu0
        %v4888 = vadd.f32 %v3863, %v4887
        %v4889 = vpop.f32.mrb[0].mxu0
        %4890 = vmatprep.mubr.f32.mxu0 %v1520
        %4891 = vmatmul.mubr.f32.gmra.mrb[0].mxu0 %v1519
        %v4892 = vpop.f32.mrb[0].mxu0
        %v4893 = vadd.f32 %v3868, %v4892
        %v4894 = vpop.f32.mrb[0].mxu0
        %4895 = vmatprep.mubr.f32.mxu0 %v1524
        %4896 = vmatmul.mubr.f32.gmra.mrb[0].mxu0 %v1523
        %v4897 = vpop.f32.mrb[0].mxu0
        %v4898 = vadd.f32 %v3873, %v4897
        %v4899 = vpop.f32.mrb[0].mxu0
        %4900 = vmatprep.mubr.f32.mxu0 %v1528
        %4901 = vmatmul.mubr.f32.gmra.mrb[0].mxu0 %v1527
        %v4902 = vpop.f32.mrb[0].mxu0
        %v4903 = vadd.f32 %v3878, %v4902
        %v4904 = vpop.f32.mrb[0].mxu0
        %4905 = vmatprep.mubr.f32.mxu0 %v1532
        %4906 = vmatmul.mubr.f32.gmra.mrb[0].mxu0 %v1531
        %v4907 = vpop.f32.mrb[0].mxu0
        %v4908 = vadd.f32 %v3883, %v4907
        %v4909 = vpop.f32.mrb[0].mxu0
        %4910 = vmatprep.mubr.f32.mxu0 %v1536
        %4911 = vmatmul.mubr.f32.gmra.mrb[0].mxu0 %v1535
        %v4912 = vpop.f32.mrb[0].mxu0
        %v4913 = vadd.f32 %v3888, %v4912
        %v4914 = vpop.f32.mrb[0].mxu0
        %4915 = vmatprep.mubr.f32.mxu0 %v1540
        %4916 = vmatmul.mubr.f32.gmra.mrb[0].mxu0 %v1539
        %v4917 = vpop.f32.mrb[0].mxu0
        %v4918 = vadd.f32 %v3893, %v4917
        %v4919 = vpop.f32.mrb[0].mxu0
        %4920 = vmatprep.mubr.f32.mxu0 %v1544
        %4921 = vmatmul.mubr.f32.gmra.mrb[0].mxu0 %v1543
        %v4922 = vpop.f32.mrb[0].mxu0
        %v4923 = vadd.f32 %v3898, %v4922
        %v4924 = vpop.f32.mrb[0].mxu0
        %4925 = vmatprep.mubr.f32.mxu0 %v1548
        %4926 = vmatmul.mubr.f32.gmra.mrb[0].mxu0 %v1547
        %v4927 = vpop.f32.mrb[0].mxu0
        %v4928 = vadd.f32 %v3903, %v4927
        %v4929 = vpop.f32.mrb[0].mxu0
        %4930 = vmatprep.mubr.f32.mxu0 %v1552
        %4931 = vmatmul.mubr.f32.gmra.mrb[0].mxu0 %v1551
        %v4932 = vpop.f32.mrb[0].mxu0
        %v4933 = vadd.f32 %v3908, %v4932
        %v4934 = vpop.f32.mrb[0].mxu0
        %4935 = vmatprep.mubr.f32.mxu0 %v1556
        %4936 = vmatmul.mubr.f32.gmra.mrb[0].mxu0 %v1555
        %v4937 = vpop.f32.mrb[0].mxu0
        %v4938 = vadd.f32 %v3913, %v4937
        %v4939 = vpop.f32.mrb[0].mxu0
        %4940 = vmatprep.mubr.f32.mxu0 %v1560
        %4941 = vmatmul.mubr.f32.gmra.mrb[0].mxu0 %v1559
        %v4942 = vpop.f32.mrb[0].mxu0
        %v4943 = vadd.f32 %v3918, %v4942
        %v4944 = vpop.f32.mrb[0].mxu0
        %4945 = vmatprep.mubr.f32.mxu0 %v1564
        %4946 = vmatmul.mubr.f32.gmra.mrb[0].mxu0 %v1563
        %v4947 = vpop.f32.mrb[0].mxu0
        %v4948 = vadd.f32 %v3923, %v4947
        %v4949 = vpop.f32.mrb[0].mxu0
        %4950 = vmatprep.mubr.f32.mxu0 %v1568
        %4951 = vmatmul.mubr.f32.gmra.mrb[0].mxu0 %v1567
        %v4952 = vpop.f32.mrb[0].mxu0
        %v4953 = vadd.f32 %v3928, %v4952
        %v4954 = vpop.f32.mrb[0].mxu0
        %4955 = vmatprep.mubr.f32.mxu0 %v1572
        %4956 = vmatmul.mubr.f32.gmra.mrb[0].mxu0 %v1571
        %v4957 = vpop.f32.mrb[0].mxu0
        %v4958 = vadd.f32 %v3933, %v4957
        %v4959 = vpop.f32.mrb[0].mxu0
        %4960 = vmatprep.mubr.f32.mxu0 %v1576
        %4961 = vmatmul.mubr.f32.gmra.mrb[0].mxu0 %v1575
        %v4962 = vpop.f32.mrb[0].mxu0
        %v4963 = vadd.f32 %v3938, %v4962
        %v4964 = vpop.f32.mrb[0].mxu0
        %4965 = vmatprep.mubr.f32.mxu0 %v1580
        %4966 = vmatmul.mubr.f32.gmra.mrb[0].mxu0 %v1579
        %v4967 = vpop.f32.mrb[0].mxu0
        %v4968 = vadd.f32 %v3943, %v4967
        %v4969 = vpop.f32.mrb[0].mxu0
        %4970 = vmatprep.mubr.f32.mxu0 %v1584
        %4971 = vmatmul.mubr.f32.gmra.mrb[0].mxu0 %v1583
        %v4972 = vpop.f32.mrb[0].mxu0
        %v4973 = vadd.f32 %v3948, %v4972
        %v4974 = vpop.f32.mrb[0].mxu0
        %4975 = vmatprep.mubr.f32.mxu0 %v1588
        %4976 = vmatmul.mubr.f32.gmra.mrb[0].mxu0 %v1587
        %v4977 = vpop.f32.mrb[0].mxu0
        %v4978 = vadd.f32 %v3953, %v4977
        %v4979 = vpop.f32.mrb[0].mxu0
        %4980 = vmatprep.mubr.f32.mxu0 %v1592
        %4981 = vmatmul.mubr.f32.gmra.mrb[0].mxu0 %v1591
        %v4982 = vpop.f32.mrb[0].mxu0
        %v4983 = vadd.f32 %v3958, %v4982
        %v4984 = vpop.f32.mrb[0].mxu0
        %4985 = vmatprep.mubr.f32.mxu0 %v1596
        %4986 = vmatmul.mubr.f32.gmra.mrb[0].mxu0 %v1595
        %v4987 = vpop.f32.mrb[0].mxu0
        %v4988 = vadd.f32 %v3963, %v4987
        %v4989 = vpop.f32.mrb[0].mxu0
        %4990 = vmatprep.mubr.f32.mxu0 %v1600
        %4991 = vmatmul.mubr.f32.gmra.mrb[0].mxu0 %v1599
        %v4992 = vpop.f32.mrb[0].mxu0
        %v4993 = vadd.f32 %v3968, %v4992
        %v4994 = vpop.f32.mrb[0].mxu0
        %4995 = vmatprep.mubr.f32.mxu0 %v1604
        %4996 = vmatmul.mubr.f32.gmra.mrb[0].mxu0 %v1603
        %v4997 = vpop.f32.mrb[0].mxu0
        %v4998 = vadd.f32 %v3973, %v4997
        %v4999 = vpop.f32.mrb[0].mxu0
        %5000 = vmatprep.mubr.f32.mxu0 %v1608
        %5001 = vmatmul.mubr.f32.gmra.mrb[0].mxu0 %v1607
        %v5002 = vpop.f32.mrb[0].mxu0
        %v5003 = vadd.f32 %v3978, %v5002
        %v5004 = vpop.f32.mrb[0].mxu0
        %5005 = vmatprep.mubr.f32.mxu0 %v1612
        %5006 = vmatmul.mubr.f32.gmra.mrb[0].mxu0 %v1611
        %v5007 = vpop.f32.mrb[0].mxu0
        %v5008 = vadd.f32 %v3983, %v5007
        %v5009 = vpop.f32.mrb[0].mxu0
        %5010 = vmatprep.mubr.f32.mxu0 %v1616
        %5011 = vmatmul.mubr.f32.gmra.mrb[0].mxu0 %v1615
        %v5012 = vpop.f32.mrb[0].mxu0
        %v5013 = vadd.f32 %v3988, %v5012
        %v5014 = vpop.f32.mrb[0].mxu0
        %5015 = vmatprep.mubr.f32.mxu0 %v1620
        %5016 = vmatmul.mubr.f32.gmra.mrb[0].mxu0 %v1619
        %v5017 = vpop.f32.mrb[0].mxu0
        %v5018 = vadd.f32 %v3993, %v5017
        %v5019 = vpop.f32.mrb[0].mxu0
        %5020 = vmatprep.mubr.f32.mxu0 %v1624
        %5021 = vmatmul.mubr.f32.gmra.mrb[0].mxu0 %v1623
        %v5022 = vpop.f32.mrb[0].mxu0
        %v5023 = vadd.f32 %v3998, %v5022
        %v5024 = vpop.f32.mrb[0].mxu0
        %5025 = vmatprep.mubr.f32.mxu0 %v1628
        %5026 = vmatmul.mubr.f32.gmra.mrb[0].mxu0 %v1627
        %v5027 = vpop.f32.mrb[0].mxu0
        %v5028 = vadd.f32 %v4003, %v5027
        %v5029 = vpop.f32.mrb[0].mxu0
        %5030 = vmatprep.mubr.f32.mxu0 %v1632
        %5031 = vmatmul.mubr.f32.gmra.mrb[0].mxu0 %v1631
        %v5032 = vpop.f32.mrb[0].mxu0
        %v5033 = vadd.f32 %v4008, %v5032
        %v5034 = vpop.f32.mrb[0].mxu0
        %5035 = vmatprep.mubr.f32.mxu0 %v1636
        %5036 = vmatmul.mubr.f32.gmra.mrb[0].mxu0 %v1635
        %v5037 = vpop.f32.mrb[0].mxu0
        %v5038 = vadd.f32 %v4013, %v5037
        %v5039 = vpop.f32.mrb[0].mxu0
        %5040 = vmatprep.mubr.f32.mxu0 %v1640
        %5041 = vmatmul.mubr.f32.gmra.mrb[0].mxu0 %v1639
        %v5042 = vpop.f32.mrb[0].mxu0
        %v5043 = vadd.f32 %v4018, %v5042
        %v5044 = vpop.f32.mrb[0].mxu0
        %5045 = vmatprep.mubr.f32.mxu0 %v1644
        %5046 = vmatmul.mubr.f32.gmra.mrb[0].mxu0 %v1643
        %v5047 = vpop.f32.mrb[0].mxu0
        %v5048 = vadd.f32 %v4023, %v5047
        %v5049 = vpop.f32.mrb[0].mxu0
        %5050 = vmatprep.mubr.f32.mxu0 %v1648
        %5051 = vmatmul.mubr.f32.gmra.mrb[0].mxu0 %v1647
        %v5052 = vpop.f32.mrb[0].mxu0
        %v5053 = vadd.f32 %v4028, %v5052
        %v5054 = vpop.f32.mrb[0].mxu0
        %5055 = vmatprep.mubr.f32.mxu0 %v1652
        %5056 = vmatmul.mubr.f32.gmra.mrb[0].mxu0 %v1651
        %v5057 = vpop.f32.mrb[0].mxu0
        %v5058 = vadd.f32 %v4033, %v5057
        %v5059 = vpop.f32.mrb[0].mxu0
        %5060 = vmatprep.mubr.f32.mxu0 %v1656
        %5061 = vmatmul.mubr.f32.gmra.mrb[0].mxu0 %v1655
        %v5062 = vpop.f32.mrb[0].mxu0
        %v5063 = vadd.f32 %v4038, %v5062
        %v5064 = vpop.f32.mrb[0].mxu0
        %5065 = vmatprep.mubr.f32.mxu0 %v1660
        %5066 = vmatmul.mubr.f32.gmra.mrb[0].mxu0 %v1659
        %v5067 = vpop.f32.mrb[0].mxu0
        %v5068 = vadd.f32 %v4043, %v5067
        %v5069 = vpop.f32.mrb[0].mxu0
        %5070 = vmatprep.mubr.f32.mxu0 %v1664
        %5071 = vmatmul.mubr.f32.gmra.mrb[0].mxu0 %v1663
        %v5072 = vpop.f32.mrb[0].mxu0
        %v5073 = vadd.f32 %v4048, %v5072
        %v5074 = vpop.f32.mrb[0].mxu0
        %5075 = vmatprep.mubr.f32.mxu0 %v1668
        %5076 = vmatmul.mubr.f32.gmra.mrb[0].mxu0 %v1667
        %v5077 = vpop.f32.mrb[0].mxu0
        %v5078 = vadd.f32 %v4053, %v5077
        %v5079 = vpop.f32.mrb[0].mxu0
        %5080 = vmatprep.mubr.f32.mxu0 %v1672
        %5081 = vmatmul.mubr.f32.gmra.mrb[0].mxu0 %v1671
        %v5082 = vpop.f32.mrb[0].mxu0
        %v5083 = vadd.f32 %v4058, %v5082
        %v5084 = vpop.f32.mrb[0].mxu0
        %5085 = vmatprep.mubr.f32.mxu0 %v1676
        %5086 = vmatmul.mubr.f32.gmra.mrb[0].mxu0 %v1675
        %v5087 = vpop.f32.mrb[0].mxu0
        %v5088 = vadd.f32 %v4063, %v5087
        %v5089 = vpop.f32.mrb[0].mxu0
        %5090 = vmatprep.mubr.f32.mxu0 %v1680
        %5091 = vmatmul.mubr.f32.gmra.mrb[0].mxu0 %v1679
        %v5092 = vpop.f32.mrb[0].mxu0
        %v5093 = vadd.f32 %v4068, %v5092
        %v5094 = vpop.f32.mrb[0].mxu0
        %5095 = vmatprep.mubr.f32.mxu0 %v1684
        %5096 = vmatmul.mubr.f32.gmra.mrb[0].mxu0 %v1683
        %v5097 = vpop.f32.mrb[0].mxu0
        %v5098 = vadd.f32 %v4073, %v5097
        %v5099 = vpop.f32.mrb[0].mxu0
        %5100 = vmatprep.mubr.f32.mxu0 %v1688
        %5101 = vmatmul.mubr.f32.gmra.mrb[0].mxu0 %v1687
        %v5102 = vpop.f32.mrb[0].mxu0
        %v5103 = vadd.f32 %v4078, %v5102
        %v5104 = vpop.f32.mrb[0].mxu0
        %5105 = vmatprep.mubr.f32.mxu0 %v1692
        %5106 = vmatmul.mubr.f32.gmra.mrb[0].mxu0 %v1691
        %v5107 = vpop.f32.mrb[0].mxu0
        %v5108 = vadd.f32 %v4083, %v5107
        %v5109 = vpop.f32.mrb[0].mxu0
        %5110 = vmatprep.mubr.f32.mxu0 %v1696
        %5111 = vmatmul.mubr.f32.gmra.mrb[0].mxu0 %v1695
        %v5112 = vpop.f32.mrb[0].mxu0
        %v5113 = vadd.f32 %v4088, %v5112
        %v5114 = vpop.f32.mrb[0].mxu0
        %5115 = vmatprep.mubr.f32.mxu0 %v1700
        %5116 = vmatmul.mubr.f32.gmra.mrb[0].mxu0 %v1699
        %v5117 = vpop.f32.mrb[0].mxu0
        %v5118 = vadd.f32 %v4093, %v5117
        %v5119 = vpop.f32.mrb[0].mxu0
        %5120 = vmatprep.mubr.f32.mxu0 %v1704
        %5121 = vmatmul.mubr.f32.gmra.mrb[0].mxu0 %v1703
        %v5122 = vpop.f32.mrb[0].mxu0
        %v5123 = vadd.f32 %v4098, %v5122
        %v5124 = vpop.f32.mrb[0].mxu0
        %5125 = vmatprep.mubr.f32.mxu0 %v1708
        %5126 = vmatmul.mubr.f32.gmra.mrb[0].mxu0 %v1707
        %v5127 = vpop.f32.mrb[0].mxu0
        %v5128 = vadd.f32 %v4103, %v5127
        %v5129 = vpop.f32.mrb[0].mxu0
        %5130 = vmatprep.mubr.f32.mxu0 %v1712
        %5131 = vmatmul.mubr.f32.gmra.mrb[0].mxu0 %v1711
        %v5132 = vpop.f32.mrb[0].mxu0
        %v5133 = vadd.f32 %v4108, %v5132
        %v5134 = vpop.f32.mrb[0].mxu0
        %5135 = vmatprep.mubr.f32.mxu0 %v1716
        %5136 = vmatmul.mubr.f32.gmra.mrb[0].mxu0 %v1715
        %v5137 = vpop.f32.mrb[0].mxu0
        %v5138 = vadd.f32 %v4113, %v5137
        %v5139 = vpop.f32.mrb[0].mxu0
        %5140 = vmatprep.mubr.f32.mxu0 %v1720
        %5141 = vmatmul.mubr.f32.gmra.mrb[0].mxu0 %v1719
        %v5142 = vpop.f32.mrb[0].mxu0
        %v5143 = vadd.f32 %v4118, %v5142
        %v5144 = vpop.f32.mrb[0].mxu0
        %5145 = vmatprep.mubr.f32.mxu0 %v1724
        %5146 = vmatmul.mubr.f32.gmra.mrb[0].mxu0 %v1723
        %v5147 = vpop.f32.mrb[0].mxu0
        %v5148 = vadd.f32 %v4123, %v5147
        %v5149 = vpop.f32.mrb[0].mxu0
        %5150 = vmatprep.mubr.f32.mxu0 %v1728
        %5151 = vmatmul.mubr.f32.gmra.mrb[0].mxu0 %v1727
        %v5152 = vpop.f32.mrb[0].mxu0
        %v5153 = vadd.f32 %v4128, %v5152
        %v5154 = vpop.f32.mrb[0].mxu0
        %5155 = vmatprep.mubr.f32.mxu0 %v1732
        %5156 = vmatmul.mubr.f32.gmra.mrb[0].mxu0 %v1731
        %v5157 = vpop.f32.mrb[0].mxu0
        %v5158 = vadd.f32 %v4133, %v5157
        %v5159 = vpop.f32.mrb[0].mxu0
        %5160 = vmatprep.mubr.f32.mxu0 %v1736
        %5161 = vmatmul.mubr.f32.gmra.mrb[0].mxu0 %v1735
        %v5162 = vpop.f32.mrb[0].mxu0
        %v5163 = vadd.f32 %v4138, %v5162
        %v5164 = vpop.f32.mrb[0].mxu0
        %5165 = vmatprep.mubr.f32.mxu0 %v1740
        %5166 = vmatmul.mubr.f32.gmra.mrb[0].mxu0 %v1739
        %v5167 = vpop.f32.mrb[0].mxu0
        %v5168 = vadd.f32 %v4143, %v5167
        %v5169 = vpop.f32.mrb[0].mxu0
        %5170 = vmatprep.mubr.f32.mxu0 %v1744
        %5171 = vmatmul.mubr.f32.gmra.mrb[0].mxu0 %v1743
        %v5172 = vpop.f32.mrb[0].mxu0
        %v5173 = vadd.f32 %v4148, %v5172
        %v5174 = vpop.f32.mrb[0].mxu0
        %5175 = vmatprep.mubr.f32.mxu0 %v1748
        %5176 = vmatmul.mubr.f32.gmra.mrb[0].mxu0 %v1747
        %v5177 = vpop.f32.mrb[0].mxu0
        %v5178 = vadd.f32 %v4153, %v5177
        %v5179 = vpop.f32.mrb[0].mxu0
        %5180 = vmatprep.mubr.f32.mxu0 %v1752
        %5181 = vmatmul.mubr.f32.gmra.mrb[0].mxu0 %v1751
        %v5182 = vpop.f32.mrb[0].mxu0
        %v5183 = vadd.f32 %v4158, %v5182
        %v5184 = vpop.f32.mrb[0].mxu0
        %5185 = vmatprep.mubr.f32.mxu0 %v1756
        %5186 = vmatmul.mubr.f32.gmra.mrb[0].mxu0 %v1755
        %v5187 = vpop.f32.mrb[0].mxu0
        %v5188 = vadd.f32 %v4163, %v5187
        %v5189 = vpop.f32.mrb[0].mxu0
        %5190 = vmatprep.mubr.f32.mxu0 %v1760
        %5191 = vmatmul.mubr.f32.gmra.mrb[0].mxu0 %v1759
        %v5192 = vpop.f32.mrb[0].mxu0
        %v5193 = vadd.f32 %v4168, %v5192
        %v5194 = vpop.f32.mrb[0].mxu0
        %5195 = vmatprep.mubr.f32.mxu0 %v1764
        %5196 = vmatmul.mubr.f32.gmra.mrb[0].mxu0 %v1763
        %v5197 = vpop.f32.mrb[0].mxu0
        %v5198 = vadd.f32 %v4173, %v5197
        %v5199 = vpop.f32.mrb[0].mxu0
        %5200 = vmatprep.mubr.f32.mxu0 %v1768
        %5201 = vmatmul.mubr.f32.gmra.mrb[0].mxu0 %v1767
        %v5202 = vpop.f32.mrb[0].mxu0
        %v5203 = vadd.f32 %v4178, %v5202
        %v5204 = vpop.f32.mrb[0].mxu0
        %5205 = vmatprep.mubr.f32.mxu0 %v1772
        %5206 = vmatmul.mubr.f32.gmra.mrb[0].mxu0 %v1771
        %v5207 = vpop.f32.mrb[0].mxu0
        %v5208 = vadd.f32 %v4183, %v5207
        %v5209 = vpop.f32.mrb[0].mxu0
        %5210 = vmatprep.mubr.f32.mxu0 %v1776
        %5211 = vmatmul.mubr.f32.gmra.mrb[0].mxu0 %v1775
        %v5212 = vpop.f32.mrb[0].mxu0
        %v5213 = vadd.f32 %v4188, %v5212
        %v5214 = vpop.f32.mrb[0].mxu0
        %5215 = vmatprep.mubr.f32.mxu0 %v1780
        %5216 = vmatmul.mubr.f32.gmra.mrb[0].mxu0 %v1779
        %v5217 = vpop.f32.mrb[0].mxu0
        %v5218 = vadd.f32 %v4193, %v5217
        %v5219 = vpop.f32.mrb[0].mxu0
        %5220 = vmatprep.mubr.f32.mxu0 %v1784
        %5221 = vmatmul.mubr.f32.gmra.mrb[0].mxu0 %v1783
        %v5222 = vpop.f32.mrb[0].mxu0
        %v5223 = vadd.f32 %v4198, %v5222
        %v5224 = vpop.f32.mrb[0].mxu0
        %5225 = vmatprep.mubr.f32.mxu0 %v1788
        %5226 = vmatmul.mubr.f32.gmra.mrb[0].mxu0 %v1787
        %v5227 = vpop.f32.mrb[0].mxu0
        %v5228 = vadd.f32 %v4203, %v5227
        %v5229 = vpop.f32.mrb[0].mxu0
        %5230 = vmatprep.mubr.f32.mxu0 %v1792
        %5231 = vmatmul.mubr.f32.gmra.mrb[0].mxu0 %v1791
        %v5232 = vpop.f32.mrb[0].mxu0
        %v5233 = vadd.f32 %v4208, %v5232
        %v5234 = vpop.f32.mrb[0].mxu0
        %5235 = vmatprep.mubr.f32.mxu0 %v1796
        %5236 = vmatmul.mubr.f32.gmra.mrb[0].mxu0 %v1795
        %v5237 = vpop.f32.mrb[0].mxu0
        %v5238 = vadd.f32 %v4213, %v5237
        %v5239 = vpop.f32.mrb[0].mxu0
        %5240 = vmatprep.mubr.f32.mxu0 %v1800
        %5241 = vmatmul.mubr.f32.gmra.mrb[0].mxu0 %v1799
        %v5242 = vpop.f32.mrb[0].mxu0
        %v5243 = vadd.f32 %v4218, %v5242
        %v5244 = vpop.f32.mrb[0].mxu0
        %5245 = vmatprep.mubr.f32.mxu0 %v1804
        %5246 = vmatmul.mubr.f32.gmra.mrb[0].mxu0 %v1803
        %v5247 = vpop.f32.mrb[0].mxu0
        %v5248 = vadd.f32 %v4223, %v5247
        %v5249 = vpop.f32.mrb[0].mxu0
        %5250 = vmatprep.mubr.f32.mxu0 %v1808
        %5251 = vmatmul.mubr.f32.gmra.mrb[0].mxu0 %v1807
        %v5252 = vpop.f32.mrb[0].mxu0
        %v5253 = vadd.f32 %v4228, %v5252
        %v5254 = vpop.f32.mrb[0].mxu0
        %5255 = vmatprep.mubr.f32.mxu0 %v1812
        %5256 = vmatmul.mubr.f32.gmra.mrb[0].mxu0 %v1811
        %v5257 = vpop.f32.mrb[0].mxu0
        %v5258 = vadd.f32 %v4233, %v5257
        %v5259 = vpop.f32.mrb[0].mxu0
        %5260 = vmatprep.mubr.f32.mxu0 %v1816
        %5261 = vmatmul.mubr.f32.gmra.mrb[0].mxu0 %v1815
        %v5262 = vpop.f32.mrb[0].mxu0
        %v5263 = vadd.f32 %v4238, %v5262
        %v5264 = vpop.f32.mrb[0].mxu0
        %5265 = vmatprep.mubr.f32.mxu0 %v1820
        %5266 = vmatmul.mubr.f32.gmra.mrb[0].mxu0 %v1819
        %v5267 = vpop.f32.mrb[0].mxu0
        %v5268 = vadd.f32 %v4243, %v5267
        %v5269 = vpop.f32.mrb[0].mxu0
        %5270 = vmatprep.mubr.f32.mxu0 %v1824
        %5271 = vmatmul.mubr.f32.gmra.mrb[0].mxu0 %v1823
        %v5272 = vpop.f32.mrb[0].mxu0
        %v5273 = vadd.f32 %v4248, %v5272
        %v5274 = vpop.f32.mrb[0].mxu0
        %5275 = vmatprep.mubr.f32.mxu0 %v1828
        %5276 = vmatmul.mubr.f32.gmra.mrb[0].mxu0 %v1827
        %v5277 = vpop.f32.mrb[0].mxu0
        %v5278 = vadd.f32 %v4253, %v5277
        %v5279 = vpop.f32.mrb[0].mxu0
        %5280 = vmatprep.mubr.f32.mxu0 %v1832
        %5281 = vmatmul.mubr.f32.gmra.mrb[0].mxu0 %v1831
        %v5282 = vpop.f32.mrb[0].mxu0
        %v5283 = vadd.f32 %v4258, %v5282
        %v5284 = vpop.f32.mrb[0].mxu0
        %5285 = vmatprep.mubr.f32.mxu0 %v1836
        %5286 = vmatmul.mubr.f32.gmra.mrb[0].mxu0 %v1835
        %v5287 = vpop.f32.mrb[0].mxu0
        %v5288 = vadd.f32 %v4263, %v5287
        %v5289 = vpop.f32.mrb[0].mxu0
        %5290 = vmatprep.mubr.f32.mxu0 %v1840
        %5291 = vmatmul.mubr.f32.gmra.mrb[0].mxu0 %v1839
        %v5292 = vpop.f32.mrb[0].mxu0
        %v5293 = vadd.f32 %v4268, %v5292
        %v5294 = vpop.f32.mrb[0].mxu0
        %5295 = vmatprep.mubr.f32.mxu0 %v1844
        %5296 = vmatmul.mubr.f32.gmra.mrb[0].mxu0 %v1843
        %v5297 = vpop.f32.mrb[0].mxu0
        %v5298 = vadd.f32 %v4273, %v5297
        %v5299 = vpop.f32.mrb[0].mxu0
        %5300 = vmatprep.mubr.f32.mxu0 %v1848
        %5301 = vmatmul.mubr.f32.gmra.mrb[0].mxu0 %v1847
        %v5302 = vpop.f32.mrb[0].mxu0
        %v5303 = vadd.f32 %v4278, %v5302
        %v5304 = vpop.f32.mrb[0].mxu0
        %5305 = vmatprep.mubr.f32.mxu0 %v1852
        %5306 = vmatmul.mubr.f32.gmra.mrb[0].mxu0 %v1851
        %v5307 = vpop.f32.mrb[0].mxu0
        %v5308 = vadd.f32 %v4283, %v5307
        %v5309 = vpop.f32.mrb[0].mxu0
        %5310 = vdwg.mxu0
        %v5311 = vmax.f32 %v4353, 0.0
        %v5312 = vmax.f32 %v4358, 0.0
        %v5313 = vmax.f32 %v4363, 0.0
        %v5314 = vmax.f32 %v4368, 0.0
        %v5315 = vmax.f32 %v4373, 0.0
        %v5316 = vmax.f32 %v4378, 0.0
        %v5317 = vmax.f32 %v4383, 0.0
        %v5318 = vmax.f32 %v4388, 0.0
        %v5319 = vmax.f32 %v4393, 0.0
        %v5320 = vmax.f32 %v4398, 0.0
        %v5321 = vmax.f32 %v4403, 0.0
        %v5322 = vmax.f32 %v4408, 0.0
        %v5323 = vmax.f32 %v4413, 0.0
        %v5324 = vmax.f32 %v4418, 0.0
        %v5325 = vmax.f32 %v4423, 0.0
        %v5326 = vmax.f32 %v4428, 0.0
        %v5327 = vmax.f32 %v4433, 0.0
        %v5328 = vmax.f32 %v4438, 0.0
        %v5329 = vmax.f32 %v4443, 0.0
        %v5330 = vmax.f32 %v4448, 0.0
        %v5331 = vmax.f32 %v4453, 0.0
        %v5332 = vmax.f32 %v4458, 0.0
        %v5333 = vmax.f32 %v4463, 0.0
        %v5334 = vmax.f32 %v4468, 0.0
        %v5335 = vmax.f32 %v4473, 0.0
        %v5336 = vmax.f32 %v4478, 0.0
        %v5337 = vmax.f32 %v4483, 0.0
        %v5338 = vmax.f32 %v4488, 0.0
        %v5339 = vmax.f32 %v4493, 0.0
        %v5340 = vmax.f32 %v4498, 0.0
        %v5341 = vmax.f32 %v4503, 0.0
        %v5342 = vmax.f32 %v4508, 0.0
        %v5343 = vmax.f32 %v4513, 0.0
        %v5344 = vmax.f32 %v4518, 0.0
        %v5345 = vmax.f32 %v4523, 0.0
        %v5346 = vmax.f32 %v4528, 0.0
        %v5347 = vmax.f32 %v4533, 0.0
        %v5348 = vmax.f32 %v4538, 0.0
        %v5349 = vmax.f32 %v4543, 0.0
        %v5350 = vmax.f32 %v4548, 0.0
        %v5351 = vmax.f32 %v4553, 0.0
        %v5352 = vmax.f32 %v4558, 0.0
        %v5353 = vmax.f32 %v4563, 0.0
        %v5354 = vmax.f32 %v4568, 0.0
        %v5355 = vmax.f32 %v4573, 0.0
        %v5356 = vmax.f32 %v4578, 0.0
        %v5357 = vmax.f32 %v4583, 0.0
        %v5358 = vmax.f32 %v4588, 0.0
        %v5359 = vmax.f32 %v4593, 0.0
        %v5360 = vmax.f32 %v4598, 0.0
        %v5361 = vmax.f32 %v4603, 0.0
        %v5362 = vmax.f32 %v4608, 0.0
        %v5363 = vmax.f32 %v4613, 0.0
        %v5364 = vmax.f32 %v4618, 0.0
        %v5365 = vmax.f32 %v4623, 0.0
        %v5366 = vmax.f32 %v4628, 0.0
        %v5367 = vmax.f32 %v4633, 0.0
        %v5368 = vmax.f32 %v4638, 0.0
        %v5369 = vmax.f32 %v4643, 0.0
        %v5370 = vmax.f32 %v4648, 0.0
        %v5371 = vmax.f32 %v4653, 0.0
        %v5372 = vmax.f32 %v4658, 0.0
        %v5373 = vmax.f32 %v4663, 0.0
        %v5374 = vmax.f32 %v4668, 0.0
        %v5375 = vmax.f32 %v4673, 0.0
        %v5376 = vmax.f32 %v4678, 0.0
        %v5377 = vmax.f32 %v4683, 0.0
        %v5378 = vmax.f32 %v4688, 0.0
        %v5379 = vmax.f32 %v4693, 0.0
        %v5380 = vmax.f32 %v4698, 0.0
        %v5381 = vmax.f32 %v4703, 0.0
        %v5382 = vmax.f32 %v4708, 0.0
        %v5383 = vmax.f32 %v4713, 0.0
        %v5384 = vmax.f32 %v4718, 0.0
        %v5385 = vmax.f32 %v4723, 0.0
        %v5386 = vmax.f32 %v4728, 0.0
        %v5387 = vmax.f32 %v4733, 0.0
        %v5388 = vmax.f32 %v4738, 0.0
        %v5389 = vmax.f32 %v4743, 0.0
        %v5390 = vmax.f32 %v4748, 0.0
        %v5391 = vmax.f32 %v4753, 0.0
        %v5392 = vmax.f32 %v4758, 0.0
        %v5393 = vmax.f32 %v4763, 0.0
        %v5394 = vmax.f32 %v4768, 0.0
        %v5395 = vmax.f32 %v4773, 0.0
        %v5396 = vmax.f32 %v4778, 0.0
        %v5397 = vmax.f32 %v4783, 0.0
        %v5398 = vmax.f32 %v4788, 0.0
        %v5399 = vmax.f32 %v4793, 0.0
        %v5400 = vmax.f32 %v4798, 0.0
        %v5401 = vmax.f32 %v4803, 0.0
        %v5402 = vmax.f32 %v4808, 0.0
        %v5403 = vmax.f32 %v4813, 0.0
        %v5404 = vmax.f32 %v4818, 0.0
        %v5405 = vmax.f32 %v4823, 0.0
        %v5406 = vmax.f32 %v4828, 0.0
        %v5407 = vmax.f32 %v4833, 0.0
        %v5408 = vmax.f32 %v4838, 0.0
        %v5409 = vmax.f32 %v4843, 0.0
        %v5410 = vmax.f32 %v4848, 0.0
        %v5411 = vmax.f32 %v4853, 0.0
        %v5412 = vmax.f32 %v4858, 0.0
        %v5413 = vmax.f32 %v4863, 0.0
        %v5414 = vmax.f32 %v4868, 0.0
        %v5415 = vmax.f32 %v4873, 0.0
        %v5416 = vmax.f32 %v4878, 0.0
        %v5417 = vmax.f32 %v4883, 0.0
        %v5418 = vmax.f32 %v4888, 0.0
        %v5419 = vmax.f32 %v4893, 0.0
        %v5420 = vmax.f32 %v4898, 0.0
        %v5421 = vmax.f32 %v4903, 0.0
        %v5422 = vmax.f32 %v4908, 0.0
        %v5423 = vmax.f32 %v4913, 0.0
        %v5424 = vmax.f32 %v4918, 0.0
        %v5425 = vmax.f32 %v4923, 0.0
        %v5426 = vmax.f32 %v4928, 0.0
        %v5427 = vmax.f32 %v4933, 0.0
        %v5428 = vmax.f32 %v4938, 0.0
        %v5429 = vmax.f32 %v4943, 0.0
        %v5430 = vmax.f32 %v4948, 0.0
        %v5431 = vmax.f32 %v4953, 0.0
        %v5432 = vmax.f32 %v4958, 0.0
        %v5433 = vmax.f32 %v4963, 0.0
        %v5434 = vmax.f32 %v4968, 0.0
        %v5435 = vmax.f32 %v4973, 0.0
        %v5436 = vmax.f32 %v4978, 0.0
        %v5437 = vmax.f32 %v4983, 0.0
        %v5438 = vmax.f32 %v4988, 0.0
        %v5439 = vmax.f32 %v4993, 0.0
        %v5440 = vmax.f32 %v4998, 0.0
        %v5441 = vmax.f32 %v5003, 0.0
        %v5442 = vmax.f32 %v5008, 0.0
        %v5443 = vmax.f32 %v5013, 0.0
        %v5444 = vmax.f32 %v5018, 0.0
        %v5445 = vmax.f32 %v5023, 0.0
        %v5446 = vmax.f32 %v5028, 0.0
        %v5447 = vmax.f32 %v5033, 0.0
        %v5448 = vmax.f32 %v5038, 0.0
        %v5449 = vmax.f32 %v5043, 0.0
        %v5450 = vmax.f32 %v5048, 0.0
        %v5451 = vmax.f32 %v5053, 0.0
        %v5452 = vmax.f32 %v5058, 0.0
        %v5453 = vmax.f32 %v5063, 0.0
        %v5454 = vmax.f32 %v5068, 0.0
        %v5455 = vmax.f32 %v5073, 0.0
        %v5456 = vmax.f32 %v5078, 0.0
        %v5457 = vmax.f32 %v5083, 0.0
        %v5458 = vmax.f32 %v5088, 0.0
        %v5459 = vmax.f32 %v5093, 0.0
        %v5460 = vmax.f32 %v5098, 0.0
        %v5461 = vmax.f32 %v5103, 0.0
        %v5462 = vmax.f32 %v5108, 0.0
        %v5463 = vmax.f32 %v5113, 0.0
        %v5464 = vmax.f32 %v5118, 0.0
        %v5465 = vmax.f32 %v5123, 0.0
        %v5466 = vmax.f32 %v5128, 0.0
        %v5467 = vmax.f32 %v5133, 0.0
        %v5468 = vmax.f32 %v5138, 0.0
        %v5469 = vmax.f32 %v5143, 0.0
        %v5470 = vmax.f32 %v5148, 0.0
        %v5471 = vmax.f32 %v5153, 0.0
        %v5472 = vmax.f32 %v5158, 0.0
        %v5473 = vmax.f32 %v5163, 0.0
        %v5474 = vmax.f32 %v5168, 0.0
        %v5475 = vmax.f32 %v5173, 0.0
        %v5476 = vmax.f32 %v5178, 0.0
        %v5477 = vmax.f32 %v5183, 0.0
        %v5478 = vmax.f32 %v5188, 0.0
        %v5479 = vmax.f32 %v5193, 0.0
        %v5480 = vmax.f32 %v5198, 0.0
        %v5481 = vmax.f32 %v5203, 0.0
        %v5482 = vmax.f32 %v5208, 0.0
        %v5483 = vmax.f32 %v5213, 0.0
        %v5484 = vmax.f32 %v5218, 0.0
        %v5485 = vmax.f32 %v5223, 0.0
        %v5486 = vmax.f32 %v5228, 0.0
        %v5487 = vmax.f32 %v5233, 0.0
        %v5488 = vmax.f32 %v5238, 0.0
        %v5489 = vmax.f32 %v5243, 0.0
        %v5490 = vmax.f32 %v5248, 0.0
        %v5491 = vmax.f32 %v5253, 0.0
        %v5492 = vmax.f32 %v5258, 0.0
        %v5493 = vmax.f32 %v5263, 0.0
        %v5494 = vmax.f32 %v5268, 0.0
        %v5495 = vmax.f32 %v5273, 0.0
        %v5496 = vmax.f32 %v5278, 0.0
        %v5497 = vmax.f32 %v5283, 0.0
        %v5498 = vmax.f32 %v5288, 0.0
        %v5499 = vmax.f32 %v5293, 0.0
        %v5500 = vmax.f32 %v5298, 0.0
        %v5501 = vmax.f32 %v5303, 0.0
        %v5502 = vmax.f32 %v5308, 0.0
        %v5503 = vmul.f32 %v1917, %v5311
        %v5504 = vmul.f32 %v1918, %v5312
        %v5505 = vmul.f32 %v1919, %v5313
        %v5506 = vmul.f32 %v1920, %v5314
        %v5507 = vmul.f32 %v1921, %v5315
        %v5508 = vmul.f32 %v1922, %v5316
        %v5509 = vmul.f32 %v1923, %v5317
        %v5510 = vmul.f32 %v1924, %v5318
        %v5511 = vmul.f32 %v1925, %v5319
        %v5512 = vmul.f32 %v1926, %v5320
        %v5513 = vmul.f32 %v1927, %v5321
        %v5514 = vmul.f32 %v1928, %v5322
        %v5515 = vmul.f32 %v1929, %v5323
        %v5516 = vmul.f32 %v1930, %v5324
        %v5517 = vmul.f32 %v1931, %v5325
        %v5518 = vmul.f32 %v1932, %v5326
        %v5519 = vmul.f32 %v1933, %v5327
        %v5520 = vmul.f32 %v1934, %v5328
        %v5521 = vmul.f32 %v1935, %v5329
        %v5522 = vmul.f32 %v1936, %v5330
        %v5523 = vmul.f32 %v1937, %v5331
        %v5524 = vmul.f32 %v1938, %v5332
        %v5525 = vmul.f32 %v1939, %v5333
        %v5526 = vmul.f32 %v1940, %v5334
        %v5527 = vmul.f32 %v1941, %v5335
        %v5528 = vmul.f32 %v1942, %v5336
        %v5529 = vmul.f32 %v1943, %v5337
        %v5530 = vmul.f32 %v1944, %v5338
        %v5531 = vmul.f32 %v1945, %v5339
        %v5532 = vmul.f32 %v1946, %v5340
        %v5533 = vmul.f32 %v1947, %v5341
        %v5534 = vmul.f32 %v1948, %v5342
        %v5535 = vmul.f32 %v1949, %v5343
        %v5536 = vmul.f32 %v1950, %v5344
        %v5537 = vmul.f32 %v1951, %v5345
        %v5538 = vmul.f32 %v1952, %v5346
        %v5539 = vmul.f32 %v1953, %v5347
        %v5540 = vmul.f32 %v1954, %v5348
        %v5541 = vmul.f32 %v1955, %v5349
        %v5542 = vmul.f32 %v1956, %v5350
        %v5543 = vmul.f32 %v1957, %v5351
        %v5544 = vmul.f32 %v1958, %v5352
        %v5545 = vmul.f32 %v1959, %v5353
        %v5546 = vmul.f32 %v1960, %v5354
        %v5547 = vmul.f32 %v1961, %v5355
        %v5548 = vmul.f32 %v1962, %v5356
        %v5549 = vmul.f32 %v1963, %v5357
        %v5550 = vmul.f32 %v1964, %v5358
        %v5551 = vmul.f32 %v1965, %v5359
        %v5552 = vmul.f32 %v1966, %v5360
        %v5553 = vmul.f32 %v1967, %v5361
        %v5554 = vmul.f32 %v1968, %v5362
        %v5555 = vmul.f32 %v1969, %v5363
        %v5556 = vmul.f32 %v1970, %v5364
        %v5557 = vmul.f32 %v1971, %v5365
        %v5558 = vmul.f32 %v1972, %v5366
        %v5559 = vmul.f32 %v1973, %v5367
        %v5560 = vmul.f32 %v1974, %v5368
        %v5561 = vmul.f32 %v1975, %v5369
        %v5562 = vmul.f32 %v1976, %v5370
        %v5563 = vmul.f32 %v1977, %v5371
        %v5564 = vmul.f32 %v1978, %v5372
        %v5565 = vmul.f32 %v1979, %v5373
        %v5566 = vmul.f32 %v1980, %v5374
        %v5567 = vmul.f32 %v1981, %v5375
        %v5568 = vmul.f32 %v1982, %v5376
        %v5569 = vmul.f32 %v1983, %v5377
        %v5570 = vmul.f32 %v1984, %v5378
        %v5571 = vmul.f32 %v1985, %v5379
        %v5572 = vmul.f32 %v1986, %v5380
        %v5573 = vmul.f32 %v1987, %v5381
        %v5574 = vmul.f32 %v1988, %v5382
        %v5575 = vmul.f32 %v1989, %v5383
        %v5576 = vmul.f32 %v1990, %v5384
        %v5577 = vmul.f32 %v1991, %v5385
        %v5578 = vmul.f32 %v1992, %v5386
        %v5579 = vmul.f32 %v1993, %v5387
        %v5580 = vmul.f32 %v1994, %v5388
        %v5581 = vmul.f32 %v1995, %v5389
        %v5582 = vmul.f32 %v1996, %v5390
        %v5583 = vmul.f32 %v1997, %v5391
        %v5584 = vmul.f32 %v1998, %v5392
        %v5585 = vmul.f32 %v1999, %v5393
        %v5586 = vmul.f32 %v2000, %v5394
        %v5587 = vmul.f32 %v2001, %v5395
        %v5588 = vmul.f32 %v2002, %v5396
        %v5589 = vmul.f32 %v2003, %v5397
        %v5590 = vmul.f32 %v2004, %v5398
        %v5591 = vmul.f32 %v2005, %v5399
        %v5592 = vmul.f32 %v2006, %v5400
        %v5593 = vmul.f32 %v2007, %v5401
        %v5594 = vmul.f32 %v2008, %v5402
        %v5595 = vmul.f32 %v2009, %v5403
        %v5596 = vmul.f32 %v2010, %v5404
        %v5597 = vmul.f32 %v2011, %v5405
        %v5598 = vmul.f32 %v2012, %v5406
        %v5599 = vmul.f32 %v2013, %v5407
        %v5600 = vmul.f32 %v2014, %v5408
        %v5601 = vmul.f32 %v2015, %v5409
        %v5602 = vmul.f32 %v2016, %v5410
        %v5603 = vmul.f32 %v2017, %v5411
        %v5604 = vmul.f32 %v2018, %v5412
        %v5605 = vmul.f32 %v2019, %v5413
        %v5606 = vmul.f32 %v2020, %v5414
        %v5607 = vmul.f32 %v2021, %v5415
        %v5608 = vmul.f32 %v2022, %v5416
        %v5609 = vmul.f32 %v2023, %v5417
        %v5610 = vmul.f32 %v2024, %v5418
        %v5611 = vmul.f32 %v2025, %v5419
        %v5612 = vmul.f32 %v2026, %v5420
        %v5613 = vmul.f32 %v2027, %v5421
        %v5614 = vmul.f32 %v2028, %v5422
        %v5615 = vmul.f32 %v2029, %v5423
        %v5616 = vmul.f32 %v2030, %v5424
        %v5617 = vmul.f32 %v2031, %v5425
        %v5618 = vmul.f32 %v2032, %v5426
        %v5619 = vmul.f32 %v2033, %v5427
        %v5620 = vmul.f32 %v2034, %v5428
        %v5621 = vmul.f32 %v2035, %v5429
        %v5622 = vmul.f32 %v2036, %v5430
        %v5623 = vmul.f32 %v2037, %v5431
        %v5624 = vmul.f32 %v2038, %v5432
        %v5625 = vmul.f32 %v2039, %v5433
        %v5626 = vmul.f32 %v2040, %v5434
        %v5627 = vmul.f32 %v2041, %v5435
        %v5628 = vmul.f32 %v2042, %v5436
        %v5629 = vmul.f32 %v2043, %v5437
        %v5630 = vmul.f32 %v2044, %v5438
        %v5631 = vmul.f32 %v2045, %v5439
        %v5632 = vmul.f32 %v2046, %v5440
        %v5633 = vmul.f32 %v2047, %v5441
        %v5634 = vmul.f32 %v2048, %v5442
        %v5635 = vmul.f32 %v2049, %v5443
        %v5636 = vmul.f32 %v2050, %v5444
        %v5637 = vmul.f32 %v2051, %v5445
        %v5638 = vmul.f32 %v2052, %v5446
        %v5639 = vmul.f32 %v2053, %v5447
        %v5640 = vmul.f32 %v2054, %v5448
        %v5641 = vmul.f32 %v2055, %v5449
        %v5642 = vmul.f32 %v2056, %v5450
        %v5643 = vmul.f32 %v2057, %v5451
        %v5644 = vmul.f32 %v2058, %v5452
        %v5645 = vmul.f32 %v2059, %v5453
        %v5646 = vmul.f32 %v2060, %v5454
        %v5647 = vmul.f32 %v2061, %v5455
        %v5648 = vmul.f32 %v2062, %v5456
        %v5649 = vmul.f32 %v2063, %v5457
        %v5650 = vmul.f32 %v2064, %v5458
        %v5651 = vmul.f32 %v2065, %v5459
        %v5652 = vmul.f32 %v2066, %v5460
        %v5653 = vmul.f32 %v2067, %v5461
        %v5654 = vmul.f32 %v2068, %v5462
        %v5655 = vmul.f32 %v2069, %v5463
        %v5656 = vmul.f32 %v2070, %v5464
        %v5657 = vmul.f32 %v2071, %v5465
        %v5658 = vmul.f32 %v2072, %v5466
        %v5659 = vmul.f32 %v2073, %v5467
        %v5660 = vmul.f32 %v2074, %v5468
        %v5661 = vmul.f32 %v2075, %v5469
        %v5662 = vmul.f32 %v2076, %v5470
        %v5663 = vmul.f32 %v2077, %v5471
        %v5664 = vmul.f32 %v2078, %v5472
        %v5665 = vmul.f32 %v2079, %v5473
        %v5666 = vmul.f32 %v2080, %v5474
        %v5667 = vmul.f32 %v2081, %v5475
        %v5668 = vmul.f32 %v2082, %v5476
        %v5669 = vmul.f32 %v2083, %v5477
        %v5670 = vmul.f32 %v2084, %v5478
        %v5671 = vmul.f32 %v2085, %v5479
        %v5672 = vmul.f32 %v2086, %v5480
        %v5673 = vmul.f32 %v2087, %v5481
        %v5674 = vmul.f32 %v2088, %v5482
        %v5675 = vmul.f32 %v2089, %v5483
        %v5676 = vmul.f32 %v2090, %v5484
        %v5677 = vmul.f32 %v2091, %v5485
        %v5678 = vmul.f32 %v2092, %v5486
        %v5679 = vmul.f32 %v2093, %v5487
        %v5680 = vmul.f32 %v2094, %v5488
        %v5681 = vmul.f32 %v2095, %v5489
        %v5682 = vmul.f32 %v2096, %v5490
        %v5683 = vmul.f32 %v2097, %v5491
        %v5684 = vmul.f32 %v2098, %v5492
        %v5685 = vmul.f32 %v2099, %v5493
        %v5686 = vmul.f32 %v2100, %v5494
        %v5687 = vmul.f32 %v2101, %v5495
        %v5688 = vmul.f32 %v2102, %v5496
        %v5689 = vmul.f32 %v2103, %v5497
        %v5690 = vmul.f32 %v2104, %v5498
        %v5691 = vmul.f32 %v2105, %v5499
        %v5692 = vmul.f32 %v2106, %v5500
        %v5693 = vmul.f32 %v2107, %v5501
        %v5694 = vmul.f32 %v2108, %v5502
        %5695 = vst.msk [vmem:[%s274] sm:$0xff] %vm1017, %v5503
        %5696 = vst.msk [vmem:[%s274 + $0x8] sm:$0xff] %vm1017, %v5504
        %5697 = vst.msk [vmem:[%s274 + $0x10] sm:$0xff] %vm1017, %v5505
        %5698 = vst.msk [vmem:[%s274 + $0x18] sm:$0xff] %vm1017, %v5506
        %5699 = vst.msk [vmem:[%s274 + $0x20] sm:$0xff] %vm1017, %v5507
        %5700 = vst.msk [vmem:[%s274 + $0x28] sm:$0xff] %vm1017, %v5508
        %5701 = vst.msk [vmem:[%s274 + $0x30] sm:$0xff] %vm1017, %v5509
        %5702 = vst.msk [vmem:[%s274 + $0x38] sm:$0xff] %vm1017, %v5510
        %5703 = vst.msk [vmem:[%s274 + $0x40] sm:$0xff] %vm1017, %v5511
        %5704 = vst.msk [vmem:[%s274 + $0x48] sm:$0xff] %vm1017, %v5512
        %5705 = vst.msk [vmem:[%s274 + $0x50] sm:$0xff] %vm1017, %v5513
        %5706 = vst.msk [vmem:[%s274 + $0x58] sm:$0xff] %vm1017, %v5514
        %5707 = vst.msk [vmem:[%s274 + $0x60] sm:$0xff] %vm1017, %v5515
        %5708 = vst.msk [vmem:[%s274 + $0x68] sm:$0xff] %vm1017, %v5516
        %5709 = vst.msk [vmem:[%s274 + $0x70] sm:$0xff] %vm1017, %v5517
        %5710 = vst.msk [vmem:[%s274 + $0x78] sm:$0xff] %vm1017, %v5518
        %5711 = vst.msk [vmem:[%s274 + $0x80] sm:$0xff] %vm1017, %v5519
        %5712 = vst.msk [vmem:[%s274 + $0x88] sm:$0xff] %vm1017, %v5520
        %5713 = vst.msk [vmem:[%s274 + $0x90] sm:$0xff] %vm1017, %v5521
        %5714 = vst.msk [vmem:[%s274 + $0x98] sm:$0xff] %vm1017, %v5522
        %5715 = vst.msk [vmem:[%s274 + $0xa0] sm:$0xff] %vm1017, %v5523
        %5716 = vst.msk [vmem:[%s274 + $0xa8] sm:$0xff] %vm1017, %v5524
        %5717 = vst.msk [vmem:[%s274 + $0xb0] sm:$0xff] %vm1017, %v5525
        %5718 = vst.msk [vmem:[%s274 + $0xb8] sm:$0xff] %vm1017, %v5526
        %5719 = vst.msk [vmem:[%s274 + $0xc0] sm:$0xff] %vm1017, %v5527
        %5720 = vst.msk [vmem:[%s274 + $0xc8] sm:$0xff] %vm1017, %v5528
        %5721 = vst.msk [vmem:[%s274 + $0xd0] sm:$0xff] %vm1017, %v5529
        %5722 = vst.msk [vmem:[%s274 + $0xd8] sm:$0xff] %vm1017, %v5530
        %5723 = vst.msk [vmem:[%s274 + $0xe0] sm:$0xff] %vm1017, %v5531
        %5724 = vst.msk [vmem:[%s274 + $0xe8] sm:$0xff] %vm1017, %v5532
        %5725 = vst.msk [vmem:[%s274 + $0xf0] sm:$0xff] %vm1017, %v5533
        %5726 = vst.msk [vmem:[%s274 + $0xf8] sm:$0xff] %vm1017, %v5534
        %5727 = vst.msk [vmem:[%s274 + $0x100] sm:$0xff] %vm1017, %v5535
        %5728 = vst.msk [vmem:[%s274 + $0x108] sm:$0xff] %vm1017, %v5536
        %5729 = vst.msk [vmem:[%s274 + $0x110] sm:$0xff] %vm1017, %v5537
        %5730 = vst.msk [vmem:[%s274 + $0x118] sm:$0xff] %vm1017, %v5538
        %5731 = vst.msk [vmem:[%s274 + $0x120] sm:$0xff] %vm1017, %v5539
        %5732 = vst.msk [vmem:[%s274 + $0x128] sm:$0xff] %vm1017, %v5540
        %5733 = vst.msk [vmem:[%s274 + $0x130] sm:$0xff] %vm1017, %v5541
        %5734 = vst.msk [vmem:[%s274 + $0x138] sm:$0xff] %vm1017, %v5542
        %5735 = vst.msk [vmem:[%s274 + $0x140] sm:$0xff] %vm1017, %v5543
        %5736 = vst.msk [vmem:[%s274 + $0x148] sm:$0xff] %vm1017, %v5544
        %5737 = vst.msk [vmem:[%s274 + $0x150] sm:$0xff] %vm1017, %v5545
        %5738 = vst.msk [vmem:[%s274 + $0x158] sm:$0xff] %vm1017, %v5546
        %5739 = vst.msk [vmem:[%s274 + $0x160] sm:$0xff] %vm1017, %v5547
        %5740 = vst.msk [vmem:[%s274 + $0x168] sm:$0xff] %vm1017, %v5548
        %5741 = vst.msk [vmem:[%s274 + $0x170] sm:$0xff] %vm1017, %v5549
        %5742 = vst.msk [vmem:[%s274 + $0x178] sm:$0xff] %vm1017, %v5550
        %5743 = vst.msk [vmem:[%s274 + $0x180] sm:$0xff] %vm1017, %v5551
        %5744 = vst.msk [vmem:[%s274 + $0x188] sm:$0xff] %vm1017, %v5552
        %5745 = vst.msk [vmem:[%s274 + $0x190] sm:$0xff] %vm1017, %v5553
        %5746 = vst.msk [vmem:[%s274 + $0x198] sm:$0xff] %vm1017, %v5554
        %5747 = vst.msk [vmem:[%s274 + $0x1a0] sm:$0xff] %vm1017, %v5555
        %5748 = vst.msk [vmem:[%s274 + $0x1a8] sm:$0xff] %vm1017, %v5556
        %5749 = vst.msk [vmem:[%s274 + $0x1b0] sm:$0xff] %vm1017, %v5557
        %5750 = vst.msk [vmem:[%s274 + $0x1b8] sm:$0xff] %vm1017, %v5558
        %5751 = vst.msk [vmem:[%s274 + $0x1c0] sm:$0xff] %vm1017, %v5559
        %5752 = vst.msk [vmem:[%s274 + $0x1c8] sm:$0xff] %vm1017, %v5560
        %5753 = vst.msk [vmem:[%s274 + $0x1d0] sm:$0xff] %vm1017, %v5561
        %5754 = vst.msk [vmem:[%s274 + $0x1d8] sm:$0xff] %vm1017, %v5562
        %5755 = vst.msk [vmem:[%s274 + $0x1e0] sm:$0xff] %vm1017, %v5563
        %5756 = vst.msk [vmem:[%s274 + $0x1e8] sm:$0xff] %vm1017, %v5564
        %5757 = vst.msk [vmem:[%s274 + $0x1f0] sm:$0xff] %vm1017, %v5565
        %5758 = vst.msk [vmem:[%s274 + $0x1f8] sm:$0xff] %vm1017, %v5566
        %5759 = vst.msk [vmem:[%s274 + $0x200] sm:$0xff] %vm1017, %v5567
        %5760 = vst.msk [vmem:[%s274 + $0x208] sm:$0xff] %vm1017, %v5568
        %5761 = vst.msk [vmem:[%s274 + $0x210] sm:$0xff] %vm1017, %v5569
        %5762 = vst.msk [vmem:[%s274 + $0x218] sm:$0xff] %vm1017, %v5570
        %5763 = vst.msk [vmem:[%s274 + $0x220] sm:$0xff] %vm1017, %v5571
        %5764 = vst.msk [vmem:[%s274 + $0x228] sm:$0xff] %vm1017, %v5572
        %5765 = vst.msk [vmem:[%s274 + $0x230] sm:$0xff] %vm1017, %v5573
        %5766 = vst.msk [vmem:[%s274 + $0x238] sm:$0xff] %vm1017, %v5574
        %5767 = vst.msk [vmem:[%s274 + $0x240] sm:$0xff] %vm1017, %v5575
        %5768 = vst.msk [vmem:[%s274 + $0x248] sm:$0xff] %vm1017, %v5576
        %5769 = vst.msk [vmem:[%s274 + $0x250] sm:$0xff] %vm1017, %v5577
        %5770 = vst.msk [vmem:[%s274 + $0x258] sm:$0xff] %vm1017, %v5578
        %5771 = vst.msk [vmem:[%s274 + $0x260] sm:$0xff] %vm1017, %v5579
        %5772 = vst.msk [vmem:[%s274 + $0x268] sm:$0xff] %vm1017, %v5580
        %5773 = vst.msk [vmem:[%s274 + $0x270] sm:$0xff] %vm1017, %v5581
        %5774 = vst.msk [vmem:[%s274 + $0x278] sm:$0xff] %vm1017, %v5582
        %5775 = vst.msk [vmem:[%s274 + $0x280] sm:$0xff] %vm1017, %v5583
        %5776 = vst.msk [vmem:[%s274 + $0x288] sm:$0xff] %vm1017, %v5584
        %5777 = vst.msk [vmem:[%s274 + $0x290] sm:$0xff] %vm1017, %v5585
        %5778 = vst.msk [vmem:[%s274 + $0x298] sm:$0xff] %vm1017, %v5586
        %5779 = vst.msk [vmem:[%s274 + $0x2a0] sm:$0xff] %vm1017, %v5587
        %5780 = vst.msk [vmem:[%s274 + $0x2a8] sm:$0xff] %vm1017, %v5588
        %5781 = vst.msk [vmem:[%s274 + $0x2b0] sm:$0xff] %vm1017, %v5589
        %5782 = vst.msk [vmem:[%s274 + $0x2b8] sm:$0xff] %vm1017, %v5590
        %5783 = vst.msk [vmem:[%s274 + $0x2c0] sm:$0xff] %vm1017, %v5591
        %5784 = vst.msk [vmem:[%s274 + $0x2c8] sm:$0xff] %vm1017, %v5592
        %5785 = vst.msk [vmem:[%s274 + $0x2d0] sm:$0xff] %vm1017, %v5593
        %5786 = vst.msk [vmem:[%s274 + $0x2d8] sm:$0xff] %vm1017, %v5594
        %5787 = vst.msk [vmem:[%s274 + $0x2e0] sm:$0xff] %vm1017, %v5595
        %5788 = vst.msk [vmem:[%s274 + $0x2e8] sm:$0xff] %vm1017, %v5596
        %5789 = vst.msk [vmem:[%s274 + $0x2f0] sm:$0xff] %vm1017, %v5597
        %5790 = vst.msk [vmem:[%s274 + $0x2f8] sm:$0xff] %vm1017, %v5598
        %5791 = vst.msk [vmem:[%s274 + $0x300] sm:$0xff] %vm1017, %v5599
        %5792 = vst.msk [vmem:[%s274 + $0x308] sm:$0xff] %vm1017, %v5600
        %5793 = vst.msk [vmem:[%s274 + $0x310] sm:$0xff] %vm1017, %v5601
        %5794 = vst.msk [vmem:[%s274 + $0x318] sm:$0xff] %vm1017, %v5602
        %5795 = vst.msk [vmem:[%s274 + $0x320] sm:$0xff] %vm1017, %v5603
        %5796 = vst.msk [vmem:[%s274 + $0x328] sm:$0xff] %vm1017, %v5604
        %5797 = vst.msk [vmem:[%s274 + $0x330] sm:$0xff] %vm1017, %v5605
        %5798 = vst.msk [vmem:[%s274 + $0x338] sm:$0xff] %vm1017, %v5606
        %5799 = vst.msk [vmem:[%s274 + $0x340] sm:$0xff] %vm1017, %v5607
        %5800 = vst.msk [vmem:[%s274 + $0x348] sm:$0xff] %vm1017, %v5608
        %5801 = vst.msk [vmem:[%s274 + $0x350] sm:$0xff] %vm1017, %v5609
        %5802 = vst.msk [vmem:[%s274 + $0x358] sm:$0xff] %vm1017, %v5610
        %5803 = vst.msk [vmem:[%s274 + $0x360] sm:$0xff] %vm1017, %v5611
        %5804 = vst.msk [vmem:[%s274 + $0x368] sm:$0xff] %vm1017, %v5612
        %5805 = vst.msk [vmem:[%s274 + $0x370] sm:$0xff] %vm1017, %v5613
        %5806 = vst.msk [vmem:[%s274 + $0x378] sm:$0xff] %vm1017, %v5614
        %5807 = vst.msk [vmem:[%s274 + $0x380] sm:$0xff] %vm1017, %v5615
        %5808 = vst.msk [vmem:[%s274 + $0x388] sm:$0xff] %vm1017, %v5616
        %5809 = vst.msk [vmem:[%s274 + $0x390] sm:$0xff] %vm1017, %v5617
        %5810 = vst.msk [vmem:[%s274 + $0x398] sm:$0xff] %vm1017, %v5618
        %5811 = vst.msk [vmem:[%s274 + $0x3a0] sm:$0xff] %vm1017, %v5619
        %5812 = vst.msk [vmem:[%s274 + $0x3a8] sm:$0xff] %vm1017, %v5620
        %5813 = vst.msk [vmem:[%s274 + $0x3b0] sm:$0xff] %vm1017, %v5621
        %5814 = vst.msk [vmem:[%s274 + $0x3b8] sm:$0xff] %vm1017, %v5622
        %5815 = vst.msk [vmem:[%s274 + $0x3c0] sm:$0xff] %vm1017, %v5623
        %5816 = vst.msk [vmem:[%s274 + $0x3c8] sm:$0xff] %vm1017, %v5624
        %5817 = vst.msk [vmem:[%s274 + $0x3d0] sm:$0xff] %vm1017, %v5625
        %5818 = vst.msk [vmem:[%s274 + $0x3d8] sm:$0xff] %vm1017, %v5626
        %5819 = vst.msk [vmem:[%s274 + $0x3e0] sm:$0xff] %vm1017, %v5627
        %5820 = vst.msk [vmem:[%s274 + $0x3e8] sm:$0xff] %vm1017, %v5628
        %5821 = vst.msk [vmem:[%s274 + $0x3f0] sm:$0xff] %vm1017, %v5629
        %5822 = vst.msk [vmem:[%s274 + $0x3f8] sm:$0xff] %vm1017, %v5630
        %5823 = vst.msk [vmem:[%s274 + $0x400] sm:$0xff] %vm1017, %v5631
        %5824 = vst.msk [vmem:[%s274 + $0x408] sm:$0xff] %vm1017, %v5632
        %5825 = vst.msk [vmem:[%s274 + $0x410] sm:$0xff] %vm1017, %v5633
        %5826 = vst.msk [vmem:[%s274 + $0x418] sm:$0xff] %vm1017, %v5634
        %5827 = vst.msk [vmem:[%s274 + $0x420] sm:$0xff] %vm1017, %v5635
        %5828 = vst.msk [vmem:[%s274 + $0x428] sm:$0xff] %vm1017, %v5636
        %5829 = vst.msk [vmem:[%s274 + $0x430] sm:$0xff] %vm1017, %v5637
        %5830 = vst.msk [vmem:[%s274 + $0x438] sm:$0xff] %vm1017, %v5638
        %5831 = vst.msk [vmem:[%s274 + $0x440] sm:$0xff] %vm1017, %v5639
        %5832 = vst.msk [vmem:[%s274 + $0x448] sm:$0xff] %vm1017, %v5640
        %5833 = vst.msk [vmem:[%s274 + $0x450] sm:$0xff] %vm1017, %v5641
        %5834 = vst.msk [vmem:[%s274 + $0x458] sm:$0xff] %vm1017, %v5642
        %5835 = vst.msk [vmem:[%s274 + $0x460] sm:$0xff] %vm1017, %v5643
        %5836 = vst.msk [vmem:[%s274 + $0x468] sm:$0xff] %vm1017, %v5644
        %5837 = vst.msk [vmem:[%s274 + $0x470] sm:$0xff] %vm1017, %v5645
        %5838 = vst.msk [vmem:[%s274 + $0x478] sm:$0xff] %vm1017, %v5646
        %5839 = vst.msk [vmem:[%s274 + $0x480] sm:$0xff] %vm1017, %v5647
        %5840 = vst.msk [vmem:[%s274 + $0x488] sm:$0xff] %vm1017, %v5648
        %5841 = vst.msk [vmem:[%s274 + $0x490] sm:$0xff] %vm1017, %v5649
        %5842 = vst.msk [vmem:[%s274 + $0x498] sm:$0xff] %vm1017, %v5650
        %5843 = vst.msk [vmem:[%s274 + $0x4a0] sm:$0xff] %vm1017, %v5651
        %5844 = vst.msk [vmem:[%s274 + $0x4a8] sm:$0xff] %vm1017, %v5652
        %5845 = vst.msk [vmem:[%s274 + $0x4b0] sm:$0xff] %vm1017, %v5653
        %5846 = vst.msk [vmem:[%s274 + $0x4b8] sm:$0xff] %vm1017, %v5654
        %5847 = vst.msk [vmem:[%s274 + $0x4c0] sm:$0xff] %vm1017, %v5655
        %5848 = vst.msk [vmem:[%s274 + $0x4c8] sm:$0xff] %vm1017, %v5656
        %5849 = vst.msk [vmem:[%s274 + $0x4d0] sm:$0xff] %vm1017, %v5657
        %5850 = vst.msk [vmem:[%s274 + $0x4d8] sm:$0xff] %vm1017, %v5658
        %5851 = vst.msk [vmem:[%s274 + $0x4e0] sm:$0xff] %vm1017, %v5659
        %5852 = vst.msk [vmem:[%s274 + $0x4e8] sm:$0xff] %vm1017, %v5660
        %5853 = vst.msk [vmem:[%s274 + $0x4f0] sm:$0xff] %vm1017, %v5661
        %5854 = vst.msk [vmem:[%s274 + $0x4f8] sm:$0xff] %vm1017, %v5662
        %5855 = vst.msk [vmem:[%s274 + $0x500] sm:$0xff] %vm1017, %v5663
        %5856 = vst.msk [vmem:[%s274 + $0x508] sm:$0xff] %vm1017, %v5664
        %5857 = vst.msk [vmem:[%s274 + $0x510] sm:$0xff] %vm1017, %v5665
        %5858 = vst.msk [vmem:[%s274 + $0x518] sm:$0xff] %vm1017, %v5666
        %5859 = vst.msk [vmem:[%s274 + $0x520] sm:$0xff] %vm1017, %v5667
        %5860 = vst.msk [vmem:[%s274 + $0x528] sm:$0xff] %vm1017, %v5668
        %5861 = vst.msk [vmem:[%s274 + $0x530] sm:$0xff] %vm1017, %v5669
        %5862 = vst.msk [vmem:[%s274 + $0x538] sm:$0xff] %vm1017, %v5670
        %5863 = vst.msk [vmem:[%s274 + $0x540] sm:$0xff] %vm1017, %v5671
        %5864 = vst.msk [vmem:[%s274 + $0x548] sm:$0xff] %vm1017, %v5672
        %5865 = vst.msk [vmem:[%s274 + $0x550] sm:$0xff] %vm1017, %v5673
        %5866 = vst.msk [vmem:[%s274 + $0x558] sm:$0xff] %vm1017, %v5674
        %5867 = vst.msk [vmem:[%s274 + $0x560] sm:$0xff] %vm1017, %v5675
        %5868 = vst.msk [vmem:[%s274 + $0x568] sm:$0xff] %vm1017, %v5676
        %5869 = vst.msk [vmem:[%s274 + $0x570] sm:$0xff] %vm1017, %v5677
        %5870 = vst.msk [vmem:[%s274 + $0x578] sm:$0xff] %vm1017, %v5678
        %5871 = vst.msk [vmem:[%s274 + $0x580] sm:$0xff] %vm1017, %v5679
        %5872 = vst.msk [vmem:[%s274 + $0x588] sm:$0xff] %vm1017, %v5680
        %5873 = vst.msk [vmem:[%s274 + $0x590] sm:$0xff] %vm1017, %v5681
        %5874 = vst.msk [vmem:[%s274 + $0x598] sm:$0xff] %vm1017, %v5682
        %5875 = vst.msk [vmem:[%s274 + $0x5a0] sm:$0xff] %vm1017, %v5683
        %5876 = vst.msk [vmem:[%s274 + $0x5a8] sm:$0xff] %vm1017, %v5684
        %5877 = vst.msk [vmem:[%s274 + $0x5b0] sm:$0xff] %vm1017, %v5685
        %5878 = vst.msk [vmem:[%s274 + $0x5b8] sm:$0xff] %vm1017, %v5686
        %5879 = vst.msk [vmem:[%s274 + $0x5c0] sm:$0xff] %vm1017, %v5687
        %5880 = vst.msk [vmem:[%s274 + $0x5c8] sm:$0xff] %vm1017, %v5688
        %5881 = vst.msk [vmem:[%s274 + $0x5d0] sm:$0xff] %vm1017, %v5689
        %5882 = vst.msk [vmem:[%s274 + $0x5d8] sm:$0xff] %vm1017, %v5690
        %5883 = vst.msk [vmem:[%s274 + $0x5e0] sm:$0xff] %vm1017, %v5691
        %5884 = vst.msk [vmem:[%s274 + $0x5e8] sm:$0xff] %vm1017, %v5692
        %5885 = vst.msk [vmem:[%s274 + $0x5f0] sm:$0xff] %vm1017, %v5693
        %5886 = vst.msk [vmem:[%s274 + $0x5f8] sm:$0xff] %vm1017, %v5694
      $region48: #{sppm_forward.2} parent=39 // pred_fallthru
        _
      %p5887 = scmp.lt.s32.totalorder %s20, 1
      %s5888 = scalar_select %p5887, %s20, 1
      %s5889 = smul.addr %s5888, 192
      %s5890 = smul.addr %s5889, 8
      %s5891 = scalar_lea.vmem %s5, %s5890
      // Predicated region
      $region49: #{sppm_forward.2} parent=39 // pred_check
        %p5892 = pneg %p163
      $region50: #{sppm_forward.2} parent=39 // pred_check_branch
        %5894 = sbr.rel (%p5892) target = $region52
      $region51: #{sppm_forward.2} parent=39 // pred_region
        _
      $region52: #{sppm_forward.2} parent=39 // pred_fallthru
        _
    $region40: #{sppm_forward.2} parent=5 // pred_fallthru
      _
    %p5895 = scmp.le.s32.totalorder 2, %s11
    // Predicated region
    $region53: #{sppm_forward.2} parent=5 // pred_check
      %p5896 = pneg %p5895
    $region54: #{sppm_forward.2} parent=5 // pred_check_branch
      %5898 = sbr.rel (%p5896) target = $region56
    $region55: #{sppm_forward.2} parent=5 // pred_region
      %s5899 = ssub.s32 %s11, 2
      // Predicated region
      $region57: #{sppm_forward.2} parent=55 // pred_check
        %p5900 = pneg %p169
      $region58: #{sppm_forward.2} parent=55 // pred_check_branch
        %5902 = sbr.rel (%p5900) target = $region60
      $region59: #{sppm_forward.2} parent=55 // pred_region
        %p5903 = scmp.lt.s32.totalorder %s22, 1
        %s5904 = scalar_select %p5903, %s22, 1
        %s5905 = smul.addr %s5904, 192
        %s5906 = smul.addr %s5905, 8
        %s5907 = scalar_lea.vmem %s5, %s5906
      $region60: #{sppm_forward.2} parent=55 // pred_fallthru
        _
    $region56: #{sppm_forward.2} parent=5 // pred_fallthru
      _
  $region6: #{sppm_forward.2} parent=0 // loop_footer
    %s15 = sadd.s32 1, %s11
  $region7: #{sppm_forward.2} parent=0 // loop_footer_branch
    %10 = sbr.rel target = $region3
  $region8: #{sppm_forward.2} parent=0 // loop_exit
    _

</llo_original>
